<compile_context>
chip_gen: v6e
topology: v6e:2x2x1
jax: 0.10.0
libtpu: 0.0.40
codegen_flags: <defaults>
</compile_context>

<pallas_src>
import functools

import jax
import jax.numpy as jnp
from jax.experimental import pallas as pl
from jax.experimental.pallas import tpu as pltpu

# ----------------------------- model dimensions -----------------------------
C_IN = 3            # RGB input
C_STEM = 32         # EfficientNet-b2 stem channels
FEATURES = 1408     # EfficientNet-b2 _fc.in_features
H1, H2, H3, OUT = 1024, 512, 512, 264
OUT_PAD = 384       # 3 * 128 lane-dense head output; sliced back to OUT in the wrapper
KH = KW = 3
STRIDE = 2
PAD = 1
BN_EPS = 1e-3
K_RAW = KH * KW * C_IN   # 27
K_PAD = 32               # pad contraction dim to 32
MAX_TILE_M = 2048        # max stem row tile (review suggestion)

_VMEM = pl.BlockSpec(memory_space=pltpu.MemorySpace.VMEM)


def _round_up(x, m):
    return (x + m - 1) // m * m


# ------------------------------ Pallas kernels ------------------------------
def _stem_gap_kernel(patches_ref, w_ref, scale_ref, shift_ref, pooled_ref,
                     *, tile_m, m_valid):
    """im2col conv tile as MXU matmul + fused BN + SiLU + global-average-pool.

    Grid = (batch, m_tiles).  The (1, 1, C_STEM) pooled output block stays resident
    across the m axis (index map ignores m); it is zeroed on the first m tile and
    divided by the true row count on the last one.
    """
    m = pl.program_id(1)

    @pl.when(m == 0)
    def _init():
        pooled_ref[...] = jnp.zeros_like(pooled_ref)

    # (tile_m, K_PAD) bf16 @ (K_PAD, C_STEM) bf16 -> f32 accumulation on the MXU.
    y = jnp.dot(patches_ref[0], w_ref[...], preferred_element_type=jnp.float32)
    y = y * scale_ref[...] + shift_ref[...]          # folded BatchNorm
    y = y * jax.nn.sigmoid(y)                        # SiLU / swish

    # Mask rows that are only M-padding (beyond Ho*Wo) so they don't pollute the mean.
    rows = m * tile_m + jax.lax.broadcasted_iota(jnp.int32, y.shape, 0)
    y = jnp.where(rows < m_valid, y, 0.0)

    pooled_ref[...] = pooled_ref[...] + jnp.sum(y, axis=0, keepdims=True)[None]

    @pl.when(m == pl.num_programs(1) - 1)
    def _finalize():
        pooled_ref[...] = pooled_ref[...] * (1.0 / m_valid)


def _head_kernel(pooled_ref, wh_ref, hsc_ref, hsh_ref,
                 w1_ref, b1_ref, w2_ref, b2_ref,
                 w3_ref, b3_ref, w4_ref, b4_ref, out_ref):
    """1x1 head projection (BN + SiLU) -> myfc MLP (ReLU chain).

    bf16 weights / activations into the MXU, f32 accumulation throughout.
    """
    h = jnp.dot(pooled_ref[...].astype(jnp.bfloat16), wh_ref[...],
                preferred_element_type=jnp.float32)
    h = h * hsc_ref[...] + hsh_ref[...]
    h = h * jax.nn.sigmoid(h)                        # SiLU
    h = jnp.maximum(jnp.dot(h.astype(jnp.bfloat16), w1_ref[...],
                            preferred_element_type=jnp.float32) + b1_ref[...], 0.0)
    h = jnp.maximum(jnp.dot(h.astype(jnp.bfloat16), w2_ref[...],
                            preferred_element_type=jnp.float32) + b2_ref[...], 0.0)
    h = jnp.maximum(jnp.dot(h.astype(jnp.bfloat16), w3_ref[...],
                            preferred_element_type=jnp.float32) + b3_ref[...], 0.0)
    out_ref[...] = jnp.dot(h.astype(jnp.bfloat16), w4_ref[...],
                           preferred_element_type=jnp.float32) + b4_ref[...]


# ------------------------------- glue helpers --------------------------------
def _extract_patches(x_nchw):
    """NCHW input -> (B, Ho*Wo, KH*KW*C) patch matrix (no 5-D transpose).

    NCHW -> NHWC transpose happens on the 1x raw input; the 9 stride-2 taps are
    concatenated directly in final (i, j, c) order, matching the weight layout.
    """
    B, C, H, W = x_nchw.shape
    x = jnp.transpose(x_nchw, (0, 2, 3, 1))                       # NHWC
    x = jnp.pad(x, ((0, 0), (PAD, PAD), (PAD, PAD), (0, 0)))
    Ho = (H + 2 * PAD - KH) // STRIDE + 1
    Wo = (W + 2 * PAD - KW) // STRIDE + 1
    taps = []
    for i in range(KH):
        for j in range(KW):
            taps.append(x[:, i:i + STRIDE * Ho:STRIDE, j:j + STRIDE * Wo:STRIDE, :])
    p = jnp.concatenate(taps, axis=-1)                            # (B, Ho, Wo, 9*C)
    return p.reshape(B, Ho * Wo, K_RAW), Ho, Wo


def init_params(key):
    ks = jax.random.split(key, 6)
    scale = 0.02
    p = {}
    # stem conv (PyTorch layout (Cout, Cin, KH, KW)) -> (KH*KW*Cin, Cout), K padded to 32
    w_conv = scale * jax.random.normal(ks[0], (C_STEM, C_IN, KH, KW), jnp.float32)
    w_mat = w_conv.transpose(2, 3, 1, 0).reshape(K_RAW, C_STEM)
    p["w_stem"] = jnp.pad(w_mat, ((0, K_PAD - K_RAW), (0, 0))).astype(jnp.bfloat16)
    # folded BN (gamma=1, beta=0, mean=0, var=1)
    inv_std = 1.0 / jnp.sqrt(1.0 + BN_EPS)
    p["stem_scale"] = jnp.full((1, C_STEM), inv_std, jnp.float32)
    p["stem_shift"] = jnp.zeros((1, C_STEM), jnp.float32)
    # backbone head 1x1 projection to FEATURES, folded BN
    p["w_head"] = (scale * jax.random.normal(ks[1], (C_STEM, FEATURES),
                                             jnp.float32)).astype(jnp.bfloat16)
    p["head_scale"] = jnp.full((1, FEATURES), inv_std, jnp.float32)
    p["head_shift"] = jnp.zeros((1, FEATURES), jnp.float32)
    # myfc MLP (bf16 weights, f32 biases)
    p["w1"] = (scale * jax.random.normal(ks[2], (FEATURES, H1), jnp.float32)).astype(jnp.bfloat16)
    p["b1"] = jnp.zeros((1, H1), jnp.float32)
    p["w2"] = (scale * jax.random.normal(ks[3], (H1, H2), jnp.float32)).astype(jnp.bfloat16)
    p["b2"] = jnp.zeros((1, H2), jnp.float32)
    p["w3"] = (scale * jax.random.normal(ks[4], (H2, H3), jnp.float32)).astype(jnp.bfloat16)
    p["b3"] = jnp.zeros((1, H3), jnp.float32)
    w4 = scale * jax.random.normal(ks[5], (H3, OUT), jnp.float32)
    p["w4"] = jnp.pad(w4, ((0, 0), (0, OUT_PAD - OUT))).astype(jnp.bfloat16)
    p["b4"] = jnp.zeros((1, OUT_PAD), jnp.float32)
    return p


# --------------------------------- forward -----------------------------------
def enetv2_forward(params, x_nchw):
    B = x_nchw.shape[0]
    patches, Ho, Wo = _extract_patches(x_nchw)
    m_valid = Ho * Wo
    tile_m = min(MAX_TILE_M, _round_up(m_valid, 16))
    m_pad = _round_up(m_valid, tile_m)
    n_m = m_pad // tile_m
    patches = jnp.pad(patches, ((0, 0), (0, m_pad - m_valid), (0, K_PAD - K_RAW)))
    patches = patches.astype(jnp.bfloat16)

    # Pallas kernel 1: stem conv (im2col matmul) + BN + SiLU + fused global-average-pool.
    stem_kernel = functools.partial(_stem_gap_kernel, tile_m=tile_m, m_valid=m_valid)
    pooled = pl.pallas_call(
        stem_kernel,
        out_shape=jax.ShapeDtypeStruct((B, 1, C_STEM), jnp.float32),
        grid=(B, n_m),
        in_specs=[
            pl.BlockSpec((1, tile_m, K_PAD), lambda b, m: (b, m, 0)),
            pl.BlockSpec((K_PAD, C_STEM), lambda b, m: (0, 0)),
            pl.BlockSpec((1, C_STEM), lambda b, m: (0, 0)),
            pl.BlockSpec((1, C_STEM), lambda b, m: (0, 0)),
        ],
        out_specs=pl.BlockSpec((1, 1, C_STEM), lambda b, m: (b, 0, 0)),
        compiler_params=pltpu.CompilerParams(
            dimension_semantics=("parallel", "arbitrary"),
            vmem_limit_bytes=32 * 1024 * 1024,
        ),
    )(patches, params["w_stem"], params["stem_scale"], params["stem_shift"])
    pooled = pooled.reshape(B, C_STEM)

    # Pallas kernel 2: head projection (BN + SiLU) -> myfc MLP (weight-resident, tiny M).
    out_full = pl.pallas_call(
        _head_kernel,
        out_shape=jax.ShapeDtypeStruct((B, OUT_PAD), jnp.float32),
        in_specs=[_VMEM] * 12,
        out_specs=_VMEM,
        compiler_params=pltpu.CompilerParams(vmem_limit_bytes=32 * 1024 * 1024),
    )(pooled,
      params["w_head"], params["head_scale"], params["head_shift"],
      params["w1"], params["b1"], params["w2"], params["b2"],
      params["w3"], params["b3"], params["w4"], params["b4"])

    return out_full[:, :OUT]


if __name__ == "__main__":
    key = jax.random.PRNGKey(0)
    kx, kp = jax.random.split(key)
    x = jax.random.normal(kx, (2, C_IN, 16, 16), jnp.float32)   # NCHW input
    params = init_params(kp)
    fwd = jax.jit(enetv2_forward)
    out = fwd(params, x)
    out = jax.block_until_ready(out)
    assert out.shape == (2, OUT) and out.dtype == jnp.float32
    print("KERNEL_OK")
</pallas_src>

<mosaic_0001>
module attributes {stable_mosaic.version = 11 : i64} {
  func.func @_stem_gap_kernel(%arg0: i32, %arg1: i32, %arg2: memref<1x64x32xbf16, #tpu.memory_space<vmem>>, %arg3: memref<32x32xbf16, #tpu.memory_space<vmem>>, %arg4: memref<1x32xf32, #tpu.memory_space<vmem>>, %arg5: memref<1x32xf32, #tpu.memory_space<vmem>>, %arg6: memref<1x1x32xf32, #tpu.memory_space<vmem>>) attributes {dimension_semantics = [#tpu.dimension_semantics<parallel>, #tpu.dimension_semantics<arbitrary>], iteration_bounds = array<i64: 2, 1>, scalar_prefetch = 0 : i64, scratch_operands = 0 : i64, tpu.core_type = #tpu.core_type<tc>, window_params = [{transform_indices = @transform_0, window_bounds = array<i64: 1, 64, 32>}, {pipeline_mode = #tpu.pipeline_mode<synchronous>, transform_indices = @transform_1, window_bounds = array<i64: 32, 32>}, {pipeline_mode = #tpu.pipeline_mode<synchronous>, transform_indices = @transform_2, window_bounds = array<i64: 1, 32>}, {pipeline_mode = #tpu.pipeline_mode<synchronous>, transform_indices = @transform_3, window_bounds = array<i64: 1, 32>}, {transform_indices = @transform_4, window_bounds = array<i64: 1, 1, 32>}]} {
    %c0_i32 = arith.constant 0 : i32
    %0 = arith.cmpi eq, %arg1, %c0_i32 : i32
    %1 = arith.extui %0 : i1 to i32
    %c0_i32_0 = arith.constant 0 : i32
    %2 = arith.cmpi ne, %1, %c0_i32_0 : i32
    scf.if %2 {
      %cst_21 = arith.constant 0.000000e+00 : f32
      %36 = vector.broadcast %cst_21 : f32 to vector<1x1x32xf32>
      %c0_22 = arith.constant 0 : index
      %c0_23 = arith.constant 0 : index
      %c0_24 = arith.constant 0 : index
      %37 = vector.load %arg6[%c0_22, %c0_23, %c0_24] : memref<1x1x32xf32, #tpu.memory_space<vmem>>, vector<1x1x32xf32>
      tpu.vector_store %arg6[%c0_22, %c0_23, %c0_24], %36 {strides = array<i32>} : memref<1x1x32xf32, #tpu.memory_space<vmem>>, vector<1x1x32xf32>,
    } else {
    }
    %c0 = arith.constant 0 : index
    %c0_1 = arith.constant 0 : index
    %c0_2 = arith.constant 0 : index
    %3 = vector.load %arg2[%c0, %c0_1, %c0_2] : memref<1x64x32xbf16, #tpu.memory_space<vmem>>, vector<1x64x32xbf16>
    %4 = vector.shape_cast %3 : vector<1x64x32xbf16> to vector<64x32xbf16>
    %c0_3 = arith.constant 0 : index
    %c0_4 = arith.constant 0 : index
    %5 = vector.load %arg3[%c0_3, %c0_4] : memref<32x32xbf16, #tpu.memory_space<vmem>>, vector<32x32xbf16>
    %cst = arith.constant dense<0.000000e+00> : vector<64x32xf32>
    %6 = tpu.matmul %4, %5, %cst {dimension_numbers = #tpu.dot_dimension_numbers<[1], [0], [0], [1], [0, 0, 1, 1], [], []>} : vector<64x32xbf16>, vector<32x32xbf16>, vector<64x32xf32> -> vector<64x32xf32>
    %c0_5 = arith.constant 0 : index
    %c0_6 = arith.constant 0 : index
    %7 = vector.load %arg4[%c0_5, %c0_6] : memref<1x32xf32, #tpu.memory_space<vmem>>, vector<1x32xf32>
    %8 = vector.broadcast %7 : vector<1x32xf32> to vector<64x32xf32>
    %9 = arith.mulf %6, %8 : vector<64x32xf32>
    %c0_7 = arith.constant 0 : index
    %c0_8 = arith.constant 0 : index
    %10 = vector.load %arg5[%c0_7, %c0_8] : memref<1x32xf32, #tpu.memory_space<vmem>>, vector<1x32xf32>
    %11 = vector.broadcast %10 : vector<1x32xf32> to vector<64x32xf32>
    %12 = arith.addf %9, %11 : vector<64x32xf32>
    %13 = arith.negf %12 : vector<64x32xf32>
    %14 = math.exp %13 : vector<64x32xf32>
    %cst_9 = arith.constant 1.000000e+00 : f32
    %15 = vector.broadcast %cst_9 : f32 to vector<64x32xf32>
    %16 = arith.addf %15, %14 : vector<64x32xf32>
    %17 = arith.divf %15, %16 : vector<64x32xf32>
    %18 = arith.mulf %12, %17 : vector<64x32xf32>
    %c64_i32 = arith.constant 64 : i32
    %19 = arith.muli %arg1, %c64_i32 : i32
    %20 = tpu.iota {dimensions = array<i32: 0>} : vector<64x32xi32>
    %21 = vector.broadcast %19 : i32 to vector<64x32xi32>
    %22 = arith.addi %21, %20 : vector<64x32xi32>
    %c64_i32_10 = arith.constant 64 : i32
    %23 = vector.broadcast %c64_i32_10 : i32 to vector<64x32xi32>
    %24 = arith.cmpi slt, %22, %23 : vector<64x32xi32>
    %cst_11 = arith.constant 0.000000e+00 : f32
    %25 = vector.broadcast %cst_11 : f32 to vector<64x32xf32>
    %26 = arith.select %24, %18, %25 : vector<64x32xi1>, vector<64x32xf32>
    %c0_12 = arith.constant 0 : index
    %c0_13 = arith.constant 0 : index
    %c0_14 = arith.constant 0 : index
    %27 = vector.load %arg6[%c0_12, %c0_13, %c0_14] : memref<1x1x32xf32, #tpu.memory_space<vmem>>, vector<1x1x32xf32>
    %cst_15 = arith.constant dense<0.000000e+00> : vector<32xf32>
    %28 = vector.multi_reduction <add>, %26, %cst_15 [0] : vector<64x32xf32> to vector<32xf32>
    %29 = vector.shape_cast %28 : vector<32xf32> to vector<1x32xf32>
    %30 = vector.shape_cast %29 : vector<1x32xf32> to vector<1x1x32xf32>
    %31 = arith.addf %27, %30 : vector<1x1x32xf32>
    %c0_16 = arith.constant 0 : index
    %c0_17 = arith.constant 0 : index
    %c0_18 = arith.constant 0 : index
    %32 = vector.load %arg6[%c0_16, %c0_17, %c0_18] : memref<1x1x32xf32, #tpu.memory_space<vmem>>, vector<1x1x32xf32>
    tpu.vector_store %arg6[%c0_16, %c0_17, %c0_18], %31 {strides = array<i32>} : memref<1x1x32xf32, #tpu.memory_space<vmem>>, vector<1x1x32xf32>,
    %c0_i32_19 = arith.constant 0 : i32
    %33 = arith.cmpi eq, %arg1, %c0_i32_19 : i32
    %34 = arith.extui %33 : i1 to i32
    %c0_i32_20 = arith.constant 0 : i32
    %35 = arith.cmpi ne, %34, %c0_i32_20 : i32
    scf.if %35 {
      %c0_21 = arith.constant 0 : index
      %c0_22 = arith.constant 0 : index
      %c0_23 = arith.constant 0 : index
      %36 = vector.load %arg6[%c0_21, %c0_22, %c0_23] : memref<1x1x32xf32, #tpu.memory_space<vmem>>, vector<1x1x32xf32>
      %cst_24 = arith.constant 1.562500e-02 : f32
      %37 = vector.broadcast %cst_24 : f32 to vector<1x1x32xf32>
      %38 = arith.mulf %36, %37 : vector<1x1x32xf32>
      %c0_25 = arith.constant 0 : index
      %c0_26 = arith.constant 0 : index
      %c0_27 = arith.constant 0 : index
      %39 = vector.load %arg6[%c0_25, %c0_26, %c0_27] : memref<1x1x32xf32, #tpu.memory_space<vmem>>, vector<1x1x32xf32>
      tpu.vector_store %arg6[%c0_25, %c0_26, %c0_27], %38 {strides = array<i32>} : memref<1x1x32xf32, #tpu.memory_space<vmem>>, vector<1x1x32xf32>,
    } else {
    }
    return
  }
  func.func @transform_0(%arg0: i32, %arg1: i32) -> (i32, i32, i32) {
    %c0_i32 = arith.constant 0 : i32
    %c0_i32_0 = arith.constant 0 : i32
    return %arg0, %arg1, %c0_i32 : i32, i32, i32
  }
  func.func @transform_1(%arg0: i32, %arg1: i32) -> (i32, i32) {
    %c0_i32 = arith.constant 0 : i32
    %c0_i32_0 = arith.constant 0 : i32
    %c0_i32_1 = arith.constant 0 : i32
    return %c0_i32, %c0_i32_0 : i32, i32
  }
  func.func @transform_2(%arg0: i32, %arg1: i32) -> (i32, i32) {
    %c0_i32 = arith.constant 0 : i32
    %c0_i32_0 = arith.constant 0 : i32
    %c0_i32_1 = arith.constant 0 : i32
    return %c0_i32, %c0_i32_0 : i32, i32
  }
  func.func @transform_3(%arg0: i32, %arg1: i32) -> (i32, i32) {
    %c0_i32 = arith.constant 0 : i32
    %c0_i32_0 = arith.constant 0 : i32
    %c0_i32_1 = arith.constant 0 : i32
    return %c0_i32, %c0_i32_0 : i32, i32
  }
  func.func @transform_4(%arg0: i32, %arg1: i32) -> (i32, i32, i32) {
    %c0_i32 = arith.constant 0 : i32
    %c0_i32_0 = arith.constant 0 : i32
    %c0_i32_1 = arith.constant 0 : i32
    return %arg0, %c0_i32, %c0_i32_0 : i32, i32, i32
  }
}

module attributes {stable_mosaic.version = 11 : i64} {
  func.func @_head_kernel(%arg0: memref<2x32xf32, #tpu.memory_space<vmem>>, %arg1: memref<32x1408xbf16, #tpu.memory_space<vmem>>, %arg2: memref<1x1408xf32, #tpu.memory_space<vmem>>, %arg3: memref<1x1408xf32, #tpu.memory_space<vmem>>, %arg4: memref<1408x1024xbf16, #tpu.memory_space<vmem>>, %arg5: memref<1x1024xf32, #tpu.memory_space<vmem>>, %arg6: memref<1024x512xbf16, #tpu.memory_space<vmem>>, %arg7: memref<1x512xf32, #tpu.memory_space<vmem>>, %arg8: memref<512x512xbf16, #tpu.memory_space<vmem>>, %arg9: memref<1x512xf32, #tpu.memory_space<vmem>>, %arg10: memref<512x384xbf16, #tpu.memory_space<vmem>>, %arg11: memref<1x384xf32, #tpu.memory_space<vmem>>, %arg12: memref<2x384xf32, #tpu.memory_space<vmem>>) attributes {dimension_semantics = [], scalar_prefetch = 0 : i64, scratch_operands = 0 : i64, tpu.core_type = #tpu.core_type<tc>} {
    %c0 = arith.constant 0 : index
    %c0_0 = arith.constant 0 : index
    %0 = vector.load %arg0[%c0, %c0_0] : memref<2x32xf32, #tpu.memory_space<vmem>>, vector<2x32xf32>
    %1 = arith.truncf %0 : vector<2x32xf32> to vector<2x32xbf16>
    %c0_1 = arith.constant 0 : index
    %c0_2 = arith.constant 0 : index
    %2 = vector.load %arg1[%c0_1, %c0_2] : memref<32x1408xbf16, #tpu.memory_space<vmem>>, vector<32x1408xbf16>
    %cst = arith.constant dense<0.000000e+00> : vector<2x1408xf32>
    %3 = tpu.matmul %1, %2, %cst {dimension_numbers = #tpu.dot_dimension_numbers<[1], [0], [0], [1], [0, 0, 1, 1], [], []>} : vector<2x32xbf16>, vector<32x1408xbf16>, vector<2x1408xf32> -> vector<2x1408xf32>
    %c0_3 = arith.constant 0 : index
    %c0_4 = arith.constant 0 : index
    %4 = vector.load %arg2[%c0_3, %c0_4] : memref<1x1408xf32, #tpu.memory_space<vmem>>, vector<1x1408xf32>
    %5 = vector.broadcast %4 : vector<1x1408xf32> to vector<2x1408xf32>
    %6 = arith.mulf %3, %5 : vector<2x1408xf32>
    %c0_5 = arith.constant 0 : index
    %c0_6 = arith.constant 0 : index
    %7 = vector.load %arg3[%c0_5, %c0_6] : memref<1x1408xf32, #tpu.memory_space<vmem>>, vector<1x1408xf32>
    %8 = vector.broadcast %7 : vector<1x1408xf32> to vector<2x1408xf32>
    %9 = arith.addf %6, %8 : vector<2x1408xf32>
    %10 = arith.negf %9 : vector<2x1408xf32>
    %11 = math.exp %10 : vector<2x1408xf32>
    %cst_7 = arith.constant 1.000000e+00 : f32
    %12 = vector.broadcast %cst_7 : f32 to vector<2x1408xf32>
    %13 = arith.addf %12, %11 : vector<2x1408xf32>
    %14 = arith.divf %12, %13 : vector<2x1408xf32>
    %15 = arith.mulf %9, %14 : vector<2x1408xf32>
    %16 = arith.truncf %15 : vector<2x1408xf32> to vector<2x1408xbf16>
    %c0_8 = arith.constant 0 : index
    %c0_9 = arith.constant 0 : index
    %17 = vector.load %arg4[%c0_8, %c0_9] : memref<1408x1024xbf16, #tpu.memory_space<vmem>>, vector<1408x1024xbf16>
    %cst_10 = arith.constant dense<0.000000e+00> : vector<2x1024xf32>
    %18 = tpu.matmul %16, %17, %cst_10 {dimension_numbers = #tpu.dot_dimension_numbers<[1], [0], [0], [1], [0, 0, 1, 1], [], []>} : vector<2x1408xbf16>, vector<1408x1024xbf16>, vector<2x1024xf32> -> vector<2x1024xf32>
    %c0_11 = arith.constant 0 : index
    %c0_12 = arith.constant 0 : index
    %19 = vector.load %arg5[%c0_11, %c0_12] : memref<1x1024xf32, #tpu.memory_space<vmem>>, vector<1x1024xf32>
    %20 = vector.broadcast %19 : vector<1x1024xf32> to vector<2x1024xf32>
    %21 = arith.addf %18, %20 : vector<2x1024xf32>
    %cst_13 = arith.constant 0.000000e+00 : f32
    %22 = vector.broadcast %cst_13 : f32 to vector<2x1024xf32>
    %23 = arith.maximumf %21, %22 : vector<2x1024xf32>
    %24 = arith.truncf %23 : vector<2x1024xf32> to vector<2x1024xbf16>
    %c0_14 = arith.constant 0 : index
    %c0_15 = arith.constant 0 : index
    %25 = vector.load %arg6[%c0_14, %c0_15] : memref<1024x512xbf16, #tpu.memory_space<vmem>>, vector<1024x512xbf16>
    %cst_16 = arith.constant dense<0.000000e+00> : vector<2x512xf32>
    %26 = tpu.matmul %24, %25, %cst_16 {dimension_numbers = #tpu.dot_dimension_numbers<[1], [0], [0], [1], [0, 0, 1, 1], [], []>} : vector<2x1024xbf16>, vector<1024x512xbf16>, vector<2x512xf32> -> vector<2x512xf32>
    %c0_17 = arith.constant 0 : index
    %c0_18 = arith.constant 0 : index
    %27 = vector.load %arg7[%c0_17, %c0_18] : memref<1x512xf32, #tpu.memory_space<vmem>>, vector<1x512xf32>
    %28 = vector.broadcast %27 : vector<1x512xf32> to vector<2x512xf32>
    %29 = arith.addf %26, %28 : vector<2x512xf32>
    %cst_19 = arith.constant 0.000000e+00 : f32
    %30 = vector.broadcast %cst_19 : f32 to vector<2x512xf32>
    %31 = arith.maximumf %29, %30 : vector<2x512xf32>
    %32 = arith.truncf %31 : vector<2x512xf32> to vector<2x512xbf16>
    %c0_20 = arith.constant 0 : index
    %c0_21 = arith.constant 0 : index
    %33 = vector.load %arg8[%c0_20, %c0_21] : memref<512x512xbf16, #tpu.memory_space<vmem>>, vector<512x512xbf16>
    %cst_22 = arith.constant dense<0.000000e+00> : vector<2x512xf32>
    %34 = tpu.matmul %32, %33, %cst_22 {dimension_numbers = #tpu.dot_dimension_numbers<[1], [0], [0], [1], [0, 0, 1, 1], [], []>} : vector<2x512xbf16>, vector<512x512xbf16>, vector<2x512xf32> -> vector<2x512xf32>
    %c0_23 = arith.constant 0 : index
    %c0_24 = arith.constant 0 : index
    %35 = vector.load %arg9[%c0_23, %c0_24] : memref<1x512xf32, #tpu.memory_space<vmem>>, vector<1x512xf32>
    %36 = vector.broadcast %35 : vector<1x512xf32> to vector<2x512xf32>
    %37 = arith.addf %34, %36 : vector<2x512xf32>
    %cst_25 = arith.constant 0.000000e+00 : f32
    %38 = vector.broadcast %cst_25 : f32 to vector<2x512xf32>
    %39 = arith.maximumf %37, %38 : vector<2x512xf32>
    %40 = arith.truncf %39 : vector<2x512xf32> to vector<2x512xbf16>
    %c0_26 = arith.constant 0 : index
    %c0_27 = arith.constant 0 : index
    %41 = vector.load %arg10[%c0_26, %c0_27] : memref<512x384xbf16, #tpu.memory_space<vmem>>, vector<512x384xbf16>
    %cst_28 = arith.constant dense<0.000000e+00> : vector<2x384xf32>
    %42 = tpu.matmul %40, %41, %cst_28 {dimension_numbers = #tpu.dot_dimension_numbers<[1], [0], [0], [1], [0, 0, 1, 1], [], []>} : vector<2x512xbf16>, vector<512x384xbf16>, vector<2x384xf32> -> vector<2x384xf32>
    %c0_29 = arith.constant 0 : index
    %c0_30 = arith.constant 0 : index
    %43 = vector.load %arg11[%c0_29, %c0_30] : memref<1x384xf32, #tpu.memory_space<vmem>>, vector<1x384xf32>
    %44 = vector.broadcast %43 : vector<1x384xf32> to vector<2x384xf32>
    %45 = arith.addf %42, %44 : vector<2x384xf32>
    %c0_31 = arith.constant 0 : index
    %c0_32 = arith.constant 0 : index
    %46 = vector.load %arg12[%c0_31, %c0_32] : memref<2x384xf32, #tpu.memory_space<vmem>>, vector<2x384xf32>
    tpu.vector_store %arg12[%c0_31, %c0_32], %45 {strides = array<i32>} : memref<2x384xf32, #tpu.memory_space<vmem>>, vector<2x384xf32>,
    return
  }
}

</mosaic_0001>

<llo_original>
// kernel: enetv2_forward.2
$region0: #{enetv2_forward.2}
  #allocation0 [shape = 'u32[]', space=smem, size = 0x4, offset = 0x4, fixed_abs, tag = 'smem constant byte address 0x4 - core index']
  #allocation1 [shape = 'u32[144,128]{1,0:T(1,128)}', space=vmem, size = 0x12000, scoped, tag = 'internal scratch']
  %s0 = inlined_call_operand.vmem [shape: bf16[2,64,32], index: 0, kind: input, shape index: {}]
  %s1 = inlined_call_operand.hbm [shape: bf16[32,32], index: 1, kind: input, shape index: {}]
  %s2 = inlined_call_operand.hbm [shape: f32[1,32], index: 2, kind: input, shape index: {}]
  %s3 = inlined_call_operand.hbm [shape: f32[1,32], index: 3, kind: input, shape index: {}]
  %s4 = inlined_call_operand.vmem [shape: f32[2,1,32], index: 4, kind: output, shape index: {}]
  %s5 = sld [smem:[#allocation0]]
  $region69: #{enetv2_forward.2} parent=0
    _
  %s7 = ssub.s32 1, %s5
  %s8 = scalar_select 0, %s7, %s5
  $region1: #{enetv2_forward.2} parent=0
    #allocation2 [shape = 'u8[8192]{0}', space=vmem, size = 0x2000, scoped, tag = 'input window, operand 1, single buffered']
    #allocation3 [shape = 's32[2]{0}', space=sflag, size = 0x8, scoped, tag = 'scoped memory for enetv2_forward.2']
    #allocation4 [shape = 'u8[512]{0}', space=vmem, size = 0x400, scoped, tag = 'input window, operand 2, single buffered']
    #allocation5 [shape = 's32[1]{0}', space=sflag, size = 0x4, scoped, tag = 'scoped memory for enetv2_forward.2']
    #allocation6 [shape = 'u8[512]{0}', space=vmem, size = 0x400, scoped, tag = 'input window, operand 3, single buffered']
    %9 = vsyncpa [#allocation3], 0
    %10 = vsyncpa [#allocation5], 0
    loop: start=0, step=1, limit=4
    $region2: #{enetv2_forward.2} parent=1 // loop_pre_header
      _
    $region3: #{enetv2_forward.2} parent=1 // loop_header
      %s12 = sphi 0, %s16
      %p13 = scmp.ge.s32.totalorder %s12, 4
      %s19 = sphi 0, %s31
      %s20 = sphi 0, %s27
      %s21 = sphi 0, %s19
      %s22 = sphi 0, %s20
      %s23 = sphi 0, %s21
      %s24 = sphi 0, %s22
      %s36 = sphi 0, %s38
      %s39 = sphi 0, %s36
      %s40 = sphi 0, %s39
      %s56 = sphi 0, %s40
      %s60 = sphi 0, %s60
      %s62 = sphi 0, %s60
      %s63 = sphi 0, %s62
      %s77 = sphi 0, %s63
      %s81 = sphi 0, %s81
      %s83 = sphi 0, %s81
      %s84 = sphi 0, %s83
      %s98 = sphi 0, %s84
      %s102 = sphi 0, %s102
      %s104 = sphi 0, %s102
      %s105 = sphi 0, %s104
      %s119 = sphi 0, %s105
      %s125 = sphi 0, %s127
      %s128 = sphi 0, %s125
      %s129 = sphi 0, %s128
      %s145 = sphi 0, %s129
    $region4: #{enetv2_forward.2} parent=1 // loop_header_branch
      %15 = sbr.rel (%p13) target = $region8
    $region5: #{enetv2_forward.2} parent=1 // loop_body
      %s17 = ssub.s32 %s12, 1
      %s18 = ssub.s32 %s12, 2
      %s25 = sadd.s32 1, %s20
      %p26 = scmp.ge.s32.totalorder %s25, 1
      %s27 = scalar_select %p26, 0, %s25
      %s28 = sadd.s32 1, %s19
      %s29 = scalar_select %p26, %s28, %s19
      %p30 = scmp.ge.s32.totalorder %s29, 2
      %s31 = scalar_select %p30, 0, %s29
      %s32 = ssub.s32 %s19, %s31
      %s33 = ssub.s32 %s20, %s27
      %s34 = sor.u32 %s32, %s33
      %p35 = scmp.eq.s32.totalorder %s34, 0
      %s37 = sadd.s32 %s36, 1
      %s38 = scalar_select %p35, %s36, %s37
      %p41 = pneg %p35
      %p42 = scmp.eq.s32.totalorder %s12, 1
      %p43 = por %p41, %p42
      %p44 = scmp.ne.s32.totalorder %s36, %s39
      %p45 = scmp.eq.s32.totalorder %s12, 0
      %p46 = por %p44, %p45
      %p47 = scmp.ne.s32.totalorder %s36, %s39
      %p48 = scmp.eq.s32.totalorder %s17, 1
      %p49 = por %p47, %p48
      %p50 = scmp.ne.s32.totalorder %s39, %s40
      %p51 = scmp.eq.s32.totalorder %s17, 0
      %p52 = por %p50, %p51
      %p53 = scmp.ne.s32.totalorder %s39, %s40
      %p54 = scmp.eq.s32.totalorder %s18, 1
      %p55 = por %p53, %p54
      %p57 = scmp.ne.s32.totalorder %s40, %s56
      %p58 = scmp.eq.s32.totalorder %s18, 0
      %p59 = por %p57, %p58
      %s61 = sadd.s32 %s60, 1
      %p64 = scmp.eq.s32.totalorder %s12, 1
      %p65 = scmp.ne.s32.totalorder %s60, %s62
      %p66 = scmp.eq.s32.totalorder %s12, 0
      %p67 = por %p65, %p66
      %p68 = scmp.ne.s32.totalorder %s60, %s62
      %p69 = scmp.eq.s32.totalorder %s17, 1
      %p70 = por %p68, %p69
      %p71 = scmp.ne.s32.totalorder %s62, %s63
      %p72 = scmp.eq.s32.totalorder %s17, 0
      %p73 = por %p71, %p72
      %p74 = scmp.ne.s32.totalorder %s62, %s63
      %p75 = scmp.eq.s32.totalorder %s18, 1
      %p76 = por %p74, %p75
      %p78 = scmp.ne.s32.totalorder %s63, %s77
      %p79 = scmp.eq.s32.totalorder %s18, 0
      %p80 = por %p78, %p79
      %s82 = sadd.s32 %s81, 1
      %p85 = scmp.eq.s32.totalorder %s12, 1
      %p86 = scmp.ne.s32.totalorder %s81, %s83
      %p87 = scmp.eq.s32.totalorder %s12, 0
      %p88 = por %p86, %p87
      %p89 = scmp.ne.s32.totalorder %s81, %s83
      %p90 = scmp.eq.s32.totalorder %s17, 1
      %p91 = por %p89, %p90
      %p92 = scmp.ne.s32.totalorder %s83, %s84
      %p93 = scmp.eq.s32.totalorder %s17, 0
      %p94 = por %p92, %p93
      %p95 = scmp.ne.s32.totalorder %s83, %s84
      %p96 = scmp.eq.s32.totalorder %s18, 1
      %p97 = por %p95, %p96
      %p99 = scmp.ne.s32.totalorder %s84, %s98
      %p100 = scmp.eq.s32.totalorder %s18, 0
      %p101 = por %p99, %p100
      %s103 = sadd.s32 %s102, 1
      %p106 = scmp.eq.s32.totalorder %s12, 1
      %p107 = scmp.ne.s32.totalorder %s102, %s104
      %p108 = scmp.eq.s32.totalorder %s12, 0
      %p109 = por %p107, %p108
      %p110 = scmp.ne.s32.totalorder %s102, %s104
      %p111 = scmp.eq.s32.totalorder %s17, 1
      %p112 = por %p110, %p111
      %p113 = scmp.ne.s32.totalorder %s104, %s105
      %p114 = scmp.eq.s32.totalorder %s17, 0
      %p115 = por %p113, %p114
      %p116 = scmp.ne.s32.totalorder %s104, %s105
      %p117 = scmp.eq.s32.totalorder %s18, 1
      %p118 = por %p116, %p117
      %p120 = scmp.ne.s32.totalorder %s105, %s119
      %p121 = scmp.eq.s32.totalorder %s18, 0
      %p122 = por %p120, %p121
      %s123 = ssub.s32 %s19, %s31
      %p124 = scmp.eq.s32.totalorder %s123, 0
      %s126 = sadd.s32 %s125, 1
      %s127 = scalar_select %p124, %s125, %s126
      %p130 = pneg %p124
      %p131 = scmp.eq.s32.totalorder %s12, 1
      %p132 = por %p130, %p131
      %p133 = scmp.ne.s32.totalorder %s125, %s128
      %p134 = scmp.eq.s32.totalorder %s12, 0
      %p135 = por %p133, %p134
      %p136 = scmp.ne.s32.totalorder %s125, %s128
      %p137 = scmp.eq.s32.totalorder %s17, 1
      %p138 = por %p136, %p137
      %p139 = scmp.ne.s32.totalorder %s128, %s129
      %p140 = scmp.eq.s32.totalorder %s17, 0
      %p141 = por %p139, %p140
      %p142 = scmp.ne.s32.totalorder %s128, %s129
      %p143 = scmp.eq.s32.totalorder %s18, 1
      %p144 = por %p142, %p143
      %p146 = scmp.ne.s32.totalorder %s129, %s145
      %p147 = scmp.eq.s32.totalorder %s18, 0
      %p148 = por %p146, %p147
      %p149 = scmp.le.s32.totalorder 1, %s12
      %p150 = scmp.lt.s32.totalorder %s12, 3
      %p151 = pnand %p149, %p150
      %p152 = pneg %p151
      // Predicated region
      $region9: #{enetv2_forward.2} parent=5 // pred_check
        _
      $region10: #{enetv2_forward.2} parent=5 // pred_check_branch
        %154 = sbr.rel (%p151) target = $region12
      $region11: #{enetv2_forward.2} parent=5 // pred_region
        %s155 = ssub.s32 %s12, 1
        // Predicated region
        $region13: #{enetv2_forward.2} parent=11 // pred_check
          %p156 = pneg %p73
        $region14: #{enetv2_forward.2} parent=11 // pred_check_branch
          %158 = sbr.rel (%p156) target = $region16
        $region15: #{enetv2_forward.2} parent=11 // pred_region
          %s160 = ssub.s32 256, 256
          %161 = vsyncadd [#allocation3], %s160
          %s162 = sshll.u32 [#allocation2], 4
          %s163 = int_to_ptr.vmem [resolvable:$true] %s162
          %168 = dma.hbm_to_vmem [thread:$0]  %s1, 256, %s163, [#allocation3], 64, 64, 4
        $region16: #{enetv2_forward.2} parent=11 // pred_fallthru
          _
        // Predicated region
        $region17: #{enetv2_forward.2} parent=11 // pred_check
          %p169 = pneg %p94
        $region18: #{enetv2_forward.2} parent=11 // pred_check_branch
          %171 = sbr.rel (%p169) target = $region20
        $region19: #{enetv2_forward.2} parent=11 // pred_region
          %s173 = ssub.s32 16, 16
          %174 = vsyncadd [#allocation5], %s173
          %s176 = sshll.u32 [#allocation4], 4
          %s177 = int_to_ptr.vmem [resolvable:$true] %s176
          %179 = dma.hbm_to_vmem [thread:$0]  %s2, 16, %s177, [#allocation5]
        $region20: #{enetv2_forward.2} parent=11 // pred_fallthru
          _
        // Predicated region
        $region21: #{enetv2_forward.2} parent=11 // pred_check
          %p180 = pneg %p115
        $region22: #{enetv2_forward.2} parent=11 // pred_check_branch
          %182 = sbr.rel (%p180) target = $region24
        $region23: #{enetv2_forward.2} parent=11 // pred_region
          %s184 = ssub.s32 16, 16
          %185 = vsyncadd [#allocation5], %s184
          %s187 = sshll.u32 [#allocation6], 4
          %s188 = int_to_ptr.vmem [resolvable:$true] %s187
          %190 = dma.hbm_to_vmem [thread:$0]  %s3, 16, %s188, [#allocation5]
        $region24: #{enetv2_forward.2} parent=11 // pred_fallthru
          _
      $region12: #{enetv2_forward.2} parent=5 // pred_fallthru
        _
      %p191 = scmp.lt.s32.totalorder %s12, 2
      // Predicated region
      $region25: #{enetv2_forward.2} parent=5 // pred_check
        %p192 = pneg %p191
      $region26: #{enetv2_forward.2} parent=5 // pred_check_branch
        %194 = sbr.rel (%p192) target = $region28
      $region27: #{enetv2_forward.2} parent=5 // pred_region
        // Predicated region
        $region29: #{enetv2_forward.2} parent=27 // pred_check
          %p195 = pneg %p46
        $region30: #{enetv2_forward.2} parent=27 // pred_check_branch
          %197 = sbr.rel (%p195) target = $region32
        $region31: #{enetv2_forward.2} parent=27 // pred_region
          %s198 = smul.u32 8, %s20
          %p199 = scmp.lt.s32.totalorder %s19, 1
          %s200 = scalar_select %p199, %s19, 1
          %p201 = scmp.lt.s32.totalorder %s198, 7
          %s202 = scalar_select %p201, %s198, 7
          %s203 = smul.addr %s200, 8
          %s204 = sadd.s32 %s202, %s203
          %s205 = smul.addr %s204, 4
          %s206 = scalar_lea.vmem %s0, %s205
          %s207 = smul.u32 8, %s20
        $region32: #{enetv2_forward.2} parent=27 // pred_fallthru
          _
      $region28: #{enetv2_forward.2} parent=5 // pred_fallthru
        _
      %p208 = scmp.le.s32.totalorder 1, %s12
      %p209 = scmp.lt.s32.totalorder %s12, 3
      %p210 = pnand %p208, %p209
      %p211 = pneg %p210
      // Predicated region
      $region33: #{enetv2_forward.2} parent=5 // pred_check
        _
      $region34: #{enetv2_forward.2} parent=5 // pred_check_branch
        %213 = sbr.rel (%p210) target = $region36
      $region35: #{enetv2_forward.2} parent=5 // pred_region
        %s214 = ssub.s32 %s12, 1
        // Predicated region
        $region37: #{enetv2_forward.2} parent=35 // pred_check
          %p215 = pneg %p73
        $region38: #{enetv2_forward.2} parent=35 // pred_check_branch
          %217 = sbr.rel (%p215) target = $region40
        $region39: #{enetv2_forward.2} parent=35 // pred_region
          %218 = dma.done [#allocation3], 256
        $region40: #{enetv2_forward.2} parent=35 // pred_fallthru
          _
        // Predicated region
        $region41: #{enetv2_forward.2} parent=35 // pred_check
          %p219 = pneg %p94
        $region42: #{enetv2_forward.2} parent=35 // pred_check_branch
          %221 = sbr.rel (%p219) target = $region44
        $region43: #{enetv2_forward.2} parent=35 // pred_region
          %222 = dma.done [#allocation5], 16
        $region44: #{enetv2_forward.2} parent=35 // pred_fallthru
          _
        // Predicated region
        $region45: #{enetv2_forward.2} parent=35 // pred_check
          %p223 = pneg %p115
        $region46: #{enetv2_forward.2} parent=35 // pred_check_branch
          %225 = sbr.rel (%p223) target = $region48
        $region47: #{enetv2_forward.2} parent=35 // pred_region
          %226 = dma.done [#allocation5], 16
        $region48: #{enetv2_forward.2} parent=35 // pred_fallthru
          _
        %s227 = smul.u32 8, %s22
        %p228 = scmp.lt.s32.totalorder %s21, 1
        %s229 = scalar_select %p228, %s21, 1
        %p230 = scmp.lt.s32.totalorder %s227, 7
        %s231 = scalar_select %p230, %s227, 7
        %s232 = smul.addr %s229, 8
        %s233 = sadd.s32 %s231, %s232
        %s234 = smul.addr %s233, 4
        %s235 = scalar_lea.vmem %s0, %s234
        %p236 = pneg %p52
        %p237 = pneg %p49
        %p238 = pneg %p73
        %p239 = pneg %p70
        %p240 = pneg %p94
        %p241 = pneg %p91
        %p242 = pneg %p115
        %p243 = pneg %p112
        %p244 = pneg %p141
        %p245 = pneg %p138
        %p246 = scmp.lt.s32.totalorder %s21, 1
        %s247 = scalar_select %p246, %s21, 1
        %s248 = scalar_lea.vmem %s4, %s247
        %s249 = smul.u32 8, %s22
        %p250 = scmp.lt.s32.totalorder %s21, 1
        %s251 = scalar_select %p250, %s21, 1
        %p252 = scmp.lt.s32.totalorder %s249, 7
        %s253 = scalar_select %p252, %s249, 7
        %s254 = smul.addr %s251, 8
        %s255 = sadd.s32 %s253, %s254
        %s256 = smul.addr %s255, 4
        %s257 = scalar_lea.vmem %s0, %s256
        %s258 = smul.u32 8, %s22
        %p259 = scmp.lt.s32.totalorder %s21, 1
        %s260 = scalar_select %p259, %s21, 1
        %s261 = scalar_lea.vmem %s4, %s260
        %p263 = scmp.eq.s32.totalorder %s22, 0
        // Predicated region
        $region49: #{enetv2_forward.2} parent=35 // pred_check
          %p264 = pneg %p263
        $region50: #{enetv2_forward.2} parent=35 // pred_check_branch
          %266 = sbr.rel (%p264) target = $region52
        $region51: #{enetv2_forward.2} parent=35 // pred_region
          %vm267 = vcmask 253952
          %268 = vst.msk [vmem:[%s261] sm:$0x1] %vm267, 0.0
        $region52: #{enetv2_forward.2} parent=35 // pred_fallthru
          _
        %v269 = vld [vmem:[%s257] sm:$0xf]
        %v270 = vld [vmem:[%s257 + $0x4] sm:$0xf]
        %v271 = vld [vmem:[%s257 + $0x8] sm:$0xf]
        %v272 = vld [vmem:[%s257 + $0xc] sm:$0xf]
        %v273 = vld [vmem:[%s257 + $0x10] sm:$0xf]
        %v274 = vld [vmem:[%s257 + $0x14] sm:$0xf]
        %v275 = vld [vmem:[%s257 + $0x18] sm:$0xf]
        %v276 = vld [vmem:[%s257 + $0x1c] sm:$0xf]
        %v277 = vld [vmem:[#allocation2] sm:$0xf]
        %v278 = vld [vmem:[#allocation2 + $0x4] sm:$0xf]
        %v279 = vld [vmem:[#allocation2 + $0x8] sm:$0xf]
        %v280 = vld [vmem:[#allocation2 + $0xc] sm:$0xf]
        %v289 = vunpack.c.l.b16 %v269
        %v290 = vunpack.c.l.b16 %v270
        %v291 = vunpack.c.l.b16 %v271
        %v292 = vunpack.c.l.b16 %v272
        %v293 = vunpack.c.l.b16 %v273
        %v294 = vunpack.c.l.b16 %v274
        %v295 = vunpack.c.l.b16 %v275
        %v296 = vunpack.c.l.b16 %v276
        %v297 = vpack.c.b16 %v290, %v289
        %v298 = vpack.c.b16 %v292, %v291
        %v299 = vpack.c.b16 %v294, %v293
        %v300 = vpack.c.b16 %v296, %v295
        %v305 = vunpack.c.l.b16 %v277
        %v306 = vunpack.c.l.b16 %v278
        %v307 = vunpack.c.l.b16 %v279
        %v308 = vunpack.c.l.b16 %v280
        %v309 = vpack.c.b16 %v306, %v305
        %v310 = vpack.c.b16 %v308, %v307
        %vm313 = vcmask 261120
        %v315 = vsel %vm313, %v297, 0
        %v318 = vsel %vm313, %v298, 0
        %v321 = vsel %vm313, %v299, 0
        %v324 = vsel %vm313, %v300, 0
        %326 = vmatprep.subr.bf16.mxu0 0
        %327 = vmatpush1.bf16.msra.mxu0 0
        %328 = vmatprep.subr.bf16.mxu0 0
        %329 = vmatpush1.bf16.msra.mxu0 0
        %330 = vmatprep.subr.bf16.mxu0 0
        %331 = vmatpush1.bf16.msra.mxu0 0
        %332 = vmatprep.subr.bf16.mxu0 0
        %333 = vmatpush1.bf16.msra.mxu0 0
        %334 = vmatprep.subr.bf16.mxu0 0
        %335 = vmatpush1.bf16.msra.mxu0 0
        %336 = vmatprep.subr.bf16.mxu0 0
        %337 = vmatpush1.bf16.msra.mxu0 0
        %338 = vmatprep.subr.bf16.mxu0 0
        %339 = vmatpush1.bf16.msra.mxu0 %v310
        %340 = vmatprep.subr.bf16.mxu0 0
        %341 = vmatpush1.bf16.msra.mxu0 %v309
        %342 = vmatprep.subr.bf16.mxu0 0
        %343 = vmatpush2.bf16.msra.mxu0 0
        %344 = vmatprep.subr.bf16.mxu0 0
        %345 = vmatpush2.bf16.msra.mxu0 0
        %346 = vmatprep.subr.bf16.mxu0 0
        %347 = vmatpush2.bf16.msra.mxu0 0
        %348 = vmatprep.subr.bf16.mxu0 0
        %349 = vmatpush2.bf16.msra.mxu0 0
        %350 = vmatprep.subr.bf16.mxu0 0
        %351 = vmatpush2.bf16.msra.mxu0 0
        %352 = vmatprep.subr.bf16.mxu0 0
        %353 = vmatpush2.bf16.msra.mxu0 0
        %354 = vmatprep.subr.bf16.mxu0 0
        %355 = vmatpush2.bf16.msra.mxu0 0
        %356 = vmatprep.subr.bf16.mxu0 0
        %357 = vmatpush2.bf16.msra.mxu0 0
        %358 = vmatprep.mubr.bf16.mxu0 0
        %359 = vmatmul.mubr.bf16.gmra.mxu0 %v315
        %v360 = vpop.f32.mrf.mxu0
        %v361 = vadd.f32 0.0, %v360
        %v362 = vpop.f32.mrf.mxu0
        %v363 = vpop.f32.mrf.mxu0
        %v364 = vadd.f32 0.0, %v363
        %v365 = vpop.f32.mrf.mxu0
        %366 = vmatprep.mubr.bf16.mxu0 0
        %367 = vmatmul.mubr.bf16.gmra.mxu0 %v318
        %v368 = vpop.f32.mrf.mxu0
        %v369 = vadd.f32 0.0, %v368
        %v370 = vpop.f32.mrf.mxu0
        %v371 = vpop.f32.mrf.mxu0
        %v372 = vadd.f32 0.0, %v371
        %v373 = vpop.f32.mrf.mxu0
        %374 = vmatprep.mubr.bf16.mxu0 0
        %375 = vmatmul.mubr.bf16.gmra.mxu0 %v321
        %v376 = vpop.f32.mrf.mxu0
        %v377 = vadd.f32 0.0, %v376
        %v378 = vpop.f32.mrf.mxu0
        %v379 = vpop.f32.mrf.mxu0
        %v380 = vadd.f32 0.0, %v379
        %v381 = vpop.f32.mrf.mxu0
        %382 = vmatprep.mubr.bf16.mxu0 0
        %383 = vmatmul.mubr.bf16.gmra.mxu0 %v324
        %v384 = vpop.f32.mrf.mxu0
        %v385 = vadd.f32 0.0, %v384
        %v386 = vpop.f32.mrf.mxu0
        %v387 = vpop.f32.mrf.mxu0
        %v388 = vadd.f32 0.0, %v387
        %v389 = vpop.f32.mrf.mxu0
        %390 = vdwg.mxu0
        %v391 = vld [vmem:[#allocation4] sm:$0x1]
        %v393 = vlaneseq
        %v394 = vshrl.u32 %v393, 7
        %v395 = vsub.s32 0, %v394
        %v396 = vrot.slane %v391, %v395
        %v398 = vmul.f32 %v361, %v396
        %v399 = vmul.f32 %v364, %v396
        %v400 = vmul.f32 %v369, %v396
        %v401 = vmul.f32 %v372, %v396
        %v402 = vmul.f32 %v377, %v396
        %v403 = vmul.f32 %v380, %v396
        %v404 = vmul.f32 %v385, %v396
        %v405 = vmul.f32 %v388, %v396
        %v406 = vld [vmem:[#allocation6] sm:$0x1]
        %v408 = vlaneseq
        %v409 = vshrl.u32 %v408, 7
        %v410 = vsub.s32 0, %v409
        %v411 = vrot.slane %v406, %v410
        %v413 = vadd.f32 %v398, %v411
        %v414 = vadd.f32 %v399, %v411
        %v415 = vadd.f32 %v400, %v411
        %v416 = vadd.f32 %v401, %v411
        %v417 = vadd.f32 %v402, %v411
        %v418 = vadd.f32 %v403, %v411
        %v419 = vadd.f32 %v404, %v411
        %v420 = vadd.f32 %v405, %v411
        %v421 = vxor.u32 %v413, 2147483648
        %v422 = vxor.u32 %v414, 2147483648
        %v423 = vxor.u32 %v415, 2147483648
        %v424 = vxor.u32 %v416, 2147483648
        %v425 = vxor.u32 %v417, 2147483648
        %v426 = vxor.u32 %v418, 2147483648
        %v427 = vxor.u32 %v419, 2147483648
        %v428 = vxor.u32 %v420, 2147483648
        %v429 = vmul.f32 %v421, 1.442695
        %v430 = vpow.pop %v429
        %v431 = vmul.f32 %v422, 1.442695
        %v432 = vpow.pop %v431
        %v433 = vmul.f32 %v423, 1.442695
        %v434 = vpow.pop %v433
        %v435 = vmul.f32 %v424, 1.442695
        %v436 = vpow.pop %v435
        %v437 = vmul.f32 %v425, 1.442695
        %v438 = vpow.pop %v437
        %v439 = vmul.f32 %v426, 1.442695
        %v440 = vpow.pop %v439
        %v441 = vmul.f32 %v427, 1.442695
        %v442 = vpow.pop %v441
        %v443 = vmul.f32 %v428, 1.442695
        %v444 = vpow.pop %v443
        %v445 = vadd.f32 %v430, 1.0
        %v446 = vadd.f32 %v432, 1.0
        %v447 = vadd.f32 %v434, 1.0
        %v448 = vadd.f32 %v436, 1.0
        %v449 = vadd.f32 %v438, 1.0
        %v450 = vadd.f32 %v440, 1.0
        %v451 = vadd.f32 %v442, 1.0
        %v452 = vadd.f32 %v444, 1.0
        %v453 = vrcp.pop %v445
        %v454 = vmul.f32 1.0, %v453
        %v455 = vrcp.pop %v446
        %v456 = vmul.f32 1.0, %v455
        %v457 = vrcp.pop %v447
        %v458 = vmul.f32 1.0, %v457
        %v459 = vrcp.pop %v448
        %v460 = vmul.f32 1.0, %v459
        %v461 = vrcp.pop %v449
        %v462 = vmul.f32 1.0, %v461
        %v463 = vrcp.pop %v450
        %v464 = vmul.f32 1.0, %v463
        %v465 = vrcp.pop %v451
        %v466 = vmul.f32 1.0, %v465
        %v467 = vrcp.pop %v452
        %v468 = vmul.f32 1.0, %v467
        %v469 = vmul.f32 %v413, %v454
        %v470 = vmul.f32 %v414, %v456
        %v471 = vmul.f32 %v415, %v458
        %v472 = vmul.f32 %v416, %v460
        %v473 = vmul.f32 %v417, %v462
        %v474 = vmul.f32 %v418, %v464
        %v475 = vmul.f32 %v419, %v466
        %v476 = vmul.f32 %v420, %v468
        %s477 = smul.u32 %s22, 64
        %v478 = vlaneseq
        %v479 = vshrl.u32 %v478, 7
        %v480 = vadd.s32 %v479, 8
        %v481 = vadd.s32 %v479, 16
        %v482 = vadd.s32 %v479, 24
        %v483 = vadd.s32 %v479, 32
        %v484 = vadd.s32 %v479, 40
        %v485 = vadd.s32 %v479, 48
        %v486 = vadd.s32 %v479, 56
        %v487 = vstv %s477
        %v488 = vadd.s32 %v487, %v479
        %v489 = vadd.s32 %v487, %v480
        %v490 = vadd.s32 %v487, %v481
        %v491 = vadd.s32 %v487, %v482
        %v492 = vadd.s32 %v487, %v483
        %v493 = vadd.s32 %v487, %v484
        %v494 = vadd.s32 %v487, %v485
        %v495 = vadd.s32 %v487, %v486
        %vm496 = vcmp.lt.s32.totalorder %v488, 64
        %vm497 = vcmp.lt.s32.totalorder %v489, 64
        %vm498 = vcmp.lt.s32.totalorder %v490, 64
        %vm499 = vcmp.lt.s32.totalorder %v491, 64
        %vm500 = vcmp.lt.s32.totalorder %v492, 64
        %vm501 = vcmp.lt.s32.totalorder %v493, 64
        %vm502 = vcmp.lt.s32.totalorder %v494, 64
        %vm503 = vcmp.lt.s32.totalorder %v495, 64
        %v504 = vsel %vm496, %v469, 0.0
        %v505 = vsel %vm497, %v470, 0.0
        %v506 = vsel %vm498, %v471, 0.0
        %v507 = vsel %vm499, %v472, 0.0
        %v508 = vsel %vm500, %v473, 0.0
        %v509 = vsel %vm501, %v474, 0.0
        %v510 = vsel %vm502, %v475, 0.0
        %v511 = vsel %vm503, %v476, 0.0
        %v512 = vld [vmem:[%s261] sm:$0x1]
        %v513 = vsel %vm313, %v504, 0.0
        %v514 = vsel %vm313, %v505, 0.0
        %v515 = vadd.f32 %v513, %v514
        %v516 = vsel %vm313, %v506, 0.0
        %v517 = vadd.f32 %v515, %v516
        %v518 = vsel %vm313, %v507, 0.0
        %v519 = vadd.f32 %v517, %v518
        %v520 = vsel %vm313, %v508, 0.0
        %v521 = vadd.f32 %v519, %v520
        %v522 = vsel %vm313, %v509, 0.0
        %v523 = vadd.f32 %v521, %v522
        %v524 = vsel %vm313, %v510, 0.0
        %v525 = vadd.f32 %v523, %v524
        %v526 = vsel %vm313, %v511, 0.0
        %v527 = vadd.f32 %v525, %v526
        %v528 = vrot.slane %v527, 4
        %v529 = vadd.f32 %v527, %v528
        %v530 = vrot.slane %v529, 2
        %v531 = vadd.f32 %v529, %v530
        %v532 = vrot.slane %v531, 1
        %v533 = vadd.f32 %v531, %v532
        %v534 = vadd.f32 %v512, %v533
        %vm535 = vcmask 253952
        %536 = vst.msk [vmem:[%s261] sm:$0x1] %vm535, %v534
        // Predicated region
        $region53: #{enetv2_forward.2} parent=35 // pred_check
          %p537 = pneg %p263
        $region54: #{enetv2_forward.2} parent=35 // pred_check_branch
          %539 = sbr.rel (%p537) target = $region56
        $region55: #{enetv2_forward.2} parent=35 // pred_region
          %v540 = vld [vmem:[%s261] sm:$0x1]
          %v541 = vmul.f32 %v540, 0.015625
          %542 = vst.msk [vmem:[%s261] sm:$0x1] %vm535, %v541
        $region56: #{enetv2_forward.2} parent=35 // pred_fallthru
          _
        %p543 = scmp.lt.s32.totalorder %s21, 1
        %s544 = scalar_select %p543, %s21, 1
        %s545 = scalar_lea.vmem %s4, %s544
        // Predicated region
        $region57: #{enetv2_forward.2} parent=35 // pred_check
          %p546 = pneg %p138
        $region58: #{enetv2_forward.2} parent=35 // pred_check_branch
          %548 = sbr.rel (%p546) target = $region60
        $region59: #{enetv2_forward.2} parent=35 // pred_region
          _
        $region60: #{enetv2_forward.2} parent=35 // pred_fallthru
          _
      $region36: #{enetv2_forward.2} parent=5 // pred_fallthru
        _
      %p549 = scmp.le.s32.totalorder 2, %s12
      // Predicated region
      $region61: #{enetv2_forward.2} parent=5 // pred_check
        %p550 = pneg %p549
      $region62: #{enetv2_forward.2} parent=5 // pred_check_branch
        %552 = sbr.rel (%p550) target = $region64
      $region63: #{enetv2_forward.2} parent=5 // pred_region
        %s553 = ssub.s32 %s12, 2
        // Predicated region
        $region65: #{enetv2_forward.2} parent=63 // pred_check
          %p554 = pneg %p144
        $region66: #{enetv2_forward.2} parent=63 // pred_check_branch
          %556 = sbr.rel (%p554) target = $region68
        $region67: #{enetv2_forward.2} parent=63 // pred_region
          %p557 = scmp.lt.s32.totalorder %s23, 1
          %s558 = scalar_select %p557, %s23, 1
          %s559 = scalar_lea.vmem %s4, %s558
        $region68: #{enetv2_forward.2} parent=63 // pred_fallthru
          _
      $region64: #{enetv2_forward.2} parent=5 // pred_fallthru
        _
    $region6: #{enetv2_forward.2} parent=1 // loop_footer
      %s16 = sadd.s32 1, %s12
    $region7: #{enetv2_forward.2} parent=1 // loop_footer_branch
      %11 = sbr.rel target = $region3
    $region8: #{enetv2_forward.2} parent=1 // loop_exit
      _
    %560 = vsyncpa [#allocation3], 1
    %s561 = scalar_lea.sflag [#allocation3], 1
    %562 = vsyncpa %s561, 1
    %563 = vsyncpa [#allocation5], 1

// kernel: enetv2_forward.3
$region0: #{enetv2_forward.3}
  #allocation0 [shape = 'u32[]', space=smem, size = 0x4, offset = 0x4, fixed_abs, tag = 'smem constant byte address 0x4 - core index']
  #allocation1 [shape = 'u32[144,128]{1,0:T(1,128)}', space=vmem, size = 0x12000, scoped, tag = 'internal scratch']
  %s0 = inlined_call_operand.vmem [shape: f32[2,32], index: 0, kind: input, shape index: {}]
  %s1 = inlined_call_operand.hbm [shape: bf16[32,1408], index: 1, kind: input, shape index: {}]
  %s2 = inlined_call_operand.hbm [shape: f32[1,1408], index: 2, kind: input, shape index: {}]
  %s3 = inlined_call_operand.hbm [shape: f32[1,1408], index: 3, kind: input, shape index: {}]
  %s4 = inlined_call_operand.hbm [shape: bf16[1408,1024], index: 4, kind: input, shape index: {}]
  %s5 = inlined_call_operand.hbm [shape: f32[1,1024], index: 5, kind: input, shape index: {}]
  %s6 = inlined_call_operand.hbm [shape: bf16[1024,512], index: 6, kind: input, shape index: {}]
  %s7 = inlined_call_operand.hbm [shape: f32[1,512], index: 7, kind: input, shape index: {}]
  %s8 = inlined_call_operand.hbm [shape: bf16[512,512], index: 8, kind: input, shape index: {}]
  %s9 = inlined_call_operand.hbm [shape: f32[1,512], index: 9, kind: input, shape index: {}]
  %s10 = inlined_call_operand.hbm [shape: bf16[512,384], index: 10, kind: input, shape index: {}]
  %s11 = inlined_call_operand.hbm [shape: f32[1,384], index: 11, kind: input, shape index: {}]
  %s12 = inlined_call_operand.hbm [shape: f32[2,384], index: 12, kind: output, shape index: {}]
  %s13 = sld [smem:[#allocation0]]
  $region102: #{enetv2_forward.3} parent=0
    _
  %s15 = ssub.s32 1, %s13
  %s16 = scalar_select 0, %s15, %s13
  $region1: #{enetv2_forward.3} parent=0
    #allocation2 [shape = 'u8[90112]{0}', space=vmem, size = 0x16000, scoped, tag = 'input window, operand 1, single buffered']
    #allocation3 [shape = 's32[1]{0}', space=sflag, size = 0x4, scoped, tag = 'scoped memory for enetv2_forward.3']
    #allocation4 [shape = 's32[1]{0}', space=sflag, size = 0x4, scoped, tag = 'scoped memory for enetv2_forward.3']
    #allocation5 [shape = 'u8[5632]{0}', space=vmem, size = 0x1800, scoped, tag = 'input window, operand 2, single buffered']
    #allocation6 [shape = 's32[1]{0}', space=sflag, size = 0x4, scoped, tag = 'scoped memory for enetv2_forward.3']
    #allocation7 [shape = 'u8[5632]{0}', space=vmem, size = 0x1800, scoped, tag = 'input window, operand 3, single buffered']
    #allocation8 [shape = 'u8[2883584]{0}', space=vmem, size = 0x2c0000, scoped, tag = 'input window, operand 4, single buffered']
    #allocation9 [shape = 's32[1]{0}', space=sflag, size = 0x4, scoped, tag = 'scoped memory for enetv2_forward.3']
    #allocation10 [shape = 'u8[4096]{0}', space=vmem, size = 0x1000, scoped, tag = 'input window, operand 5, single buffered']
    #allocation11 [shape = 'u8[1048576]{0}', space=vmem, size = 0x100000, scoped, tag = 'input window, operand 6, single buffered']
    #allocation12 [shape = 's32[1]{0}', space=sflag, size = 0x4, scoped, tag = 'scoped memory for enetv2_forward.3']
    #allocation13 [shape = 'u8[2048]{0}', space=vmem, size = 0x800, scoped, tag = 'input window, operand 7, single buffered']
    #allocation14 [shape = 'u8[524288]{0}', space=vmem, size = 0x80000, scoped, tag = 'input window, operand 8, single buffered']
    #allocation15 [shape = 's32[1]{0}', space=sflag, size = 0x4, scoped, tag = 'scoped memory for enetv2_forward.3']
    #allocation16 [shape = 'u8[2048]{0}', space=vmem, size = 0x800, scoped, tag = 'input window, operand 9, single buffered']
    #allocation17 [shape = 'u8[393216]{0}', space=vmem, size = 0x60000, scoped, tag = 'input window, operand 10, single buffered']
    #allocation18 [shape = 's32[1]{0}', space=sflag, size = 0x4, scoped, tag = 'scoped memory for enetv2_forward.3']
    #allocation19 [shape = 'u8[1536]{0}', space=vmem, size = 0x800, scoped, tag = 'input window, operand 11, single buffered']
    #allocation20 [shape = 'u8[3072]{0}', space=vmem, size = 0xc00, scoped, tag = 'output window, operand 0, single buffered']
    %17 = vsyncpa [#allocation3], 0
    %18 = vsyncpa [#allocation6], 0
    %19 = vsyncpa [#allocation9], 0
    %20 = vsyncpa [#allocation12], 0
    %21 = vsyncpa [#allocation15], 0
    %22 = vsyncpa [#allocation18], 0
    %23 = vsyncpa [#allocation4], 0
    // Predicated region
    $region2: #{enetv2_forward.3} parent=1 // pred_check
      _
    $region3: #{enetv2_forward.3} parent=1 // pred_check_branch
      %25 = sbr.rel (0) target = $region5
    $region4: #{enetv2_forward.3} parent=1 // pred_region
      _
    $region5: #{enetv2_forward.3} parent=1 // pred_fallthru
      _
    // Predicated region
    $region6: #{enetv2_forward.3} parent=1 // pred_check
      _
    $region7: #{enetv2_forward.3} parent=1 // pred_check_branch
      %27 = sbr.rel (0) target = $region9
    $region8: #{enetv2_forward.3} parent=1 // pred_region
      %s29 = ssub.s32 2816, 2816
      %30 = vsyncadd [#allocation3], %s29
      %s31 = sshll.u32 [#allocation2], 4
      %s32 = int_to_ptr.vmem [resolvable:$true] %s31
      %37 = dma.hbm_to_vmem [thread:$0]  %s1, 2816, %s32, [#allocation3], 704, 704, 44
    $region9: #{enetv2_forward.3} parent=1 // pred_fallthru
      _
    // Predicated region
    $region10: #{enetv2_forward.3} parent=1 // pred_check
      _
    $region11: #{enetv2_forward.3} parent=1 // pred_check_branch
      %39 = sbr.rel (0) target = $region13
    $region12: #{enetv2_forward.3} parent=1 // pred_region
      %s41 = ssub.s32 176, 176
      %42 = vsyncadd [#allocation6], %s41
      %s44 = sshll.u32 [#allocation5], 4
      %s45 = int_to_ptr.vmem [resolvable:$true] %s44
      %47 = dma.hbm_to_vmem [thread:$0]  %s2, 176, %s45, [#allocation6]
    $region13: #{enetv2_forward.3} parent=1 // pred_fallthru
      _
    // Predicated region
    $region14: #{enetv2_forward.3} parent=1 // pred_check
      _
    $region15: #{enetv2_forward.3} parent=1 // pred_check_branch
      %49 = sbr.rel (0) target = $region17
    $region16: #{enetv2_forward.3} parent=1 // pred_region
      %s51 = ssub.s32 176, 176
      %52 = vsyncadd [#allocation6], %s51
      %s54 = sshll.u32 [#allocation7], 4
      %s55 = int_to_ptr.vmem [resolvable:$true] %s54
      %57 = dma.hbm_to_vmem [thread:$0]  %s3, 176, %s55, [#allocation6]
    $region17: #{enetv2_forward.3} parent=1 // pred_fallthru
      _
    // Predicated region
    $region18: #{enetv2_forward.3} parent=1 // pred_check
      _
    $region19: #{enetv2_forward.3} parent=1 // pred_check_branch
      %59 = sbr.rel (0) target = $region21
    $region20: #{enetv2_forward.3} parent=1 // pred_region
      %s61 = ssub.s32 90112, 90112
      %62 = vsyncadd [#allocation9], %s61
      %s63 = sshll.u32 [#allocation8], 4
      %s64 = int_to_ptr.vmem [resolvable:$true] %s63
      %69 = dma.hbm_to_vmem [thread:$0]  %s4, 90112, %s64, [#allocation9], 512, 512, 32
    $region21: #{enetv2_forward.3} parent=1 // pred_fallthru
      _
    // Predicated region
    $region22: #{enetv2_forward.3} parent=1 // pred_check
      _
    $region23: #{enetv2_forward.3} parent=1 // pred_check_branch
      %71 = sbr.rel (0) target = $region25
    $region24: #{enetv2_forward.3} parent=1 // pred_region
      %s73 = ssub.s32 128, 128
      %74 = vsyncadd [#allocation9], %s73
      %s76 = sshll.u32 [#allocation10], 4
      %s77 = int_to_ptr.vmem [resolvable:$true] %s76
      %79 = dma.hbm_to_vmem [thread:$0]  %s5, 128, %s77, [#allocation9]
    $region25: #{enetv2_forward.3} parent=1 // pred_fallthru
      _
    // Predicated region
    $region26: #{enetv2_forward.3} parent=1 // pred_check
      _
    $region27: #{enetv2_forward.3} parent=1 // pred_check_branch
      %81 = sbr.rel (0) target = $region29
    $region28: #{enetv2_forward.3} parent=1 // pred_region
      %s83 = ssub.s32 32768, 32768
      %84 = vsyncadd [#allocation12], %s83
      %s85 = sshll.u32 [#allocation11], 4
      %s86 = int_to_ptr.vmem [resolvable:$true] %s85
      %91 = dma.hbm_to_vmem [thread:$0]  %s6, 32768, %s86, [#allocation12], 256, 256, 16
    $region29: #{enetv2_forward.3} parent=1 // pred_fallthru
      _
    // Predicated region
    $region30: #{enetv2_forward.3} parent=1 // pred_check
      _
    $region31: #{enetv2_forward.3} parent=1 // pred_check_branch
      %93 = sbr.rel (0) target = $region33
    $region32: #{enetv2_forward.3} parent=1 // pred_region
      %s95 = ssub.s32 64, 64
      %96 = vsyncadd [#allocation12], %s95
      %s98 = sshll.u32 [#allocation13], 4
      %s99 = int_to_ptr.vmem [resolvable:$true] %s98
      %101 = dma.hbm_to_vmem [thread:$0]  %s7, 64, %s99, [#allocation12]
    $region33: #{enetv2_forward.3} parent=1 // pred_fallthru
      _
    // Predicated region
    $region34: #{enetv2_forward.3} parent=1 // pred_check
      _
    $region35: #{enetv2_forward.3} parent=1 // pred_check_branch
      %103 = sbr.rel (0) target = $region37
    $region36: #{enetv2_forward.3} parent=1 // pred_region
      %s105 = ssub.s32 16384, 16384
      %106 = vsyncadd [#allocation15], %s105
      %s107 = sshll.u32 [#allocation14], 4
      %s108 = int_to_ptr.vmem [resolvable:$true] %s107
      %113 = dma.hbm_to_vmem [thread:$0]  %s8, 16384, %s108, [#allocation15], 256, 256, 16
    $region37: #{enetv2_forward.3} parent=1 // pred_fallthru
      _
    // Predicated region
    $region38: #{enetv2_forward.3} parent=1 // pred_check
      _
    $region39: #{enetv2_forward.3} parent=1 // pred_check_branch
      %115 = sbr.rel (0) target = $region41
    $region40: #{enetv2_forward.3} parent=1 // pred_region
      %s117 = ssub.s32 64, 64
      %118 = vsyncadd [#allocation15], %s117
      %s120 = sshll.u32 [#allocation16], 4
      %s121 = int_to_ptr.vmem [resolvable:$true] %s120
      %123 = dma.hbm_to_vmem [thread:$0]  %s9, 64, %s121, [#allocation15]
    $region41: #{enetv2_forward.3} parent=1 // pred_fallthru
      _
    // Predicated region
    $region42: #{enetv2_forward.3} parent=1 // pred_check
      _
    $region43: #{enetv2_forward.3} parent=1 // pred_check_branch
      %125 = sbr.rel (0) target = $region45
    $region44: #{enetv2_forward.3} parent=1 // pred_region
      %s127 = ssub.s32 12288, 12288
      %128 = vsyncadd [#allocation18], %s127
      %s129 = sshll.u32 [#allocation17], 4
      %s130 = int_to_ptr.vmem [resolvable:$true] %s129
      %135 = dma.hbm_to_vmem [thread:$0]  %s10, 12288, %s130, [#allocation18], 192, 192, 12
    $region45: #{enetv2_forward.3} parent=1 // pred_fallthru
      _
    // Predicated region
    $region46: #{enetv2_forward.3} parent=1 // pred_check
      _
    $region47: #{enetv2_forward.3} parent=1 // pred_check_branch
      %137 = sbr.rel (0) target = $region49
    $region48: #{enetv2_forward.3} parent=1 // pred_region
      %s139 = ssub.s32 48, 48
      %140 = vsyncadd [#allocation18], %s139
      %s142 = sshll.u32 [#allocation19], 4
      %s143 = int_to_ptr.vmem [resolvable:$true] %s142
      %145 = dma.hbm_to_vmem [thread:$0]  %s11, 48, %s143, [#allocation18]
    $region49: #{enetv2_forward.3} parent=1 // pred_fallthru
      _
    // Predicated region
    $region50: #{enetv2_forward.3} parent=1 // pred_check
      _
    $region51: #{enetv2_forward.3} parent=1 // pred_check_branch
      %147 = sbr.rel (0) target = $region53
    $region52: #{enetv2_forward.3} parent=1 // pred_region
      %148 = dma.done [#allocation3], 2816
    $region53: #{enetv2_forward.3} parent=1 // pred_fallthru
      _
    // Predicated region
    $region54: #{enetv2_forward.3} parent=1 // pred_check
      _
    $region55: #{enetv2_forward.3} parent=1 // pred_check_branch
      %150 = sbr.rel (0) target = $region57
    $region56: #{enetv2_forward.3} parent=1 // pred_region
      %151 = dma.done [#allocation6], 176
    $region57: #{enetv2_forward.3} parent=1 // pred_fallthru
      _
    // Predicated region
    $region58: #{enetv2_forward.3} parent=1 // pred_check
      _
    $region59: #{enetv2_forward.3} parent=1 // pred_check_branch
      %153 = sbr.rel (0) target = $region61
    $region60: #{enetv2_forward.3} parent=1 // pred_region
      %154 = dma.done [#allocation6], 176
    $region61: #{enetv2_forward.3} parent=1 // pred_fallthru
      _
    // Predicated region
    $region62: #{enetv2_forward.3} parent=1 // pred_check
      _
    $region63: #{enetv2_forward.3} parent=1 // pred_check_branch
      %156 = sbr.rel (0) target = $region65
    $region64: #{enetv2_forward.3} parent=1 // pred_region
      %157 = dma.done [#allocation9], 90112
    $region65: #{enetv2_forward.3} parent=1 // pred_fallthru
      _
    // Predicated region
    $region66: #{enetv2_forward.3} parent=1 // pred_check
      _
    $region67: #{enetv2_forward.3} parent=1 // pred_check_branch
      %159 = sbr.rel (0) target = $region69
    $region68: #{enetv2_forward.3} parent=1 // pred_region
      %160 = dma.done [#allocation9], 128
    $region69: #{enetv2_forward.3} parent=1 // pred_fallthru
      _
    // Predicated region
    $region70: #{enetv2_forward.3} parent=1 // pred_check
      _
    $region71: #{enetv2_forward.3} parent=1 // pred_check_branch
      %162 = sbr.rel (0) target = $region73
    $region72: #{enetv2_forward.3} parent=1 // pred_region
      %163 = dma.done [#allocation12], 32768
    $region73: #{enetv2_forward.3} parent=1 // pred_fallthru
      _
    // Predicated region
    $region74: #{enetv2_forward.3} parent=1 // pred_check
      _
    $region75: #{enetv2_forward.3} parent=1 // pred_check_branch
      %165 = sbr.rel (0) target = $region77
    $region76: #{enetv2_forward.3} parent=1 // pred_region
      %166 = dma.done [#allocation12], 64
    $region77: #{enetv2_forward.3} parent=1 // pred_fallthru
      _
    // Predicated region
    $region78: #{enetv2_forward.3} parent=1 // pred_check
      _
    $region79: #{enetv2_forward.3} parent=1 // pred_check_branch
      %168 = sbr.rel (0) target = $region81
    $region80: #{enetv2_forward.3} parent=1 // pred_region
      %169 = dma.done [#allocation15], 16384
    $region81: #{enetv2_forward.3} parent=1 // pred_fallthru
      _
    // Predicated region
    $region82: #{enetv2_forward.3} parent=1 // pred_check
      _
    $region83: #{enetv2_forward.3} parent=1 // pred_check_branch
      %171 = sbr.rel (0) target = $region85
    $region84: #{enetv2_forward.3} parent=1 // pred_region
      %172 = dma.done [#allocation15], 64
    $region85: #{enetv2_forward.3} parent=1 // pred_fallthru
      _
    // Predicated region
    $region86: #{enetv2_forward.3} parent=1 // pred_check
      _
    $region87: #{enetv2_forward.3} parent=1 // pred_check_branch
      %174 = sbr.rel (0) target = $region89
    $region88: #{enetv2_forward.3} parent=1 // pred_region
      %175 = dma.done [#allocation18], 12288
    $region89: #{enetv2_forward.3} parent=1 // pred_fallthru
      _
    // Predicated region
    $region90: #{enetv2_forward.3} parent=1 // pred_check
      _
    $region91: #{enetv2_forward.3} parent=1 // pred_check_branch
      %177 = sbr.rel (0) target = $region93
    $region92: #{enetv2_forward.3} parent=1 // pred_region
      %178 = dma.done [#allocation18], 48
    $region93: #{enetv2_forward.3} parent=1 // pred_fallthru
      _
    %v180 = vld [vmem:[%s0] sm:$0x3]
    %v181 = vpack.c.bf16 %v180, %v180
    %v182 = vld [vmem:[#allocation2] sm:$0xff]
    %v183 = vld [vmem:[#allocation2 + $0x8] sm:$0xff]
    %v184 = vld [vmem:[#allocation2 + $0x10] sm:$0xff]
    %v185 = vld [vmem:[#allocation2 + $0x18] sm:$0xff]
    %v186 = vld [vmem:[#allocation2 + $0x20] sm:$0xff]
    %v187 = vld [vmem:[#allocation2 + $0x28] sm:$0xf]
    %v188 = vld [vmem:[#allocation2 + $0x2c] sm:$0xff]
    %v189 = vld [vmem:[#allocation2 + $0x34] sm:$0xff]
    %v190 = vld [vmem:[#allocation2 + $0x3c] sm:$0xff]
    %v191 = vld [vmem:[#allocation2 + $0x44] sm:$0xff]
    %v192 = vld [vmem:[#allocation2 + $0x4c] sm:$0xff]
    %v193 = vld [vmem:[#allocation2 + $0x54] sm:$0xf]
    %v194 = vld [vmem:[#allocation2 + $0x58] sm:$0xff]
    %v195 = vld [vmem:[#allocation2 + $0x60] sm:$0xff]
    %v196 = vld [vmem:[#allocation2 + $0x68] sm:$0xff]
    %v197 = vld [vmem:[#allocation2 + $0x70] sm:$0xff]
    %v198 = vld [vmem:[#allocation2 + $0x78] sm:$0xff]
    %v199 = vld [vmem:[#allocation2 + $0x80] sm:$0xf]
    %v200 = vld [vmem:[#allocation2 + $0x84] sm:$0xff]
    %v201 = vld [vmem:[#allocation2 + $0x8c] sm:$0xff]
    %v202 = vld [vmem:[#allocation2 + $0x94] sm:$0xff]
    %v203 = vld [vmem:[#allocation2 + $0x9c] sm:$0xff]
    %v204 = vld [vmem:[#allocation2 + $0xa4] sm:$0xff]
    %v205 = vld [vmem:[#allocation2 + $0xac] sm:$0xf]
    %v230 = vunpack.c.l.b16 %v182
    %v231 = vunpack.c.h.b16 %v182
    %v232 = vunpack.c.l.b16 %v183
    %v233 = vunpack.c.h.b16 %v183
    %v234 = vunpack.c.l.b16 %v184
    %v235 = vunpack.c.h.b16 %v184
    %v236 = vunpack.c.l.b16 %v185
    %v237 = vunpack.c.h.b16 %v185
    %v238 = vunpack.c.l.b16 %v186
    %v239 = vunpack.c.h.b16 %v186
    %v240 = vunpack.c.l.b16 %v187
    %v241 = vunpack.c.l.b16 %v188
    %v242 = vunpack.c.h.b16 %v188
    %v243 = vunpack.c.l.b16 %v189
    %v244 = vunpack.c.h.b16 %v189
    %v245 = vunpack.c.l.b16 %v190
    %v246 = vunpack.c.h.b16 %v190
    %v247 = vunpack.c.l.b16 %v191
    %v248 = vunpack.c.h.b16 %v191
    %v249 = vunpack.c.l.b16 %v192
    %v250 = vunpack.c.h.b16 %v192
    %v251 = vunpack.c.l.b16 %v193
    %v252 = vunpack.c.l.b16 %v194
    %v253 = vunpack.c.h.b16 %v194
    %v254 = vunpack.c.l.b16 %v195
    %v255 = vunpack.c.h.b16 %v195
    %v256 = vunpack.c.l.b16 %v196
    %v257 = vunpack.c.h.b16 %v196
    %v258 = vunpack.c.l.b16 %v197
    %v259 = vunpack.c.h.b16 %v197
    %v260 = vunpack.c.l.b16 %v198
    %v261 = vunpack.c.h.b16 %v198
    %v262 = vunpack.c.l.b16 %v199
    %v263 = vunpack.c.l.b16 %v200
    %v264 = vunpack.c.h.b16 %v200
    %v265 = vunpack.c.l.b16 %v201
    %v266 = vunpack.c.h.b16 %v201
    %v267 = vunpack.c.l.b16 %v202
    %v268 = vunpack.c.h.b16 %v202
    %v269 = vunpack.c.l.b16 %v203
    %v270 = vunpack.c.h.b16 %v203
    %v271 = vunpack.c.l.b16 %v204
    %v272 = vunpack.c.h.b16 %v204
    %v273 = vunpack.c.l.b16 %v205
    %v274 = vpack.c.b16 %v241, %v230
    %v275 = vpack.c.b16 %v242, %v231
    %v276 = vpack.c.b16 %v243, %v232
    %v277 = vpack.c.b16 %v244, %v233
    %v278 = vpack.c.b16 %v245, %v234
    %v279 = vpack.c.b16 %v246, %v235
    %v280 = vpack.c.b16 %v247, %v236
    %v281 = vpack.c.b16 %v248, %v237
    %v282 = vpack.c.b16 %v249, %v238
    %v283 = vpack.c.b16 %v250, %v239
    %v284 = vpack.c.b16 %v251, %v240
    %v285 = vpack.c.b16 %v263, %v252
    %v286 = vpack.c.b16 %v264, %v253
    %v287 = vpack.c.b16 %v265, %v254
    %v288 = vpack.c.b16 %v266, %v255
    %v289 = vpack.c.b16 %v267, %v256
    %v290 = vpack.c.b16 %v268, %v257
    %v291 = vpack.c.b16 %v269, %v258
    %v292 = vpack.c.b16 %v270, %v259
    %v293 = vpack.c.b16 %v271, %v260
    %v294 = vpack.c.b16 %v272, %v261
    %v295 = vpack.c.b16 %v273, %v262
    %vm318 = vcmask 261120
    %v320 = vsel %vm318, %v181, 0
    %322 = vmatprep.subr.bf16.mxu0 0
    %323 = vmatpush1.bf16.msra.mxu0 0
    %324 = vmatprep.subr.bf16.mxu0 0
    %325 = vmatpush1.bf16.msra.mxu0 0
    %326 = vmatprep.subr.bf16.mxu0 0
    %327 = vmatpush1.bf16.msra.mxu0 0
    %328 = vmatprep.subr.bf16.mxu0 0
    %329 = vmatpush1.bf16.msra.mxu0 0
    %330 = vmatprep.subr.bf16.mxu0 0
    %331 = vmatpush1.bf16.msra.mxu0 0
    %332 = vmatprep.subr.bf16.mxu0 0
    %333 = vmatpush1.bf16.msra.mxu0 0
    %334 = vmatprep.subr.bf16.mxu0 %v286
    %335 = vmatpush1.bf16.msra.mxu0 %v285
    %336 = vmatprep.subr.bf16.mxu0 %v275
    %337 = vmatpush1.bf16.msra.mxu0 %v274
    %338 = vmatprep.subr.bf16.mxu0 0
    %339 = vmatpush2.bf16.msra.mxu0 0
    %340 = vmatprep.subr.bf16.mxu0 0
    %341 = vmatpush2.bf16.msra.mxu0 0
    %342 = vmatprep.subr.bf16.mxu0 0
    %343 = vmatpush2.bf16.msra.mxu0 0
    %344 = vmatprep.subr.bf16.mxu0 0
    %345 = vmatpush2.bf16.msra.mxu0 0
    %346 = vmatprep.subr.bf16.mxu0 0
    %347 = vmatpush2.bf16.msra.mxu0 0
    %348 = vmatprep.subr.bf16.mxu0 0
    %349 = vmatpush2.bf16.msra.mxu0 0
    %350 = vmatprep.subr.bf16.mxu0 0
    %351 = vmatpush2.bf16.msra.mxu0 0
    %352 = vmatprep.subr.bf16.mxu0 0
    %353 = vmatpush2.bf16.msra.mxu0 0
    %354 = vmatprep.mubr.bf16.mxu0 0
    %355 = vmatmul.mubr.bf16.gmra.mxu0 %v320
    %v356 = vpop.f32.mrf.mxu0
    %v357 = vadd.f32 0.0, %v356
    %v358 = vpop.f32.mrf.mxu0
    %v359 = vadd.f32 0.0, %v358
    %v360 = vpop.f32.mrf.mxu0
    %v361 = vpop.f32.mrf.mxu0
    %362 = vdwg.mxu0
    %363 = vmatprep.subr.bf16.mxu0 0
    %364 = vmatpush1.bf16.msra.mxu0 0
    %365 = vmatprep.subr.bf16.mxu0 0
    %366 = vmatpush1.bf16.msra.mxu0 0
    %367 = vmatprep.subr.bf16.mxu0 0
    %368 = vmatpush1.bf16.msra.mxu0 0
    %369 = vmatprep.subr.bf16.mxu0 0
    %370 = vmatpush1.bf16.msra.mxu0 0
    %371 = vmatprep.subr.bf16.mxu0 0
    %372 = vmatpush1.bf16.msra.mxu0 0
    %373 = vmatprep.subr.bf16.mxu0 0
    %374 = vmatpush1.bf16.msra.mxu0 0
    %375 = vmatprep.subr.bf16.mxu0 %v288
    %376 = vmatpush1.bf16.msra.mxu0 %v287
    %377 = vmatprep.subr.bf16.mxu0 %v277
    %378 = vmatpush1.bf16.msra.mxu0 %v276
    %379 = vmatprep.subr.bf16.mxu0 0
    %380 = vmatpush2.bf16.msra.mxu0 0
    %381 = vmatprep.subr.bf16.mxu0 0
    %382 = vmatpush2.bf16.msra.mxu0 0
    %383 = vmatprep.subr.bf16.mxu0 0
    %384 = vmatpush2.bf16.msra.mxu0 0
    %385 = vmatprep.subr.bf16.mxu0 0
    %386 = vmatpush2.bf16.msra.mxu0 0
    %387 = vmatprep.subr.bf16.mxu0 0
    %388 = vmatpush2.bf16.msra.mxu0 0
    %389 = vmatprep.subr.bf16.mxu0 0
    %390 = vmatpush2.bf16.msra.mxu0 0
    %391 = vmatprep.subr.bf16.mxu0 0
    %392 = vmatpush2.bf16.msra.mxu0 0
    %393 = vmatprep.subr.bf16.mxu0 0
    %394 = vmatpush2.bf16.msra.mxu0 0
    %395 = vmatprep.mubr.bf16.mxu0 0
    %396 = vmatmul.mubr.bf16.gmra.mxu0 %v320
    %v397 = vpop.f32.mrf.mxu0
    %v398 = vadd.f32 0.0, %v397
    %v399 = vpop.f32.mrf.mxu0
    %v400 = vadd.f32 0.0, %v399
    %v401 = vpop.f32.mrf.mxu0
    %v402 = vpop.f32.mrf.mxu0
    %403 = vdwg.mxu0
    %404 = vmatprep.subr.bf16.mxu0 0
    %405 = vmatpush1.bf16.msra.mxu0 0
    %406 = vmatprep.subr.bf16.mxu0 0
    %407 = vmatpush1.bf16.msra.mxu0 0
    %408 = vmatprep.subr.bf16.mxu0 0
    %409 = vmatpush1.bf16.msra.mxu0 0
    %410 = vmatprep.subr.bf16.mxu0 0
    %411 = vmatpush1.bf16.msra.mxu0 0
    %412 = vmatprep.subr.bf16.mxu0 0
    %413 = vmatpush1.bf16.msra.mxu0 0
    %414 = vmatprep.subr.bf16.mxu0 0
    %415 = vmatpush1.bf16.msra.mxu0 0
    %416 = vmatprep.subr.bf16.mxu0 %v290
    %417 = vmatpush1.bf16.msra.mxu0 %v289
    %418 = vmatprep.subr.bf16.mxu0 %v279
    %419 = vmatpush1.bf16.msra.mxu0 %v278
    %420 = vmatprep.subr.bf16.mxu0 0
    %421 = vmatpush2.bf16.msra.mxu0 0
    %422 = vmatprep.subr.bf16.mxu0 0
    %423 = vmatpush2.bf16.msra.mxu0 0
    %424 = vmatprep.subr.bf16.mxu0 0
    %425 = vmatpush2.bf16.msra.mxu0 0
    %426 = vmatprep.subr.bf16.mxu0 0
    %427 = vmatpush2.bf16.msra.mxu0 0
    %428 = vmatprep.subr.bf16.mxu0 0
    %429 = vmatpush2.bf16.msra.mxu0 0
    %430 = vmatprep.subr.bf16.mxu0 0
    %431 = vmatpush2.bf16.msra.mxu0 0
    %432 = vmatprep.subr.bf16.mxu0 0
    %433 = vmatpush2.bf16.msra.mxu0 0
    %434 = vmatprep.subr.bf16.mxu0 0
    %435 = vmatpush2.bf16.msra.mxu0 0
    %436 = vmatprep.mubr.bf16.mxu0 0
    %437 = vmatmul.mubr.bf16.gmra.mxu0 %v320
    %v438 = vpop.f32.mrf.mxu0
    %v439 = vadd.f32 0.0, %v438
    %v440 = vpop.f32.mrf.mxu0
    %v441 = vadd.f32 0.0, %v440
    %v442 = vpop.f32.mrf.mxu0
    %v443 = vpop.f32.mrf.mxu0
    %444 = vdwg.mxu0
    %445 = vmatprep.subr.bf16.mxu0 0
    %446 = vmatpush1.bf16.msra.mxu0 0
    %447 = vmatprep.subr.bf16.mxu0 0
    %448 = vmatpush1.bf16.msra.mxu0 0
    %449 = vmatprep.subr.bf16.mxu0 0
    %450 = vmatpush1.bf16.msra.mxu0 0
    %451 = vmatprep.subr.bf16.mxu0 0
    %452 = vmatpush1.bf16.msra.mxu0 0
    %453 = vmatprep.subr.bf16.mxu0 0
    %454 = vmatpush1.bf16.msra.mxu0 0
    %455 = vmatprep.subr.bf16.mxu0 0
    %456 = vmatpush1.bf16.msra.mxu0 0
    %457 = vmatprep.subr.bf16.mxu0 %v292
    %458 = vmatpush1.bf16.msra.mxu0 %v291
    %459 = vmatprep.subr.bf16.mxu0 %v281
    %460 = vmatpush1.bf16.msra.mxu0 %v280
    %461 = vmatprep.subr.bf16.mxu0 0
    %462 = vmatpush2.bf16.msra.mxu0 0
    %463 = vmatprep.subr.bf16.mxu0 0
    %464 = vmatpush2.bf16.msra.mxu0 0
    %465 = vmatprep.subr.bf16.mxu0 0
    %466 = vmatpush2.bf16.msra.mxu0 0
    %467 = vmatprep.subr.bf16.mxu0 0
    %468 = vmatpush2.bf16.msra.mxu0 0
    %469 = vmatprep.subr.bf16.mxu0 0
    %470 = vmatpush2.bf16.msra.mxu0 0
    %471 = vmatprep.subr.bf16.mxu0 0
    %472 = vmatpush2.bf16.msra.mxu0 0
    %473 = vmatprep.subr.bf16.mxu0 0
    %474 = vmatpush2.bf16.msra.mxu0 0
    %475 = vmatprep.subr.bf16.mxu0 0
    %476 = vmatpush2.bf16.msra.mxu0 0
    %477 = vmatprep.mubr.bf16.mxu0 0
    %478 = vmatmul.mubr.bf16.gmra.mxu0 %v320
    %v479 = vpop.f32.mrf.mxu0
    %v480 = vadd.f32 0.0, %v479
    %v481 = vpop.f32.mrf.mxu0
    %v482 = vadd.f32 0.0, %v481
    %v483 = vpop.f32.mrf.mxu0
    %v484 = vpop.f32.mrf.mxu0
    %485 = vdwg.mxu0
    %486 = vmatprep.subr.bf16.mxu0 0
    %487 = vmatpush1.bf16.msra.mxu0 0
    %488 = vmatprep.subr.bf16.mxu0 0
    %489 = vmatpush1.bf16.msra.mxu0 0
    %490 = vmatprep.subr.bf16.mxu0 0
    %491 = vmatpush1.bf16.msra.mxu0 0
    %492 = vmatprep.subr.bf16.mxu0 0
    %493 = vmatpush1.bf16.msra.mxu0 0
    %494 = vmatprep.subr.bf16.mxu0 0
    %495 = vmatpush1.bf16.msra.mxu0 0
    %496 = vmatprep.subr.bf16.mxu0 0
    %497 = vmatpush1.bf16.msra.mxu0 0
    %498 = vmatprep.subr.bf16.mxu0 %v294
    %499 = vmatpush1.bf16.msra.mxu0 %v293
    %500 = vmatprep.subr.bf16.mxu0 %v283
    %501 = vmatpush1.bf16.msra.mxu0 %v282
    %502 = vmatprep.subr.bf16.mxu0 0
    %503 = vmatpush2.bf16.msra.mxu0 0
    %504 = vmatprep.subr.bf16.mxu0 0
    %505 = vmatpush2.bf16.msra.mxu0 0
    %506 = vmatprep.subr.bf16.mxu0 0
    %507 = vmatpush2.bf16.msra.mxu0 0
    %508 = vmatprep.subr.bf16.mxu0 0
    %509 = vmatpush2.bf16.msra.mxu0 0
    %510 = vmatprep.subr.bf16.mxu0 0
    %511 = vmatpush2.bf16.msra.mxu0 0
    %512 = vmatprep.subr.bf16.mxu0 0
    %513 = vmatpush2.bf16.msra.mxu0 0
    %514 = vmatprep.subr.bf16.mxu0 0
    %515 = vmatpush2.bf16.msra.mxu0 0
    %516 = vmatprep.subr.bf16.mxu0 0
    %517 = vmatpush2.bf16.msra.mxu0 0
    %518 = vmatprep.mubr.bf16.mxu0 0
    %519 = vmatmul.mubr.bf16.gmra.mxu0 %v320
    %v520 = vpop.f32.mrf.mxu0
    %v521 = vadd.f32 0.0, %v520
    %v522 = vpop.f32.mrf.mxu0
    %v523 = vadd.f32 0.0, %v522
    %v524 = vpop.f32.mrf.mxu0
    %v525 = vpop.f32.mrf.mxu0
    %526 = vdwg.mxu0
    %527 = vmatprep.subr.bf16.mxu0 0
    %528 = vmatpush1.bf16.msra.mxu0 0
    %529 = vmatprep.subr.bf16.mxu0 0
    %530 = vmatpush1.bf16.msra.mxu0 0
    %531 = vmatprep.subr.bf16.mxu0 0
    %532 = vmatpush1.bf16.msra.mxu0 0
    %533 = vmatprep.subr.bf16.mxu0 0
    %534 = vmatpush1.bf16.msra.mxu0 0
    %535 = vmatprep.subr.bf16.mxu0 0
    %536 = vmatpush1.bf16.msra.mxu0 0
    %537 = vmatprep.subr.bf16.mxu0 0
    %538 = vmatpush1.bf16.msra.mxu0 0
    %539 = vmatprep.subr.bf16.mxu0 0
    %540 = vmatpush1.bf16.msra.mxu0 %v295
    %541 = vmatprep.subr.bf16.mxu0 0
    %542 = vmatpush1.bf16.msra.mxu0 %v284
    %543 = vmatprep.subr.bf16.mxu0 0
    %544 = vmatpush2.bf16.msra.mxu0 0
    %545 = vmatprep.subr.bf16.mxu0 0
    %546 = vmatpush2.bf16.msra.mxu0 0
    %547 = vmatprep.subr.bf16.mxu0 0
    %548 = vmatpush2.bf16.msra.mxu0 0
    %549 = vmatprep.subr.bf16.mxu0 0
    %550 = vmatpush2.bf16.msra.mxu0 0
    %551 = vmatprep.subr.bf16.mxu0 0
    %552 = vmatpush2.bf16.msra.mxu0 0
    %553 = vmatprep.subr.bf16.mxu0 0
    %554 = vmatpush2.bf16.msra.mxu0 0
    %555 = vmatprep.subr.bf16.mxu0 0
    %556 = vmatpush2.bf16.msra.mxu0 0
    %557 = vmatprep.subr.bf16.mxu0 0
    %558 = vmatpush2.bf16.msra.mxu0 0
    %559 = vmatprep.mubr.bf16.mxu0 0
    %560 = vmatmul.mubr.bf16.gmra.mxu0 %v320
    %v561 = vpop.f32.mrf.mxu0
    %v562 = vadd.f32 0.0, %v561
    %v563 = vpop.f32.mrf.mxu0
    %v564 = vpop.f32.mrf.mxu0
    %v565 = vpop.f32.mrf.mxu0
    %566 = vdwg.mxu0
    %v567 = vld [vmem:[#allocation5] sm:$0xff]
    %v568 = vld [vmem:[#allocation5 + $0x8] sm:$0x7]
    %v571 = vlaneseq
    %v572 = vshrl.u32 %v571, 7
    %v573 = vsub.s32 0, %v572
    %v574 = vrot.slane %v567, %v573
    %v575 = vlaneseq
    %v576 = vshrl.u32 %v575, 7
    %v577 = vsub.s32 1, %v576
    %v578 = vrot.slane %v567, %v577
    %v579 = vlaneseq
    %v580 = vshrl.u32 %v579, 7
    %v581 = vsub.s32 2, %v580
    %v582 = vrot.slane %v567, %v581
    %v583 = vlaneseq
    %v584 = vshrl.u32 %v583, 7
    %v585 = vsub.s32 3, %v584
    %v586 = vrot.slane %v567, %v585
    %v587 = vlaneseq
    %v588 = vshrl.u32 %v587, 7
    %v589 = vsub.s32 4, %v588
    %v590 = vrot.slane %v567, %v589
    %v591 = vlaneseq
    %v592 = vshrl.u32 %v591, 7
    %v593 = vsub.s32 5, %v592
    %v594 = vrot.slane %v567, %v593
    %v595 = vlaneseq
    %v596 = vshrl.u32 %v595, 7
    %v597 = vsub.s32 6, %v596
    %v598 = vrot.slane %v567, %v597
    %v599 = vlaneseq
    %v600 = vshrl.u32 %v599, 7
    %v601 = vsub.s32 7, %v600
    %v602 = vrot.slane %v567, %v601
    %v603 = vlaneseq
    %v604 = vshrl.u32 %v603, 7
    %v605 = vsub.s32 0, %v604
    %v606 = vrot.slane %v568, %v605
    %v607 = vlaneseq
    %v608 = vshrl.u32 %v607, 7
    %v609 = vsub.s32 1, %v608
    %v610 = vrot.slane %v568, %v609
    %v611 = vlaneseq
    %v612 = vshrl.u32 %v611, 7
    %v613 = vsub.s32 2, %v612
    %v614 = vrot.slane %v568, %v613
    %v626 = vmul.f32 %v357, %v574
    %v627 = vmul.f32 %v359, %v578
    %v628 = vmul.f32 %v398, %v582
    %v629 = vmul.f32 %v400, %v586
    %v630 = vmul.f32 %v439, %v590
    %v631 = vmul.f32 %v441, %v594
    %v632 = vmul.f32 %v480, %v598
    %v633 = vmul.f32 %v482, %v602
    %v634 = vmul.f32 %v521, %v606
    %v635 = vmul.f32 %v523, %v610
    %v636 = vmul.f32 %v562, %v614
    %v637 = vld [vmem:[#allocation7] sm:$0xff]
    %v638 = vld [vmem:[#allocation7 + $0x8] sm:$0x7]
    %v641 = vlaneseq
    %v642 = vshrl.u32 %v641, 7
    %v643 = vsub.s32 0, %v642
    %v644 = vrot.slane %v637, %v643
    %v645 = vlaneseq
    %v646 = vshrl.u32 %v645, 7
    %v647 = vsub.s32 1, %v646
    %v648 = vrot.slane %v637, %v647
    %v649 = vlaneseq
    %v650 = vshrl.u32 %v649, 7
    %v651 = vsub.s32 2, %v650
    %v652 = vrot.slane %v637, %v651
    %v653 = vlaneseq
    %v654 = vshrl.u32 %v653, 7
    %v655 = vsub.s32 3, %v654
    %v656 = vrot.slane %v637, %v655
    %v657 = vlaneseq
    %v658 = vshrl.u32 %v657, 7
    %v659 = vsub.s32 4, %v658
    %v660 = vrot.slane %v637, %v659
    %v661 = vlaneseq
    %v662 = vshrl.u32 %v661, 7
    %v663 = vsub.s32 5, %v662
    %v664 = vrot.slane %v637, %v663
    %v665 = vlaneseq
    %v666 = vshrl.u32 %v665, 7
    %v667 = vsub.s32 6, %v666
    %v668 = vrot.slane %v637, %v667
    %v669 = vlaneseq
    %v670 = vshrl.u32 %v669, 7
    %v671 = vsub.s32 7, %v670
    %v672 = vrot.slane %v637, %v671
    %v673 = vlaneseq
    %v674 = vshrl.u32 %v673, 7
    %v675 = vsub.s32 0, %v674
    %v676 = vrot.slane %v638, %v675
    %v677 = vlaneseq
    %v678 = vshrl.u32 %v677, 7
    %v679 = vsub.s32 1, %v678
    %v680 = vrot.slane %v638, %v679
    %v681 = vlaneseq
    %v682 = vshrl.u32 %v681, 7
    %v683 = vsub.s32 2, %v682
    %v684 = vrot.slane %v638, %v683
    %v696 = vadd.f32 %v626, %v644
    %v697 = vadd.f32 %v627, %v648
    %v698 = vadd.f32 %v628, %v652
    %v699 = vadd.f32 %v629, %v656
    %v700 = vadd.f32 %v630, %v660
    %v701 = vadd.f32 %v631, %v664
    %v702 = vadd.f32 %v632, %v668
    %v703 = vadd.f32 %v633, %v672
    %v704 = vadd.f32 %v634, %v676
    %v705 = vadd.f32 %v635, %v680
    %v706 = vadd.f32 %v636, %v684
    %v707 = vxor.u32 %v696, 2147483648
    %v708 = vxor.u32 %v697, 2147483648
    %v709 = vxor.u32 %v698, 2147483648
    %v710 = vxor.u32 %v699, 2147483648
    %v711 = vxor.u32 %v700, 2147483648
    %v712 = vxor.u32 %v701, 2147483648
    %v713 = vxor.u32 %v702, 2147483648
    %v714 = vxor.u32 %v703, 2147483648
    %v715 = vxor.u32 %v704, 2147483648
    %v716 = vxor.u32 %v705, 2147483648
    %v717 = vxor.u32 %v706, 2147483648
    %v718 = vmul.f32 %v707, 1.442695
    %v719 = vpow.pop %v718
    %v720 = vmul.f32 %v708, 1.442695
    %v721 = vpow.pop %v720
    %v722 = vmul.f32 %v709, 1.442695
    %v723 = vpow.pop %v722
    %v724 = vmul.f32 %v710, 1.442695
    %v725 = vpow.pop %v724
    %v726 = vmul.f32 %v711, 1.442695
    %v727 = vpow.pop %v726
    %v728 = vmul.f32 %v712, 1.442695
    %v729 = vpow.pop %v728
    %v730 = vmul.f32 %v713, 1.442695
    %v731 = vpow.pop %v730
    %v732 = vmul.f32 %v714, 1.442695
    %v733 = vpow.pop %v732
    %v734 = vmul.f32 %v715, 1.442695
    %v735 = vpow.pop %v734
    %v736 = vmul.f32 %v716, 1.442695
    %v737 = vpow.pop %v736
    %v738 = vmul.f32 %v717, 1.442695
    %v739 = vpow.pop %v738
    %v740 = vadd.f32 %v719, 1.0
    %v741 = vadd.f32 %v721, 1.0
    %v742 = vadd.f32 %v723, 1.0
    %v743 = vadd.f32 %v725, 1.0
    %v744 = vadd.f32 %v727, 1.0
    %v745 = vadd.f32 %v729, 1.0
    %v746 = vadd.f32 %v731, 1.0
    %v747 = vadd.f32 %v733, 1.0
    %v748 = vadd.f32 %v735, 1.0
    %v749 = vadd.f32 %v737, 1.0
    %v750 = vadd.f32 %v739, 1.0
    %v751 = vrcp.pop %v740
    %v752 = vmul.f32 1.0, %v751
    %v753 = vrcp.pop %v741
    %v754 = vmul.f32 1.0, %v753
    %v755 = vrcp.pop %v742
    %v756 = vmul.f32 1.0, %v755
    %v757 = vrcp.pop %v743
    %v758 = vmul.f32 1.0, %v757
    %v759 = vrcp.pop %v744
    %v760 = vmul.f32 1.0, %v759
    %v761 = vrcp.pop %v745
    %v762 = vmul.f32 1.0, %v761
    %v763 = vrcp.pop %v746
    %v764 = vmul.f32 1.0, %v763
    %v765 = vrcp.pop %v747
    %v766 = vmul.f32 1.0, %v765
    %v767 = vrcp.pop %v748
    %v768 = vmul.f32 1.0, %v767
    %v769 = vrcp.pop %v749
    %v770 = vmul.f32 1.0, %v769
    %v771 = vrcp.pop %v750
    %v772 = vmul.f32 1.0, %v771
    %v773 = vmul.f32 %v696, %v752
    %v774 = vmul.f32 %v697, %v754
    %v775 = vmul.f32 %v698, %v756
    %v776 = vmul.f32 %v699, %v758
    %v777 = vmul.f32 %v700, %v760
    %v778 = vmul.f32 %v701, %v762
    %v779 = vmul.f32 %v702, %v764
    %v780 = vmul.f32 %v703, %v766
    %v781 = vmul.f32 %v704, %v768
    %v782 = vmul.f32 %v705, %v770
    %v783 = vmul.f32 %v706, %v772
    %v784 = vpack.c.bf16 %v773, %v773
    %v785 = vpack.c.bf16 %v774, %v774
    %v786 = vpack.c.bf16 %v775, %v775
    %v787 = vpack.c.bf16 %v776, %v776
    %v788 = vpack.c.bf16 %v777, %v777
    %v789 = vpack.c.bf16 %v778, %v778
    %v790 = vpack.c.bf16 %v779, %v779
    %v791 = vpack.c.bf16 %v780, %v780
    %v792 = vpack.c.bf16 %v781, %v781
    %v793 = vpack.c.bf16 %v782, %v782
    %v794 = vpack.c.bf16 %v783, %v783
    %v795 = vld [vmem:[#allocation8] sm:$0xff]
    %v796 = vld [vmem:[#allocation8 + $0x8] sm:$0xff]
    %v797 = vld [vmem:[#allocation8 + $0x10] sm:$0xff]
    %v798 = vld [vmem:[#allocation8 + $0x18] sm:$0xff]
    %v799 = vld [vmem:[#allocation8 + $0x20] sm:$0xff]
    %v800 = vld [vmem:[#allocation8 + $0x28] sm:$0xff]
    %v801 = vld [vmem:[#allocation8 + $0x30] sm:$0xff]
    %v802 = vld [vmem:[#allocation8 + $0x38] sm:$0xff]
    %v803 = vld [vmem:[#allocation8 + $0x40] sm:$0xff]
    %v804 = vld [vmem:[#allocation8 + $0x48] sm:$0xff]
    %v805 = vld [vmem:[#allocation8 + $0x50] sm:$0xff]
    %v806 = vld [vmem:[#allocation8 + $0x58] sm:$0xff]
    %v807 = vld [vmem:[#allocation8 + $0x60] sm:$0xff]
    %v808 = vld [vmem:[#allocation8 + $0x68] sm:$0xff]
    %v809 = vld [vmem:[#allocation8 + $0x70] sm:$0xff]
    %v810 = vld [vmem:[#allocation8 + $0x78] sm:$0xff]
    %v811 = vld [vmem:[#allocation8 + $0x80] sm:$0xff]
    %v812 = vld [vmem:[#allocation8 + $0x88] sm:$0xff]
    %v813 = vld [vmem:[#allocation8 + $0x90] sm:$0xff]
    %v814 = vld [vmem:[#allocation8 + $0x98] sm:$0xff]
    %v815 = vld [vmem:[#allocation8 + $0xa0] sm:$0xff]
    %v816 = vld [vmem:[#allocation8 + $0xa8] sm:$0xff]
    %v817 = vld [vmem:[#allocation8 + $0xb0] sm:$0xff]
    %v818 = vld [vmem:[#allocation8 + $0xb8] sm:$0xff]
    %v819 = vld [vmem:[#allocation8 + $0xc0] sm:$0xff]
    %v820 = vld [vmem:[#allocation8 + $0xc8] sm:$0xff]
    %v821 = vld [vmem:[#allocation8 + $0xd0] sm:$0xff]
    %v822 = vld [vmem:[#allocation8 + $0xd8] sm:$0xff]
    %v823 = vld [vmem:[#allocation8 + $0xe0] sm:$0xff]
    %v824 = vld [vmem:[#allocation8 + $0xe8] sm:$0xff]
    %v825 = vld [vmem:[#allocation8 + $0xf0] sm:$0xff]
    %v826 = vld [vmem:[#allocation8 + $0xf8] sm:$0xff]
    %v827 = vld [vmem:[#allocation8 + $0x100] sm:$0xff]
    %v828 = vld [vmem:[#allocation8 + $0x108] sm:$0xff]
    %v829 = vld [vmem:[#allocation8 + $0x110] sm:$0xff]
    %v830 = vld [vmem:[#allocation8 + $0x118] sm:$0xff]
    %v831 = vld [vmem:[#allocation8 + $0x120] sm:$0xff]
    %v832 = vld [vmem:[#allocation8 + $0x128] sm:$0xff]
    %v833 = vld [vmem:[#allocation8 + $0x130] sm:$0xff]
    %v834 = vld [vmem:[#allocation8 + $0x138] sm:$0xff]
    %v835 = vld [vmem:[#allocation8 + $0x140] sm:$0xff]
    %v836 = vld [vmem:[#allocation8 + $0x148] sm:$0xff]
    %v837 = vld [vmem:[#allocation8 + $0x150] sm:$0xff]
    %v838 = vld [vmem:[#allocation8 + $0x158] sm:$0xff]
    %v839 = vld [vmem:[#allocation8 + $0x160] sm:$0xff]
    %v840 = vld [vmem:[#allocation8 + $0x168] sm:$0xff]
    %v841 = vld [vmem:[#allocation8 + $0x170] sm:$0xff]
    %v842 = vld [vmem:[#allocation8 + $0x178] sm:$0xff]
    %v843 = vld [vmem:[#allocation8 + $0x180] sm:$0xff]
    %v844 = vld [vmem:[#allocation8 + $0x188] sm:$0xff]
    %v845 = vld [vmem:[#allocation8 + $0x190] sm:$0xff]
    %v846 = vld [vmem:[#allocation8 + $0x198] sm:$0xff]
    %v847 = vld [vmem:[#allocation8 + $0x1a0] sm:$0xff]
    %v848 = vld [vmem:[#allocation8 + $0x1a8] sm:$0xff]
    %v849 = vld [vmem:[#allocation8 + $0x1b0] sm:$0xff]
    %v850 = vld [vmem:[#allocation8 + $0x1b8] sm:$0xff]
    %v851 = vld [vmem:[#allocation8 + $0x1c0] sm:$0xff]
    %v852 = vld [vmem:[#allocation8 + $0x1c8] sm:$0xff]
    %v853 = vld [vmem:[#allocation8 + $0x1d0] sm:$0xff]
    %v854 = vld [vmem:[#allocation8 + $0x1d8] sm:$0xff]
    %v855 = vld [vmem:[#allocation8 + $0x1e0] sm:$0xff]
    %v856 = vld [vmem:[#allocation8 + $0x1e8] sm:$0xff]
    %v857 = vld [vmem:[#allocation8 + $0x1f0] sm:$0xff]
    %v858 = vld [vmem:[#allocation8 + $0x1f8] sm:$0xff]
    %v859 = vld [vmem:[#allocation8 + $0x200] sm:$0xff]
    %v860 = vld [vmem:[#allocation8 + $0x208] sm:$0xff]
    %v861 = vld [vmem:[#allocation8 + $0x210] sm:$0xff]
    %v862 = vld [vmem:[#allocation8 + $0x218] sm:$0xff]
    %v863 = vld [vmem:[#allocation8 + $0x220] sm:$0xff]
    %v864 = vld [vmem:[#allocation8 + $0x228] sm:$0xff]
    %v865 = vld [vmem:[#allocation8 + $0x230] sm:$0xff]
    %v866 = vld [vmem:[#allocation8 + $0x238] sm:$0xff]
    %v867 = vld [vmem:[#allocation8 + $0x240] sm:$0xff]
    %v868 = vld [vmem:[#allocation8 + $0x248] sm:$0xff]
    %v869 = vld [vmem:[#allocation8 + $0x250] sm:$0xff]
    %v870 = vld [vmem:[#allocation8 + $0x258] sm:$0xff]
    %v871 = vld [vmem:[#allocation8 + $0x260] sm:$0xff]
    %v872 = vld [vmem:[#allocation8 + $0x268] sm:$0xff]
    %v873 = vld [vmem:[#allocation8 + $0x270] sm:$0xff]
    %v874 = vld [vmem:[#allocation8 + $0x278] sm:$0xff]
    %v875 = vld [vmem:[#allocation8 + $0x280] sm:$0xff]
    %v876 = vld [vmem:[#allocation8 + $0x288] sm:$0xff]
    %v877 = vld [vmem:[#allocation8 + $0x290] sm:$0xff]
    %v878 = vld [vmem:[#allocation8 + $0x298] sm:$0xff]
    %v879 = vld [vmem:[#allocation8 + $0x2a0] sm:$0xff]
    %v880 = vld [vmem:[#allocation8 + $0x2a8] sm:$0xff]
    %v881 = vld [vmem:[#allocation8 + $0x2b0] sm:$0xff]
    %v882 = vld [vmem:[#allocation8 + $0x2b8] sm:$0xff]
    %v883 = vld [vmem:[#allocation8 + $0x2c0] sm:$0xff]
    %v884 = vld [vmem:[#allocation8 + $0x2c8] sm:$0xff]
    %v885 = vld [vmem:[#allocation8 + $0x2d0] sm:$0xff]
    %v886 = vld [vmem:[#allocation8 + $0x2d8] sm:$0xff]
    %v887 = vld [vmem:[#allocation8 + $0x2e0] sm:$0xff]
    %v888 = vld [vmem:[#allocation8 + $0x2e8] sm:$0xff]
    %v889 = vld [vmem:[#allocation8 + $0x2f0] sm:$0xff]
    %v890 = vld [vmem:[#allocation8 + $0x2f8] sm:$0xff]
    %v891 = vld [vmem:[#allocation8 + $0x300] sm:$0xff]
    %v892 = vld [vmem:[#allocation8 + $0x308] sm:$0xff]
    %v893 = vld [vmem:[#allocation8 + $0x310] sm:$0xff]
    %v894 = vld [vmem:[#allocation8 + $0x318] sm:$0xff]
    %v895 = vld [vmem:[#allocation8 + $0x320] sm:$0xff]
    %v896 = vld [vmem:[#allocation8 + $0x328] sm:$0xff]
    %v897 = vld [vmem:[#allocation8 + $0x330] sm:$0xff]
    %v898 = vld [vmem:[#allocation8 + $0x338] sm:$0xff]
    %v899 = vld [vmem:[#allocation8 + $0x340] sm:$0xff]
    %v900 = vld [vmem:[#allocation8 + $0x348] sm:$0xff]
    %v901 = vld [vmem:[#allocation8 + $0x350] sm:$0xff]
    %v902 = vld [vmem:[#allocation8 + $0x358] sm:$0xff]
    %v903 = vld [vmem:[#allocation8 + $0x360] sm:$0xff]
    %v904 = vld [vmem:[#allocation8 + $0x368] sm:$0xff]
    %v905 = vld [vmem:[#allocation8 + $0x370] sm:$0xff]
    %v906 = vld [vmem:[#allocation8 + $0x378] sm:$0xff]
    %v907 = vld [vmem:[#allocation8 + $0x380] sm:$0xff]
    %v908 = vld [vmem:[#allocation8 + $0x388] sm:$0xff]
    %v909 = vld [vmem:[#allocation8 + $0x390] sm:$0xff]
    %v910 = vld [vmem:[#allocation8 + $0x398] sm:$0xff]
    %v911 = vld [vmem:[#allocation8 + $0x3a0] sm:$0xff]
    %v912 = vld [vmem:[#allocation8 + $0x3a8] sm:$0xff]
    %v913 = vld [vmem:[#allocation8 + $0x3b0] sm:$0xff]
    %v914 = vld [vmem:[#allocation8 + $0x3b8] sm:$0xff]
    %v915 = vld [vmem:[#allocation8 + $0x3c0] sm:$0xff]
    %v916 = vld [vmem:[#allocation8 + $0x3c8] sm:$0xff]
    %v917 = vld [vmem:[#allocation8 + $0x3d0] sm:$0xff]
    %v918 = vld [vmem:[#allocation8 + $0x3d8] sm:$0xff]
    %v919 = vld [vmem:[#allocation8 + $0x3e0] sm:$0xff]
    %v920 = vld [vmem:[#allocation8 + $0x3e8] sm:$0xff]
    %v921 = vld [vmem:[#allocation8 + $0x3f0] sm:$0xff]
    %v922 = vld [vmem:[#allocation8 + $0x3f8] sm:$0xff]
    %v923 = vld [vmem:[#allocation8 + $0x400] sm:$0xff]
    %v924 = vld [vmem:[#allocation8 + $0x408] sm:$0xff]
    %v925 = vld [vmem:[#allocation8 + $0x410] sm:$0xff]
    %v926 = vld [vmem:[#allocation8 + $0x418] sm:$0xff]
    %v927 = vld [vmem:[#allocation8 + $0x420] sm:$0xff]
    %v928 = vld [vmem:[#allocation8 + $0x428] sm:$0xff]
    %v929 = vld [vmem:[#allocation8 + $0x430] sm:$0xff]
    %v930 = vld [vmem:[#allocation8 + $0x438] sm:$0xff]
    %v931 = vld [vmem:[#allocation8 + $0x440] sm:$0xff]
    %v932 = vld [vmem:[#allocation8 + $0x448] sm:$0xff]
    %v933 = vld [vmem:[#allocation8 + $0x450] sm:$0xff]
    %v934 = vld [vmem:[#allocation8 + $0x458] sm:$0xff]
    %v935 = vld [vmem:[#allocation8 + $0x460] sm:$0xff]
    %v936 = vld [vmem:[#allocation8 + $0x468] sm:$0xff]
    %v937 = vld [vmem:[#allocation8 + $0x470] sm:$0xff]
    %v938 = vld [vmem:[#allocation8 + $0x478] sm:$0xff]
    %v939 = vld [vmem:[#allocation8 + $0x480] sm:$0xff]
    %v940 = vld [vmem:[#allocation8 + $0x488] sm:$0xff]
    %v941 = vld [vmem:[#allocation8 + $0x490] sm:$0xff]
    %v942 = vld [vmem:[#allocation8 + $0x498] sm:$0xff]
    %v943 = vld [vmem:[#allocation8 + $0x4a0] sm:$0xff]
    %v944 = vld [vmem:[#allocation8 + $0x4a8] sm:$0xff]
    %v945 = vld [vmem:[#allocation8 + $0x4b0] sm:$0xff]
    %v946 = vld [vmem:[#allocation8 + $0x4b8] sm:$0xff]
    %v947 = vld [vmem:[#allocation8 + $0x4c0] sm:$0xff]
    %v948 = vld [vmem:[#allocation8 + $0x4c8] sm:$0xff]
    %v949 = vld [vmem:[#allocation8 + $0x4d0] sm:$0xff]
    %v950 = vld [vmem:[#allocation8 + $0x4d8] sm:$0xff]
    %v951 = vld [vmem:[#allocation8 + $0x4e0] sm:$0xff]
    %v952 = vld [vmem:[#allocation8 + $0x4e8] sm:$0xff]
    %v953 = vld [vmem:[#allocation8 + $0x4f0] sm:$0xff]
    %v954 = vld [vmem:[#allocation8 + $0x4f8] sm:$0xff]
    %v955 = vld [vmem:[#allocation8 + $0x500] sm:$0xff]
    %v956 = vld [vmem:[#allocation8 + $0x508] sm:$0xff]
    %v957 = vld [vmem:[#allocation8 + $0x510] sm:$0xff]
    %v958 = vld [vmem:[#allocation8 + $0x518] sm:$0xff]
    %v959 = vld [vmem:[#allocation8 + $0x520] sm:$0xff]
    %v960 = vld [vmem:[#allocation8 + $0x528] sm:$0xff]
    %v961 = vld [vmem:[#allocation8 + $0x530] sm:$0xff]
    %v962 = vld [vmem:[#allocation8 + $0x538] sm:$0xff]
    %v963 = vld [vmem:[#allocation8 + $0x540] sm:$0xff]
    %v964 = vld [vmem:[#allocation8 + $0x548] sm:$0xff]
    %v965 = vld [vmem:[#allocation8 + $0x550] sm:$0xff]
    %v966 = vld [vmem:[#allocation8 + $0x558] sm:$0xff]
    %v967 = vld [vmem:[#allocation8 + $0x560] sm:$0xff]
    %v968 = vld [vmem:[#allocation8 + $0x568] sm:$0xff]
    %v969 = vld [vmem:[#allocation8 + $0x570] sm:$0xff]
    %v970 = vld [vmem:[#allocation8 + $0x578] sm:$0xff]
    %v971 = vld [vmem:[#allocation8 + $0x580] sm:$0xff]
    %v972 = vld [vmem:[#allocation8 + $0x588] sm:$0xff]
    %v973 = vld [vmem:[#allocation8 + $0x590] sm:$0xff]
    %v974 = vld [vmem:[#allocation8 + $0x598] sm:$0xff]
    %v975 = vld [vmem:[#allocation8 + $0x5a0] sm:$0xff]
    %v976 = vld [vmem:[#allocation8 + $0x5a8] sm:$0xff]
    %v977 = vld [vmem:[#allocation8 + $0x5b0] sm:$0xff]
    %v978 = vld [vmem:[#allocation8 + $0x5b8] sm:$0xff]
    %v979 = vld [vmem:[#allocation8 + $0x5c0] sm:$0xff]
    %v980 = vld [vmem:[#allocation8 + $0x5c8] sm:$0xff]
    %v981 = vld [vmem:[#allocation8 + $0x5d0] sm:$0xff]
    %v982 = vld [vmem:[#allocation8 + $0x5d8] sm:$0xff]
    %v983 = vld [vmem:[#allocation8 + $0x5e0] sm:$0xff]
    %v984 = vld [vmem:[#allocation8 + $0x5e8] sm:$0xff]
    %v985 = vld [vmem:[#allocation8 + $0x5f0] sm:$0xff]
    %v986 = vld [vmem:[#allocation8 + $0x5f8] sm:$0xff]
    %v987 = vld [vmem:[#allocation8 + $0x600] sm:$0xff]
    %v988 = vld [vmem:[#allocation8 + $0x608] sm:$0xff]
    %v989 = vld [vmem:[#allocation8 + $0x610] sm:$0xff]
    %v990 = vld [vmem:[#allocation8 + $0x618] sm:$0xff]
    %v991 = vld [vmem:[#allocation8 + $0x620] sm:$0xff]
    %v992 = vld [vmem:[#allocation8 + $0x628] sm:$0xff]
    %v993 = vld [vmem:[#allocation8 + $0x630] sm:$0xff]
    %v994 = vld [vmem:[#allocation8 + $0x638] sm:$0xff]
    %v995 = vld [vmem:[#allocation8 + $0x640] sm:$0xff]
    %v996 = vld [vmem:[#allocation8 + $0x648] sm:$0xff]
    %v997 = vld [vmem:[#allocation8 + $0x650] sm:$0xff]
    %v998 = vld [vmem:[#allocation8 + $0x658] sm:$0xff]
    %v999 = vld [vmem:[#allocation8 + $0x660] sm:$0xff]
    %v1000 = vld [vmem:[#allocation8 + $0x668] sm:$0xff]
    %v1001 = vld [vmem:[#allocation8 + $0x670] sm:$0xff]
    %v1002 = vld [vmem:[#allocation8 + $0x678] sm:$0xff]
    %v1003 = vld [vmem:[#allocation8 + $0x680] sm:$0xff]
    %v1004 = vld [vmem:[#allocation8 + $0x688] sm:$0xff]
    %v1005 = vld [vmem:[#allocation8 + $0x690] sm:$0xff]
    %v1006 = vld [vmem:[#allocation8 + $0x698] sm:$0xff]
    %v1007 = vld [vmem:[#allocation8 + $0x6a0] sm:$0xff]
    %v1008 = vld [vmem:[#allocation8 + $0x6a8] sm:$0xff]
    %v1009 = vld [vmem:[#allocation8 + $0x6b0] sm:$0xff]
    %v1010 = vld [vmem:[#allocation8 + $0x6b8] sm:$0xff]
    %v1011 = vld [vmem:[#allocation8 + $0x6c0] sm:$0xff]
    %v1012 = vld [vmem:[#allocation8 + $0x6c8] sm:$0xff]
    %v1013 = vld [vmem:[#allocation8 + $0x6d0] sm:$0xff]
    %v1014 = vld [vmem:[#allocation8 + $0x6d8] sm:$0xff]
    %v1015 = vld [vmem:[#allocation8 + $0x6e0] sm:$0xff]
    %v1016 = vld [vmem:[#allocation8 + $0x6e8] sm:$0xff]
    %v1017 = vld [vmem:[#allocation8 + $0x6f0] sm:$0xff]
    %v1018 = vld [vmem:[#allocation8 + $0x6f8] sm:$0xff]
    %v1019 = vld [vmem:[#allocation8 + $0x700] sm:$0xff]
    %v1020 = vld [vmem:[#allocation8 + $0x708] sm:$0xff]
    %v1021 = vld [vmem:[#allocation8 + $0x710] sm:$0xff]
    %v1022 = vld [vmem:[#allocation8 + $0x718] sm:$0xff]
    %v1023 = vld [vmem:[#allocation8 + $0x720] sm:$0xff]
    %v1024 = vld [vmem:[#allocation8 + $0x728] sm:$0xff]
    %v1025 = vld [vmem:[#allocation8 + $0x730] sm:$0xff]
    %v1026 = vld [vmem:[#allocation8 + $0x738] sm:$0xff]
    %v1027 = vld [vmem:[#allocation8 + $0x740] sm:$0xff]
    %v1028 = vld [vmem:[#allocation8 + $0x748] sm:$0xff]
    %v1029 = vld [vmem:[#allocation8 + $0x750] sm:$0xff]
    %v1030 = vld [vmem:[#allocation8 + $0x758] sm:$0xff]
    %v1031 = vld [vmem:[#allocation8 + $0x760] sm:$0xff]
    %v1032 = vld [vmem:[#allocation8 + $0x768] sm:$0xff]
    %v1033 = vld [vmem:[#allocation8 + $0x770] sm:$0xff]
    %v1034 = vld [vmem:[#allocation8 + $0x778] sm:$0xff]
    %v1035 = vld [vmem:[#allocation8 + $0x780] sm:$0xff]
    %v1036 = vld [vmem:[#allocation8 + $0x788] sm:$0xff]
    %v1037 = vld [vmem:[#allocation8 + $0x790] sm:$0xff]
    %v1038 = vld [vmem:[#allocation8 + $0x798] sm:$0xff]
    %v1039 = vld [vmem:[#allocation8 + $0x7a0] sm:$0xff]
    %v1040 = vld [vmem:[#allocation8 + $0x7a8] sm:$0xff]
    %v1041 = vld [vmem:[#allocation8 + $0x7b0] sm:$0xff]
    %v1042 = vld [vmem:[#allocation8 + $0x7b8] sm:$0xff]
    %v1043 = vld [vmem:[#allocation8 + $0x7c0] sm:$0xff]
    %v1044 = vld [vmem:[#allocation8 + $0x7c8] sm:$0xff]
    %v1045 = vld [vmem:[#allocation8 + $0x7d0] sm:$0xff]
    %v1046 = vld [vmem:[#allocation8 + $0x7d8] sm:$0xff]
    %v1047 = vld [vmem:[#allocation8 + $0x7e0] sm:$0xff]
    %v1048 = vld [vmem:[#allocation8 + $0x7e8] sm:$0xff]
    %v1049 = vld [vmem:[#allocation8 + $0x7f0] sm:$0xff]
    %v1050 = vld [vmem:[#allocation8 + $0x7f8] sm:$0xff]
    %v1051 = vld [vmem:[#allocation8 + $0x800] sm:$0xff]
    %v1052 = vld [vmem:[#allocation8 + $0x808] sm:$0xff]
    %v1053 = vld [vmem:[#allocation8 + $0x810] sm:$0xff]
    %v1054 = vld [vmem:[#allocation8 + $0x818] sm:$0xff]
    %v1055 = vld [vmem:[#allocation8 + $0x820] sm:$0xff]
    %v1056 = vld [vmem:[#allocation8 + $0x828] sm:$0xff]
    %v1057 = vld [vmem:[#allocation8 + $0x830] sm:$0xff]
    %v1058 = vld [vmem:[#allocation8 + $0x838] sm:$0xff]
    %v1059 = vld [vmem:[#allocation8 + $0x840] sm:$0xff]
    %v1060 = vld [vmem:[#allocation8 + $0x848] sm:$0xff]
    %v1061 = vld [vmem:[#allocation8 + $0x850] sm:$0xff]
    %v1062 = vld [vmem:[#allocation8 + $0x858] sm:$0xff]
    %v1063 = vld [vmem:[#allocation8 + $0x860] sm:$0xff]
    %v1064 = vld [vmem:[#allocation8 + $0x868] sm:$0xff]
    %v1065 = vld [vmem:[#allocation8 + $0x870] sm:$0xff]
    %v1066 = vld [vmem:[#allocation8 + $0x878] sm:$0xff]
    %v1067 = vld [vmem:[#allocation8 + $0x880] sm:$0xff]
    %v1068 = vld [vmem:[#allocation8 + $0x888] sm:$0xff]
    %v1069 = vld [vmem:[#allocation8 + $0x890] sm:$0xff]
    %v1070 = vld [vmem:[#allocation8 + $0x898] sm:$0xff]
    %v1071 = vld [vmem:[#allocation8 + $0x8a0] sm:$0xff]
    %v1072 = vld [vmem:[#allocation8 + $0x8a8] sm:$0xff]
    %v1073 = vld [vmem:[#allocation8 + $0x8b0] sm:$0xff]
    %v1074 = vld [vmem:[#allocation8 + $0x8b8] sm:$0xff]
    %v1075 = vld [vmem:[#allocation8 + $0x8c0] sm:$0xff]
    %v1076 = vld [vmem:[#allocation8 + $0x8c8] sm:$0xff]
    %v1077 = vld [vmem:[#allocation8 + $0x8d0] sm:$0xff]
    %v1078 = vld [vmem:[#allocation8 + $0x8d8] sm:$0xff]
    %v1079 = vld [vmem:[#allocation8 + $0x8e0] sm:$0xff]
    %v1080 = vld [vmem:[#allocation8 + $0x8e8] sm:$0xff]
    %v1081 = vld [vmem:[#allocation8 + $0x8f0] sm:$0xff]
    %v1082 = vld [vmem:[#allocation8 + $0x8f8] sm:$0xff]
    %v1083 = vld [vmem:[#allocation8 + $0x900] sm:$0xff]
    %v1084 = vld [vmem:[#allocation8 + $0x908] sm:$0xff]
    %v1085 = vld [vmem:[#allocation8 + $0x910] sm:$0xff]
    %v1086 = vld [vmem:[#allocation8 + $0x918] sm:$0xff]
    %v1087 = vld [vmem:[#allocation8 + $0x920] sm:$0xff]
    %v1088 = vld [vmem:[#allocation8 + $0x928] sm:$0xff]
    %v1089 = vld [vmem:[#allocation8 + $0x930] sm:$0xff]
    %v1090 = vld [vmem:[#allocation8 + $0x938] sm:$0xff]
    %v1091 = vld [vmem:[#allocation8 + $0x940] sm:$0xff]
    %v1092 = vld [vmem:[#allocation8 + $0x948] sm:$0xff]
    %v1093 = vld [vmem:[#allocation8 + $0x950] sm:$0xff]
    %v1094 = vld [vmem:[#allocation8 + $0x958] sm:$0xff]
    %v1095 = vld [vmem:[#allocation8 + $0x960] sm:$0xff]
    %v1096 = vld [vmem:[#allocation8 + $0x968] sm:$0xff]
    %v1097 = vld [vmem:[#allocation8 + $0x970] sm:$0xff]
    %v1098 = vld [vmem:[#allocation8 + $0x978] sm:$0xff]
    %v1099 = vld [vmem:[#allocation8 + $0x980] sm:$0xff]
    %v1100 = vld [vmem:[#allocation8 + $0x988] sm:$0xff]
    %v1101 = vld [vmem:[#allocation8 + $0x990] sm:$0xff]
    %v1102 = vld [vmem:[#allocation8 + $0x998] sm:$0xff]
    %v1103 = vld [vmem:[#allocation8 + $0x9a0] sm:$0xff]
    %v1104 = vld [vmem:[#allocation8 + $0x9a8] sm:$0xff]
    %v1105 = vld [vmem:[#allocation8 + $0x9b0] sm:$0xff]
    %v1106 = vld [vmem:[#allocation8 + $0x9b8] sm:$0xff]
    %v1107 = vld [vmem:[#allocation8 + $0x9c0] sm:$0xff]
    %v1108 = vld [vmem:[#allocation8 + $0x9c8] sm:$0xff]
    %v1109 = vld [vmem:[#allocation8 + $0x9d0] sm:$0xff]
    %v1110 = vld [vmem:[#allocation8 + $0x9d8] sm:$0xff]
    %v1111 = vld [vmem:[#allocation8 + $0x9e0] sm:$0xff]
    %v1112 = vld [vmem:[#allocation8 + $0x9e8] sm:$0xff]
    %v1113 = vld [vmem:[#allocation8 + $0x9f0] sm:$0xff]
    %v1114 = vld [vmem:[#allocation8 + $0x9f8] sm:$0xff]
    %v1115 = vld [vmem:[#allocation8 + $0xa00] sm:$0xff]
    %v1116 = vld [vmem:[#allocation8 + $0xa08] sm:$0xff]
    %v1117 = vld [vmem:[#allocation8 + $0xa10] sm:$0xff]
    %v1118 = vld [vmem:[#allocation8 + $0xa18] sm:$0xff]
    %v1119 = vld [vmem:[#allocation8 + $0xa20] sm:$0xff]
    %v1120 = vld [vmem:[#allocation8 + $0xa28] sm:$0xff]
    %v1121 = vld [vmem:[#allocation8 + $0xa30] sm:$0xff]
    %v1122 = vld [vmem:[#allocation8 + $0xa38] sm:$0xff]
    %v1123 = vld [vmem:[#allocation8 + $0xa40] sm:$0xff]
    %v1124 = vld [vmem:[#allocation8 + $0xa48] sm:$0xff]
    %v1125 = vld [vmem:[#allocation8 + $0xa50] sm:$0xff]
    %v1126 = vld [vmem:[#allocation8 + $0xa58] sm:$0xff]
    %v1127 = vld [vmem:[#allocation8 + $0xa60] sm:$0xff]
    %v1128 = vld [vmem:[#allocation8 + $0xa68] sm:$0xff]
    %v1129 = vld [vmem:[#allocation8 + $0xa70] sm:$0xff]
    %v1130 = vld [vmem:[#allocation8 + $0xa78] sm:$0xff]
    %v1131 = vld [vmem:[#allocation8 + $0xa80] sm:$0xff]
    %v1132 = vld [vmem:[#allocation8 + $0xa88] sm:$0xff]
    %v1133 = vld [vmem:[#allocation8 + $0xa90] sm:$0xff]
    %v1134 = vld [vmem:[#allocation8 + $0xa98] sm:$0xff]
    %v1135 = vld [vmem:[#allocation8 + $0xaa0] sm:$0xff]
    %v1136 = vld [vmem:[#allocation8 + $0xaa8] sm:$0xff]
    %v1137 = vld [vmem:[#allocation8 + $0xab0] sm:$0xff]
    %v1138 = vld [vmem:[#allocation8 + $0xab8] sm:$0xff]
    %v1139 = vld [vmem:[#allocation8 + $0xac0] sm:$0xff]
    %v1140 = vld [vmem:[#allocation8 + $0xac8] sm:$0xff]
    %v1141 = vld [vmem:[#allocation8 + $0xad0] sm:$0xff]
    %v1142 = vld [vmem:[#allocation8 + $0xad8] sm:$0xff]
    %v1143 = vld [vmem:[#allocation8 + $0xae0] sm:$0xff]
    %v1144 = vld [vmem:[#allocation8 + $0xae8] sm:$0xff]
    %v1145 = vld [vmem:[#allocation8 + $0xaf0] sm:$0xff]
    %v1146 = vld [vmem:[#allocation8 + $0xaf8] sm:$0xff]
    %v1147 = vld [vmem:[#allocation8 + $0xb00] sm:$0xff]
    %v1148 = vld [vmem:[#allocation8 + $0xb08] sm:$0xff]
    %v1149 = vld [vmem:[#allocation8 + $0xb10] sm:$0xff]
    %v1150 = vld [vmem:[#allocation8 + $0xb18] sm:$0xff]
    %v1151 = vld [vmem:[#allocation8 + $0xb20] sm:$0xff]
    %v1152 = vld [vmem:[#allocation8 + $0xb28] sm:$0xff]
    %v1153 = vld [vmem:[#allocation8 + $0xb30] sm:$0xff]
    %v1154 = vld [vmem:[#allocation8 + $0xb38] sm:$0xff]
    %v1155 = vld [vmem:[#allocation8 + $0xb40] sm:$0xff]
    %v1156 = vld [vmem:[#allocation8 + $0xb48] sm:$0xff]
    %v1157 = vld [vmem:[#allocation8 + $0xb50] sm:$0xff]
    %v1158 = vld [vmem:[#allocation8 + $0xb58] sm:$0xff]
    %v1159 = vld [vmem:[#allocation8 + $0xb60] sm:$0xff]
    %v1160 = vld [vmem:[#allocation8 + $0xb68] sm:$0xff]
    %v1161 = vld [vmem:[#allocation8 + $0xb70] sm:$0xff]
    %v1162 = vld [vmem:[#allocation8 + $0xb78] sm:$0xff]
    %v1163 = vld [vmem:[#allocation8 + $0xb80] sm:$0xff]
    %v1164 = vld [vmem:[#allocation8 + $0xb88] sm:$0xff]
    %v1165 = vld [vmem:[#allocation8 + $0xb90] sm:$0xff]
    %v1166 = vld [vmem:[#allocation8 + $0xb98] sm:$0xff]
    %v1167 = vld [vmem:[#allocation8 + $0xba0] sm:$0xff]
    %v1168 = vld [vmem:[#allocation8 + $0xba8] sm:$0xff]
    %v1169 = vld [vmem:[#allocation8 + $0xbb0] sm:$0xff]
    %v1170 = vld [vmem:[#allocation8 + $0xbb8] sm:$0xff]
    %v1171 = vld [vmem:[#allocation8 + $0xbc0] sm:$0xff]
    %v1172 = vld [vmem:[#allocation8 + $0xbc8] sm:$0xff]
    %v1173 = vld [vmem:[#allocation8 + $0xbd0] sm:$0xff]
    %v1174 = vld [vmem:[#allocation8 + $0xbd8] sm:$0xff]
    %v1175 = vld [vmem:[#allocation8 + $0xbe0] sm:$0xff]
    %v1176 = vld [vmem:[#allocation8 + $0xbe8] sm:$0xff]
    %v1177 = vld [vmem:[#allocation8 + $0xbf0] sm:$0xff]
    %v1178 = vld [vmem:[#allocation8 + $0xbf8] sm:$0xff]
    %v1179 = vld [vmem:[#allocation8 + $0xc00] sm:$0xff]
    %v1180 = vld [vmem:[#allocation8 + $0xc08] sm:$0xff]
    %v1181 = vld [vmem:[#allocation8 + $0xc10] sm:$0xff]
    %v1182 = vld [vmem:[#allocation8 + $0xc18] sm:$0xff]
    %v1183 = vld [vmem:[#allocation8 + $0xc20] sm:$0xff]
    %v1184 = vld [vmem:[#allocation8 + $0xc28] sm:$0xff]
    %v1185 = vld [vmem:[#allocation8 + $0xc30] sm:$0xff]
    %v1186 = vld [vmem:[#allocation8 + $0xc38] sm:$0xff]
    %v1187 = vld [vmem:[#allocation8 + $0xc40] sm:$0xff]
    %v1188 = vld [vmem:[#allocation8 + $0xc48] sm:$0xff]
    %v1189 = vld [vmem:[#allocation8 + $0xc50] sm:$0xff]
    %v1190 = vld [vmem:[#allocation8 + $0xc58] sm:$0xff]
    %v1191 = vld [vmem:[#allocation8 + $0xc60] sm:$0xff]
    %v1192 = vld [vmem:[#allocation8 + $0xc68] sm:$0xff]
    %v1193 = vld [vmem:[#allocation8 + $0xc70] sm:$0xff]
    %v1194 = vld [vmem:[#allocation8 + $0xc78] sm:$0xff]
    %v1195 = vld [vmem:[#allocation8 + $0xc80] sm:$0xff]
    %v1196 = vld [vmem:[#allocation8 + $0xc88] sm:$0xff]
    %v1197 = vld [vmem:[#allocation8 + $0xc90] sm:$0xff]
    %v1198 = vld [vmem:[#allocation8 + $0xc98] sm:$0xff]
    %v1199 = vld [vmem:[#allocation8 + $0xca0] sm:$0xff]
    %v1200 = vld [vmem:[#allocation8 + $0xca8] sm:$0xff]
    %v1201 = vld [vmem:[#allocation8 + $0xcb0] sm:$0xff]
    %v1202 = vld [vmem:[#allocation8 + $0xcb8] sm:$0xff]
    %v1203 = vld [vmem:[#allocation8 + $0xcc0] sm:$0xff]
    %v1204 = vld [vmem:[#allocation8 + $0xcc8] sm:$0xff]
    %v1205 = vld [vmem:[#allocation8 + $0xcd0] sm:$0xff]
    %v1206 = vld [vmem:[#allocation8 + $0xcd8] sm:$0xff]
    %v1207 = vld [vmem:[#allocation8 + $0xce0] sm:$0xff]
    %v1208 = vld [vmem:[#allocation8 + $0xce8] sm:$0xff]
    %v1209 = vld [vmem:[#allocation8 + $0xcf0] sm:$0xff]
    %v1210 = vld [vmem:[#allocation8 + $0xcf8] sm:$0xff]
    %v1211 = vld [vmem:[#allocation8 + $0xd00] sm:$0xff]
    %v1212 = vld [vmem:[#allocation8 + $0xd08] sm:$0xff]
    %v1213 = vld [vmem:[#allocation8 + $0xd10] sm:$0xff]
    %v1214 = vld [vmem:[#allocation8 + $0xd18] sm:$0xff]
    %v1215 = vld [vmem:[#allocation8 + $0xd20] sm:$0xff]
    %v1216 = vld [vmem:[#allocation8 + $0xd28] sm:$0xff]
    %v1217 = vld [vmem:[#allocation8 + $0xd30] sm:$0xff]
    %v1218 = vld [vmem:[#allocation8 + $0xd38] sm:$0xff]
    %v1219 = vld [vmem:[#allocation8 + $0xd40] sm:$0xff]
    %v1220 = vld [vmem:[#allocation8 + $0xd48] sm:$0xff]
    %v1221 = vld [vmem:[#allocation8 + $0xd50] sm:$0xff]
    %v1222 = vld [vmem:[#allocation8 + $0xd58] sm:$0xff]
    %v1223 = vld [vmem:[#allocation8 + $0xd60] sm:$0xff]
    %v1224 = vld [vmem:[#allocation8 + $0xd68] sm:$0xff]
    %v1225 = vld [vmem:[#allocation8 + $0xd70] sm:$0xff]
    %v1226 = vld [vmem:[#allocation8 + $0xd78] sm:$0xff]
    %v1227 = vld [vmem:[#allocation8 + $0xd80] sm:$0xff]
    %v1228 = vld [vmem:[#allocation8 + $0xd88] sm:$0xff]
    %v1229 = vld [vmem:[#allocation8 + $0xd90] sm:$0xff]
    %v1230 = vld [vmem:[#allocation8 + $0xd98] sm:$0xff]
    %v1231 = vld [vmem:[#allocation8 + $0xda0] sm:$0xff]
    %v1232 = vld [vmem:[#allocation8 + $0xda8] sm:$0xff]
    %v1233 = vld [vmem:[#allocation8 + $0xdb0] sm:$0xff]
    %v1234 = vld [vmem:[#allocation8 + $0xdb8] sm:$0xff]
    %v1235 = vld [vmem:[#allocation8 + $0xdc0] sm:$0xff]
    %v1236 = vld [vmem:[#allocation8 + $0xdc8] sm:$0xff]
    %v1237 = vld [vmem:[#allocation8 + $0xdd0] sm:$0xff]
    %v1238 = vld [vmem:[#allocation8 + $0xdd8] sm:$0xff]
    %v1239 = vld [vmem:[#allocation8 + $0xde0] sm:$0xff]
    %v1240 = vld [vmem:[#allocation8 + $0xde8] sm:$0xff]
    %v1241 = vld [vmem:[#allocation8 + $0xdf0] sm:$0xff]
    %v1242 = vld [vmem:[#allocation8 + $0xdf8] sm:$0xff]
    %v1243 = vld [vmem:[#allocation8 + $0xe00] sm:$0xff]
    %v1244 = vld [vmem:[#allocation8 + $0xe08] sm:$0xff]
    %v1245 = vld [vmem:[#allocation8 + $0xe10] sm:$0xff]
    %v1246 = vld [vmem:[#allocation8 + $0xe18] sm:$0xff]
    %v1247 = vld [vmem:[#allocation8 + $0xe20] sm:$0xff]
    %v1248 = vld [vmem:[#allocation8 + $0xe28] sm:$0xff]
    %v1249 = vld [vmem:[#allocation8 + $0xe30] sm:$0xff]
    %v1250 = vld [vmem:[#allocation8 + $0xe38] sm:$0xff]
    %v1251 = vld [vmem:[#allocation8 + $0xe40] sm:$0xff]
    %v1252 = vld [vmem:[#allocation8 + $0xe48] sm:$0xff]
    %v1253 = vld [vmem:[#allocation8 + $0xe50] sm:$0xff]
    %v1254 = vld [vmem:[#allocation8 + $0xe58] sm:$0xff]
    %v1255 = vld [vmem:[#allocation8 + $0xe60] sm:$0xff]
    %v1256 = vld [vmem:[#allocation8 + $0xe68] sm:$0xff]
    %v1257 = vld [vmem:[#allocation8 + $0xe70] sm:$0xff]
    %v1258 = vld [vmem:[#allocation8 + $0xe78] sm:$0xff]
    %v1259 = vld [vmem:[#allocation8 + $0xe80] sm:$0xff]
    %v1260 = vld [vmem:[#allocation8 + $0xe88] sm:$0xff]
    %v1261 = vld [vmem:[#allocation8 + $0xe90] sm:$0xff]
    %v1262 = vld [vmem:[#allocation8 + $0xe98] sm:$0xff]
    %v1263 = vld [vmem:[#allocation8 + $0xea0] sm:$0xff]
    %v1264 = vld [vmem:[#allocation8 + $0xea8] sm:$0xff]
    %v1265 = vld [vmem:[#allocation8 + $0xeb0] sm:$0xff]
    %v1266 = vld [vmem:[#allocation8 + $0xeb8] sm:$0xff]
    %v1267 = vld [vmem:[#allocation8 + $0xec0] sm:$0xff]
    %v1268 = vld [vmem:[#allocation8 + $0xec8] sm:$0xff]
    %v1269 = vld [vmem:[#allocation8 + $0xed0] sm:$0xff]
    %v1270 = vld [vmem:[#allocation8 + $0xed8] sm:$0xff]
    %v1271 = vld [vmem:[#allocation8 + $0xee0] sm:$0xff]
    %v1272 = vld [vmem:[#allocation8 + $0xee8] sm:$0xff]
    %v1273 = vld [vmem:[#allocation8 + $0xef0] sm:$0xff]
    %v1274 = vld [vmem:[#allocation8 + $0xef8] sm:$0xff]
    %v1275 = vld [vmem:[#allocation8 + $0xf00] sm:$0xff]
    %v1276 = vld [vmem:[#allocation8 + $0xf08] sm:$0xff]
    %v1277 = vld [vmem:[#allocation8 + $0xf10] sm:$0xff]
    %v1278 = vld [vmem:[#allocation8 + $0xf18] sm:$0xff]
    %v1279 = vld [vmem:[#allocation8 + $0xf20] sm:$0xff]
    %v1280 = vld [vmem:[#allocation8 + $0xf28] sm:$0xff]
    %v1281 = vld [vmem:[#allocation8 + $0xf30] sm:$0xff]
    %v1282 = vld [vmem:[#allocation8 + $0xf38] sm:$0xff]
    %v1283 = vld [vmem:[#allocation8 + $0xf40] sm:$0xff]
    %v1284 = vld [vmem:[#allocation8 + $0xf48] sm:$0xff]
    %v1285 = vld [vmem:[#allocation8 + $0xf50] sm:$0xff]
    %v1286 = vld [vmem:[#allocation8 + $0xf58] sm:$0xff]
    %v1287 = vld [vmem:[#allocation8 + $0xf60] sm:$0xff]
    %v1288 = vld [vmem:[#allocation8 + $0xf68] sm:$0xff]
    %v1289 = vld [vmem:[#allocation8 + $0xf70] sm:$0xff]
    %v1290 = vld [vmem:[#allocation8 + $0xf78] sm:$0xff]
    %v1291 = vld [vmem:[#allocation8 + $0xf80] sm:$0xff]
    %v1292 = vld [vmem:[#allocation8 + $0xf88] sm:$0xff]
    %v1293 = vld [vmem:[#allocation8 + $0xf90] sm:$0xff]
    %v1294 = vld [vmem:[#allocation8 + $0xf98] sm:$0xff]
    %v1295 = vld [vmem:[#allocation8 + $0xfa0] sm:$0xff]
    %v1296 = vld [vmem:[#allocation8 + $0xfa8] sm:$0xff]
    %v1297 = vld [vmem:[#allocation8 + $0xfb0] sm:$0xff]
    %v1298 = vld [vmem:[#allocation8 + $0xfb8] sm:$0xff]
    %v1299 = vld [vmem:[#allocation8 + $0xfc0] sm:$0xff]
    %v1300 = vld [vmem:[#allocation8 + $0xfc8] sm:$0xff]
    %v1301 = vld [vmem:[#allocation8 + $0xfd0] sm:$0xff]
    %v1302 = vld [vmem:[#allocation8 + $0xfd8] sm:$0xff]
    %v1303 = vld [vmem:[#allocation8 + $0xfe0] sm:$0xff]
    %v1304 = vld [vmem:[#allocation8 + $0xfe8] sm:$0xff]
    %v1305 = vld [vmem:[#allocation8 + $0xff0] sm:$0xff]
    %v1306 = vld [vmem:[#allocation8 + $0xff8] sm:$0xff]
    %v1307 = vld [vmem:[#allocation8 + $0x1000] sm:$0xff]
    %v1308 = vld [vmem:[#allocation8 + $0x1008] sm:$0xff]
    %v1309 = vld [vmem:[#allocation8 + $0x1010] sm:$0xff]
    %v1310 = vld [vmem:[#allocation8 + $0x1018] sm:$0xff]
    %v1311 = vld [vmem:[#allocation8 + $0x1020] sm:$0xff]
    %v1312 = vld [vmem:[#allocation8 + $0x1028] sm:$0xff]
    %v1313 = vld [vmem:[#allocation8 + $0x1030] sm:$0xff]
    %v1314 = vld [vmem:[#allocation8 + $0x1038] sm:$0xff]
    %v1315 = vld [vmem:[#allocation8 + $0x1040] sm:$0xff]
    %v1316 = vld [vmem:[#allocation8 + $0x1048] sm:$0xff]
    %v1317 = vld [vmem:[#allocation8 + $0x1050] sm:$0xff]
    %v1318 = vld [vmem:[#allocation8 + $0x1058] sm:$0xff]
    %v1319 = vld [vmem:[#allocation8 + $0x1060] sm:$0xff]
    %v1320 = vld [vmem:[#allocation8 + $0x1068] sm:$0xff]
    %v1321 = vld [vmem:[#allocation8 + $0x1070] sm:$0xff]
    %v1322 = vld [vmem:[#allocation8 + $0x1078] sm:$0xff]
    %v1323 = vld [vmem:[#allocation8 + $0x1080] sm:$0xff]
    %v1324 = vld [vmem:[#allocation8 + $0x1088] sm:$0xff]
    %v1325 = vld [vmem:[#allocation8 + $0x1090] sm:$0xff]
    %v1326 = vld [vmem:[#allocation8 + $0x1098] sm:$0xff]
    %v1327 = vld [vmem:[#allocation8 + $0x10a0] sm:$0xff]
    %v1328 = vld [vmem:[#allocation8 + $0x10a8] sm:$0xff]
    %v1329 = vld [vmem:[#allocation8 + $0x10b0] sm:$0xff]
    %v1330 = vld [vmem:[#allocation8 + $0x10b8] sm:$0xff]
    %v1331 = vld [vmem:[#allocation8 + $0x10c0] sm:$0xff]
    %v1332 = vld [vmem:[#allocation8 + $0x10c8] sm:$0xff]
    %v1333 = vld [vmem:[#allocation8 + $0x10d0] sm:$0xff]
    %v1334 = vld [vmem:[#allocation8 + $0x10d8] sm:$0xff]
    %v1335 = vld [vmem:[#allocation8 + $0x10e0] sm:$0xff]
    %v1336 = vld [vmem:[#allocation8 + $0x10e8] sm:$0xff]
    %v1337 = vld [vmem:[#allocation8 + $0x10f0] sm:$0xff]
    %v1338 = vld [vmem:[#allocation8 + $0x10f8] sm:$0xff]
    %v1339 = vld [vmem:[#allocation8 + $0x1100] sm:$0xff]
    %v1340 = vld [vmem:[#allocation8 + $0x1108] sm:$0xff]
    %v1341 = vld [vmem:[#allocation8 + $0x1110] sm:$0xff]
    %v1342 = vld [vmem:[#allocation8 + $0x1118] sm:$0xff]
    %v1343 = vld [vmem:[#allocation8 + $0x1120] sm:$0xff]
    %v1344 = vld [vmem:[#allocation8 + $0x1128] sm:$0xff]
    %v1345 = vld [vmem:[#allocation8 + $0x1130] sm:$0xff]
    %v1346 = vld [vmem:[#allocation8 + $0x1138] sm:$0xff]
    %v1347 = vld [vmem:[#allocation8 + $0x1140] sm:$0xff]
    %v1348 = vld [vmem:[#allocation8 + $0x1148] sm:$0xff]
    %v1349 = vld [vmem:[#allocation8 + $0x1150] sm:$0xff]
    %v1350 = vld [vmem:[#allocation8 + $0x1158] sm:$0xff]
    %v1351 = vld [vmem:[#allocation8 + $0x1160] sm:$0xff]
    %v1352 = vld [vmem:[#allocation8 + $0x1168] sm:$0xff]
    %v1353 = vld [vmem:[#allocation8 + $0x1170] sm:$0xff]
    %v1354 = vld [vmem:[#allocation8 + $0x1178] sm:$0xff]
    %v1355 = vld [vmem:[#allocation8 + $0x1180] sm:$0xff]
    %v1356 = vld [vmem:[#allocation8 + $0x1188] sm:$0xff]
    %v1357 = vld [vmem:[#allocation8 + $0x1190] sm:$0xff]
    %v1358 = vld [vmem:[#allocation8 + $0x1198] sm:$0xff]
    %v1359 = vld [vmem:[#allocation8 + $0x11a0] sm:$0xff]
    %v1360 = vld [vmem:[#allocation8 + $0x11a8] sm:$0xff]
    %v1361 = vld [vmem:[#allocation8 + $0x11b0] sm:$0xff]
    %v1362 = vld [vmem:[#allocation8 + $0x11b8] sm:$0xff]
    %v1363 = vld [vmem:[#allocation8 + $0x11c0] sm:$0xff]
    %v1364 = vld [vmem:[#allocation8 + $0x11c8] sm:$0xff]
    %v1365 = vld [vmem:[#allocation8 + $0x11d0] sm:$0xff]
    %v1366 = vld [vmem:[#allocation8 + $0x11d8] sm:$0xff]
    %v1367 = vld [vmem:[#allocation8 + $0x11e0] sm:$0xff]
    %v1368 = vld [vmem:[#allocation8 + $0x11e8] sm:$0xff]
    %v1369 = vld [vmem:[#allocation8 + $0x11f0] sm:$0xff]
    %v1370 = vld [vmem:[#allocation8 + $0x11f8] sm:$0xff]
    %v1371 = vld [vmem:[#allocation8 + $0x1200] sm:$0xff]
    %v1372 = vld [vmem:[#allocation8 + $0x1208] sm:$0xff]
    %v1373 = vld [vmem:[#allocation8 + $0x1210] sm:$0xff]
    %v1374 = vld [vmem:[#allocation8 + $0x1218] sm:$0xff]
    %v1375 = vld [vmem:[#allocation8 + $0x1220] sm:$0xff]
    %v1376 = vld [vmem:[#allocation8 + $0x1228] sm:$0xff]
    %v1377 = vld [vmem:[#allocation8 + $0x1230] sm:$0xff]
    %v1378 = vld [vmem:[#allocation8 + $0x1238] sm:$0xff]
    %v1379 = vld [vmem:[#allocation8 + $0x1240] sm:$0xff]
    %v1380 = vld [vmem:[#allocation8 + $0x1248] sm:$0xff]
    %v1381 = vld [vmem:[#allocation8 + $0x1250] sm:$0xff]
    %v1382 = vld [vmem:[#allocation8 + $0x1258] sm:$0xff]
    %v1383 = vld [vmem:[#allocation8 + $0x1260] sm:$0xff]
    %v1384 = vld [vmem:[#allocation8 + $0x1268] sm:$0xff]
    %v1385 = vld [vmem:[#allocation8 + $0x1270] sm:$0xff]
    %v1386 = vld [vmem:[#allocation8 + $0x1278] sm:$0xff]
    %v1387 = vld [vmem:[#allocation8 + $0x1280] sm:$0xff]
    %v1388 = vld [vmem:[#allocation8 + $0x1288] sm:$0xff]
    %v1389 = vld [vmem:[#allocation8 + $0x1290] sm:$0xff]
    %v1390 = vld [vmem:[#allocation8 + $0x1298] sm:$0xff]
    %v1391 = vld [vmem:[#allocation8 + $0x12a0] sm:$0xff]
    %v1392 = vld [vmem:[#allocation8 + $0x12a8] sm:$0xff]
    %v1393 = vld [vmem:[#allocation8 + $0x12b0] sm:$0xff]
    %v1394 = vld [vmem:[#allocation8 + $0x12b8] sm:$0xff]
    %v1395 = vld [vmem:[#allocation8 + $0x12c0] sm:$0xff]
    %v1396 = vld [vmem:[#allocation8 + $0x12c8] sm:$0xff]
    %v1397 = vld [vmem:[#allocation8 + $0x12d0] sm:$0xff]
    %v1398 = vld [vmem:[#allocation8 + $0x12d8] sm:$0xff]
    %v1399 = vld [vmem:[#allocation8 + $0x12e0] sm:$0xff]
    %v1400 = vld [vmem:[#allocation8 + $0x12e8] sm:$0xff]
    %v1401 = vld [vmem:[#allocation8 + $0x12f0] sm:$0xff]
    %v1402 = vld [vmem:[#allocation8 + $0x12f8] sm:$0xff]
    %v1403 = vld [vmem:[#allocation8 + $0x1300] sm:$0xff]
    %v1404 = vld [vmem:[#allocation8 + $0x1308] sm:$0xff]
    %v1405 = vld [vmem:[#allocation8 + $0x1310] sm:$0xff]
    %v1406 = vld [vmem:[#allocation8 + $0x1318] sm:$0xff]
    %v1407 = vld [vmem:[#allocation8 + $0x1320] sm:$0xff]
    %v1408 = vld [vmem:[#allocation8 + $0x1328] sm:$0xff]
    %v1409 = vld [vmem:[#allocation8 + $0x1330] sm:$0xff]
    %v1410 = vld [vmem:[#allocation8 + $0x1338] sm:$0xff]
    %v1411 = vld [vmem:[#allocation8 + $0x1340] sm:$0xff]
    %v1412 = vld [vmem:[#allocation8 + $0x1348] sm:$0xff]
    %v1413 = vld [vmem:[#allocation8 + $0x1350] sm:$0xff]
    %v1414 = vld [vmem:[#allocation8 + $0x1358] sm:$0xff]
    %v1415 = vld [vmem:[#allocation8 + $0x1360] sm:$0xff]
    %v1416 = vld [vmem:[#allocation8 + $0x1368] sm:$0xff]
    %v1417 = vld [vmem:[#allocation8 + $0x1370] sm:$0xff]
    %v1418 = vld [vmem:[#allocation8 + $0x1378] sm:$0xff]
    %v1419 = vld [vmem:[#allocation8 + $0x1380] sm:$0xff]
    %v1420 = vld [vmem:[#allocation8 + $0x1388] sm:$0xff]
    %v1421 = vld [vmem:[#allocation8 + $0x1390] sm:$0xff]
    %v1422 = vld [vmem:[#allocation8 + $0x1398] sm:$0xff]
    %v1423 = vld [vmem:[#allocation8 + $0x13a0] sm:$0xff]
    %v1424 = vld [vmem:[#allocation8 + $0x13a8] sm:$0xff]
    %v1425 = vld [vmem:[#allocation8 + $0x13b0] sm:$0xff]
    %v1426 = vld [vmem:[#allocation8 + $0x13b8] sm:$0xff]
    %v1427 = vld [vmem:[#allocation8 + $0x13c0] sm:$0xff]
    %v1428 = vld [vmem:[#allocation8 + $0x13c8] sm:$0xff]
    %v1429 = vld [vmem:[#allocation8 + $0x13d0] sm:$0xff]
    %v1430 = vld [vmem:[#allocation8 + $0x13d8] sm:$0xff]
    %v1431 = vld [vmem:[#allocation8 + $0x13e0] sm:$0xff]
    %v1432 = vld [vmem:[#allocation8 + $0x13e8] sm:$0xff]
    %v1433 = vld [vmem:[#allocation8 + $0x13f0] sm:$0xff]
    %v1434 = vld [vmem:[#allocation8 + $0x13f8] sm:$0xff]
    %v1435 = vld [vmem:[#allocation8 + $0x1400] sm:$0xff]
    %v1436 = vld [vmem:[#allocation8 + $0x1408] sm:$0xff]
    %v1437 = vld [vmem:[#allocation8 + $0x1410] sm:$0xff]
    %v1438 = vld [vmem:[#allocation8 + $0x1418] sm:$0xff]
    %v1439 = vld [vmem:[#allocation8 + $0x1420] sm:$0xff]
    %v1440 = vld [vmem:[#allocation8 + $0x1428] sm:$0xff]
    %v1441 = vld [vmem:[#allocation8 + $0x1430] sm:$0xff]
    %v1442 = vld [vmem:[#allocation8 + $0x1438] sm:$0xff]
    %v1443 = vld [vmem:[#allocation8 + $0x1440] sm:$0xff]
    %v1444 = vld [vmem:[#allocation8 + $0x1448] sm:$0xff]
    %v1445 = vld [vmem:[#allocation8 + $0x1450] sm:$0xff]
    %v1446 = vld [vmem:[#allocation8 + $0x1458] sm:$0xff]
    %v1447 = vld [vmem:[#allocation8 + $0x1460] sm:$0xff]
    %v1448 = vld [vmem:[#allocation8 + $0x1468] sm:$0xff]
    %v1449 = vld [vmem:[#allocation8 + $0x1470] sm:$0xff]
    %v1450 = vld [vmem:[#allocation8 + $0x1478] sm:$0xff]
    %v1451 = vld [vmem:[#allocation8 + $0x1480] sm:$0xff]
    %v1452 = vld [vmem:[#allocation8 + $0x1488] sm:$0xff]
    %v1453 = vld [vmem:[#allocation8 + $0x1490] sm:$0xff]
    %v1454 = vld [vmem:[#allocation8 + $0x1498] sm:$0xff]
    %v1455 = vld [vmem:[#allocation8 + $0x14a0] sm:$0xff]
    %v1456 = vld [vmem:[#allocation8 + $0x14a8] sm:$0xff]
    %v1457 = vld [vmem:[#allocation8 + $0x14b0] sm:$0xff]
    %v1458 = vld [vmem:[#allocation8 + $0x14b8] sm:$0xff]
    %v1459 = vld [vmem:[#allocation8 + $0x14c0] sm:$0xff]
    %v1460 = vld [vmem:[#allocation8 + $0x14c8] sm:$0xff]
    %v1461 = vld [vmem:[#allocation8 + $0x14d0] sm:$0xff]
    %v1462 = vld [vmem:[#allocation8 + $0x14d8] sm:$0xff]
    %v1463 = vld [vmem:[#allocation8 + $0x14e0] sm:$0xff]
    %v1464 = vld [vmem:[#allocation8 + $0x14e8] sm:$0xff]
    %v1465 = vld [vmem:[#allocation8 + $0x14f0] sm:$0xff]
    %v1466 = vld [vmem:[#allocation8 + $0x14f8] sm:$0xff]
    %v1467 = vld [vmem:[#allocation8 + $0x1500] sm:$0xff]
    %v1468 = vld [vmem:[#allocation8 + $0x1508] sm:$0xff]
    %v1469 = vld [vmem:[#allocation8 + $0x1510] sm:$0xff]
    %v1470 = vld [vmem:[#allocation8 + $0x1518] sm:$0xff]
    %v1471 = vld [vmem:[#allocation8 + $0x1520] sm:$0xff]
    %v1472 = vld [vmem:[#allocation8 + $0x1528] sm:$0xff]
    %v1473 = vld [vmem:[#allocation8 + $0x1530] sm:$0xff]
    %v1474 = vld [vmem:[#allocation8 + $0x1538] sm:$0xff]
    %v1475 = vld [vmem:[#allocation8 + $0x1540] sm:$0xff]
    %v1476 = vld [vmem:[#allocation8 + $0x1548] sm:$0xff]
    %v1477 = vld [vmem:[#allocation8 + $0x1550] sm:$0xff]
    %v1478 = vld [vmem:[#allocation8 + $0x1558] sm:$0xff]
    %v1479 = vld [vmem:[#allocation8 + $0x1560] sm:$0xff]
    %v1480 = vld [vmem:[#allocation8 + $0x1568] sm:$0xff]
    %v1481 = vld [vmem:[#allocation8 + $0x1570] sm:$0xff]
    %v1482 = vld [vmem:[#allocation8 + $0x1578] sm:$0xff]
    %v1483 = vld [vmem:[#allocation8 + $0x1580] sm:$0xff]
    %v1484 = vld [vmem:[#allocation8 + $0x1588] sm:$0xff]
    %v1485 = vld [vmem:[#allocation8 + $0x1590] sm:$0xff]
    %v1486 = vld [vmem:[#allocation8 + $0x1598] sm:$0xff]
    %v1487 = vld [vmem:[#allocation8 + $0x15a0] sm:$0xff]
    %v1488 = vld [vmem:[#allocation8 + $0x15a8] sm:$0xff]
    %v1489 = vld [vmem:[#allocation8 + $0x15b0] sm:$0xff]
    %v1490 = vld [vmem:[#allocation8 + $0x15b8] sm:$0xff]
    %v1491 = vld [vmem:[#allocation8 + $0x15c0] sm:$0xff]
    %v1492 = vld [vmem:[#allocation8 + $0x15c8] sm:$0xff]
    %v1493 = vld [vmem:[#allocation8 + $0x15d0] sm:$0xff]
    %v1494 = vld [vmem:[#allocation8 + $0x15d8] sm:$0xff]
    %v1495 = vld [vmem:[#allocation8 + $0x15e0] sm:$0xff]
    %v1496 = vld [vmem:[#allocation8 + $0x15e8] sm:$0xff]
    %v1497 = vld [vmem:[#allocation8 + $0x15f0] sm:$0xff]
    %v1498 = vld [vmem:[#allocation8 + $0x15f8] sm:$0xff]
    %v1499 = vld [vmem:[#allocation10] sm:$0xff]
    %v1501 = vlaneseq
    %v1502 = vshrl.u32 %v1501, 7
    %v1503 = vsub.s32 0, %v1502
    %v1504 = vrot.slane %v1499, %v1503
    %v1505 = vlaneseq
    %v1506 = vshrl.u32 %v1505, 7
    %v1507 = vsub.s32 1, %v1506
    %v1508 = vrot.slane %v1499, %v1507
    %v1509 = vlaneseq
    %v1510 = vshrl.u32 %v1509, 7
    %v1511 = vsub.s32 2, %v1510
    %v1512 = vrot.slane %v1499, %v1511
    %v1513 = vlaneseq
    %v1514 = vshrl.u32 %v1513, 7
    %v1515 = vsub.s32 3, %v1514
    %v1516 = vrot.slane %v1499, %v1515
    %v1517 = vlaneseq
    %v1518 = vshrl.u32 %v1517, 7
    %v1519 = vsub.s32 4, %v1518
    %v1520 = vrot.slane %v1499, %v1519
    %v1521 = vlaneseq
    %v1522 = vshrl.u32 %v1521, 7
    %v1523 = vsub.s32 5, %v1522
    %v1524 = vrot.slane %v1499, %v1523
    %v1525 = vlaneseq
    %v1526 = vshrl.u32 %v1525, 7
    %v1527 = vsub.s32 6, %v1526
    %v1528 = vrot.slane %v1499, %v1527
    %v1529 = vlaneseq
    %v1530 = vshrl.u32 %v1529, 7
    %v1531 = vsub.s32 7, %v1530
    %v1532 = vrot.slane %v1499, %v1531
    %v2245 = vunpack.c.l.b16 %v795
    %v2246 = vunpack.c.h.b16 %v795
    %v2247 = vunpack.c.l.b16 %v796
    %v2248 = vunpack.c.h.b16 %v796
    %v2249 = vunpack.c.l.b16 %v797
    %v2250 = vunpack.c.h.b16 %v797
    %v2251 = vunpack.c.l.b16 %v798
    %v2252 = vunpack.c.h.b16 %v798
    %v2253 = vunpack.c.l.b16 %v799
    %v2254 = vunpack.c.h.b16 %v799
    %v2255 = vunpack.c.l.b16 %v800
    %v2256 = vunpack.c.h.b16 %v800
    %v2257 = vunpack.c.l.b16 %v801
    %v2258 = vunpack.c.h.b16 %v801
    %v2259 = vunpack.c.l.b16 %v802
    %v2260 = vunpack.c.h.b16 %v802
    %v2261 = vunpack.c.l.b16 %v803
    %v2262 = vunpack.c.h.b16 %v803
    %v2263 = vunpack.c.l.b16 %v804
    %v2264 = vunpack.c.h.b16 %v804
    %v2265 = vunpack.c.l.b16 %v805
    %v2266 = vunpack.c.h.b16 %v805
    %v2267 = vunpack.c.l.b16 %v806
    %v2268 = vunpack.c.h.b16 %v806
    %v2269 = vunpack.c.l.b16 %v807
    %v2270 = vunpack.c.h.b16 %v807
    %v2271 = vunpack.c.l.b16 %v808
    %v2272 = vunpack.c.h.b16 %v808
    %v2273 = vunpack.c.l.b16 %v809
    %v2274 = vunpack.c.h.b16 %v809
    %v2275 = vunpack.c.l.b16 %v810
    %v2276 = vunpack.c.h.b16 %v810
    %v2277 = vunpack.c.l.b16 %v811
    %v2278 = vunpack.c.h.b16 %v811
    %v2279 = vunpack.c.l.b16 %v812
    %v2280 = vunpack.c.h.b16 %v812
    %v2281 = vunpack.c.l.b16 %v813
    %v2282 = vunpack.c.h.b16 %v813
    %v2283 = vunpack.c.l.b16 %v814
    %v2284 = vunpack.c.h.b16 %v814
    %v2285 = vunpack.c.l.b16 %v815
    %v2286 = vunpack.c.h.b16 %v815
    %v2287 = vunpack.c.l.b16 %v816
    %v2288 = vunpack.c.h.b16 %v816
    %v2289 = vunpack.c.l.b16 %v817
    %v2290 = vunpack.c.h.b16 %v817
    %v2291 = vunpack.c.l.b16 %v818
    %v2292 = vunpack.c.h.b16 %v818
    %v2293 = vunpack.c.l.b16 %v819
    %v2294 = vunpack.c.h.b16 %v819
    %v2295 = vunpack.c.l.b16 %v820
    %v2296 = vunpack.c.h.b16 %v820
    %v2297 = vunpack.c.l.b16 %v821
    %v2298 = vunpack.c.h.b16 %v821
    %v2299 = vunpack.c.l.b16 %v822
    %v2300 = vunpack.c.h.b16 %v822
    %v2301 = vunpack.c.l.b16 %v823
    %v2302 = vunpack.c.h.b16 %v823
    %v2303 = vunpack.c.l.b16 %v824
    %v2304 = vunpack.c.h.b16 %v824
    %v2305 = vunpack.c.l.b16 %v825
    %v2306 = vunpack.c.h.b16 %v825
    %v2307 = vunpack.c.l.b16 %v826
    %v2308 = vunpack.c.h.b16 %v826
    %v2309 = vunpack.c.l.b16 %v827
    %v2310 = vunpack.c.h.b16 %v827
    %v2311 = vunpack.c.l.b16 %v828
    %v2312 = vunpack.c.h.b16 %v828
    %v2313 = vunpack.c.l.b16 %v829
    %v2314 = vunpack.c.h.b16 %v829
    %v2315 = vunpack.c.l.b16 %v830
    %v2316 = vunpack.c.h.b16 %v830
    %v2317 = vunpack.c.l.b16 %v831
    %v2318 = vunpack.c.h.b16 %v831
    %v2319 = vunpack.c.l.b16 %v832
    %v2320 = vunpack.c.h.b16 %v832
    %v2321 = vunpack.c.l.b16 %v833
    %v2322 = vunpack.c.h.b16 %v833
    %v2323 = vunpack.c.l.b16 %v834
    %v2324 = vunpack.c.h.b16 %v834
    %v2325 = vunpack.c.l.b16 %v835
    %v2326 = vunpack.c.h.b16 %v835
    %v2327 = vunpack.c.l.b16 %v836
    %v2328 = vunpack.c.h.b16 %v836
    %v2329 = vunpack.c.l.b16 %v837
    %v2330 = vunpack.c.h.b16 %v837
    %v2331 = vunpack.c.l.b16 %v838
    %v2332 = vunpack.c.h.b16 %v838
    %v2333 = vunpack.c.l.b16 %v839
    %v2334 = vunpack.c.h.b16 %v839
    %v2335 = vunpack.c.l.b16 %v840
    %v2336 = vunpack.c.h.b16 %v840
    %v2337 = vunpack.c.l.b16 %v841
    %v2338 = vunpack.c.h.b16 %v841
    %v2339 = vunpack.c.l.b16 %v842
    %v2340 = vunpack.c.h.b16 %v842
    %v2341 = vunpack.c.l.b16 %v843
    %v2342 = vunpack.c.h.b16 %v843
    %v2343 = vunpack.c.l.b16 %v844
    %v2344 = vunpack.c.h.b16 %v844
    %v2345 = vunpack.c.l.b16 %v845
    %v2346 = vunpack.c.h.b16 %v845
    %v2347 = vunpack.c.l.b16 %v846
    %v2348 = vunpack.c.h.b16 %v846
    %v2349 = vunpack.c.l.b16 %v847
    %v2350 = vunpack.c.h.b16 %v847
    %v2351 = vunpack.c.l.b16 %v848
    %v2352 = vunpack.c.h.b16 %v848
    %v2353 = vunpack.c.l.b16 %v849
    %v2354 = vunpack.c.h.b16 %v849
    %v2355 = vunpack.c.l.b16 %v850
    %v2356 = vunpack.c.h.b16 %v850
    %v2357 = vunpack.c.l.b16 %v851
    %v2358 = vunpack.c.h.b16 %v851
    %v2359 = vunpack.c.l.b16 %v852
    %v2360 = vunpack.c.h.b16 %v852
    %v2361 = vunpack.c.l.b16 %v853
    %v2362 = vunpack.c.h.b16 %v853
    %v2363 = vunpack.c.l.b16 %v854
    %v2364 = vunpack.c.h.b16 %v854
    %v2365 = vunpack.c.l.b16 %v855
    %v2366 = vunpack.c.h.b16 %v855
    %v2367 = vunpack.c.l.b16 %v856
    %v2368 = vunpack.c.h.b16 %v856
    %v2369 = vunpack.c.l.b16 %v857
    %v2370 = vunpack.c.h.b16 %v857
    %v2371 = vunpack.c.l.b16 %v858
    %v2372 = vunpack.c.h.b16 %v858
    %v2373 = vunpack.c.l.b16 %v859
    %v2374 = vunpack.c.h.b16 %v859
    %v2375 = vunpack.c.l.b16 %v860
    %v2376 = vunpack.c.h.b16 %v860
    %v2377 = vunpack.c.l.b16 %v861
    %v2378 = vunpack.c.h.b16 %v861
    %v2379 = vunpack.c.l.b16 %v862
    %v2380 = vunpack.c.h.b16 %v862
    %v2381 = vunpack.c.l.b16 %v863
    %v2382 = vunpack.c.h.b16 %v863
    %v2383 = vunpack.c.l.b16 %v864
    %v2384 = vunpack.c.h.b16 %v864
    %v2385 = vunpack.c.l.b16 %v865
    %v2386 = vunpack.c.h.b16 %v865
    %v2387 = vunpack.c.l.b16 %v866
    %v2388 = vunpack.c.h.b16 %v866
    %v2389 = vunpack.c.l.b16 %v867
    %v2390 = vunpack.c.h.b16 %v867
    %v2391 = vunpack.c.l.b16 %v868
    %v2392 = vunpack.c.h.b16 %v868
    %v2393 = vunpack.c.l.b16 %v869
    %v2394 = vunpack.c.h.b16 %v869
    %v2395 = vunpack.c.l.b16 %v870
    %v2396 = vunpack.c.h.b16 %v870
    %v2397 = vunpack.c.l.b16 %v871
    %v2398 = vunpack.c.h.b16 %v871
    %v2399 = vunpack.c.l.b16 %v872
    %v2400 = vunpack.c.h.b16 %v872
    %v2401 = vunpack.c.l.b16 %v873
    %v2402 = vunpack.c.h.b16 %v873
    %v2403 = vunpack.c.l.b16 %v874
    %v2404 = vunpack.c.h.b16 %v874
    %v2405 = vunpack.c.l.b16 %v875
    %v2406 = vunpack.c.h.b16 %v875
    %v2407 = vunpack.c.l.b16 %v876
    %v2408 = vunpack.c.h.b16 %v876
    %v2409 = vunpack.c.l.b16 %v877
    %v2410 = vunpack.c.h.b16 %v877
    %v2411 = vunpack.c.l.b16 %v878
    %v2412 = vunpack.c.h.b16 %v878
    %v2413 = vunpack.c.l.b16 %v879
    %v2414 = vunpack.c.h.b16 %v879
    %v2415 = vunpack.c.l.b16 %v880
    %v2416 = vunpack.c.h.b16 %v880
    %v2417 = vunpack.c.l.b16 %v881
    %v2418 = vunpack.c.h.b16 %v881
    %v2419 = vunpack.c.l.b16 %v882
    %v2420 = vunpack.c.h.b16 %v882
    %v2421 = vunpack.c.l.b16 %v883
    %v2422 = vunpack.c.h.b16 %v883
    %v2423 = vunpack.c.l.b16 %v884
    %v2424 = vunpack.c.h.b16 %v884
    %v2425 = vunpack.c.l.b16 %v885
    %v2426 = vunpack.c.h.b16 %v885
    %v2427 = vunpack.c.l.b16 %v886
    %v2428 = vunpack.c.h.b16 %v886
    %v2429 = vunpack.c.l.b16 %v887
    %v2430 = vunpack.c.h.b16 %v887
    %v2431 = vunpack.c.l.b16 %v888
    %v2432 = vunpack.c.h.b16 %v888
    %v2433 = vunpack.c.l.b16 %v889
    %v2434 = vunpack.c.h.b16 %v889
    %v2435 = vunpack.c.l.b16 %v890
    %v2436 = vunpack.c.h.b16 %v890
    %v2437 = vunpack.c.l.b16 %v891
    %v2438 = vunpack.c.h.b16 %v891
    %v2439 = vunpack.c.l.b16 %v892
    %v2440 = vunpack.c.h.b16 %v892
    %v2441 = vunpack.c.l.b16 %v893
    %v2442 = vunpack.c.h.b16 %v893
    %v2443 = vunpack.c.l.b16 %v894
    %v2444 = vunpack.c.h.b16 %v894
    %v2445 = vunpack.c.l.b16 %v895
    %v2446 = vunpack.c.h.b16 %v895
    %v2447 = vunpack.c.l.b16 %v896
    %v2448 = vunpack.c.h.b16 %v896
    %v2449 = vunpack.c.l.b16 %v897
    %v2450 = vunpack.c.h.b16 %v897
    %v2451 = vunpack.c.l.b16 %v898
    %v2452 = vunpack.c.h.b16 %v898
    %v2453 = vunpack.c.l.b16 %v899
    %v2454 = vunpack.c.h.b16 %v899
    %v2455 = vunpack.c.l.b16 %v900
    %v2456 = vunpack.c.h.b16 %v900
    %v2457 = vunpack.c.l.b16 %v901
    %v2458 = vunpack.c.h.b16 %v901
    %v2459 = vunpack.c.l.b16 %v902
    %v2460 = vunpack.c.h.b16 %v902
    %v2461 = vunpack.c.l.b16 %v903
    %v2462 = vunpack.c.h.b16 %v903
    %v2463 = vunpack.c.l.b16 %v904
    %v2464 = vunpack.c.h.b16 %v904
    %v2465 = vunpack.c.l.b16 %v905
    %v2466 = vunpack.c.h.b16 %v905
    %v2467 = vunpack.c.l.b16 %v906
    %v2468 = vunpack.c.h.b16 %v906
    %v2469 = vunpack.c.l.b16 %v907
    %v2470 = vunpack.c.h.b16 %v907
    %v2471 = vunpack.c.l.b16 %v908
    %v2472 = vunpack.c.h.b16 %v908
    %v2473 = vunpack.c.l.b16 %v909
    %v2474 = vunpack.c.h.b16 %v909
    %v2475 = vunpack.c.l.b16 %v910
    %v2476 = vunpack.c.h.b16 %v910
    %v2477 = vunpack.c.l.b16 %v911
    %v2478 = vunpack.c.h.b16 %v911
    %v2479 = vunpack.c.l.b16 %v912
    %v2480 = vunpack.c.h.b16 %v912
    %v2481 = vunpack.c.l.b16 %v913
    %v2482 = vunpack.c.h.b16 %v913
    %v2483 = vunpack.c.l.b16 %v914
    %v2484 = vunpack.c.h.b16 %v914
    %v2485 = vunpack.c.l.b16 %v915
    %v2486 = vunpack.c.h.b16 %v915
    %v2487 = vunpack.c.l.b16 %v916
    %v2488 = vunpack.c.h.b16 %v916
    %v2489 = vunpack.c.l.b16 %v917
    %v2490 = vunpack.c.h.b16 %v917
    %v2491 = vunpack.c.l.b16 %v918
    %v2492 = vunpack.c.h.b16 %v918
    %v2493 = vunpack.c.l.b16 %v919
    %v2494 = vunpack.c.h.b16 %v919
    %v2495 = vunpack.c.l.b16 %v920
    %v2496 = vunpack.c.h.b16 %v920
    %v2497 = vunpack.c.l.b16 %v921
    %v2498 = vunpack.c.h.b16 %v921
    %v2499 = vunpack.c.l.b16 %v922
    %v2500 = vunpack.c.h.b16 %v922
    %v2501 = vunpack.c.l.b16 %v923
    %v2502 = vunpack.c.h.b16 %v923
    %v2503 = vunpack.c.l.b16 %v924
    %v2504 = vunpack.c.h.b16 %v924
    %v2505 = vunpack.c.l.b16 %v925
    %v2506 = vunpack.c.h.b16 %v925
    %v2507 = vunpack.c.l.b16 %v926
    %v2508 = vunpack.c.h.b16 %v926
    %v2509 = vunpack.c.l.b16 %v927
    %v2510 = vunpack.c.h.b16 %v927
    %v2511 = vunpack.c.l.b16 %v928
    %v2512 = vunpack.c.h.b16 %v928
    %v2513 = vunpack.c.l.b16 %v929
    %v2514 = vunpack.c.h.b16 %v929
    %v2515 = vunpack.c.l.b16 %v930
    %v2516 = vunpack.c.h.b16 %v930
    %v2517 = vunpack.c.l.b16 %v931
    %v2518 = vunpack.c.h.b16 %v931
    %v2519 = vunpack.c.l.b16 %v932
    %v2520 = vunpack.c.h.b16 %v932
    %v2521 = vunpack.c.l.b16 %v933
    %v2522 = vunpack.c.h.b16 %v933
    %v2523 = vunpack.c.l.b16 %v934
    %v2524 = vunpack.c.h.b16 %v934
    %v2525 = vunpack.c.l.b16 %v935
    %v2526 = vunpack.c.h.b16 %v935
    %v2527 = vunpack.c.l.b16 %v936
    %v2528 = vunpack.c.h.b16 %v936
    %v2529 = vunpack.c.l.b16 %v937
    %v2530 = vunpack.c.h.b16 %v937
    %v2531 = vunpack.c.l.b16 %v938
    %v2532 = vunpack.c.h.b16 %v938
    %v2533 = vunpack.c.l.b16 %v939
    %v2534 = vunpack.c.h.b16 %v939
    %v2535 = vunpack.c.l.b16 %v940
    %v2536 = vunpack.c.h.b16 %v940
    %v2537 = vunpack.c.l.b16 %v941
    %v2538 = vunpack.c.h.b16 %v941
    %v2539 = vunpack.c.l.b16 %v942
    %v2540 = vunpack.c.h.b16 %v942
    %v2541 = vunpack.c.l.b16 %v943
    %v2542 = vunpack.c.h.b16 %v943
    %v2543 = vunpack.c.l.b16 %v944
    %v2544 = vunpack.c.h.b16 %v944
    %v2545 = vunpack.c.l.b16 %v945
    %v2546 = vunpack.c.h.b16 %v945
    %v2547 = vunpack.c.l.b16 %v946
    %v2548 = vunpack.c.h.b16 %v946
    %v2549 = vunpack.c.l.b16 %v947
    %v2550 = vunpack.c.h.b16 %v947
    %v2551 = vunpack.c.l.b16 %v948
    %v2552 = vunpack.c.h.b16 %v948
    %v2553 = vunpack.c.l.b16 %v949
    %v2554 = vunpack.c.h.b16 %v949
    %v2555 = vunpack.c.l.b16 %v950
    %v2556 = vunpack.c.h.b16 %v950
    %v2557 = vunpack.c.l.b16 %v951
    %v2558 = vunpack.c.h.b16 %v951
    %v2559 = vunpack.c.l.b16 %v952
    %v2560 = vunpack.c.h.b16 %v952
    %v2561 = vunpack.c.l.b16 %v953
    %v2562 = vunpack.c.h.b16 %v953
    %v2563 = vunpack.c.l.b16 %v954
    %v2564 = vunpack.c.h.b16 %v954
    %v2565 = vunpack.c.l.b16 %v955
    %v2566 = vunpack.c.h.b16 %v955
    %v2567 = vunpack.c.l.b16 %v956
    %v2568 = vunpack.c.h.b16 %v956
    %v2569 = vunpack.c.l.b16 %v957
    %v2570 = vunpack.c.h.b16 %v957
    %v2571 = vunpack.c.l.b16 %v958
    %v2572 = vunpack.c.h.b16 %v958
    %v2573 = vunpack.c.l.b16 %v959
    %v2574 = vunpack.c.h.b16 %v959
    %v2575 = vunpack.c.l.b16 %v960
    %v2576 = vunpack.c.h.b16 %v960
    %v2577 = vunpack.c.l.b16 %v961
    %v2578 = vunpack.c.h.b16 %v961
    %v2579 = vunpack.c.l.b16 %v962
    %v2580 = vunpack.c.h.b16 %v962
    %v2581 = vunpack.c.l.b16 %v963
    %v2582 = vunpack.c.h.b16 %v963
    %v2583 = vunpack.c.l.b16 %v964
    %v2584 = vunpack.c.h.b16 %v964
    %v2585 = vunpack.c.l.b16 %v965
    %v2586 = vunpack.c.h.b16 %v965
    %v2587 = vunpack.c.l.b16 %v966
    %v2588 = vunpack.c.h.b16 %v966
    %v2589 = vunpack.c.l.b16 %v967
    %v2590 = vunpack.c.h.b16 %v967
    %v2591 = vunpack.c.l.b16 %v968
    %v2592 = vunpack.c.h.b16 %v968
    %v2593 = vunpack.c.l.b16 %v969
    %v2594 = vunpack.c.h.b16 %v969
    %v2595 = vunpack.c.l.b16 %v970
    %v2596 = vunpack.c.h.b16 %v970
    %v2597 = vunpack.c.l.b16 %v971
    %v2598 = vunpack.c.h.b16 %v971
    %v2599 = vunpack.c.l.b16 %v972
    %v2600 = vunpack.c.h.b16 %v972
    %v2601 = vunpack.c.l.b16 %v973
    %v2602 = vunpack.c.h.b16 %v973
    %v2603 = vunpack.c.l.b16 %v974
    %v2604 = vunpack.c.h.b16 %v974
    %v2605 = vunpack.c.l.b16 %v975
    %v2606 = vunpack.c.h.b16 %v975
    %v2607 = vunpack.c.l.b16 %v976
    %v2608 = vunpack.c.h.b16 %v976
    %v2609 = vunpack.c.l.b16 %v977
    %v2610 = vunpack.c.h.b16 %v977
    %v2611 = vunpack.c.l.b16 %v978
    %v2612 = vunpack.c.h.b16 %v978
    %v2613 = vunpack.c.l.b16 %v979
    %v2614 = vunpack.c.h.b16 %v979
    %v2615 = vunpack.c.l.b16 %v980
    %v2616 = vunpack.c.h.b16 %v980
    %v2617 = vunpack.c.l.b16 %v981
    %v2618 = vunpack.c.h.b16 %v981
    %v2619 = vunpack.c.l.b16 %v982
    %v2620 = vunpack.c.h.b16 %v982
    %v2621 = vunpack.c.l.b16 %v983
    %v2622 = vunpack.c.h.b16 %v983
    %v2623 = vunpack.c.l.b16 %v984
    %v2624 = vunpack.c.h.b16 %v984
    %v2625 = vunpack.c.l.b16 %v985
    %v2626 = vunpack.c.h.b16 %v985
    %v2627 = vunpack.c.l.b16 %v986
    %v2628 = vunpack.c.h.b16 %v986
    %v2629 = vunpack.c.l.b16 %v987
    %v2630 = vunpack.c.h.b16 %v987
    %v2631 = vunpack.c.l.b16 %v988
    %v2632 = vunpack.c.h.b16 %v988
    %v2633 = vunpack.c.l.b16 %v989
    %v2634 = vunpack.c.h.b16 %v989
    %v2635 = vunpack.c.l.b16 %v990
    %v2636 = vunpack.c.h.b16 %v990
    %v2637 = vunpack.c.l.b16 %v991
    %v2638 = vunpack.c.h.b16 %v991
    %v2639 = vunpack.c.l.b16 %v992
    %v2640 = vunpack.c.h.b16 %v992
    %v2641 = vunpack.c.l.b16 %v993
    %v2642 = vunpack.c.h.b16 %v993
    %v2643 = vunpack.c.l.b16 %v994
    %v2644 = vunpack.c.h.b16 %v994
    %v2645 = vunpack.c.l.b16 %v995
    %v2646 = vunpack.c.h.b16 %v995
    %v2647 = vunpack.c.l.b16 %v996
    %v2648 = vunpack.c.h.b16 %v996
    %v2649 = vunpack.c.l.b16 %v997
    %v2650 = vunpack.c.h.b16 %v997
    %v2651 = vunpack.c.l.b16 %v998
    %v2652 = vunpack.c.h.b16 %v998
    %v2653 = vunpack.c.l.b16 %v999
    %v2654 = vunpack.c.h.b16 %v999
    %v2655 = vunpack.c.l.b16 %v1000
    %v2656 = vunpack.c.h.b16 %v1000
    %v2657 = vunpack.c.l.b16 %v1001
    %v2658 = vunpack.c.h.b16 %v1001
    %v2659 = vunpack.c.l.b16 %v1002
    %v2660 = vunpack.c.h.b16 %v1002
    %v2661 = vunpack.c.l.b16 %v1003
    %v2662 = vunpack.c.h.b16 %v1003
    %v2663 = vunpack.c.l.b16 %v1004
    %v2664 = vunpack.c.h.b16 %v1004
    %v2665 = vunpack.c.l.b16 %v1005
    %v2666 = vunpack.c.h.b16 %v1005
    %v2667 = vunpack.c.l.b16 %v1006
    %v2668 = vunpack.c.h.b16 %v1006
    %v2669 = vunpack.c.l.b16 %v1007
    %v2670 = vunpack.c.h.b16 %v1007
    %v2671 = vunpack.c.l.b16 %v1008
    %v2672 = vunpack.c.h.b16 %v1008
    %v2673 = vunpack.c.l.b16 %v1009
    %v2674 = vunpack.c.h.b16 %v1009
    %v2675 = vunpack.c.l.b16 %v1010
    %v2676 = vunpack.c.h.b16 %v1010
    %v2677 = vunpack.c.l.b16 %v1011
    %v2678 = vunpack.c.h.b16 %v1011
    %v2679 = vunpack.c.l.b16 %v1012
    %v2680 = vunpack.c.h.b16 %v1012
    %v2681 = vunpack.c.l.b16 %v1013
    %v2682 = vunpack.c.h.b16 %v1013
    %v2683 = vunpack.c.l.b16 %v1014
    %v2684 = vunpack.c.h.b16 %v1014
    %v2685 = vunpack.c.l.b16 %v1015
    %v2686 = vunpack.c.h.b16 %v1015
    %v2687 = vunpack.c.l.b16 %v1016
    %v2688 = vunpack.c.h.b16 %v1016
    %v2689 = vunpack.c.l.b16 %v1017
    %v2690 = vunpack.c.h.b16 %v1017
    %v2691 = vunpack.c.l.b16 %v1018
    %v2692 = vunpack.c.h.b16 %v1018
    %v2693 = vunpack.c.l.b16 %v1019
    %v2694 = vunpack.c.h.b16 %v1019
    %v2695 = vunpack.c.l.b16 %v1020
    %v2696 = vunpack.c.h.b16 %v1020
    %v2697 = vunpack.c.l.b16 %v1021
    %v2698 = vunpack.c.h.b16 %v1021
    %v2699 = vunpack.c.l.b16 %v1022
    %v2700 = vunpack.c.h.b16 %v1022
    %v2701 = vunpack.c.l.b16 %v1023
    %v2702 = vunpack.c.h.b16 %v1023
    %v2703 = vunpack.c.l.b16 %v1024
    %v2704 = vunpack.c.h.b16 %v1024
    %v2705 = vunpack.c.l.b16 %v1025
    %v2706 = vunpack.c.h.b16 %v1025
    %v2707 = vunpack.c.l.b16 %v1026
    %v2708 = vunpack.c.h.b16 %v1026
    %v2709 = vunpack.c.l.b16 %v1027
    %v2710 = vunpack.c.h.b16 %v1027
    %v2711 = vunpack.c.l.b16 %v1028
    %v2712 = vunpack.c.h.b16 %v1028
    %v2713 = vunpack.c.l.b16 %v1029
    %v2714 = vunpack.c.h.b16 %v1029
    %v2715 = vunpack.c.l.b16 %v1030
    %v2716 = vunpack.c.h.b16 %v1030
    %v2717 = vunpack.c.l.b16 %v1031
    %v2718 = vunpack.c.h.b16 %v1031
    %v2719 = vunpack.c.l.b16 %v1032
    %v2720 = vunpack.c.h.b16 %v1032
    %v2721 = vunpack.c.l.b16 %v1033
    %v2722 = vunpack.c.h.b16 %v1033
    %v2723 = vunpack.c.l.b16 %v1034
    %v2724 = vunpack.c.h.b16 %v1034
    %v2725 = vunpack.c.l.b16 %v1035
    %v2726 = vunpack.c.h.b16 %v1035
    %v2727 = vunpack.c.l.b16 %v1036
    %v2728 = vunpack.c.h.b16 %v1036
    %v2729 = vunpack.c.l.b16 %v1037
    %v2730 = vunpack.c.h.b16 %v1037
    %v2731 = vunpack.c.l.b16 %v1038
    %v2732 = vunpack.c.h.b16 %v1038
    %v2733 = vunpack.c.l.b16 %v1039
    %v2734 = vunpack.c.h.b16 %v1039
    %v2735 = vunpack.c.l.b16 %v1040
    %v2736 = vunpack.c.h.b16 %v1040
    %v2737 = vunpack.c.l.b16 %v1041
    %v2738 = vunpack.c.h.b16 %v1041
    %v2739 = vunpack.c.l.b16 %v1042
    %v2740 = vunpack.c.h.b16 %v1042
    %v2741 = vunpack.c.l.b16 %v1043
    %v2742 = vunpack.c.h.b16 %v1043
    %v2743 = vunpack.c.l.b16 %v1044
    %v2744 = vunpack.c.h.b16 %v1044
    %v2745 = vunpack.c.l.b16 %v1045
    %v2746 = vunpack.c.h.b16 %v1045
    %v2747 = vunpack.c.l.b16 %v1046
    %v2748 = vunpack.c.h.b16 %v1046
    %v2749 = vunpack.c.l.b16 %v1047
    %v2750 = vunpack.c.h.b16 %v1047
    %v2751 = vunpack.c.l.b16 %v1048
    %v2752 = vunpack.c.h.b16 %v1048
    %v2753 = vunpack.c.l.b16 %v1049
    %v2754 = vunpack.c.h.b16 %v1049
    %v2755 = vunpack.c.l.b16 %v1050
    %v2756 = vunpack.c.h.b16 %v1050
    %v2757 = vunpack.c.l.b16 %v1051
    %v2758 = vunpack.c.h.b16 %v1051
    %v2759 = vunpack.c.l.b16 %v1052
    %v2760 = vunpack.c.h.b16 %v1052
    %v2761 = vunpack.c.l.b16 %v1053
    %v2762 = vunpack.c.h.b16 %v1053
    %v2763 = vunpack.c.l.b16 %v1054
    %v2764 = vunpack.c.h.b16 %v1054
    %v2765 = vunpack.c.l.b16 %v1055
    %v2766 = vunpack.c.h.b16 %v1055
    %v2767 = vunpack.c.l.b16 %v1056
    %v2768 = vunpack.c.h.b16 %v1056
    %v2769 = vunpack.c.l.b16 %v1057
    %v2770 = vunpack.c.h.b16 %v1057
    %v2771 = vunpack.c.l.b16 %v1058
    %v2772 = vunpack.c.h.b16 %v1058
    %v2773 = vunpack.c.l.b16 %v1059
    %v2774 = vunpack.c.h.b16 %v1059
    %v2775 = vunpack.c.l.b16 %v1060
    %v2776 = vunpack.c.h.b16 %v1060
    %v2777 = vunpack.c.l.b16 %v1061
    %v2778 = vunpack.c.h.b16 %v1061
    %v2779 = vunpack.c.l.b16 %v1062
    %v2780 = vunpack.c.h.b16 %v1062
    %v2781 = vunpack.c.l.b16 %v1063
    %v2782 = vunpack.c.h.b16 %v1063
    %v2783 = vunpack.c.l.b16 %v1064
    %v2784 = vunpack.c.h.b16 %v1064
    %v2785 = vunpack.c.l.b16 %v1065
    %v2786 = vunpack.c.h.b16 %v1065
    %v2787 = vunpack.c.l.b16 %v1066
    %v2788 = vunpack.c.h.b16 %v1066
    %v2789 = vunpack.c.l.b16 %v1067
    %v2790 = vunpack.c.h.b16 %v1067
    %v2791 = vunpack.c.l.b16 %v1068
    %v2792 = vunpack.c.h.b16 %v1068
    %v2793 = vunpack.c.l.b16 %v1069
    %v2794 = vunpack.c.h.b16 %v1069
    %v2795 = vunpack.c.l.b16 %v1070
    %v2796 = vunpack.c.h.b16 %v1070
    %v2797 = vunpack.c.l.b16 %v1071
    %v2798 = vunpack.c.h.b16 %v1071
    %v2799 = vunpack.c.l.b16 %v1072
    %v2800 = vunpack.c.h.b16 %v1072
    %v2801 = vunpack.c.l.b16 %v1073
    %v2802 = vunpack.c.h.b16 %v1073
    %v2803 = vunpack.c.l.b16 %v1074
    %v2804 = vunpack.c.h.b16 %v1074
    %v2805 = vunpack.c.l.b16 %v1075
    %v2806 = vunpack.c.h.b16 %v1075
    %v2807 = vunpack.c.l.b16 %v1076
    %v2808 = vunpack.c.h.b16 %v1076
    %v2809 = vunpack.c.l.b16 %v1077
    %v2810 = vunpack.c.h.b16 %v1077
    %v2811 = vunpack.c.l.b16 %v1078
    %v2812 = vunpack.c.h.b16 %v1078
    %v2813 = vunpack.c.l.b16 %v1079
    %v2814 = vunpack.c.h.b16 %v1079
    %v2815 = vunpack.c.l.b16 %v1080
    %v2816 = vunpack.c.h.b16 %v1080
    %v2817 = vunpack.c.l.b16 %v1081
    %v2818 = vunpack.c.h.b16 %v1081
    %v2819 = vunpack.c.l.b16 %v1082
    %v2820 = vunpack.c.h.b16 %v1082
    %v2821 = vunpack.c.l.b16 %v1083
    %v2822 = vunpack.c.h.b16 %v1083
    %v2823 = vunpack.c.l.b16 %v1084
    %v2824 = vunpack.c.h.b16 %v1084
    %v2825 = vunpack.c.l.b16 %v1085
    %v2826 = vunpack.c.h.b16 %v1085
    %v2827 = vunpack.c.l.b16 %v1086
    %v2828 = vunpack.c.h.b16 %v1086
    %v2829 = vunpack.c.l.b16 %v1087
    %v2830 = vunpack.c.h.b16 %v1087
    %v2831 = vunpack.c.l.b16 %v1088
    %v2832 = vunpack.c.h.b16 %v1088
    %v2833 = vunpack.c.l.b16 %v1089
    %v2834 = vunpack.c.h.b16 %v1089
    %v2835 = vunpack.c.l.b16 %v1090
    %v2836 = vunpack.c.h.b16 %v1090
    %v2837 = vunpack.c.l.b16 %v1091
    %v2838 = vunpack.c.h.b16 %v1091
    %v2839 = vunpack.c.l.b16 %v1092
    %v2840 = vunpack.c.h.b16 %v1092
    %v2841 = vunpack.c.l.b16 %v1093
    %v2842 = vunpack.c.h.b16 %v1093
    %v2843 = vunpack.c.l.b16 %v1094
    %v2844 = vunpack.c.h.b16 %v1094
    %v2845 = vunpack.c.l.b16 %v1095
    %v2846 = vunpack.c.h.b16 %v1095
    %v2847 = vunpack.c.l.b16 %v1096
    %v2848 = vunpack.c.h.b16 %v1096
    %v2849 = vunpack.c.l.b16 %v1097
    %v2850 = vunpack.c.h.b16 %v1097
    %v2851 = vunpack.c.l.b16 %v1098
    %v2852 = vunpack.c.h.b16 %v1098
    %v2853 = vunpack.c.l.b16 %v1099
    %v2854 = vunpack.c.h.b16 %v1099
    %v2855 = vunpack.c.l.b16 %v1100
    %v2856 = vunpack.c.h.b16 %v1100
    %v2857 = vunpack.c.l.b16 %v1101
    %v2858 = vunpack.c.h.b16 %v1101
    %v2859 = vunpack.c.l.b16 %v1102
    %v2860 = vunpack.c.h.b16 %v1102
    %v2861 = vunpack.c.l.b16 %v1103
    %v2862 = vunpack.c.h.b16 %v1103
    %v2863 = vunpack.c.l.b16 %v1104
    %v2864 = vunpack.c.h.b16 %v1104
    %v2865 = vunpack.c.l.b16 %v1105
    %v2866 = vunpack.c.h.b16 %v1105
    %v2867 = vunpack.c.l.b16 %v1106
    %v2868 = vunpack.c.h.b16 %v1106
    %v2869 = vunpack.c.l.b16 %v1107
    %v2870 = vunpack.c.h.b16 %v1107
    %v2871 = vunpack.c.l.b16 %v1108
    %v2872 = vunpack.c.h.b16 %v1108
    %v2873 = vunpack.c.l.b16 %v1109
    %v2874 = vunpack.c.h.b16 %v1109
    %v2875 = vunpack.c.l.b16 %v1110
    %v2876 = vunpack.c.h.b16 %v1110
    %v2877 = vunpack.c.l.b16 %v1111
    %v2878 = vunpack.c.h.b16 %v1111
    %v2879 = vunpack.c.l.b16 %v1112
    %v2880 = vunpack.c.h.b16 %v1112
    %v2881 = vunpack.c.l.b16 %v1113
    %v2882 = vunpack.c.h.b16 %v1113
    %v2883 = vunpack.c.l.b16 %v1114
    %v2884 = vunpack.c.h.b16 %v1114
    %v2885 = vunpack.c.l.b16 %v1115
    %v2886 = vunpack.c.h.b16 %v1115
    %v2887 = vunpack.c.l.b16 %v1116
    %v2888 = vunpack.c.h.b16 %v1116
    %v2889 = vunpack.c.l.b16 %v1117
    %v2890 = vunpack.c.h.b16 %v1117
    %v2891 = vunpack.c.l.b16 %v1118
    %v2892 = vunpack.c.h.b16 %v1118
    %v2893 = vunpack.c.l.b16 %v1119
    %v2894 = vunpack.c.h.b16 %v1119
    %v2895 = vunpack.c.l.b16 %v1120
    %v2896 = vunpack.c.h.b16 %v1120
    %v2897 = vunpack.c.l.b16 %v1121
    %v2898 = vunpack.c.h.b16 %v1121
    %v2899 = vunpack.c.l.b16 %v1122
    %v2900 = vunpack.c.h.b16 %v1122
    %v2901 = vunpack.c.l.b16 %v1123
    %v2902 = vunpack.c.h.b16 %v1123
    %v2903 = vunpack.c.l.b16 %v1124
    %v2904 = vunpack.c.h.b16 %v1124
    %v2905 = vunpack.c.l.b16 %v1125
    %v2906 = vunpack.c.h.b16 %v1125
    %v2907 = vunpack.c.l.b16 %v1126
    %v2908 = vunpack.c.h.b16 %v1126
    %v2909 = vunpack.c.l.b16 %v1127
    %v2910 = vunpack.c.h.b16 %v1127
    %v2911 = vunpack.c.l.b16 %v1128
    %v2912 = vunpack.c.h.b16 %v1128
    %v2913 = vunpack.c.l.b16 %v1129
    %v2914 = vunpack.c.h.b16 %v1129
    %v2915 = vunpack.c.l.b16 %v1130
    %v2916 = vunpack.c.h.b16 %v1130
    %v2917 = vunpack.c.l.b16 %v1131
    %v2918 = vunpack.c.h.b16 %v1131
    %v2919 = vunpack.c.l.b16 %v1132
    %v2920 = vunpack.c.h.b16 %v1132
    %v2921 = vunpack.c.l.b16 %v1133
    %v2922 = vunpack.c.h.b16 %v1133
    %v2923 = vunpack.c.l.b16 %v1134
    %v2924 = vunpack.c.h.b16 %v1134
    %v2925 = vunpack.c.l.b16 %v1135
    %v2926 = vunpack.c.h.b16 %v1135
    %v2927 = vunpack.c.l.b16 %v1136
    %v2928 = vunpack.c.h.b16 %v1136
    %v2929 = vunpack.c.l.b16 %v1137
    %v2930 = vunpack.c.h.b16 %v1137
    %v2931 = vunpack.c.l.b16 %v1138
    %v2932 = vunpack.c.h.b16 %v1138
    %v2933 = vunpack.c.l.b16 %v1139
    %v2934 = vunpack.c.h.b16 %v1139
    %v2935 = vunpack.c.l.b16 %v1140
    %v2936 = vunpack.c.h.b16 %v1140
    %v2937 = vunpack.c.l.b16 %v1141
    %v2938 = vunpack.c.h.b16 %v1141
    %v2939 = vunpack.c.l.b16 %v1142
    %v2940 = vunpack.c.h.b16 %v1142
    %v2941 = vunpack.c.l.b16 %v1143
    %v2942 = vunpack.c.h.b16 %v1143
    %v2943 = vunpack.c.l.b16 %v1144
    %v2944 = vunpack.c.h.b16 %v1144
    %v2945 = vunpack.c.l.b16 %v1145
    %v2946 = vunpack.c.h.b16 %v1145
    %v2947 = vunpack.c.l.b16 %v1146
    %v2948 = vunpack.c.h.b16 %v1146
    %v2949 = vunpack.c.l.b16 %v1147
    %v2950 = vunpack.c.h.b16 %v1147
    %v2951 = vunpack.c.l.b16 %v1148
    %v2952 = vunpack.c.h.b16 %v1148
    %v2953 = vunpack.c.l.b16 %v1149
    %v2954 = vunpack.c.h.b16 %v1149
    %v2955 = vunpack.c.l.b16 %v1150
    %v2956 = vunpack.c.h.b16 %v1150
    %v2957 = vunpack.c.l.b16 %v1151
    %v2958 = vunpack.c.h.b16 %v1151
    %v2959 = vunpack.c.l.b16 %v1152
    %v2960 = vunpack.c.h.b16 %v1152
    %v2961 = vunpack.c.l.b16 %v1153
    %v2962 = vunpack.c.h.b16 %v1153
    %v2963 = vunpack.c.l.b16 %v1154
    %v2964 = vunpack.c.h.b16 %v1154
    %v2965 = vunpack.c.l.b16 %v1155
    %v2966 = vunpack.c.h.b16 %v1155
    %v2967 = vunpack.c.l.b16 %v1156
    %v2968 = vunpack.c.h.b16 %v1156
    %v2969 = vunpack.c.l.b16 %v1157
    %v2970 = vunpack.c.h.b16 %v1157
    %v2971 = vunpack.c.l.b16 %v1158
    %v2972 = vunpack.c.h.b16 %v1158
    %v2973 = vunpack.c.l.b16 %v1159
    %v2974 = vunpack.c.h.b16 %v1159
    %v2975 = vunpack.c.l.b16 %v1160
    %v2976 = vunpack.c.h.b16 %v1160
    %v2977 = vunpack.c.l.b16 %v1161
    %v2978 = vunpack.c.h.b16 %v1161
    %v2979 = vunpack.c.l.b16 %v1162
    %v2980 = vunpack.c.h.b16 %v1162
    %v2981 = vunpack.c.l.b16 %v1163
    %v2982 = vunpack.c.h.b16 %v1163
    %v2983 = vunpack.c.l.b16 %v1164
    %v2984 = vunpack.c.h.b16 %v1164
    %v2985 = vunpack.c.l.b16 %v1165
    %v2986 = vunpack.c.h.b16 %v1165
    %v2987 = vunpack.c.l.b16 %v1166
    %v2988 = vunpack.c.h.b16 %v1166
    %v2989 = vunpack.c.l.b16 %v1167
    %v2990 = vunpack.c.h.b16 %v1167
    %v2991 = vunpack.c.l.b16 %v1168
    %v2992 = vunpack.c.h.b16 %v1168
    %v2993 = vunpack.c.l.b16 %v1169
    %v2994 = vunpack.c.h.b16 %v1169
    %v2995 = vunpack.c.l.b16 %v1170
    %v2996 = vunpack.c.h.b16 %v1170
    %v2997 = vunpack.c.l.b16 %v1171
    %v2998 = vunpack.c.h.b16 %v1171
    %v2999 = vunpack.c.l.b16 %v1172
    %v3000 = vunpack.c.h.b16 %v1172
    %v3001 = vunpack.c.l.b16 %v1173
    %v3002 = vunpack.c.h.b16 %v1173
    %v3003 = vunpack.c.l.b16 %v1174
    %v3004 = vunpack.c.h.b16 %v1174
    %v3005 = vunpack.c.l.b16 %v1175
    %v3006 = vunpack.c.h.b16 %v1175
    %v3007 = vunpack.c.l.b16 %v1176
    %v3008 = vunpack.c.h.b16 %v1176
    %v3009 = vunpack.c.l.b16 %v1177
    %v3010 = vunpack.c.h.b16 %v1177
    %v3011 = vunpack.c.l.b16 %v1178
    %v3012 = vunpack.c.h.b16 %v1178
    %v3013 = vunpack.c.l.b16 %v1179
    %v3014 = vunpack.c.h.b16 %v1179
    %v3015 = vunpack.c.l.b16 %v1180
    %v3016 = vunpack.c.h.b16 %v1180
    %v3017 = vunpack.c.l.b16 %v1181
    %v3018 = vunpack.c.h.b16 %v1181
    %v3019 = vunpack.c.l.b16 %v1182
    %v3020 = vunpack.c.h.b16 %v1182
    %v3021 = vunpack.c.l.b16 %v1183
    %v3022 = vunpack.c.h.b16 %v1183
    %v3023 = vunpack.c.l.b16 %v1184
    %v3024 = vunpack.c.h.b16 %v1184
    %v3025 = vunpack.c.l.b16 %v1185
    %v3026 = vunpack.c.h.b16 %v1185
    %v3027 = vunpack.c.l.b16 %v1186
    %v3028 = vunpack.c.h.b16 %v1186
    %v3029 = vunpack.c.l.b16 %v1187
    %v3030 = vunpack.c.h.b16 %v1187
    %v3031 = vunpack.c.l.b16 %v1188
    %v3032 = vunpack.c.h.b16 %v1188
    %v3033 = vunpack.c.l.b16 %v1189
    %v3034 = vunpack.c.h.b16 %v1189
    %v3035 = vunpack.c.l.b16 %v1190
    %v3036 = vunpack.c.h.b16 %v1190
    %v3037 = vunpack.c.l.b16 %v1191
    %v3038 = vunpack.c.h.b16 %v1191
    %v3039 = vunpack.c.l.b16 %v1192
    %v3040 = vunpack.c.h.b16 %v1192
    %v3041 = vunpack.c.l.b16 %v1193
    %v3042 = vunpack.c.h.b16 %v1193
    %v3043 = vunpack.c.l.b16 %v1194
    %v3044 = vunpack.c.h.b16 %v1194
    %v3045 = vunpack.c.l.b16 %v1195
    %v3046 = vunpack.c.h.b16 %v1195
    %v3047 = vunpack.c.l.b16 %v1196
    %v3048 = vunpack.c.h.b16 %v1196
    %v3049 = vunpack.c.l.b16 %v1197
    %v3050 = vunpack.c.h.b16 %v1197
    %v3051 = vunpack.c.l.b16 %v1198
    %v3052 = vunpack.c.h.b16 %v1198
    %v3053 = vunpack.c.l.b16 %v1199
    %v3054 = vunpack.c.h.b16 %v1199
    %v3055 = vunpack.c.l.b16 %v1200
    %v3056 = vunpack.c.h.b16 %v1200
    %v3057 = vunpack.c.l.b16 %v1201
    %v3058 = vunpack.c.h.b16 %v1201
    %v3059 = vunpack.c.l.b16 %v1202
    %v3060 = vunpack.c.h.b16 %v1202
    %v3061 = vunpack.c.l.b16 %v1203
    %v3062 = vunpack.c.h.b16 %v1203
    %v3063 = vunpack.c.l.b16 %v1204
    %v3064 = vunpack.c.h.b16 %v1204
    %v3065 = vunpack.c.l.b16 %v1205
    %v3066 = vunpack.c.h.b16 %v1205
    %v3067 = vunpack.c.l.b16 %v1206
    %v3068 = vunpack.c.h.b16 %v1206
    %v3069 = vunpack.c.l.b16 %v1207
    %v3070 = vunpack.c.h.b16 %v1207
    %v3071 = vunpack.c.l.b16 %v1208
    %v3072 = vunpack.c.h.b16 %v1208
    %v3073 = vunpack.c.l.b16 %v1209
    %v3074 = vunpack.c.h.b16 %v1209
    %v3075 = vunpack.c.l.b16 %v1210
    %v3076 = vunpack.c.h.b16 %v1210
    %v3077 = vunpack.c.l.b16 %v1211
    %v3078 = vunpack.c.h.b16 %v1211
    %v3079 = vunpack.c.l.b16 %v1212
    %v3080 = vunpack.c.h.b16 %v1212
    %v3081 = vunpack.c.l.b16 %v1213
    %v3082 = vunpack.c.h.b16 %v1213
    %v3083 = vunpack.c.l.b16 %v1214
    %v3084 = vunpack.c.h.b16 %v1214
    %v3085 = vunpack.c.l.b16 %v1215
    %v3086 = vunpack.c.h.b16 %v1215
    %v3087 = vunpack.c.l.b16 %v1216
    %v3088 = vunpack.c.h.b16 %v1216
    %v3089 = vunpack.c.l.b16 %v1217
    %v3090 = vunpack.c.h.b16 %v1217
    %v3091 = vunpack.c.l.b16 %v1218
    %v3092 = vunpack.c.h.b16 %v1218
    %v3093 = vunpack.c.l.b16 %v1219
    %v3094 = vunpack.c.h.b16 %v1219
    %v3095 = vunpack.c.l.b16 %v1220
    %v3096 = vunpack.c.h.b16 %v1220
    %v3097 = vunpack.c.l.b16 %v1221
    %v3098 = vunpack.c.h.b16 %v1221
    %v3099 = vunpack.c.l.b16 %v1222
    %v3100 = vunpack.c.h.b16 %v1222
    %v3101 = vunpack.c.l.b16 %v1223
    %v3102 = vunpack.c.h.b16 %v1223
    %v3103 = vunpack.c.l.b16 %v1224
    %v3104 = vunpack.c.h.b16 %v1224
    %v3105 = vunpack.c.l.b16 %v1225
    %v3106 = vunpack.c.h.b16 %v1225
    %v3107 = vunpack.c.l.b16 %v1226
    %v3108 = vunpack.c.h.b16 %v1226
    %v3109 = vunpack.c.l.b16 %v1227
    %v3110 = vunpack.c.h.b16 %v1227
    %v3111 = vunpack.c.l.b16 %v1228
    %v3112 = vunpack.c.h.b16 %v1228
    %v3113 = vunpack.c.l.b16 %v1229
    %v3114 = vunpack.c.h.b16 %v1229
    %v3115 = vunpack.c.l.b16 %v1230
    %v3116 = vunpack.c.h.b16 %v1230
    %v3117 = vunpack.c.l.b16 %v1231
    %v3118 = vunpack.c.h.b16 %v1231
    %v3119 = vunpack.c.l.b16 %v1232
    %v3120 = vunpack.c.h.b16 %v1232
    %v3121 = vunpack.c.l.b16 %v1233
    %v3122 = vunpack.c.h.b16 %v1233
    %v3123 = vunpack.c.l.b16 %v1234
    %v3124 = vunpack.c.h.b16 %v1234
    %v3125 = vunpack.c.l.b16 %v1235
    %v3126 = vunpack.c.h.b16 %v1235
    %v3127 = vunpack.c.l.b16 %v1236
    %v3128 = vunpack.c.h.b16 %v1236
    %v3129 = vunpack.c.l.b16 %v1237
    %v3130 = vunpack.c.h.b16 %v1237
    %v3131 = vunpack.c.l.b16 %v1238
    %v3132 = vunpack.c.h.b16 %v1238
    %v3133 = vunpack.c.l.b16 %v1239
    %v3134 = vunpack.c.h.b16 %v1239
    %v3135 = vunpack.c.l.b16 %v1240
    %v3136 = vunpack.c.h.b16 %v1240
    %v3137 = vunpack.c.l.b16 %v1241
    %v3138 = vunpack.c.h.b16 %v1241
    %v3139 = vunpack.c.l.b16 %v1242
    %v3140 = vunpack.c.h.b16 %v1242
    %v3141 = vunpack.c.l.b16 %v1243
    %v3142 = vunpack.c.h.b16 %v1243
    %v3143 = vunpack.c.l.b16 %v1244
    %v3144 = vunpack.c.h.b16 %v1244
    %v3145 = vunpack.c.l.b16 %v1245
    %v3146 = vunpack.c.h.b16 %v1245
    %v3147 = vunpack.c.l.b16 %v1246
    %v3148 = vunpack.c.h.b16 %v1246
    %v3149 = vunpack.c.l.b16 %v1247
    %v3150 = vunpack.c.h.b16 %v1247
    %v3151 = vunpack.c.l.b16 %v1248
    %v3152 = vunpack.c.h.b16 %v1248
    %v3153 = vunpack.c.l.b16 %v1249
    %v3154 = vunpack.c.h.b16 %v1249
    %v3155 = vunpack.c.l.b16 %v1250
    %v3156 = vunpack.c.h.b16 %v1250
    %v3157 = vunpack.c.l.b16 %v1251
    %v3158 = vunpack.c.h.b16 %v1251
    %v3159 = vunpack.c.l.b16 %v1252
    %v3160 = vunpack.c.h.b16 %v1252
    %v3161 = vunpack.c.l.b16 %v1253
    %v3162 = vunpack.c.h.b16 %v1253
    %v3163 = vunpack.c.l.b16 %v1254
    %v3164 = vunpack.c.h.b16 %v1254
    %v3165 = vunpack.c.l.b16 %v1255
    %v3166 = vunpack.c.h.b16 %v1255
    %v3167 = vunpack.c.l.b16 %v1256
    %v3168 = vunpack.c.h.b16 %v1256
    %v3169 = vunpack.c.l.b16 %v1257
    %v3170 = vunpack.c.h.b16 %v1257
    %v3171 = vunpack.c.l.b16 %v1258
    %v3172 = vunpack.c.h.b16 %v1258
    %v3173 = vunpack.c.l.b16 %v1259
    %v3174 = vunpack.c.h.b16 %v1259
    %v3175 = vunpack.c.l.b16 %v1260
    %v3176 = vunpack.c.h.b16 %v1260
    %v3177 = vunpack.c.l.b16 %v1261
    %v3178 = vunpack.c.h.b16 %v1261
    %v3179 = vunpack.c.l.b16 %v1262
    %v3180 = vunpack.c.h.b16 %v1262
    %v3181 = vunpack.c.l.b16 %v1263
    %v3182 = vunpack.c.h.b16 %v1263
    %v3183 = vunpack.c.l.b16 %v1264
    %v3184 = vunpack.c.h.b16 %v1264
    %v3185 = vunpack.c.l.b16 %v1265
    %v3186 = vunpack.c.h.b16 %v1265
    %v3187 = vunpack.c.l.b16 %v1266
    %v3188 = vunpack.c.h.b16 %v1266
    %v3189 = vunpack.c.l.b16 %v1267
    %v3190 = vunpack.c.h.b16 %v1267
    %v3191 = vunpack.c.l.b16 %v1268
    %v3192 = vunpack.c.h.b16 %v1268
    %v3193 = vunpack.c.l.b16 %v1269
    %v3194 = vunpack.c.h.b16 %v1269
    %v3195 = vunpack.c.l.b16 %v1270
    %v3196 = vunpack.c.h.b16 %v1270
    %v3197 = vunpack.c.l.b16 %v1271
    %v3198 = vunpack.c.h.b16 %v1271
    %v3199 = vunpack.c.l.b16 %v1272
    %v3200 = vunpack.c.h.b16 %v1272
    %v3201 = vunpack.c.l.b16 %v1273
    %v3202 = vunpack.c.h.b16 %v1273
    %v3203 = vunpack.c.l.b16 %v1274
    %v3204 = vunpack.c.h.b16 %v1274
    %v3205 = vunpack.c.l.b16 %v1275
    %v3206 = vunpack.c.h.b16 %v1275
    %v3207 = vunpack.c.l.b16 %v1276
    %v3208 = vunpack.c.h.b16 %v1276
    %v3209 = vunpack.c.l.b16 %v1277
    %v3210 = vunpack.c.h.b16 %v1277
    %v3211 = vunpack.c.l.b16 %v1278
    %v3212 = vunpack.c.h.b16 %v1278
    %v3213 = vunpack.c.l.b16 %v1279
    %v3214 = vunpack.c.h.b16 %v1279
    %v3215 = vunpack.c.l.b16 %v1280
    %v3216 = vunpack.c.h.b16 %v1280
    %v3217 = vunpack.c.l.b16 %v1281
    %v3218 = vunpack.c.h.b16 %v1281
    %v3219 = vunpack.c.l.b16 %v1282
    %v3220 = vunpack.c.h.b16 %v1282
    %v3221 = vunpack.c.l.b16 %v1283
    %v3222 = vunpack.c.h.b16 %v1283
    %v3223 = vunpack.c.l.b16 %v1284
    %v3224 = vunpack.c.h.b16 %v1284
    %v3225 = vunpack.c.l.b16 %v1285
    %v3226 = vunpack.c.h.b16 %v1285
    %v3227 = vunpack.c.l.b16 %v1286
    %v3228 = vunpack.c.h.b16 %v1286
    %v3229 = vunpack.c.l.b16 %v1287
    %v3230 = vunpack.c.h.b16 %v1287
    %v3231 = vunpack.c.l.b16 %v1288
    %v3232 = vunpack.c.h.b16 %v1288
    %v3233 = vunpack.c.l.b16 %v1289
    %v3234 = vunpack.c.h.b16 %v1289
    %v3235 = vunpack.c.l.b16 %v1290
    %v3236 = vunpack.c.h.b16 %v1290
    %v3237 = vunpack.c.l.b16 %v1291
    %v3238 = vunpack.c.h.b16 %v1291
    %v3239 = vunpack.c.l.b16 %v1292
    %v3240 = vunpack.c.h.b16 %v1292
    %v3241 = vunpack.c.l.b16 %v1293
    %v3242 = vunpack.c.h.b16 %v1293
    %v3243 = vunpack.c.l.b16 %v1294
    %v3244 = vunpack.c.h.b16 %v1294
    %v3245 = vunpack.c.l.b16 %v1295
    %v3246 = vunpack.c.h.b16 %v1295
    %v3247 = vunpack.c.l.b16 %v1296
    %v3248 = vunpack.c.h.b16 %v1296
    %v3249 = vunpack.c.l.b16 %v1297
    %v3250 = vunpack.c.h.b16 %v1297
    %v3251 = vunpack.c.l.b16 %v1298
    %v3252 = vunpack.c.h.b16 %v1298
    %v3253 = vunpack.c.l.b16 %v1299
    %v3254 = vunpack.c.h.b16 %v1299
    %v3255 = vunpack.c.l.b16 %v1300
    %v3256 = vunpack.c.h.b16 %v1300
    %v3257 = vunpack.c.l.b16 %v1301
    %v3258 = vunpack.c.h.b16 %v1301
    %v3259 = vunpack.c.l.b16 %v1302
    %v3260 = vunpack.c.h.b16 %v1302
    %v3261 = vunpack.c.l.b16 %v1303
    %v3262 = vunpack.c.h.b16 %v1303
    %v3263 = vunpack.c.l.b16 %v1304
    %v3264 = vunpack.c.h.b16 %v1304
    %v3265 = vunpack.c.l.b16 %v1305
    %v3266 = vunpack.c.h.b16 %v1305
    %v3267 = vunpack.c.l.b16 %v1306
    %v3268 = vunpack.c.h.b16 %v1306
    %v3269 = vunpack.c.l.b16 %v1307
    %v3270 = vunpack.c.h.b16 %v1307
    %v3271 = vunpack.c.l.b16 %v1308
    %v3272 = vunpack.c.h.b16 %v1308
    %v3273 = vunpack.c.l.b16 %v1309
    %v3274 = vunpack.c.h.b16 %v1309
    %v3275 = vunpack.c.l.b16 %v1310
    %v3276 = vunpack.c.h.b16 %v1310
    %v3277 = vunpack.c.l.b16 %v1311
    %v3278 = vunpack.c.h.b16 %v1311
    %v3279 = vunpack.c.l.b16 %v1312
    %v3280 = vunpack.c.h.b16 %v1312
    %v3281 = vunpack.c.l.b16 %v1313
    %v3282 = vunpack.c.h.b16 %v1313
    %v3283 = vunpack.c.l.b16 %v1314
    %v3284 = vunpack.c.h.b16 %v1314
    %v3285 = vunpack.c.l.b16 %v1315
    %v3286 = vunpack.c.h.b16 %v1315
    %v3287 = vunpack.c.l.b16 %v1316
    %v3288 = vunpack.c.h.b16 %v1316
    %v3289 = vunpack.c.l.b16 %v1317
    %v3290 = vunpack.c.h.b16 %v1317
    %v3291 = vunpack.c.l.b16 %v1318
    %v3292 = vunpack.c.h.b16 %v1318
    %v3293 = vunpack.c.l.b16 %v1319
    %v3294 = vunpack.c.h.b16 %v1319
    %v3295 = vunpack.c.l.b16 %v1320
    %v3296 = vunpack.c.h.b16 %v1320
    %v3297 = vunpack.c.l.b16 %v1321
    %v3298 = vunpack.c.h.b16 %v1321
    %v3299 = vunpack.c.l.b16 %v1322
    %v3300 = vunpack.c.h.b16 %v1322
    %v3301 = vunpack.c.l.b16 %v1323
    %v3302 = vunpack.c.h.b16 %v1323
    %v3303 = vunpack.c.l.b16 %v1324
    %v3304 = vunpack.c.h.b16 %v1324
    %v3305 = vunpack.c.l.b16 %v1325
    %v3306 = vunpack.c.h.b16 %v1325
    %v3307 = vunpack.c.l.b16 %v1326
    %v3308 = vunpack.c.h.b16 %v1326
    %v3309 = vunpack.c.l.b16 %v1327
    %v3310 = vunpack.c.h.b16 %v1327
    %v3311 = vunpack.c.l.b16 %v1328
    %v3312 = vunpack.c.h.b16 %v1328
    %v3313 = vunpack.c.l.b16 %v1329
    %v3314 = vunpack.c.h.b16 %v1329
    %v3315 = vunpack.c.l.b16 %v1330
    %v3316 = vunpack.c.h.b16 %v1330
    %v3317 = vunpack.c.l.b16 %v1331
    %v3318 = vunpack.c.h.b16 %v1331
    %v3319 = vunpack.c.l.b16 %v1332
    %v3320 = vunpack.c.h.b16 %v1332
    %v3321 = vunpack.c.l.b16 %v1333
    %v3322 = vunpack.c.h.b16 %v1333
    %v3323 = vunpack.c.l.b16 %v1334
    %v3324 = vunpack.c.h.b16 %v1334
    %v3325 = vunpack.c.l.b16 %v1335
    %v3326 = vunpack.c.h.b16 %v1335
    %v3327 = vunpack.c.l.b16 %v1336
    %v3328 = vunpack.c.h.b16 %v1336
    %v3329 = vunpack.c.l.b16 %v1337
    %v3330 = vunpack.c.h.b16 %v1337
    %v3331 = vunpack.c.l.b16 %v1338
    %v3332 = vunpack.c.h.b16 %v1338
    %v3333 = vunpack.c.l.b16 %v1339
    %v3334 = vunpack.c.h.b16 %v1339
    %v3335 = vunpack.c.l.b16 %v1340
    %v3336 = vunpack.c.h.b16 %v1340
    %v3337 = vunpack.c.l.b16 %v1341
    %v3338 = vunpack.c.h.b16 %v1341
    %v3339 = vunpack.c.l.b16 %v1342
    %v3340 = vunpack.c.h.b16 %v1342
    %v3341 = vunpack.c.l.b16 %v1343
    %v3342 = vunpack.c.h.b16 %v1343
    %v3343 = vunpack.c.l.b16 %v1344
    %v3344 = vunpack.c.h.b16 %v1344
    %v3345 = vunpack.c.l.b16 %v1345
    %v3346 = vunpack.c.h.b16 %v1345
    %v3347 = vunpack.c.l.b16 %v1346
    %v3348 = vunpack.c.h.b16 %v1346
    %v3349 = vunpack.c.l.b16 %v1347
    %v3350 = vunpack.c.h.b16 %v1347
    %v3351 = vunpack.c.l.b16 %v1348
    %v3352 = vunpack.c.h.b16 %v1348
    %v3353 = vunpack.c.l.b16 %v1349
    %v3354 = vunpack.c.h.b16 %v1349
    %v3355 = vunpack.c.l.b16 %v1350
    %v3356 = vunpack.c.h.b16 %v1350
    %v3357 = vunpack.c.l.b16 %v1351
    %v3358 = vunpack.c.h.b16 %v1351
    %v3359 = vunpack.c.l.b16 %v1352
    %v3360 = vunpack.c.h.b16 %v1352
    %v3361 = vunpack.c.l.b16 %v1353
    %v3362 = vunpack.c.h.b16 %v1353
    %v3363 = vunpack.c.l.b16 %v1354
    %v3364 = vunpack.c.h.b16 %v1354
    %v3365 = vunpack.c.l.b16 %v1355
    %v3366 = vunpack.c.h.b16 %v1355
    %v3367 = vunpack.c.l.b16 %v1356
    %v3368 = vunpack.c.h.b16 %v1356
    %v3369 = vunpack.c.l.b16 %v1357
    %v3370 = vunpack.c.h.b16 %v1357
    %v3371 = vunpack.c.l.b16 %v1358
    %v3372 = vunpack.c.h.b16 %v1358
    %v3373 = vunpack.c.l.b16 %v1359
    %v3374 = vunpack.c.h.b16 %v1359
    %v3375 = vunpack.c.l.b16 %v1360
    %v3376 = vunpack.c.h.b16 %v1360
    %v3377 = vunpack.c.l.b16 %v1361
    %v3378 = vunpack.c.h.b16 %v1361
    %v3379 = vunpack.c.l.b16 %v1362
    %v3380 = vunpack.c.h.b16 %v1362
    %v3381 = vunpack.c.l.b16 %v1363
    %v3382 = vunpack.c.h.b16 %v1363
    %v3383 = vunpack.c.l.b16 %v1364
    %v3384 = vunpack.c.h.b16 %v1364
    %v3385 = vunpack.c.l.b16 %v1365
    %v3386 = vunpack.c.h.b16 %v1365
    %v3387 = vunpack.c.l.b16 %v1366
    %v3388 = vunpack.c.h.b16 %v1366
    %v3389 = vunpack.c.l.b16 %v1367
    %v3390 = vunpack.c.h.b16 %v1367
    %v3391 = vunpack.c.l.b16 %v1368
    %v3392 = vunpack.c.h.b16 %v1368
    %v3393 = vunpack.c.l.b16 %v1369
    %v3394 = vunpack.c.h.b16 %v1369
    %v3395 = vunpack.c.l.b16 %v1370
    %v3396 = vunpack.c.h.b16 %v1370
    %v3397 = vunpack.c.l.b16 %v1371
    %v3398 = vunpack.c.h.b16 %v1371
    %v3399 = vunpack.c.l.b16 %v1372
    %v3400 = vunpack.c.h.b16 %v1372
    %v3401 = vunpack.c.l.b16 %v1373
    %v3402 = vunpack.c.h.b16 %v1373
    %v3403 = vunpack.c.l.b16 %v1374
    %v3404 = vunpack.c.h.b16 %v1374
    %v3405 = vunpack.c.l.b16 %v1375
    %v3406 = vunpack.c.h.b16 %v1375
    %v3407 = vunpack.c.l.b16 %v1376
    %v3408 = vunpack.c.h.b16 %v1376
    %v3409 = vunpack.c.l.b16 %v1377
    %v3410 = vunpack.c.h.b16 %v1377
    %v3411 = vunpack.c.l.b16 %v1378
    %v3412 = vunpack.c.h.b16 %v1378
    %v3413 = vunpack.c.l.b16 %v1379
    %v3414 = vunpack.c.h.b16 %v1379
    %v3415 = vunpack.c.l.b16 %v1380
    %v3416 = vunpack.c.h.b16 %v1380
    %v3417 = vunpack.c.l.b16 %v1381
    %v3418 = vunpack.c.h.b16 %v1381
    %v3419 = vunpack.c.l.b16 %v1382
    %v3420 = vunpack.c.h.b16 %v1382
    %v3421 = vunpack.c.l.b16 %v1383
    %v3422 = vunpack.c.h.b16 %v1383
    %v3423 = vunpack.c.l.b16 %v1384
    %v3424 = vunpack.c.h.b16 %v1384
    %v3425 = vunpack.c.l.b16 %v1385
    %v3426 = vunpack.c.h.b16 %v1385
    %v3427 = vunpack.c.l.b16 %v1386
    %v3428 = vunpack.c.h.b16 %v1386
    %v3429 = vunpack.c.l.b16 %v1387
    %v3430 = vunpack.c.h.b16 %v1387
    %v3431 = vunpack.c.l.b16 %v1388
    %v3432 = vunpack.c.h.b16 %v1388
    %v3433 = vunpack.c.l.b16 %v1389
    %v3434 = vunpack.c.h.b16 %v1389
    %v3435 = vunpack.c.l.b16 %v1390
    %v3436 = vunpack.c.h.b16 %v1390
    %v3437 = vunpack.c.l.b16 %v1391
    %v3438 = vunpack.c.h.b16 %v1391
    %v3439 = vunpack.c.l.b16 %v1392
    %v3440 = vunpack.c.h.b16 %v1392
    %v3441 = vunpack.c.l.b16 %v1393
    %v3442 = vunpack.c.h.b16 %v1393
    %v3443 = vunpack.c.l.b16 %v1394
    %v3444 = vunpack.c.h.b16 %v1394
    %v3445 = vunpack.c.l.b16 %v1395
    %v3446 = vunpack.c.h.b16 %v1395
    %v3447 = vunpack.c.l.b16 %v1396
    %v3448 = vunpack.c.h.b16 %v1396
    %v3449 = vunpack.c.l.b16 %v1397
    %v3450 = vunpack.c.h.b16 %v1397
    %v3451 = vunpack.c.l.b16 %v1398
    %v3452 = vunpack.c.h.b16 %v1398
    %v3453 = vunpack.c.l.b16 %v1399
    %v3454 = vunpack.c.h.b16 %v1399
    %v3455 = vunpack.c.l.b16 %v1400
    %v3456 = vunpack.c.h.b16 %v1400
    %v3457 = vunpack.c.l.b16 %v1401
    %v3458 = vunpack.c.h.b16 %v1401
    %v3459 = vunpack.c.l.b16 %v1402
    %v3460 = vunpack.c.h.b16 %v1402
    %v3461 = vunpack.c.l.b16 %v1403
    %v3462 = vunpack.c.h.b16 %v1403
    %v3463 = vunpack.c.l.b16 %v1404
    %v3464 = vunpack.c.h.b16 %v1404
    %v3465 = vunpack.c.l.b16 %v1405
    %v3466 = vunpack.c.h.b16 %v1405
    %v3467 = vunpack.c.l.b16 %v1406
    %v3468 = vunpack.c.h.b16 %v1406
    %v3469 = vunpack.c.l.b16 %v1407
    %v3470 = vunpack.c.h.b16 %v1407
    %v3471 = vunpack.c.l.b16 %v1408
    %v3472 = vunpack.c.h.b16 %v1408
    %v3473 = vunpack.c.l.b16 %v1409
    %v3474 = vunpack.c.h.b16 %v1409
    %v3475 = vunpack.c.l.b16 %v1410
    %v3476 = vunpack.c.h.b16 %v1410
    %v3477 = vunpack.c.l.b16 %v1411
    %v3478 = vunpack.c.h.b16 %v1411
    %v3479 = vunpack.c.l.b16 %v1412
    %v3480 = vunpack.c.h.b16 %v1412
    %v3481 = vunpack.c.l.b16 %v1413
    %v3482 = vunpack.c.h.b16 %v1413
    %v3483 = vunpack.c.l.b16 %v1414
    %v3484 = vunpack.c.h.b16 %v1414
    %v3485 = vunpack.c.l.b16 %v1415
    %v3486 = vunpack.c.h.b16 %v1415
    %v3487 = vunpack.c.l.b16 %v1416
    %v3488 = vunpack.c.h.b16 %v1416
    %v3489 = vunpack.c.l.b16 %v1417
    %v3490 = vunpack.c.h.b16 %v1417
    %v3491 = vunpack.c.l.b16 %v1418
    %v3492 = vunpack.c.h.b16 %v1418
    %v3493 = vunpack.c.l.b16 %v1419
    %v3494 = vunpack.c.h.b16 %v1419
    %v3495 = vunpack.c.l.b16 %v1420
    %v3496 = vunpack.c.h.b16 %v1420
    %v3497 = vunpack.c.l.b16 %v1421
    %v3498 = vunpack.c.h.b16 %v1421
    %v3499 = vunpack.c.l.b16 %v1422
    %v3500 = vunpack.c.h.b16 %v1422
    %v3501 = vunpack.c.l.b16 %v1423
    %v3502 = vunpack.c.h.b16 %v1423
    %v3503 = vunpack.c.l.b16 %v1424
    %v3504 = vunpack.c.h.b16 %v1424
    %v3505 = vunpack.c.l.b16 %v1425
    %v3506 = vunpack.c.h.b16 %v1425
    %v3507 = vunpack.c.l.b16 %v1426
    %v3508 = vunpack.c.h.b16 %v1426
    %v3509 = vunpack.c.l.b16 %v1427
    %v3510 = vunpack.c.h.b16 %v1427
    %v3511 = vunpack.c.l.b16 %v1428
    %v3512 = vunpack.c.h.b16 %v1428
    %v3513 = vunpack.c.l.b16 %v1429
    %v3514 = vunpack.c.h.b16 %v1429
    %v3515 = vunpack.c.l.b16 %v1430
    %v3516 = vunpack.c.h.b16 %v1430
    %v3517 = vunpack.c.l.b16 %v1431
    %v3518 = vunpack.c.h.b16 %v1431
    %v3519 = vunpack.c.l.b16 %v1432
    %v3520 = vunpack.c.h.b16 %v1432
    %v3521 = vunpack.c.l.b16 %v1433
    %v3522 = vunpack.c.h.b16 %v1433
    %v3523 = vunpack.c.l.b16 %v1434
    %v3524 = vunpack.c.h.b16 %v1434
    %v3525 = vunpack.c.l.b16 %v1435
    %v3526 = vunpack.c.h.b16 %v1435
    %v3527 = vunpack.c.l.b16 %v1436
    %v3528 = vunpack.c.h.b16 %v1436
    %v3529 = vunpack.c.l.b16 %v1437
    %v3530 = vunpack.c.h.b16 %v1437
    %v3531 = vunpack.c.l.b16 %v1438
    %v3532 = vunpack.c.h.b16 %v1438
    %v3533 = vunpack.c.l.b16 %v1439
    %v3534 = vunpack.c.h.b16 %v1439
    %v3535 = vunpack.c.l.b16 %v1440
    %v3536 = vunpack.c.h.b16 %v1440
    %v3537 = vunpack.c.l.b16 %v1441
    %v3538 = vunpack.c.h.b16 %v1441
    %v3539 = vunpack.c.l.b16 %v1442
    %v3540 = vunpack.c.h.b16 %v1442
    %v3541 = vunpack.c.l.b16 %v1443
    %v3542 = vunpack.c.h.b16 %v1443
    %v3543 = vunpack.c.l.b16 %v1444
    %v3544 = vunpack.c.h.b16 %v1444
    %v3545 = vunpack.c.l.b16 %v1445
    %v3546 = vunpack.c.h.b16 %v1445
    %v3547 = vunpack.c.l.b16 %v1446
    %v3548 = vunpack.c.h.b16 %v1446
    %v3549 = vunpack.c.l.b16 %v1447
    %v3550 = vunpack.c.h.b16 %v1447
    %v3551 = vunpack.c.l.b16 %v1448
    %v3552 = vunpack.c.h.b16 %v1448
    %v3553 = vunpack.c.l.b16 %v1449
    %v3554 = vunpack.c.h.b16 %v1449
    %v3555 = vunpack.c.l.b16 %v1450
    %v3556 = vunpack.c.h.b16 %v1450
    %v3557 = vunpack.c.l.b16 %v1451
    %v3558 = vunpack.c.h.b16 %v1451
    %v3559 = vunpack.c.l.b16 %v1452
    %v3560 = vunpack.c.h.b16 %v1452
    %v3561 = vunpack.c.l.b16 %v1453
    %v3562 = vunpack.c.h.b16 %v1453
    %v3563 = vunpack.c.l.b16 %v1454
    %v3564 = vunpack.c.h.b16 %v1454
    %v3565 = vunpack.c.l.b16 %v1455
    %v3566 = vunpack.c.h.b16 %v1455
    %v3567 = vunpack.c.l.b16 %v1456
    %v3568 = vunpack.c.h.b16 %v1456
    %v3569 = vunpack.c.l.b16 %v1457
    %v3570 = vunpack.c.h.b16 %v1457
    %v3571 = vunpack.c.l.b16 %v1458
    %v3572 = vunpack.c.h.b16 %v1458
    %v3573 = vunpack.c.l.b16 %v1459
    %v3574 = vunpack.c.h.b16 %v1459
    %v3575 = vunpack.c.l.b16 %v1460
    %v3576 = vunpack.c.h.b16 %v1460
    %v3577 = vunpack.c.l.b16 %v1461
    %v3578 = vunpack.c.h.b16 %v1461
    %v3579 = vunpack.c.l.b16 %v1462
    %v3580 = vunpack.c.h.b16 %v1462
    %v3581 = vunpack.c.l.b16 %v1463
    %v3582 = vunpack.c.h.b16 %v1463
    %v3583 = vunpack.c.l.b16 %v1464
    %v3584 = vunpack.c.h.b16 %v1464
    %v3585 = vunpack.c.l.b16 %v1465
    %v3586 = vunpack.c.h.b16 %v1465
    %v3587 = vunpack.c.l.b16 %v1466
    %v3588 = vunpack.c.h.b16 %v1466
    %v3589 = vunpack.c.l.b16 %v1467
    %v3590 = vunpack.c.h.b16 %v1467
    %v3591 = vunpack.c.l.b16 %v1468
    %v3592 = vunpack.c.h.b16 %v1468
    %v3593 = vunpack.c.l.b16 %v1469
    %v3594 = vunpack.c.h.b16 %v1469
    %v3595 = vunpack.c.l.b16 %v1470
    %v3596 = vunpack.c.h.b16 %v1470
    %v3597 = vunpack.c.l.b16 %v1471
    %v3598 = vunpack.c.h.b16 %v1471
    %v3599 = vunpack.c.l.b16 %v1472
    %v3600 = vunpack.c.h.b16 %v1472
    %v3601 = vunpack.c.l.b16 %v1473
    %v3602 = vunpack.c.h.b16 %v1473
    %v3603 = vunpack.c.l.b16 %v1474
    %v3604 = vunpack.c.h.b16 %v1474
    %v3605 = vunpack.c.l.b16 %v1475
    %v3606 = vunpack.c.h.b16 %v1475
    %v3607 = vunpack.c.l.b16 %v1476
    %v3608 = vunpack.c.h.b16 %v1476
    %v3609 = vunpack.c.l.b16 %v1477
    %v3610 = vunpack.c.h.b16 %v1477
    %v3611 = vunpack.c.l.b16 %v1478
    %v3612 = vunpack.c.h.b16 %v1478
    %v3613 = vunpack.c.l.b16 %v1479
    %v3614 = vunpack.c.h.b16 %v1479
    %v3615 = vunpack.c.l.b16 %v1480
    %v3616 = vunpack.c.h.b16 %v1480
    %v3617 = vunpack.c.l.b16 %v1481
    %v3618 = vunpack.c.h.b16 %v1481
    %v3619 = vunpack.c.l.b16 %v1482
    %v3620 = vunpack.c.h.b16 %v1482
    %v3621 = vunpack.c.l.b16 %v1483
    %v3622 = vunpack.c.h.b16 %v1483
    %v3623 = vunpack.c.l.b16 %v1484
    %v3624 = vunpack.c.h.b16 %v1484
    %v3625 = vunpack.c.l.b16 %v1485
    %v3626 = vunpack.c.h.b16 %v1485
    %v3627 = vunpack.c.l.b16 %v1486
    %v3628 = vunpack.c.h.b16 %v1486
    %v3629 = vunpack.c.l.b16 %v1487
    %v3630 = vunpack.c.h.b16 %v1487
    %v3631 = vunpack.c.l.b16 %v1488
    %v3632 = vunpack.c.h.b16 %v1488
    %v3633 = vunpack.c.l.b16 %v1489
    %v3634 = vunpack.c.h.b16 %v1489
    %v3635 = vunpack.c.l.b16 %v1490
    %v3636 = vunpack.c.h.b16 %v1490
    %v3637 = vunpack.c.l.b16 %v1491
    %v3638 = vunpack.c.h.b16 %v1491
    %v3639 = vunpack.c.l.b16 %v1492
    %v3640 = vunpack.c.h.b16 %v1492
    %v3641 = vunpack.c.l.b16 %v1493
    %v3642 = vunpack.c.h.b16 %v1493
    %v3643 = vunpack.c.l.b16 %v1494
    %v3644 = vunpack.c.h.b16 %v1494
    %v3645 = vunpack.c.l.b16 %v1495
    %v3646 = vunpack.c.h.b16 %v1495
    %v3647 = vunpack.c.l.b16 %v1496
    %v3648 = vunpack.c.h.b16 %v1496
    %v3649 = vunpack.c.l.b16 %v1497
    %v3650 = vunpack.c.h.b16 %v1497
    %v3651 = vunpack.c.l.b16 %v1498
    %v3652 = vunpack.c.h.b16 %v1498
    %v3653 = vpack.c.b16 %v2253, %v2245
    %v3654 = vpack.c.b16 %v2254, %v2246
    %v3655 = vpack.c.b16 %v2255, %v2247
    %v3656 = vpack.c.b16 %v2256, %v2248
    %v3657 = vpack.c.b16 %v2257, %v2249
    %v3658 = vpack.c.b16 %v2258, %v2250
    %v3659 = vpack.c.b16 %v2259, %v2251
    %v3660 = vpack.c.b16 %v2260, %v2252
    %v3661 = vpack.c.b16 %v2269, %v2261
    %v3662 = vpack.c.b16 %v2270, %v2262
    %v3663 = vpack.c.b16 %v2271, %v2263
    %v3664 = vpack.c.b16 %v2272, %v2264
    %v3665 = vpack.c.b16 %v2273, %v2265
    %v3666 = vpack.c.b16 %v2274, %v2266
    %v3667 = vpack.c.b16 %v2275, %v2267
    %v3668 = vpack.c.b16 %v2276, %v2268
    %v3669 = vpack.c.b16 %v2285, %v2277
    %v3670 = vpack.c.b16 %v2286, %v2278
    %v3671 = vpack.c.b16 %v2287, %v2279
    %v3672 = vpack.c.b16 %v2288, %v2280
    %v3673 = vpack.c.b16 %v2289, %v2281
    %v3674 = vpack.c.b16 %v2290, %v2282
    %v3675 = vpack.c.b16 %v2291, %v2283
    %v3676 = vpack.c.b16 %v2292, %v2284
    %v3677 = vpack.c.b16 %v2301, %v2293
    %v3678 = vpack.c.b16 %v2302, %v2294
    %v3679 = vpack.c.b16 %v2303, %v2295
    %v3680 = vpack.c.b16 %v2304, %v2296
    %v3681 = vpack.c.b16 %v2305, %v2297
    %v3682 = vpack.c.b16 %v2306, %v2298
    %v3683 = vpack.c.b16 %v2307, %v2299
    %v3684 = vpack.c.b16 %v2308, %v2300
    %v3685 = vpack.c.b16 %v2317, %v2309
    %v3686 = vpack.c.b16 %v2318, %v2310
    %v3687 = vpack.c.b16 %v2319, %v2311
    %v3688 = vpack.c.b16 %v2320, %v2312
    %v3689 = vpack.c.b16 %v2321, %v2313
    %v3690 = vpack.c.b16 %v2322, %v2314
    %v3691 = vpack.c.b16 %v2323, %v2315
    %v3692 = vpack.c.b16 %v2324, %v2316
    %v3693 = vpack.c.b16 %v2333, %v2325
    %v3694 = vpack.c.b16 %v2334, %v2326
    %v3695 = vpack.c.b16 %v2335, %v2327
    %v3696 = vpack.c.b16 %v2336, %v2328
    %v3697 = vpack.c.b16 %v2337, %v2329
    %v3698 = vpack.c.b16 %v2338, %v2330
    %v3699 = vpack.c.b16 %v2339, %v2331
    %v3700 = vpack.c.b16 %v2340, %v2332
    %v3701 = vpack.c.b16 %v2349, %v2341
    %v3702 = vpack.c.b16 %v2350, %v2342
    %v3703 = vpack.c.b16 %v2351, %v2343
    %v3704 = vpack.c.b16 %v2352, %v2344
    %v3705 = vpack.c.b16 %v2353, %v2345
    %v3706 = vpack.c.b16 %v2354, %v2346
    %v3707 = vpack.c.b16 %v2355, %v2347
    %v3708 = vpack.c.b16 %v2356, %v2348
    %v3709 = vpack.c.b16 %v2365, %v2357
    %v3710 = vpack.c.b16 %v2366, %v2358
    %v3711 = vpack.c.b16 %v2367, %v2359
    %v3712 = vpack.c.b16 %v2368, %v2360
    %v3713 = vpack.c.b16 %v2369, %v2361
    %v3714 = vpack.c.b16 %v2370, %v2362
    %v3715 = vpack.c.b16 %v2371, %v2363
    %v3716 = vpack.c.b16 %v2372, %v2364
    %v3717 = vpack.c.b16 %v2381, %v2373
    %v3718 = vpack.c.b16 %v2382, %v2374
    %v3719 = vpack.c.b16 %v2383, %v2375
    %v3720 = vpack.c.b16 %v2384, %v2376
    %v3721 = vpack.c.b16 %v2385, %v2377
    %v3722 = vpack.c.b16 %v2386, %v2378
    %v3723 = vpack.c.b16 %v2387, %v2379
    %v3724 = vpack.c.b16 %v2388, %v2380
    %v3725 = vpack.c.b16 %v2397, %v2389
    %v3726 = vpack.c.b16 %v2398, %v2390
    %v3727 = vpack.c.b16 %v2399, %v2391
    %v3728 = vpack.c.b16 %v2400, %v2392
    %v3729 = vpack.c.b16 %v2401, %v2393
    %v3730 = vpack.c.b16 %v2402, %v2394
    %v3731 = vpack.c.b16 %v2403, %v2395
    %v3732 = vpack.c.b16 %v2404, %v2396
    %v3733 = vpack.c.b16 %v2413, %v2405
    %v3734 = vpack.c.b16 %v2414, %v2406
    %v3735 = vpack.c.b16 %v2415, %v2407
    %v3736 = vpack.c.b16 %v2416, %v2408
    %v3737 = vpack.c.b16 %v2417, %v2409
    %v3738 = vpack.c.b16 %v2418, %v2410
    %v3739 = vpack.c.b16 %v2419, %v2411
    %v3740 = vpack.c.b16 %v2420, %v2412
    %v3741 = vpack.c.b16 %v2429, %v2421
    %v3742 = vpack.c.b16 %v2430, %v2422
    %v3743 = vpack.c.b16 %v2431, %v2423
    %v3744 = vpack.c.b16 %v2432, %v2424
    %v3745 = vpack.c.b16 %v2433, %v2425
    %v3746 = vpack.c.b16 %v2434, %v2426
    %v3747 = vpack.c.b16 %v2435, %v2427
    %v3748 = vpack.c.b16 %v2436, %v2428
    %v3749 = vpack.c.b16 %v2445, %v2437
    %v3750 = vpack.c.b16 %v2446, %v2438
    %v3751 = vpack.c.b16 %v2447, %v2439
    %v3752 = vpack.c.b16 %v2448, %v2440
    %v3753 = vpack.c.b16 %v2449, %v2441
    %v3754 = vpack.c.b16 %v2450, %v2442
    %v3755 = vpack.c.b16 %v2451, %v2443
    %v3756 = vpack.c.b16 %v2452, %v2444
    %v3757 = vpack.c.b16 %v2461, %v2453
    %v3758 = vpack.c.b16 %v2462, %v2454
    %v3759 = vpack.c.b16 %v2463, %v2455
    %v3760 = vpack.c.b16 %v2464, %v2456
    %v3761 = vpack.c.b16 %v2465, %v2457
    %v3762 = vpack.c.b16 %v2466, %v2458
    %v3763 = vpack.c.b16 %v2467, %v2459
    %v3764 = vpack.c.b16 %v2468, %v2460
    %v3765 = vpack.c.b16 %v2477, %v2469
    %v3766 = vpack.c.b16 %v2478, %v2470
    %v3767 = vpack.c.b16 %v2479, %v2471
    %v3768 = vpack.c.b16 %v2480, %v2472
    %v3769 = vpack.c.b16 %v2481, %v2473
    %v3770 = vpack.c.b16 %v2482, %v2474
    %v3771 = vpack.c.b16 %v2483, %v2475
    %v3772 = vpack.c.b16 %v2484, %v2476
    %v3773 = vpack.c.b16 %v2493, %v2485
    %v3774 = vpack.c.b16 %v2494, %v2486
    %v3775 = vpack.c.b16 %v2495, %v2487
    %v3776 = vpack.c.b16 %v2496, %v2488
    %v3777 = vpack.c.b16 %v2497, %v2489
    %v3778 = vpack.c.b16 %v2498, %v2490
    %v3779 = vpack.c.b16 %v2499, %v2491
    %v3780 = vpack.c.b16 %v2500, %v2492
    %v3781 = vpack.c.b16 %v2509, %v2501
    %v3782 = vpack.c.b16 %v2510, %v2502
    %v3783 = vpack.c.b16 %v2511, %v2503
    %v3784 = vpack.c.b16 %v2512, %v2504
    %v3785 = vpack.c.b16 %v2513, %v2505
    %v3786 = vpack.c.b16 %v2514, %v2506
    %v3787 = vpack.c.b16 %v2515, %v2507
    %v3788 = vpack.c.b16 %v2516, %v2508
    %v3789 = vpack.c.b16 %v2525, %v2517
    %v3790 = vpack.c.b16 %v2526, %v2518
    %v3791 = vpack.c.b16 %v2527, %v2519
    %v3792 = vpack.c.b16 %v2528, %v2520
    %v3793 = vpack.c.b16 %v2529, %v2521
    %v3794 = vpack.c.b16 %v2530, %v2522
    %v3795 = vpack.c.b16 %v2531, %v2523
    %v3796 = vpack.c.b16 %v2532, %v2524
    %v3797 = vpack.c.b16 %v2541, %v2533
    %v3798 = vpack.c.b16 %v2542, %v2534
    %v3799 = vpack.c.b16 %v2543, %v2535
    %v3800 = vpack.c.b16 %v2544, %v2536
    %v3801 = vpack.c.b16 %v2545, %v2537
    %v3802 = vpack.c.b16 %v2546, %v2538
    %v3803 = vpack.c.b16 %v2547, %v2539
    %v3804 = vpack.c.b16 %v2548, %v2540
    %v3805 = vpack.c.b16 %v2557, %v2549
    %v3806 = vpack.c.b16 %v2558, %v2550
    %v3807 = vpack.c.b16 %v2559, %v2551
    %v3808 = vpack.c.b16 %v2560, %v2552
    %v3809 = vpack.c.b16 %v2561, %v2553
    %v3810 = vpack.c.b16 %v2562, %v2554
    %v3811 = vpack.c.b16 %v2563, %v2555
    %v3812 = vpack.c.b16 %v2564, %v2556
    %v3813 = vpack.c.b16 %v2573, %v2565
    %v3814 = vpack.c.b16 %v2574, %v2566
    %v3815 = vpack.c.b16 %v2575, %v2567
    %v3816 = vpack.c.b16 %v2576, %v2568
    %v3817 = vpack.c.b16 %v2577, %v2569
    %v3818 = vpack.c.b16 %v2578, %v2570
    %v3819 = vpack.c.b16 %v2579, %v2571
    %v3820 = vpack.c.b16 %v2580, %v2572
    %v3821 = vpack.c.b16 %v2589, %v2581
    %v3822 = vpack.c.b16 %v2590, %v2582
    %v3823 = vpack.c.b16 %v2591, %v2583
    %v3824 = vpack.c.b16 %v2592, %v2584
    %v3825 = vpack.c.b16 %v2593, %v2585
    %v3826 = vpack.c.b16 %v2594, %v2586
    %v3827 = vpack.c.b16 %v2595, %v2587
    %v3828 = vpack.c.b16 %v2596, %v2588
    %v3829 = vpack.c.b16 %v2605, %v2597
    %v3830 = vpack.c.b16 %v2606, %v2598
    %v3831 = vpack.c.b16 %v2607, %v2599
    %v3832 = vpack.c.b16 %v2608, %v2600
    %v3833 = vpack.c.b16 %v2609, %v2601
    %v3834 = vpack.c.b16 %v2610, %v2602
    %v3835 = vpack.c.b16 %v2611, %v2603
    %v3836 = vpack.c.b16 %v2612, %v2604
    %v3837 = vpack.c.b16 %v2621, %v2613
    %v3838 = vpack.c.b16 %v2622, %v2614
    %v3839 = vpack.c.b16 %v2623, %v2615
    %v3840 = vpack.c.b16 %v2624, %v2616
    %v3841 = vpack.c.b16 %v2625, %v2617
    %v3842 = vpack.c.b16 %v2626, %v2618
    %v3843 = vpack.c.b16 %v2627, %v2619
    %v3844 = vpack.c.b16 %v2628, %v2620
    %v3845 = vpack.c.b16 %v2637, %v2629
    %v3846 = vpack.c.b16 %v2638, %v2630
    %v3847 = vpack.c.b16 %v2639, %v2631
    %v3848 = vpack.c.b16 %v2640, %v2632
    %v3849 = vpack.c.b16 %v2641, %v2633
    %v3850 = vpack.c.b16 %v2642, %v2634
    %v3851 = vpack.c.b16 %v2643, %v2635
    %v3852 = vpack.c.b16 %v2644, %v2636
    %v3853 = vpack.c.b16 %v2653, %v2645
    %v3854 = vpack.c.b16 %v2654, %v2646
    %v3855 = vpack.c.b16 %v2655, %v2647
    %v3856 = vpack.c.b16 %v2656, %v2648
    %v3857 = vpack.c.b16 %v2657, %v2649
    %v3858 = vpack.c.b16 %v2658, %v2650
    %v3859 = vpack.c.b16 %v2659, %v2651
    %v3860 = vpack.c.b16 %v2660, %v2652
    %v3861 = vpack.c.b16 %v2669, %v2661
    %v3862 = vpack.c.b16 %v2670, %v2662
    %v3863 = vpack.c.b16 %v2671, %v2663
    %v3864 = vpack.c.b16 %v2672, %v2664
    %v3865 = vpack.c.b16 %v2673, %v2665
    %v3866 = vpack.c.b16 %v2674, %v2666
    %v3867 = vpack.c.b16 %v2675, %v2667
    %v3868 = vpack.c.b16 %v2676, %v2668
    %v3869 = vpack.c.b16 %v2685, %v2677
    %v3870 = vpack.c.b16 %v2686, %v2678
    %v3871 = vpack.c.b16 %v2687, %v2679
    %v3872 = vpack.c.b16 %v2688, %v2680
    %v3873 = vpack.c.b16 %v2689, %v2681
    %v3874 = vpack.c.b16 %v2690, %v2682
    %v3875 = vpack.c.b16 %v2691, %v2683
    %v3876 = vpack.c.b16 %v2692, %v2684
    %v3877 = vpack.c.b16 %v2701, %v2693
    %v3878 = vpack.c.b16 %v2702, %v2694
    %v3879 = vpack.c.b16 %v2703, %v2695
    %v3880 = vpack.c.b16 %v2704, %v2696
    %v3881 = vpack.c.b16 %v2705, %v2697
    %v3882 = vpack.c.b16 %v2706, %v2698
    %v3883 = vpack.c.b16 %v2707, %v2699
    %v3884 = vpack.c.b16 %v2708, %v2700
    %v3885 = vpack.c.b16 %v2717, %v2709
    %v3886 = vpack.c.b16 %v2718, %v2710
    %v3887 = vpack.c.b16 %v2719, %v2711
    %v3888 = vpack.c.b16 %v2720, %v2712
    %v3889 = vpack.c.b16 %v2721, %v2713
    %v3890 = vpack.c.b16 %v2722, %v2714
    %v3891 = vpack.c.b16 %v2723, %v2715
    %v3892 = vpack.c.b16 %v2724, %v2716
    %v3893 = vpack.c.b16 %v2733, %v2725
    %v3894 = vpack.c.b16 %v2734, %v2726
    %v3895 = vpack.c.b16 %v2735, %v2727
    %v3896 = vpack.c.b16 %v2736, %v2728
    %v3897 = vpack.c.b16 %v2737, %v2729
    %v3898 = vpack.c.b16 %v2738, %v2730
    %v3899 = vpack.c.b16 %v2739, %v2731
    %v3900 = vpack.c.b16 %v2740, %v2732
    %v3901 = vpack.c.b16 %v2749, %v2741
    %v3902 = vpack.c.b16 %v2750, %v2742
    %v3903 = vpack.c.b16 %v2751, %v2743
    %v3904 = vpack.c.b16 %v2752, %v2744
    %v3905 = vpack.c.b16 %v2753, %v2745
    %v3906 = vpack.c.b16 %v2754, %v2746
    %v3907 = vpack.c.b16 %v2755, %v2747
    %v3908 = vpack.c.b16 %v2756, %v2748
    %v3909 = vpack.c.b16 %v2765, %v2757
    %v3910 = vpack.c.b16 %v2766, %v2758
    %v3911 = vpack.c.b16 %v2767, %v2759
    %v3912 = vpack.c.b16 %v2768, %v2760
    %v3913 = vpack.c.b16 %v2769, %v2761
    %v3914 = vpack.c.b16 %v2770, %v2762
    %v3915 = vpack.c.b16 %v2771, %v2763
    %v3916 = vpack.c.b16 %v2772, %v2764
    %v3917 = vpack.c.b16 %v2781, %v2773
    %v3918 = vpack.c.b16 %v2782, %v2774
    %v3919 = vpack.c.b16 %v2783, %v2775
    %v3920 = vpack.c.b16 %v2784, %v2776
    %v3921 = vpack.c.b16 %v2785, %v2777
    %v3922 = vpack.c.b16 %v2786, %v2778
    %v3923 = vpack.c.b16 %v2787, %v2779
    %v3924 = vpack.c.b16 %v2788, %v2780
    %v3925 = vpack.c.b16 %v2797, %v2789
    %v3926 = vpack.c.b16 %v2798, %v2790
    %v3927 = vpack.c.b16 %v2799, %v2791
    %v3928 = vpack.c.b16 %v2800, %v2792
    %v3929 = vpack.c.b16 %v2801, %v2793
    %v3930 = vpack.c.b16 %v2802, %v2794
    %v3931 = vpack.c.b16 %v2803, %v2795
    %v3932 = vpack.c.b16 %v2804, %v2796
    %v3933 = vpack.c.b16 %v2813, %v2805
    %v3934 = vpack.c.b16 %v2814, %v2806
    %v3935 = vpack.c.b16 %v2815, %v2807
    %v3936 = vpack.c.b16 %v2816, %v2808
    %v3937 = vpack.c.b16 %v2817, %v2809
    %v3938 = vpack.c.b16 %v2818, %v2810
    %v3939 = vpack.c.b16 %v2819, %v2811
    %v3940 = vpack.c.b16 %v2820, %v2812
    %v3941 = vpack.c.b16 %v2829, %v2821
    %v3942 = vpack.c.b16 %v2830, %v2822
    %v3943 = vpack.c.b16 %v2831, %v2823
    %v3944 = vpack.c.b16 %v2832, %v2824
    %v3945 = vpack.c.b16 %v2833, %v2825
    %v3946 = vpack.c.b16 %v2834, %v2826
    %v3947 = vpack.c.b16 %v2835, %v2827
    %v3948 = vpack.c.b16 %v2836, %v2828
    %v3949 = vpack.c.b16 %v2845, %v2837
    %v3950 = vpack.c.b16 %v2846, %v2838
    %v3951 = vpack.c.b16 %v2847, %v2839
    %v3952 = vpack.c.b16 %v2848, %v2840
    %v3953 = vpack.c.b16 %v2849, %v2841
    %v3954 = vpack.c.b16 %v2850, %v2842
    %v3955 = vpack.c.b16 %v2851, %v2843
    %v3956 = vpack.c.b16 %v2852, %v2844
    %v3957 = vpack.c.b16 %v2861, %v2853
    %v3958 = vpack.c.b16 %v2862, %v2854
    %v3959 = vpack.c.b16 %v2863, %v2855
    %v3960 = vpack.c.b16 %v2864, %v2856
    %v3961 = vpack.c.b16 %v2865, %v2857
    %v3962 = vpack.c.b16 %v2866, %v2858
    %v3963 = vpack.c.b16 %v2867, %v2859
    %v3964 = vpack.c.b16 %v2868, %v2860
    %v3965 = vpack.c.b16 %v2877, %v2869
    %v3966 = vpack.c.b16 %v2878, %v2870
    %v3967 = vpack.c.b16 %v2879, %v2871
    %v3968 = vpack.c.b16 %v2880, %v2872
    %v3969 = vpack.c.b16 %v2881, %v2873
    %v3970 = vpack.c.b16 %v2882, %v2874
    %v3971 = vpack.c.b16 %v2883, %v2875
    %v3972 = vpack.c.b16 %v2884, %v2876
    %v3973 = vpack.c.b16 %v2893, %v2885
    %v3974 = vpack.c.b16 %v2894, %v2886
    %v3975 = vpack.c.b16 %v2895, %v2887
    %v3976 = vpack.c.b16 %v2896, %v2888
    %v3977 = vpack.c.b16 %v2897, %v2889
    %v3978 = vpack.c.b16 %v2898, %v2890
    %v3979 = vpack.c.b16 %v2899, %v2891
    %v3980 = vpack.c.b16 %v2900, %v2892
    %v3981 = vpack.c.b16 %v2909, %v2901
    %v3982 = vpack.c.b16 %v2910, %v2902
    %v3983 = vpack.c.b16 %v2911, %v2903
    %v3984 = vpack.c.b16 %v2912, %v2904
    %v3985 = vpack.c.b16 %v2913, %v2905
    %v3986 = vpack.c.b16 %v2914, %v2906
    %v3987 = vpack.c.b16 %v2915, %v2907
    %v3988 = vpack.c.b16 %v2916, %v2908
    %v3989 = vpack.c.b16 %v2925, %v2917
    %v3990 = vpack.c.b16 %v2926, %v2918
    %v3991 = vpack.c.b16 %v2927, %v2919
    %v3992 = vpack.c.b16 %v2928, %v2920
    %v3993 = vpack.c.b16 %v2929, %v2921
    %v3994 = vpack.c.b16 %v2930, %v2922
    %v3995 = vpack.c.b16 %v2931, %v2923
    %v3996 = vpack.c.b16 %v2932, %v2924
    %v3997 = vpack.c.b16 %v2941, %v2933
    %v3998 = vpack.c.b16 %v2942, %v2934
    %v3999 = vpack.c.b16 %v2943, %v2935
    %v4000 = vpack.c.b16 %v2944, %v2936
    %v4001 = vpack.c.b16 %v2945, %v2937
    %v4002 = vpack.c.b16 %v2946, %v2938
    %v4003 = vpack.c.b16 %v2947, %v2939
    %v4004 = vpack.c.b16 %v2948, %v2940
    %v4005 = vpack.c.b16 %v2957, %v2949
    %v4006 = vpack.c.b16 %v2958, %v2950
    %v4007 = vpack.c.b16 %v2959, %v2951
    %v4008 = vpack.c.b16 %v2960, %v2952
    %v4009 = vpack.c.b16 %v2961, %v2953
    %v4010 = vpack.c.b16 %v2962, %v2954
    %v4011 = vpack.c.b16 %v2963, %v2955
    %v4012 = vpack.c.b16 %v2964, %v2956
    %v4013 = vpack.c.b16 %v2973, %v2965
    %v4014 = vpack.c.b16 %v2974, %v2966
    %v4015 = vpack.c.b16 %v2975, %v2967
    %v4016 = vpack.c.b16 %v2976, %v2968
    %v4017 = vpack.c.b16 %v2977, %v2969
    %v4018 = vpack.c.b16 %v2978, %v2970
    %v4019 = vpack.c.b16 %v2979, %v2971
    %v4020 = vpack.c.b16 %v2980, %v2972
    %v4021 = vpack.c.b16 %v2989, %v2981
    %v4022 = vpack.c.b16 %v2990, %v2982
    %v4023 = vpack.c.b16 %v2991, %v2983
    %v4024 = vpack.c.b16 %v2992, %v2984
    %v4025 = vpack.c.b16 %v2993, %v2985
    %v4026 = vpack.c.b16 %v2994, %v2986
    %v4027 = vpack.c.b16 %v2995, %v2987
    %v4028 = vpack.c.b16 %v2996, %v2988
    %v4029 = vpack.c.b16 %v3005, %v2997
    %v4030 = vpack.c.b16 %v3006, %v2998
    %v4031 = vpack.c.b16 %v3007, %v2999
    %v4032 = vpack.c.b16 %v3008, %v3000
    %v4033 = vpack.c.b16 %v3009, %v3001
    %v4034 = vpack.c.b16 %v3010, %v3002
    %v4035 = vpack.c.b16 %v3011, %v3003
    %v4036 = vpack.c.b16 %v3012, %v3004
    %v4037 = vpack.c.b16 %v3021, %v3013
    %v4038 = vpack.c.b16 %v3022, %v3014
    %v4039 = vpack.c.b16 %v3023, %v3015
    %v4040 = vpack.c.b16 %v3024, %v3016
    %v4041 = vpack.c.b16 %v3025, %v3017
    %v4042 = vpack.c.b16 %v3026, %v3018
    %v4043 = vpack.c.b16 %v3027, %v3019
    %v4044 = vpack.c.b16 %v3028, %v3020
    %v4045 = vpack.c.b16 %v3037, %v3029
    %v4046 = vpack.c.b16 %v3038, %v3030
    %v4047 = vpack.c.b16 %v3039, %v3031
    %v4048 = vpack.c.b16 %v3040, %v3032
    %v4049 = vpack.c.b16 %v3041, %v3033
    %v4050 = vpack.c.b16 %v3042, %v3034
    %v4051 = vpack.c.b16 %v3043, %v3035
    %v4052 = vpack.c.b16 %v3044, %v3036
    %v4053 = vpack.c.b16 %v3053, %v3045
    %v4054 = vpack.c.b16 %v3054, %v3046
    %v4055 = vpack.c.b16 %v3055, %v3047
    %v4056 = vpack.c.b16 %v3056, %v3048
    %v4057 = vpack.c.b16 %v3057, %v3049
    %v4058 = vpack.c.b16 %v3058, %v3050
    %v4059 = vpack.c.b16 %v3059, %v3051
    %v4060 = vpack.c.b16 %v3060, %v3052
    %v4061 = vpack.c.b16 %v3069, %v3061
    %v4062 = vpack.c.b16 %v3070, %v3062
    %v4063 = vpack.c.b16 %v3071, %v3063
    %v4064 = vpack.c.b16 %v3072, %v3064
    %v4065 = vpack.c.b16 %v3073, %v3065
    %v4066 = vpack.c.b16 %v3074, %v3066
    %v4067 = vpack.c.b16 %v3075, %v3067
    %v4068 = vpack.c.b16 %v3076, %v3068
    %v4069 = vpack.c.b16 %v3085, %v3077
    %v4070 = vpack.c.b16 %v3086, %v3078
    %v4071 = vpack.c.b16 %v3087, %v3079
    %v4072 = vpack.c.b16 %v3088, %v3080
    %v4073 = vpack.c.b16 %v3089, %v3081
    %v4074 = vpack.c.b16 %v3090, %v3082
    %v4075 = vpack.c.b16 %v3091, %v3083
    %v4076 = vpack.c.b16 %v3092, %v3084
    %v4077 = vpack.c.b16 %v3101, %v3093
    %v4078 = vpack.c.b16 %v3102, %v3094
    %v4079 = vpack.c.b16 %v3103, %v3095
    %v4080 = vpack.c.b16 %v3104, %v3096
    %v4081 = vpack.c.b16 %v3105, %v3097
    %v4082 = vpack.c.b16 %v3106, %v3098
    %v4083 = vpack.c.b16 %v3107, %v3099
    %v4084 = vpack.c.b16 %v3108, %v3100
    %v4085 = vpack.c.b16 %v3117, %v3109
    %v4086 = vpack.c.b16 %v3118, %v3110
    %v4087 = vpack.c.b16 %v3119, %v3111
    %v4088 = vpack.c.b16 %v3120, %v3112
    %v4089 = vpack.c.b16 %v3121, %v3113
    %v4090 = vpack.c.b16 %v3122, %v3114
    %v4091 = vpack.c.b16 %v3123, %v3115
    %v4092 = vpack.c.b16 %v3124, %v3116
    %v4093 = vpack.c.b16 %v3133, %v3125
    %v4094 = vpack.c.b16 %v3134, %v3126
    %v4095 = vpack.c.b16 %v3135, %v3127
    %v4096 = vpack.c.b16 %v3136, %v3128
    %v4097 = vpack.c.b16 %v3137, %v3129
    %v4098 = vpack.c.b16 %v3138, %v3130
    %v4099 = vpack.c.b16 %v3139, %v3131
    %v4100 = vpack.c.b16 %v3140, %v3132
    %v4101 = vpack.c.b16 %v3149, %v3141
    %v4102 = vpack.c.b16 %v3150, %v3142
    %v4103 = vpack.c.b16 %v3151, %v3143
    %v4104 = vpack.c.b16 %v3152, %v3144
    %v4105 = vpack.c.b16 %v3153, %v3145
    %v4106 = vpack.c.b16 %v3154, %v3146
    %v4107 = vpack.c.b16 %v3155, %v3147
    %v4108 = vpack.c.b16 %v3156, %v3148
    %v4109 = vpack.c.b16 %v3165, %v3157
    %v4110 = vpack.c.b16 %v3166, %v3158
    %v4111 = vpack.c.b16 %v3167, %v3159
    %v4112 = vpack.c.b16 %v3168, %v3160
    %v4113 = vpack.c.b16 %v3169, %v3161
    %v4114 = vpack.c.b16 %v3170, %v3162
    %v4115 = vpack.c.b16 %v3171, %v3163
    %v4116 = vpack.c.b16 %v3172, %v3164
    %v4117 = vpack.c.b16 %v3181, %v3173
    %v4118 = vpack.c.b16 %v3182, %v3174
    %v4119 = vpack.c.b16 %v3183, %v3175
    %v4120 = vpack.c.b16 %v3184, %v3176
    %v4121 = vpack.c.b16 %v3185, %v3177
    %v4122 = vpack.c.b16 %v3186, %v3178
    %v4123 = vpack.c.b16 %v3187, %v3179
    %v4124 = vpack.c.b16 %v3188, %v3180
    %v4125 = vpack.c.b16 %v3197, %v3189
    %v4126 = vpack.c.b16 %v3198, %v3190
    %v4127 = vpack.c.b16 %v3199, %v3191
    %v4128 = vpack.c.b16 %v3200, %v3192
    %v4129 = vpack.c.b16 %v3201, %v3193
    %v4130 = vpack.c.b16 %v3202, %v3194
    %v4131 = vpack.c.b16 %v3203, %v3195
    %v4132 = vpack.c.b16 %v3204, %v3196
    %v4133 = vpack.c.b16 %v3213, %v3205
    %v4134 = vpack.c.b16 %v3214, %v3206
    %v4135 = vpack.c.b16 %v3215, %v3207
    %v4136 = vpack.c.b16 %v3216, %v3208
    %v4137 = vpack.c.b16 %v3217, %v3209
    %v4138 = vpack.c.b16 %v3218, %v3210
    %v4139 = vpack.c.b16 %v3219, %v3211
    %v4140 = vpack.c.b16 %v3220, %v3212
    %v4141 = vpack.c.b16 %v3229, %v3221
    %v4142 = vpack.c.b16 %v3230, %v3222
    %v4143 = vpack.c.b16 %v3231, %v3223
    %v4144 = vpack.c.b16 %v3232, %v3224
    %v4145 = vpack.c.b16 %v3233, %v3225
    %v4146 = vpack.c.b16 %v3234, %v3226
    %v4147 = vpack.c.b16 %v3235, %v3227
    %v4148 = vpack.c.b16 %v3236, %v3228
    %v4149 = vpack.c.b16 %v3245, %v3237
    %v4150 = vpack.c.b16 %v3246, %v3238
    %v4151 = vpack.c.b16 %v3247, %v3239
    %v4152 = vpack.c.b16 %v3248, %v3240
    %v4153 = vpack.c.b16 %v3249, %v3241
    %v4154 = vpack.c.b16 %v3250, %v3242
    %v4155 = vpack.c.b16 %v3251, %v3243
    %v4156 = vpack.c.b16 %v3252, %v3244
    %v4157 = vpack.c.b16 %v3261, %v3253
    %v4158 = vpack.c.b16 %v3262, %v3254
    %v4159 = vpack.c.b16 %v3263, %v3255
    %v4160 = vpack.c.b16 %v3264, %v3256
    %v4161 = vpack.c.b16 %v3265, %v3257
    %v4162 = vpack.c.b16 %v3266, %v3258
    %v4163 = vpack.c.b16 %v3267, %v3259
    %v4164 = vpack.c.b16 %v3268, %v3260
    %v4165 = vpack.c.b16 %v3277, %v3269
    %v4166 = vpack.c.b16 %v3278, %v3270
    %v4167 = vpack.c.b16 %v3279, %v3271
    %v4168 = vpack.c.b16 %v3280, %v3272
    %v4169 = vpack.c.b16 %v3281, %v3273
    %v4170 = vpack.c.b16 %v3282, %v3274
    %v4171 = vpack.c.b16 %v3283, %v3275
    %v4172 = vpack.c.b16 %v3284, %v3276
    %v4173 = vpack.c.b16 %v3293, %v3285
    %v4174 = vpack.c.b16 %v3294, %v3286
    %v4175 = vpack.c.b16 %v3295, %v3287
    %v4176 = vpack.c.b16 %v3296, %v3288
    %v4177 = vpack.c.b16 %v3297, %v3289
    %v4178 = vpack.c.b16 %v3298, %v3290
    %v4179 = vpack.c.b16 %v3299, %v3291
    %v4180 = vpack.c.b16 %v3300, %v3292
    %v4181 = vpack.c.b16 %v3309, %v3301
    %v4182 = vpack.c.b16 %v3310, %v3302
    %v4183 = vpack.c.b16 %v3311, %v3303
    %v4184 = vpack.c.b16 %v3312, %v3304
    %v4185 = vpack.c.b16 %v3313, %v3305
    %v4186 = vpack.c.b16 %v3314, %v3306
    %v4187 = vpack.c.b16 %v3315, %v3307
    %v4188 = vpack.c.b16 %v3316, %v3308
    %v4189 = vpack.c.b16 %v3325, %v3317
    %v4190 = vpack.c.b16 %v3326, %v3318
    %v4191 = vpack.c.b16 %v3327, %v3319
    %v4192 = vpack.c.b16 %v3328, %v3320
    %v4193 = vpack.c.b16 %v3329, %v3321
    %v4194 = vpack.c.b16 %v3330, %v3322
    %v4195 = vpack.c.b16 %v3331, %v3323
    %v4196 = vpack.c.b16 %v3332, %v3324
    %v4197 = vpack.c.b16 %v3341, %v3333
    %v4198 = vpack.c.b16 %v3342, %v3334
    %v4199 = vpack.c.b16 %v3343, %v3335
    %v4200 = vpack.c.b16 %v3344, %v3336
    %v4201 = vpack.c.b16 %v3345, %v3337
    %v4202 = vpack.c.b16 %v3346, %v3338
    %v4203 = vpack.c.b16 %v3347, %v3339
    %v4204 = vpack.c.b16 %v3348, %v3340
    %v4205 = vpack.c.b16 %v3357, %v3349
    %v4206 = vpack.c.b16 %v3358, %v3350
    %v4207 = vpack.c.b16 %v3359, %v3351
    %v4208 = vpack.c.b16 %v3360, %v3352
    %v4209 = vpack.c.b16 %v3361, %v3353
    %v4210 = vpack.c.b16 %v3362, %v3354
    %v4211 = vpack.c.b16 %v3363, %v3355
    %v4212 = vpack.c.b16 %v3364, %v3356
    %v4213 = vpack.c.b16 %v3373, %v3365
    %v4214 = vpack.c.b16 %v3374, %v3366
    %v4215 = vpack.c.b16 %v3375, %v3367
    %v4216 = vpack.c.b16 %v3376, %v3368
    %v4217 = vpack.c.b16 %v3377, %v3369
    %v4218 = vpack.c.b16 %v3378, %v3370
    %v4219 = vpack.c.b16 %v3379, %v3371
    %v4220 = vpack.c.b16 %v3380, %v3372
    %v4221 = vpack.c.b16 %v3389, %v3381
    %v4222 = vpack.c.b16 %v3390, %v3382
    %v4223 = vpack.c.b16 %v3391, %v3383
    %v4224 = vpack.c.b16 %v3392, %v3384
    %v4225 = vpack.c.b16 %v3393, %v3385
    %v4226 = vpack.c.b16 %v3394, %v3386
    %v4227 = vpack.c.b16 %v3395, %v3387
    %v4228 = vpack.c.b16 %v3396, %v3388
    %v4229 = vpack.c.b16 %v3405, %v3397
    %v4230 = vpack.c.b16 %v3406, %v3398
    %v4231 = vpack.c.b16 %v3407, %v3399
    %v4232 = vpack.c.b16 %v3408, %v3400
    %v4233 = vpack.c.b16 %v3409, %v3401
    %v4234 = vpack.c.b16 %v3410, %v3402
    %v4235 = vpack.c.b16 %v3411, %v3403
    %v4236 = vpack.c.b16 %v3412, %v3404
    %v4237 = vpack.c.b16 %v3421, %v3413
    %v4238 = vpack.c.b16 %v3422, %v3414
    %v4239 = vpack.c.b16 %v3423, %v3415
    %v4240 = vpack.c.b16 %v3424, %v3416
    %v4241 = vpack.c.b16 %v3425, %v3417
    %v4242 = vpack.c.b16 %v3426, %v3418
    %v4243 = vpack.c.b16 %v3427, %v3419
    %v4244 = vpack.c.b16 %v3428, %v3420
    %v4245 = vpack.c.b16 %v3437, %v3429
    %v4246 = vpack.c.b16 %v3438, %v3430
    %v4247 = vpack.c.b16 %v3439, %v3431
    %v4248 = vpack.c.b16 %v3440, %v3432
    %v4249 = vpack.c.b16 %v3441, %v3433
    %v4250 = vpack.c.b16 %v3442, %v3434
    %v4251 = vpack.c.b16 %v3443, %v3435
    %v4252 = vpack.c.b16 %v3444, %v3436
    %v4253 = vpack.c.b16 %v3453, %v3445
    %v4254 = vpack.c.b16 %v3454, %v3446
    %v4255 = vpack.c.b16 %v3455, %v3447
    %v4256 = vpack.c.b16 %v3456, %v3448
    %v4257 = vpack.c.b16 %v3457, %v3449
    %v4258 = vpack.c.b16 %v3458, %v3450
    %v4259 = vpack.c.b16 %v3459, %v3451
    %v4260 = vpack.c.b16 %v3460, %v3452
    %v4261 = vpack.c.b16 %v3469, %v3461
    %v4262 = vpack.c.b16 %v3470, %v3462
    %v4263 = vpack.c.b16 %v3471, %v3463
    %v4264 = vpack.c.b16 %v3472, %v3464
    %v4265 = vpack.c.b16 %v3473, %v3465
    %v4266 = vpack.c.b16 %v3474, %v3466
    %v4267 = vpack.c.b16 %v3475, %v3467
    %v4268 = vpack.c.b16 %v3476, %v3468
    %v4269 = vpack.c.b16 %v3485, %v3477
    %v4270 = vpack.c.b16 %v3486, %v3478
    %v4271 = vpack.c.b16 %v3487, %v3479
    %v4272 = vpack.c.b16 %v3488, %v3480
    %v4273 = vpack.c.b16 %v3489, %v3481
    %v4274 = vpack.c.b16 %v3490, %v3482
    %v4275 = vpack.c.b16 %v3491, %v3483
    %v4276 = vpack.c.b16 %v3492, %v3484
    %v4277 = vpack.c.b16 %v3501, %v3493
    %v4278 = vpack.c.b16 %v3502, %v3494
    %v4279 = vpack.c.b16 %v3503, %v3495
    %v4280 = vpack.c.b16 %v3504, %v3496
    %v4281 = vpack.c.b16 %v3505, %v3497
    %v4282 = vpack.c.b16 %v3506, %v3498
    %v4283 = vpack.c.b16 %v3507, %v3499
    %v4284 = vpack.c.b16 %v3508, %v3500
    %v4285 = vpack.c.b16 %v3517, %v3509
    %v4286 = vpack.c.b16 %v3518, %v3510
    %v4287 = vpack.c.b16 %v3519, %v3511
    %v4288 = vpack.c.b16 %v3520, %v3512
    %v4289 = vpack.c.b16 %v3521, %v3513
    %v4290 = vpack.c.b16 %v3522, %v3514
    %v4291 = vpack.c.b16 %v3523, %v3515
    %v4292 = vpack.c.b16 %v3524, %v3516
    %v4293 = vpack.c.b16 %v3533, %v3525
    %v4294 = vpack.c.b16 %v3534, %v3526
    %v4295 = vpack.c.b16 %v3535, %v3527
    %v4296 = vpack.c.b16 %v3536, %v3528
    %v4297 = vpack.c.b16 %v3537, %v3529
    %v4298 = vpack.c.b16 %v3538, %v3530
    %v4299 = vpack.c.b16 %v3539, %v3531
    %v4300 = vpack.c.b16 %v3540, %v3532
    %v4301 = vpack.c.b16 %v3549, %v3541
    %v4302 = vpack.c.b16 %v3550, %v3542
    %v4303 = vpack.c.b16 %v3551, %v3543
    %v4304 = vpack.c.b16 %v3552, %v3544
    %v4305 = vpack.c.b16 %v3553, %v3545
    %v4306 = vpack.c.b16 %v3554, %v3546
    %v4307 = vpack.c.b16 %v3555, %v3547
    %v4308 = vpack.c.b16 %v3556, %v3548
    %v4309 = vpack.c.b16 %v3565, %v3557
    %v4310 = vpack.c.b16 %v3566, %v3558
    %v4311 = vpack.c.b16 %v3567, %v3559
    %v4312 = vpack.c.b16 %v3568, %v3560
    %v4313 = vpack.c.b16 %v3569, %v3561
    %v4314 = vpack.c.b16 %v3570, %v3562
    %v4315 = vpack.c.b16 %v3571, %v3563
    %v4316 = vpack.c.b16 %v3572, %v3564
    %v4317 = vpack.c.b16 %v3581, %v3573
    %v4318 = vpack.c.b16 %v3582, %v3574
    %v4319 = vpack.c.b16 %v3583, %v3575
    %v4320 = vpack.c.b16 %v3584, %v3576
    %v4321 = vpack.c.b16 %v3585, %v3577
    %v4322 = vpack.c.b16 %v3586, %v3578
    %v4323 = vpack.c.b16 %v3587, %v3579
    %v4324 = vpack.c.b16 %v3588, %v3580
    %v4325 = vpack.c.b16 %v3597, %v3589
    %v4326 = vpack.c.b16 %v3598, %v3590
    %v4327 = vpack.c.b16 %v3599, %v3591
    %v4328 = vpack.c.b16 %v3600, %v3592
    %v4329 = vpack.c.b16 %v3601, %v3593
    %v4330 = vpack.c.b16 %v3602, %v3594
    %v4331 = vpack.c.b16 %v3603, %v3595
    %v4332 = vpack.c.b16 %v3604, %v3596
    %v4333 = vpack.c.b16 %v3613, %v3605
    %v4334 = vpack.c.b16 %v3614, %v3606
    %v4335 = vpack.c.b16 %v3615, %v3607
    %v4336 = vpack.c.b16 %v3616, %v3608
    %v4337 = vpack.c.b16 %v3617, %v3609
    %v4338 = vpack.c.b16 %v3618, %v3610
    %v4339 = vpack.c.b16 %v3619, %v3611
    %v4340 = vpack.c.b16 %v3620, %v3612
    %v4341 = vpack.c.b16 %v3629, %v3621
    %v4342 = vpack.c.b16 %v3630, %v3622
    %v4343 = vpack.c.b16 %v3631, %v3623
    %v4344 = vpack.c.b16 %v3632, %v3624
    %v4345 = vpack.c.b16 %v3633, %v3625
    %v4346 = vpack.c.b16 %v3634, %v3626
    %v4347 = vpack.c.b16 %v3635, %v3627
    %v4348 = vpack.c.b16 %v3636, %v3628
    %v4349 = vpack.c.b16 %v3645, %v3637
    %v4350 = vpack.c.b16 %v3646, %v3638
    %v4351 = vpack.c.b16 %v3647, %v3639
    %v4352 = vpack.c.b16 %v3648, %v3640
    %v4353 = vpack.c.b16 %v3649, %v3641
    %v4354 = vpack.c.b16 %v3650, %v3642
    %v4355 = vpack.c.b16 %v3651, %v3643
    %v4356 = vpack.c.b16 %v3652, %v3644
    %5061 = vmatprep.subr.bf16.mxu0 %v3710
    %5062 = vmatpush1.bf16.msra.mxu0 %v3709
    %5063 = vmatprep.subr.bf16.mxu0 %v3702
    %5064 = vmatpush1.bf16.msra.mxu0 %v3701
    %5065 = vmatprep.subr.bf16.mxu0 %v3694
    %5066 = vmatpush1.bf16.msra.mxu0 %v3693
    %5067 = vmatprep.subr.bf16.mxu0 %v3686
    %5068 = vmatpush1.bf16.msra.mxu0 %v3685
    %5069 = vmatprep.subr.bf16.mxu0 %v3678
    %5070 = vmatpush1.bf16.msra.mxu0 %v3677
    %5071 = vmatprep.subr.bf16.mxu0 %v3670
    %5072 = vmatpush1.bf16.msra.mxu0 %v3669
    %5073 = vmatprep.subr.bf16.mxu0 %v3662
    %5074 = vmatpush1.bf16.msra.mxu0 %v3661
    %5075 = vmatprep.subr.bf16.mxu0 %v3654
    %5076 = vmatpush1.bf16.msra.mxu0 %v3653
    %5077 = vmatprep.subr.bf16.mxu0 %v3774
    %5078 = vmatpush2.bf16.msra.mxu0 %v3773
    %5079 = vmatprep.subr.bf16.mxu0 %v3766
    %5080 = vmatpush2.bf16.msra.mxu0 %v3765
    %5081 = vmatprep.subr.bf16.mxu0 %v3758
    %5082 = vmatpush2.bf16.msra.mxu0 %v3757
    %5083 = vmatprep.subr.bf16.mxu0 %v3750
    %5084 = vmatpush2.bf16.msra.mxu0 %v3749
    %5085 = vmatprep.subr.bf16.mxu0 %v3742
    %5086 = vmatpush2.bf16.msra.mxu0 %v3741
    %5087 = vmatprep.subr.bf16.mxu0 %v3734
    %5088 = vmatpush2.bf16.msra.mxu0 %v3733
    %5089 = vmatprep.subr.bf16.mxu0 %v3726
    %5090 = vmatpush2.bf16.msra.mxu0 %v3725
    %5091 = vmatprep.subr.bf16.mxu0 %v3718
    %5092 = vmatpush2.bf16.msra.mxu0 %v3717
    %5093 = vmatprep.mubr.bf16.mxu0 %v785
    %5094 = vmatmul.mubr.bf16.gmra.mxu0 %v784
    %v5095 = vpop.f32.mrf.mxu0
    %v5096 = vadd.f32 %v1504, %v5095
    %v5097 = vpop.f32.mrf.mxu0
    %v5098 = vadd.f32 %v1508, %v5097
    %v5099 = vpop.f32.mrf.mxu0
    %v5100 = vpop.f32.mrf.mxu0
    %5101 = vdwg.mxu0
    %5102 = vmatprep.subr.bf16.mxu0 %v3838
    %5103 = vmatpush1.bf16.msra.mxu0 %v3837
    %5104 = vmatprep.subr.bf16.mxu0 %v3830
    %5105 = vmatpush1.bf16.msra.mxu0 %v3829
    %5106 = vmatprep.subr.bf16.mxu0 %v3822
    %5107 = vmatpush1.bf16.msra.mxu0 %v3821
    %5108 = vmatprep.subr.bf16.mxu0 %v3814
    %5109 = vmatpush1.bf16.msra.mxu0 %v3813
    %5110 = vmatprep.subr.bf16.mxu0 %v3806
    %5111 = vmatpush1.bf16.msra.mxu0 %v3805
    %5112 = vmatprep.subr.bf16.mxu0 %v3798
    %5113 = vmatpush1.bf16.msra.mxu0 %v3797
    %5114 = vmatprep.subr.bf16.mxu0 %v3790
    %5115 = vmatpush1.bf16.msra.mxu0 %v3789
    %5116 = vmatprep.subr.bf16.mxu0 %v3782
    %5117 = vmatpush1.bf16.msra.mxu0 %v3781
    %5118 = vmatprep.subr.bf16.mxu0 %v3902
    %5119 = vmatpush2.bf16.msra.mxu0 %v3901
    %5120 = vmatprep.subr.bf16.mxu0 %v3894
    %5121 = vmatpush2.bf16.msra.mxu0 %v3893
    %5122 = vmatprep.subr.bf16.mxu0 %v3886
    %5123 = vmatpush2.bf16.msra.mxu0 %v3885
    %5124 = vmatprep.subr.bf16.mxu0 %v3878
    %5125 = vmatpush2.bf16.msra.mxu0 %v3877
    %5126 = vmatprep.subr.bf16.mxu0 %v3870
    %5127 = vmatpush2.bf16.msra.mxu0 %v3869
    %5128 = vmatprep.subr.bf16.mxu0 %v3862
    %5129 = vmatpush2.bf16.msra.mxu0 %v3861
    %5130 = vmatprep.subr.bf16.mxu0 %v3854
    %5131 = vmatpush2.bf16.msra.mxu0 %v3853
    %5132 = vmatprep.subr.bf16.mxu0 %v3846
    %5133 = vmatpush2.bf16.msra.mxu0 %v3845
    %5134 = vmatprep.mubr.bf16.mxu0 %v787
    %5135 = vmatmul.mubr.bf16.gmra.mxu0 %v786
    %v5136 = vpop.f32.mrf.mxu0
    %v5137 = vadd.f32 %v5096, %v5136
    %v5138 = vpop.f32.mrf.mxu0
    %v5139 = vadd.f32 %v5098, %v5138
    %v5140 = vpop.f32.mrf.mxu0
    %v5141 = vpop.f32.mrf.mxu0
    %5142 = vdwg.mxu0
    %5143 = vmatprep.subr.bf16.mxu0 %v3966
    %5144 = vmatpush1.bf16.msra.mxu0 %v3965
    %5145 = vmatprep.subr.bf16.mxu0 %v3958
    %5146 = vmatpush1.bf16.msra.mxu0 %v3957
    %5147 = vmatprep.subr.bf16.mxu0 %v3950
    %5148 = vmatpush1.bf16.msra.mxu0 %v3949
    %5149 = vmatprep.subr.bf16.mxu0 %v3942
    %5150 = vmatpush1.bf16.msra.mxu0 %v3941
    %5151 = vmatprep.subr.bf16.mxu0 %v3934
    %5152 = vmatpush1.bf16.msra.mxu0 %v3933
    %5153 = vmatprep.subr.bf16.mxu0 %v3926
    %5154 = vmatpush1.bf16.msra.mxu0 %v3925
    %5155 = vmatprep.subr.bf16.mxu0 %v3918
    %5156 = vmatpush1.bf16.msra.mxu0 %v3917
    %5157 = vmatprep.subr.bf16.mxu0 %v3910
    %5158 = vmatpush1.bf16.msra.mxu0 %v3909
    %5159 = vmatprep.subr.bf16.mxu0 %v4030
    %5160 = vmatpush2.bf16.msra.mxu0 %v4029
    %5161 = vmatprep.subr.bf16.mxu0 %v4022
    %5162 = vmatpush2.bf16.msra.mxu0 %v4021
    %5163 = vmatprep.subr.bf16.mxu0 %v4014
    %5164 = vmatpush2.bf16.msra.mxu0 %v4013
    %5165 = vmatprep.subr.bf16.mxu0 %v4006
    %5166 = vmatpush2.bf16.msra.mxu0 %v4005
    %5167 = vmatprep.subr.bf16.mxu0 %v3998
    %5168 = vmatpush2.bf16.msra.mxu0 %v3997
    %5169 = vmatprep.subr.bf16.mxu0 %v3990
    %5170 = vmatpush2.bf16.msra.mxu0 %v3989
    %5171 = vmatprep.subr.bf16.mxu0 %v3982
    %5172 = vmatpush2.bf16.msra.mxu0 %v3981
    %5173 = vmatprep.subr.bf16.mxu0 %v3974
    %5174 = vmatpush2.bf16.msra.mxu0 %v3973
    %5175 = vmatprep.mubr.bf16.mxu0 %v789
    %5176 = vmatmul.mubr.bf16.gmra.mxu0 %v788
    %v5177 = vpop.f32.mrf.mxu0
    %v5178 = vadd.f32 %v5137, %v5177
    %v5179 = vpop.f32.mrf.mxu0
    %v5180 = vadd.f32 %v5139, %v5179
    %v5181 = vpop.f32.mrf.mxu0
    %v5182 = vpop.f32.mrf.mxu0
    %5183 = vdwg.mxu0
    %5184 = vmatprep.subr.bf16.mxu0 %v4094
    %5185 = vmatpush1.bf16.msra.mxu0 %v4093
    %5186 = vmatprep.subr.bf16.mxu0 %v4086
    %5187 = vmatpush1.bf16.msra.mxu0 %v4085
    %5188 = vmatprep.subr.bf16.mxu0 %v4078
    %5189 = vmatpush1.bf16.msra.mxu0 %v4077
    %5190 = vmatprep.subr.bf16.mxu0 %v4070
    %5191 = vmatpush1.bf16.msra.mxu0 %v4069
    %5192 = vmatprep.subr.bf16.mxu0 %v4062
    %5193 = vmatpush1.bf16.msra.mxu0 %v4061
    %5194 = vmatprep.subr.bf16.mxu0 %v4054
    %5195 = vmatpush1.bf16.msra.mxu0 %v4053
    %5196 = vmatprep.subr.bf16.mxu0 %v4046
    %5197 = vmatpush1.bf16.msra.mxu0 %v4045
    %5198 = vmatprep.subr.bf16.mxu0 %v4038
    %5199 = vmatpush1.bf16.msra.mxu0 %v4037
    %5200 = vmatprep.subr.bf16.mxu0 %v4158
    %5201 = vmatpush2.bf16.msra.mxu0 %v4157
    %5202 = vmatprep.subr.bf16.mxu0 %v4150
    %5203 = vmatpush2.bf16.msra.mxu0 %v4149
    %5204 = vmatprep.subr.bf16.mxu0 %v4142
    %5205 = vmatpush2.bf16.msra.mxu0 %v4141
    %5206 = vmatprep.subr.bf16.mxu0 %v4134
    %5207 = vmatpush2.bf16.msra.mxu0 %v4133
    %5208 = vmatprep.subr.bf16.mxu0 %v4126
    %5209 = vmatpush2.bf16.msra.mxu0 %v4125
    %5210 = vmatprep.subr.bf16.mxu0 %v4118
    %5211 = vmatpush2.bf16.msra.mxu0 %v4117
    %5212 = vmatprep.subr.bf16.mxu0 %v4110
    %5213 = vmatpush2.bf16.msra.mxu0 %v4109
    %5214 = vmatprep.subr.bf16.mxu0 %v4102
    %5215 = vmatpush2.bf16.msra.mxu0 %v4101
    %5216 = vmatprep.mubr.bf16.mxu0 %v791
    %5217 = vmatmul.mubr.bf16.gmra.mxu0 %v790
    %v5218 = vpop.f32.mrf.mxu0
    %v5219 = vadd.f32 %v5178, %v5218
    %v5220 = vpop.f32.mrf.mxu0
    %v5221 = vadd.f32 %v5180, %v5220
    %v5222 = vpop.f32.mrf.mxu0
    %v5223 = vpop.f32.mrf.mxu0
    %5224 = vdwg.mxu0
    %5225 = vmatprep.subr.bf16.mxu0 %v4222
    %5226 = vmatpush1.bf16.msra.mxu0 %v4221
    %5227 = vmatprep.subr.bf16.mxu0 %v4214
    %5228 = vmatpush1.bf16.msra.mxu0 %v4213
    %5229 = vmatprep.subr.bf16.mxu0 %v4206
    %5230 = vmatpush1.bf16.msra.mxu0 %v4205
    %5231 = vmatprep.subr.bf16.mxu0 %v4198
    %5232 = vmatpush1.bf16.msra.mxu0 %v4197
    %5233 = vmatprep.subr.bf16.mxu0 %v4190
    %5234 = vmatpush1.bf16.msra.mxu0 %v4189
    %5235 = vmatprep.subr.bf16.mxu0 %v4182
    %5236 = vmatpush1.bf16.msra.mxu0 %v4181
    %5237 = vmatprep.subr.bf16.mxu0 %v4174
    %5238 = vmatpush1.bf16.msra.mxu0 %v4173
    %5239 = vmatprep.subr.bf16.mxu0 %v4166
    %5240 = vmatpush1.bf16.msra.mxu0 %v4165
    %5241 = vmatprep.subr.bf16.mxu0 %v4286
    %5242 = vmatpush2.bf16.msra.mxu0 %v4285
    %5243 = vmatprep.subr.bf16.mxu0 %v4278
    %5244 = vmatpush2.bf16.msra.mxu0 %v4277
    %5245 = vmatprep.subr.bf16.mxu0 %v4270
    %5246 = vmatpush2.bf16.msra.mxu0 %v4269
    %5247 = vmatprep.subr.bf16.mxu0 %v4262
    %5248 = vmatpush2.bf16.msra.mxu0 %v4261
    %5249 = vmatprep.subr.bf16.mxu0 %v4254
    %5250 = vmatpush2.bf16.msra.mxu0 %v4253
    %5251 = vmatprep.subr.bf16.mxu0 %v4246
    %5252 = vmatpush2.bf16.msra.mxu0 %v4245
    %5253 = vmatprep.subr.bf16.mxu0 %v4238
    %5254 = vmatpush2.bf16.msra.mxu0 %v4237
    %5255 = vmatprep.subr.bf16.mxu0 %v4230
    %5256 = vmatpush2.bf16.msra.mxu0 %v4229
    %5257 = vmatprep.mubr.bf16.mxu0 %v793
    %5258 = vmatmul.mubr.bf16.gmra.mxu0 %v792
    %v5259 = vpop.f32.mrf.mxu0
    %v5260 = vadd.f32 %v5219, %v5259
    %v5261 = vpop.f32.mrf.mxu0
    %v5262 = vadd.f32 %v5221, %v5261
    %v5263 = vpop.f32.mrf.mxu0
    %v5264 = vpop.f32.mrf.mxu0
    %5265 = vdwg.mxu0
    %5266 = vmatprep.subr.bf16.mxu0 %v4350
    %5267 = vmatpush1.bf16.msra.mxu0 %v4349
    %5268 = vmatprep.subr.bf16.mxu0 %v4342
    %5269 = vmatpush1.bf16.msra.mxu0 %v4341
    %5270 = vmatprep.subr.bf16.mxu0 %v4334
    %5271 = vmatpush1.bf16.msra.mxu0 %v4333
    %5272 = vmatprep.subr.bf16.mxu0 %v4326
    %5273 = vmatpush1.bf16.msra.mxu0 %v4325
    %5274 = vmatprep.subr.bf16.mxu0 %v4318
    %5275 = vmatpush1.bf16.msra.mxu0 %v4317
    %5276 = vmatprep.subr.bf16.mxu0 %v4310
    %5277 = vmatpush1.bf16.msra.mxu0 %v4309
    %5278 = vmatprep.subr.bf16.mxu0 %v4302
    %5279 = vmatpush1.bf16.msra.mxu0 %v4301
    %5280 = vmatprep.subr.bf16.mxu0 %v4294
    %5281 = vmatpush1.bf16.msra.mxu0 %v4293
    %5282 = vmatprep.subr.bf16.mxu0 0
    %5283 = vmatpush2.bf16.msra.mxu0 0
    %5284 = vmatprep.subr.bf16.mxu0 0
    %5285 = vmatpush2.bf16.msra.mxu0 0
    %5286 = vmatprep.subr.bf16.mxu0 0
    %5287 = vmatpush2.bf16.msra.mxu0 0
    %5288 = vmatprep.subr.bf16.mxu0 0
    %5289 = vmatpush2.bf16.msra.mxu0 0
    %5290 = vmatprep.subr.bf16.mxu0 0
    %5291 = vmatpush2.bf16.msra.mxu0 0
    %5292 = vmatprep.subr.bf16.mxu0 0
    %5293 = vmatpush2.bf16.msra.mxu0 0
    %5294 = vmatprep.subr.bf16.mxu0 0
    %5295 = vmatpush2.bf16.msra.mxu0 0
    %5296 = vmatprep.subr.bf16.mxu0 0
    %5297 = vmatpush2.bf16.msra.mxu0 0
    %5298 = vmatprep.mubr.bf16.mxu0 0
    %5299 = vmatmul.mubr.bf16.gmra.mxu0 %v794
    %v5300 = vpop.f32.mrf.mxu0
    %v5301 = vadd.f32 %v5260, %v5300
    %v5302 = vpop.f32.mrf.mxu0
    %v5303 = vadd.f32 %v5262, %v5302
    %v5304 = vpop.f32.mrf.mxu0
    %v5305 = vpop.f32.mrf.mxu0
    %5306 = vdwg.mxu0
    %5307 = vmatprep.subr.bf16.mxu0 %v3712
    %5308 = vmatpush1.bf16.msra.mxu0 %v3711
    %5309 = vmatprep.subr.bf16.mxu0 %v3704
    %5310 = vmatpush1.bf16.msra.mxu0 %v3703
    %5311 = vmatprep.subr.bf16.mxu0 %v3696
    %5312 = vmatpush1.bf16.msra.mxu0 %v3695
    %5313 = vmatprep.subr.bf16.mxu0 %v3688
    %5314 = vmatpush1.bf16.msra.mxu0 %v3687
    %5315 = vmatprep.subr.bf16.mxu0 %v3680
    %5316 = vmatpush1.bf16.msra.mxu0 %v3679
    %5317 = vmatprep.subr.bf16.mxu0 %v3672
    %5318 = vmatpush1.bf16.msra.mxu0 %v3671
    %5319 = vmatprep.subr.bf16.mxu0 %v3664
    %5320 = vmatpush1.bf16.msra.mxu0 %v3663
    %5321 = vmatprep.subr.bf16.mxu0 %v3656
    %5322 = vmatpush1.bf16.msra.mxu0 %v3655
    %5323 = vmatprep.subr.bf16.mxu0 %v3776
    %5324 = vmatpush2.bf16.msra.mxu0 %v3775
    %5325 = vmatprep.subr.bf16.mxu0 %v3768
    %5326 = vmatpush2.bf16.msra.mxu0 %v3767
    %5327 = vmatprep.subr.bf16.mxu0 %v3760
    %5328 = vmatpush2.bf16.msra.mxu0 %v3759
    %5329 = vmatprep.subr.bf16.mxu0 %v3752
    %5330 = vmatpush2.bf16.msra.mxu0 %v3751
    %5331 = vmatprep.subr.bf16.mxu0 %v3744
    %5332 = vmatpush2.bf16.msra.mxu0 %v3743
    %5333 = vmatprep.subr.bf16.mxu0 %v3736
    %5334 = vmatpush2.bf16.msra.mxu0 %v3735
    %5335 = vmatprep.subr.bf16.mxu0 %v3728
    %5336 = vmatpush2.bf16.msra.mxu0 %v3727
    %5337 = vmatprep.subr.bf16.mxu0 %v3720
    %5338 = vmatpush2.bf16.msra.mxu0 %v3719
    %5339 = vmatprep.mubr.bf16.mxu0 %v785
    %5340 = vmatmul.mubr.bf16.gmra.mxu0 %v784
    %v5341 = vpop.f32.mrf.mxu0
    %v5342 = vadd.f32 %v1512, %v5341
    %v5343 = vpop.f32.mrf.mxu0
    %v5344 = vadd.f32 %v1516, %v5343
    %v5345 = vpop.f32.mrf.mxu0
    %v5346 = vpop.f32.mrf.mxu0
    %5347 = vdwg.mxu0
    %5348 = vmatprep.subr.bf16.mxu0 %v3840
    %5349 = vmatpush1.bf16.msra.mxu0 %v3839
    %5350 = vmatprep.subr.bf16.mxu0 %v3832
    %5351 = vmatpush1.bf16.msra.mxu0 %v3831
    %5352 = vmatprep.subr.bf16.mxu0 %v3824
    %5353 = vmatpush1.bf16.msra.mxu0 %v3823
    %5354 = vmatprep.subr.bf16.mxu0 %v3816
    %5355 = vmatpush1.bf16.msra.mxu0 %v3815
    %5356 = vmatprep.subr.bf16.mxu0 %v3808
    %5357 = vmatpush1.bf16.msra.mxu0 %v3807
    %5358 = vmatprep.subr.bf16.mxu0 %v3800
    %5359 = vmatpush1.bf16.msra.mxu0 %v3799
    %5360 = vmatprep.subr.bf16.mxu0 %v3792
    %5361 = vmatpush1.bf16.msra.mxu0 %v3791
    %5362 = vmatprep.subr.bf16.mxu0 %v3784
    %5363 = vmatpush1.bf16.msra.mxu0 %v3783
    %5364 = vmatprep.subr.bf16.mxu0 %v3904
    %5365 = vmatpush2.bf16.msra.mxu0 %v3903
    %5366 = vmatprep.subr.bf16.mxu0 %v3896
    %5367 = vmatpush2.bf16.msra.mxu0 %v3895
    %5368 = vmatprep.subr.bf16.mxu0 %v3888
    %5369 = vmatpush2.bf16.msra.mxu0 %v3887
    %5370 = vmatprep.subr.bf16.mxu0 %v3880
    %5371 = vmatpush2.bf16.msra.mxu0 %v3879
    %5372 = vmatprep.subr.bf16.mxu0 %v3872
    %5373 = vmatpush2.bf16.msra.mxu0 %v3871
    %5374 = vmatprep.subr.bf16.mxu0 %v3864
    %5375 = vmatpush2.bf16.msra.mxu0 %v3863
    %5376 = vmatprep.subr.bf16.mxu0 %v3856
    %5377 = vmatpush2.bf16.msra.mxu0 %v3855
    %5378 = vmatprep.subr.bf16.mxu0 %v3848
    %5379 = vmatpush2.bf16.msra.mxu0 %v3847
    %5380 = vmatprep.mubr.bf16.mxu0 %v787
    %5381 = vmatmul.mubr.bf16.gmra.mxu0 %v786
    %v5382 = vpop.f32.mrf.mxu0
    %v5383 = vadd.f32 %v5342, %v5382
    %v5384 = vpop.f32.mrf.mxu0
    %v5385 = vadd.f32 %v5344, %v5384
    %v5386 = vpop.f32.mrf.mxu0
    %v5387 = vpop.f32.mrf.mxu0
    %5388 = vdwg.mxu0
    %5389 = vmatprep.subr.bf16.mxu0 %v3968
    %5390 = vmatpush1.bf16.msra.mxu0 %v3967
    %5391 = vmatprep.subr.bf16.mxu0 %v3960
    %5392 = vmatpush1.bf16.msra.mxu0 %v3959
    %5393 = vmatprep.subr.bf16.mxu0 %v3952
    %5394 = vmatpush1.bf16.msra.mxu0 %v3951
    %5395 = vmatprep.subr.bf16.mxu0 %v3944
    %5396 = vmatpush1.bf16.msra.mxu0 %v3943
    %5397 = vmatprep.subr.bf16.mxu0 %v3936
    %5398 = vmatpush1.bf16.msra.mxu0 %v3935
    %5399 = vmatprep.subr.bf16.mxu0 %v3928
    %5400 = vmatpush1.bf16.msra.mxu0 %v3927
    %5401 = vmatprep.subr.bf16.mxu0 %v3920
    %5402 = vmatpush1.bf16.msra.mxu0 %v3919
    %5403 = vmatprep.subr.bf16.mxu0 %v3912
    %5404 = vmatpush1.bf16.msra.mxu0 %v3911
    %5405 = vmatprep.subr.bf16.mxu0 %v4032
    %5406 = vmatpush2.bf16.msra.mxu0 %v4031
    %5407 = vmatprep.subr.bf16.mxu0 %v4024
    %5408 = vmatpush2.bf16.msra.mxu0 %v4023
    %5409 = vmatprep.subr.bf16.mxu0 %v4016
    %5410 = vmatpush2.bf16.msra.mxu0 %v4015
    %5411 = vmatprep.subr.bf16.mxu0 %v4008
    %5412 = vmatpush2.bf16.msra.mxu0 %v4007
    %5413 = vmatprep.subr.bf16.mxu0 %v4000
    %5414 = vmatpush2.bf16.msra.mxu0 %v3999
    %5415 = vmatprep.subr.bf16.mxu0 %v3992
    %5416 = vmatpush2.bf16.msra.mxu0 %v3991
    %5417 = vmatprep.subr.bf16.mxu0 %v3984
    %5418 = vmatpush2.bf16.msra.mxu0 %v3983
    %5419 = vmatprep.subr.bf16.mxu0 %v3976
    %5420 = vmatpush2.bf16.msra.mxu0 %v3975
    %5421 = vmatprep.mubr.bf16.mxu0 %v789
    %5422 = vmatmul.mubr.bf16.gmra.mxu0 %v788
    %v5423 = vpop.f32.mrf.mxu0
    %v5424 = vadd.f32 %v5383, %v5423
    %v5425 = vpop.f32.mrf.mxu0
    %v5426 = vadd.f32 %v5385, %v5425
    %v5427 = vpop.f32.mrf.mxu0
    %v5428 = vpop.f32.mrf.mxu0
    %5429 = vdwg.mxu0
    %5430 = vmatprep.subr.bf16.mxu0 %v4096
    %5431 = vmatpush1.bf16.msra.mxu0 %v4095
    %5432 = vmatprep.subr.bf16.mxu0 %v4088
    %5433 = vmatpush1.bf16.msra.mxu0 %v4087
    %5434 = vmatprep.subr.bf16.mxu0 %v4080
    %5435 = vmatpush1.bf16.msra.mxu0 %v4079
    %5436 = vmatprep.subr.bf16.mxu0 %v4072
    %5437 = vmatpush1.bf16.msra.mxu0 %v4071
    %5438 = vmatprep.subr.bf16.mxu0 %v4064
    %5439 = vmatpush1.bf16.msra.mxu0 %v4063
    %5440 = vmatprep.subr.bf16.mxu0 %v4056
    %5441 = vmatpush1.bf16.msra.mxu0 %v4055
    %5442 = vmatprep.subr.bf16.mxu0 %v4048
    %5443 = vmatpush1.bf16.msra.mxu0 %v4047
    %5444 = vmatprep.subr.bf16.mxu0 %v4040
    %5445 = vmatpush1.bf16.msra.mxu0 %v4039
    %5446 = vmatprep.subr.bf16.mxu0 %v4160
    %5447 = vmatpush2.bf16.msra.mxu0 %v4159
    %5448 = vmatprep.subr.bf16.mxu0 %v4152
    %5449 = vmatpush2.bf16.msra.mxu0 %v4151
    %5450 = vmatprep.subr.bf16.mxu0 %v4144
    %5451 = vmatpush2.bf16.msra.mxu0 %v4143
    %5452 = vmatprep.subr.bf16.mxu0 %v4136
    %5453 = vmatpush2.bf16.msra.mxu0 %v4135
    %5454 = vmatprep.subr.bf16.mxu0 %v4128
    %5455 = vmatpush2.bf16.msra.mxu0 %v4127
    %5456 = vmatprep.subr.bf16.mxu0 %v4120
    %5457 = vmatpush2.bf16.msra.mxu0 %v4119
    %5458 = vmatprep.subr.bf16.mxu0 %v4112
    %5459 = vmatpush2.bf16.msra.mxu0 %v4111
    %5460 = vmatprep.subr.bf16.mxu0 %v4104
    %5461 = vmatpush2.bf16.msra.mxu0 %v4103
    %5462 = vmatprep.mubr.bf16.mxu0 %v791
    %5463 = vmatmul.mubr.bf16.gmra.mxu0 %v790
    %v5464 = vpop.f32.mrf.mxu0
    %v5465 = vadd.f32 %v5424, %v5464
    %v5466 = vpop.f32.mrf.mxu0
    %v5467 = vadd.f32 %v5426, %v5466
    %v5468 = vpop.f32.mrf.mxu0
    %v5469 = vpop.f32.mrf.mxu0
    %5470 = vdwg.mxu0
    %5471 = vmatprep.subr.bf16.mxu0 %v4224
    %5472 = vmatpush1.bf16.msra.mxu0 %v4223
    %5473 = vmatprep.subr.bf16.mxu0 %v4216
    %5474 = vmatpush1.bf16.msra.mxu0 %v4215
    %5475 = vmatprep.subr.bf16.mxu0 %v4208
    %5476 = vmatpush1.bf16.msra.mxu0 %v4207
    %5477 = vmatprep.subr.bf16.mxu0 %v4200
    %5478 = vmatpush1.bf16.msra.mxu0 %v4199
    %5479 = vmatprep.subr.bf16.mxu0 %v4192
    %5480 = vmatpush1.bf16.msra.mxu0 %v4191
    %5481 = vmatprep.subr.bf16.mxu0 %v4184
    %5482 = vmatpush1.bf16.msra.mxu0 %v4183
    %5483 = vmatprep.subr.bf16.mxu0 %v4176
    %5484 = vmatpush1.bf16.msra.mxu0 %v4175
    %5485 = vmatprep.subr.bf16.mxu0 %v4168
    %5486 = vmatpush1.bf16.msra.mxu0 %v4167
    %5487 = vmatprep.subr.bf16.mxu0 %v4288
    %5488 = vmatpush2.bf16.msra.mxu0 %v4287
    %5489 = vmatprep.subr.bf16.mxu0 %v4280
    %5490 = vmatpush2.bf16.msra.mxu0 %v4279
    %5491 = vmatprep.subr.bf16.mxu0 %v4272
    %5492 = vmatpush2.bf16.msra.mxu0 %v4271
    %5493 = vmatprep.subr.bf16.mxu0 %v4264
    %5494 = vmatpush2.bf16.msra.mxu0 %v4263
    %5495 = vmatprep.subr.bf16.mxu0 %v4256
    %5496 = vmatpush2.bf16.msra.mxu0 %v4255
    %5497 = vmatprep.subr.bf16.mxu0 %v4248
    %5498 = vmatpush2.bf16.msra.mxu0 %v4247
    %5499 = vmatprep.subr.bf16.mxu0 %v4240
    %5500 = vmatpush2.bf16.msra.mxu0 %v4239
    %5501 = vmatprep.subr.bf16.mxu0 %v4232
    %5502 = vmatpush2.bf16.msra.mxu0 %v4231
    %5503 = vmatprep.mubr.bf16.mxu0 %v793
    %5504 = vmatmul.mubr.bf16.gmra.mxu0 %v792
    %v5505 = vpop.f32.mrf.mxu0
    %v5506 = vadd.f32 %v5465, %v5505
    %v5507 = vpop.f32.mrf.mxu0
    %v5508 = vadd.f32 %v5467, %v5507
    %v5509 = vpop.f32.mrf.mxu0
    %v5510 = vpop.f32.mrf.mxu0
    %5511 = vdwg.mxu0
    %5512 = vmatprep.subr.bf16.mxu0 %v4352
    %5513 = vmatpush1.bf16.msra.mxu0 %v4351
    %5514 = vmatprep.subr.bf16.mxu0 %v4344
    %5515 = vmatpush1.bf16.msra.mxu0 %v4343
    %5516 = vmatprep.subr.bf16.mxu0 %v4336
    %5517 = vmatpush1.bf16.msra.mxu0 %v4335
    %5518 = vmatprep.subr.bf16.mxu0 %v4328
    %5519 = vmatpush1.bf16.msra.mxu0 %v4327
    %5520 = vmatprep.subr.bf16.mxu0 %v4320
    %5521 = vmatpush1.bf16.msra.mxu0 %v4319
    %5522 = vmatprep.subr.bf16.mxu0 %v4312
    %5523 = vmatpush1.bf16.msra.mxu0 %v4311
    %5524 = vmatprep.subr.bf16.mxu0 %v4304
    %5525 = vmatpush1.bf16.msra.mxu0 %v4303
    %5526 = vmatprep.subr.bf16.mxu0 %v4296
    %5527 = vmatpush1.bf16.msra.mxu0 %v4295
    %5528 = vmatprep.subr.bf16.mxu0 0
    %5529 = vmatpush2.bf16.msra.mxu0 0
    %5530 = vmatprep.subr.bf16.mxu0 0
    %5531 = vmatpush2.bf16.msra.mxu0 0
    %5532 = vmatprep.subr.bf16.mxu0 0
    %5533 = vmatpush2.bf16.msra.mxu0 0
    %5534 = vmatprep.subr.bf16.mxu0 0
    %5535 = vmatpush2.bf16.msra.mxu0 0
    %5536 = vmatprep.subr.bf16.mxu0 0
    %5537 = vmatpush2.bf16.msra.mxu0 0
    %5538 = vmatprep.subr.bf16.mxu0 0
    %5539 = vmatpush2.bf16.msra.mxu0 0
    %5540 = vmatprep.subr.bf16.mxu0 0
    %5541 = vmatpush2.bf16.msra.mxu0 0
    %5542 = vmatprep.subr.bf16.mxu0 0
    %5543 = vmatpush2.bf16.msra.mxu0 0
    %5544 = vmatprep.mubr.bf16.mxu0 0
    %5545 = vmatmul.mubr.bf16.gmra.mxu0 %v794
    %v5546 = vpop.f32.mrf.mxu0
    %v5547 = vadd.f32 %v5506, %v5546
    %v5548 = vpop.f32.mrf.mxu0
    %v5549 = vadd.f32 %v5508, %v5548
    %v5550 = vpop.f32.mrf.mxu0
    %v5551 = vpop.f32.mrf.mxu0
    %5552 = vdwg.mxu0
    %5553 = vmatprep.subr.bf16.mxu0 %v3714
    %5554 = vmatpush1.bf16.msra.mxu0 %v3713
    %5555 = vmatprep.subr.bf16.mxu0 %v3706
    %5556 = vmatpush1.bf16.msra.mxu0 %v3705
    %5557 = vmatprep.subr.bf16.mxu0 %v3698
    %5558 = vmatpush1.bf16.msra.mxu0 %v3697
    %5559 = vmatprep.subr.bf16.mxu0 %v3690
    %5560 = vmatpush1.bf16.msra.mxu0 %v3689
    %5561 = vmatprep.subr.bf16.mxu0 %v3682
    %5562 = vmatpush1.bf16.msra.mxu0 %v3681
    %5563 = vmatprep.subr.bf16.mxu0 %v3674
    %5564 = vmatpush1.bf16.msra.mxu0 %v3673
    %5565 = vmatprep.subr.bf16.mxu0 %v3666
    %5566 = vmatpush1.bf16.msra.mxu0 %v3665
    %5567 = vmatprep.subr.bf16.mxu0 %v3658
    %5568 = vmatpush1.bf16.msra.mxu0 %v3657
    %5569 = vmatprep.subr.bf16.mxu0 %v3778
    %5570 = vmatpush2.bf16.msra.mxu0 %v3777
    %5571 = vmatprep.subr.bf16.mxu0 %v3770
    %5572 = vmatpush2.bf16.msra.mxu0 %v3769
    %5573 = vmatprep.subr.bf16.mxu0 %v3762
    %5574 = vmatpush2.bf16.msra.mxu0 %v3761
    %5575 = vmatprep.subr.bf16.mxu0 %v3754
    %5576 = vmatpush2.bf16.msra.mxu0 %v3753
    %5577 = vmatprep.subr.bf16.mxu0 %v3746
    %5578 = vmatpush2.bf16.msra.mxu0 %v3745
    %5579 = vmatprep.subr.bf16.mxu0 %v3738
    %5580 = vmatpush2.bf16.msra.mxu0 %v3737
    %5581 = vmatprep.subr.bf16.mxu0 %v3730
    %5582 = vmatpush2.bf16.msra.mxu0 %v3729
    %5583 = vmatprep.subr.bf16.mxu0 %v3722
    %5584 = vmatpush2.bf16.msra.mxu0 %v3721
    %5585 = vmatprep.mubr.bf16.mxu0 %v785
    %5586 = vmatmul.mubr.bf16.gmra.mxu0 %v784
    %v5587 = vpop.f32.mrf.mxu0
    %v5588 = vadd.f32 %v1520, %v5587
    %v5589 = vpop.f32.mrf.mxu0
    %v5590 = vadd.f32 %v1524, %v5589
    %v5591 = vpop.f32.mrf.mxu0
    %v5592 = vpop.f32.mrf.mxu0
    %5593 = vdwg.mxu0
    %5594 = vmatprep.subr.bf16.mxu0 %v3842
    %5595 = vmatpush1.bf16.msra.mxu0 %v3841
    %5596 = vmatprep.subr.bf16.mxu0 %v3834
    %5597 = vmatpush1.bf16.msra.mxu0 %v3833
    %5598 = vmatprep.subr.bf16.mxu0 %v3826
    %5599 = vmatpush1.bf16.msra.mxu0 %v3825
    %5600 = vmatprep.subr.bf16.mxu0 %v3818
    %5601 = vmatpush1.bf16.msra.mxu0 %v3817
    %5602 = vmatprep.subr.bf16.mxu0 %v3810
    %5603 = vmatpush1.bf16.msra.mxu0 %v3809
    %5604 = vmatprep.subr.bf16.mxu0 %v3802
    %5605 = vmatpush1.bf16.msra.mxu0 %v3801
    %5606 = vmatprep.subr.bf16.mxu0 %v3794
    %5607 = vmatpush1.bf16.msra.mxu0 %v3793
    %5608 = vmatprep.subr.bf16.mxu0 %v3786
    %5609 = vmatpush1.bf16.msra.mxu0 %v3785
    %5610 = vmatprep.subr.bf16.mxu0 %v3906
    %5611 = vmatpush2.bf16.msra.mxu0 %v3905
    %5612 = vmatprep.subr.bf16.mxu0 %v3898
    %5613 = vmatpush2.bf16.msra.mxu0 %v3897
    %5614 = vmatprep.subr.bf16.mxu0 %v3890
    %5615 = vmatpush2.bf16.msra.mxu0 %v3889
    %5616 = vmatprep.subr.bf16.mxu0 %v3882
    %5617 = vmatpush2.bf16.msra.mxu0 %v3881
    %5618 = vmatprep.subr.bf16.mxu0 %v3874
    %5619 = vmatpush2.bf16.msra.mxu0 %v3873
    %5620 = vmatprep.subr.bf16.mxu0 %v3866
    %5621 = vmatpush2.bf16.msra.mxu0 %v3865
    %5622 = vmatprep.subr.bf16.mxu0 %v3858
    %5623 = vmatpush2.bf16.msra.mxu0 %v3857
    %5624 = vmatprep.subr.bf16.mxu0 %v3850
    %5625 = vmatpush2.bf16.msra.mxu0 %v3849
    %5626 = vmatprep.mubr.bf16.mxu0 %v787
    %5627 = vmatmul.mubr.bf16.gmra.mxu0 %v786
    %v5628 = vpop.f32.mrf.mxu0
    %v5629 = vadd.f32 %v5588, %v5628
    %v5630 = vpop.f32.mrf.mxu0
    %v5631 = vadd.f32 %v5590, %v5630
    %v5632 = vpop.f32.mrf.mxu0
    %v5633 = vpop.f32.mrf.mxu0
    %5634 = vdwg.mxu0
    %5635 = vmatprep.subr.bf16.mxu0 %v3970
    %5636 = vmatpush1.bf16.msra.mxu0 %v3969
    %5637 = vmatprep.subr.bf16.mxu0 %v3962
    %5638 = vmatpush1.bf16.msra.mxu0 %v3961
    %5639 = vmatprep.subr.bf16.mxu0 %v3954
    %5640 = vmatpush1.bf16.msra.mxu0 %v3953
    %5641 = vmatprep.subr.bf16.mxu0 %v3946
    %5642 = vmatpush1.bf16.msra.mxu0 %v3945
    %5643 = vmatprep.subr.bf16.mxu0 %v3938
    %5644 = vmatpush1.bf16.msra.mxu0 %v3937
    %5645 = vmatprep.subr.bf16.mxu0 %v3930
    %5646 = vmatpush1.bf16.msra.mxu0 %v3929
    %5647 = vmatprep.subr.bf16.mxu0 %v3922
    %5648 = vmatpush1.bf16.msra.mxu0 %v3921
    %5649 = vmatprep.subr.bf16.mxu0 %v3914
    %5650 = vmatpush1.bf16.msra.mxu0 %v3913
    %5651 = vmatprep.subr.bf16.mxu0 %v4034
    %5652 = vmatpush2.bf16.msra.mxu0 %v4033
    %5653 = vmatprep.subr.bf16.mxu0 %v4026
    %5654 = vmatpush2.bf16.msra.mxu0 %v4025
    %5655 = vmatprep.subr.bf16.mxu0 %v4018
    %5656 = vmatpush2.bf16.msra.mxu0 %v4017
    %5657 = vmatprep.subr.bf16.mxu0 %v4010
    %5658 = vmatpush2.bf16.msra.mxu0 %v4009
    %5659 = vmatprep.subr.bf16.mxu0 %v4002
    %5660 = vmatpush2.bf16.msra.mxu0 %v4001
    %5661 = vmatprep.subr.bf16.mxu0 %v3994
    %5662 = vmatpush2.bf16.msra.mxu0 %v3993
    %5663 = vmatprep.subr.bf16.mxu0 %v3986
    %5664 = vmatpush2.bf16.msra.mxu0 %v3985
    %5665 = vmatprep.subr.bf16.mxu0 %v3978
    %5666 = vmatpush2.bf16.msra.mxu0 %v3977
    %5667 = vmatprep.mubr.bf16.mxu0 %v789
    %5668 = vmatmul.mubr.bf16.gmra.mxu0 %v788
    %v5669 = vpop.f32.mrf.mxu0
    %v5670 = vadd.f32 %v5629, %v5669
    %v5671 = vpop.f32.mrf.mxu0
    %v5672 = vadd.f32 %v5631, %v5671
    %v5673 = vpop.f32.mrf.mxu0
    %v5674 = vpop.f32.mrf.mxu0
    %5675 = vdwg.mxu0
    %5676 = vmatprep.subr.bf16.mxu0 %v4098
    %5677 = vmatpush1.bf16.msra.mxu0 %v4097
    %5678 = vmatprep.subr.bf16.mxu0 %v4090
    %5679 = vmatpush1.bf16.msra.mxu0 %v4089
    %5680 = vmatprep.subr.bf16.mxu0 %v4082
    %5681 = vmatpush1.bf16.msra.mxu0 %v4081
    %5682 = vmatprep.subr.bf16.mxu0 %v4074
    %5683 = vmatpush1.bf16.msra.mxu0 %v4073
    %5684 = vmatprep.subr.bf16.mxu0 %v4066
    %5685 = vmatpush1.bf16.msra.mxu0 %v4065
    %5686 = vmatprep.subr.bf16.mxu0 %v4058
    %5687 = vmatpush1.bf16.msra.mxu0 %v4057
    %5688 = vmatprep.subr.bf16.mxu0 %v4050
    %5689 = vmatpush1.bf16.msra.mxu0 %v4049
    %5690 = vmatprep.subr.bf16.mxu0 %v4042
    %5691 = vmatpush1.bf16.msra.mxu0 %v4041
    %5692 = vmatprep.subr.bf16.mxu0 %v4162
    %5693 = vmatpush2.bf16.msra.mxu0 %v4161
    %5694 = vmatprep.subr.bf16.mxu0 %v4154
    %5695 = vmatpush2.bf16.msra.mxu0 %v4153
    %5696 = vmatprep.subr.bf16.mxu0 %v4146
    %5697 = vmatpush2.bf16.msra.mxu0 %v4145
    %5698 = vmatprep.subr.bf16.mxu0 %v4138
    %5699 = vmatpush2.bf16.msra.mxu0 %v4137
    %5700 = vmatprep.subr.bf16.mxu0 %v4130
    %5701 = vmatpush2.bf16.msra.mxu0 %v4129
    %5702 = vmatprep.subr.bf16.mxu0 %v4122
    %5703 = vmatpush2.bf16.msra.mxu0 %v4121
    %5704 = vmatprep.subr.bf16.mxu0 %v4114
    %5705 = vmatpush2.bf16.msra.mxu0 %v4113
    %5706 = vmatprep.subr.bf16.mxu0 %v4106
    %5707 = vmatpush2.bf16.msra.mxu0 %v4105
    %5708 = vmatprep.mubr.bf16.mxu0 %v791
    %5709 = vmatmul.mubr.bf16.gmra.mxu0 %v790
    %v5710 = vpop.f32.mrf.mxu0
    %v5711 = vadd.f32 %v5670, %v5710
    %v5712 = vpop.f32.mrf.mxu0
    %v5713 = vadd.f32 %v5672, %v5712
    %v5714 = vpop.f32.mrf.mxu0
    %v5715 = vpop.f32.mrf.mxu0
    %5716 = vdwg.mxu0
    %5717 = vmatprep.subr.bf16.mxu0 %v4226
    %5718 = vmatpush1.bf16.msra.mxu0 %v4225
    %5719 = vmatprep.subr.bf16.mxu0 %v4218
    %5720 = vmatpush1.bf16.msra.mxu0 %v4217
    %5721 = vmatprep.subr.bf16.mxu0 %v4210
    %5722 = vmatpush1.bf16.msra.mxu0 %v4209
    %5723 = vmatprep.subr.bf16.mxu0 %v4202
    %5724 = vmatpush1.bf16.msra.mxu0 %v4201
    %5725 = vmatprep.subr.bf16.mxu0 %v4194
    %5726 = vmatpush1.bf16.msra.mxu0 %v4193
    %5727 = vmatprep.subr.bf16.mxu0 %v4186
    %5728 = vmatpush1.bf16.msra.mxu0 %v4185
    %5729 = vmatprep.subr.bf16.mxu0 %v4178
    %5730 = vmatpush1.bf16.msra.mxu0 %v4177
    %5731 = vmatprep.subr.bf16.mxu0 %v4170
    %5732 = vmatpush1.bf16.msra.mxu0 %v4169
    %5733 = vmatprep.subr.bf16.mxu0 %v4290
    %5734 = vmatpush2.bf16.msra.mxu0 %v4289
    %5735 = vmatprep.subr.bf16.mxu0 %v4282
    %5736 = vmatpush2.bf16.msra.mxu0 %v4281
    %5737 = vmatprep.subr.bf16.mxu0 %v4274
    %5738 = vmatpush2.bf16.msra.mxu0 %v4273
    %5739 = vmatprep.subr.bf16.mxu0 %v4266
    %5740 = vmatpush2.bf16.msra.mxu0 %v4265
    %5741 = vmatprep.subr.bf16.mxu0 %v4258
    %5742 = vmatpush2.bf16.msra.mxu0 %v4257
    %5743 = vmatprep.subr.bf16.mxu0 %v4250
    %5744 = vmatpush2.bf16.msra.mxu0 %v4249
    %5745 = vmatprep.subr.bf16.mxu0 %v4242
    %5746 = vmatpush2.bf16.msra.mxu0 %v4241
    %5747 = vmatprep.subr.bf16.mxu0 %v4234
    %5748 = vmatpush2.bf16.msra.mxu0 %v4233
    %5749 = vmatprep.mubr.bf16.mxu0 %v793
    %5750 = vmatmul.mubr.bf16.gmra.mxu0 %v792
    %v5751 = vpop.f32.mrf.mxu0
    %v5752 = vadd.f32 %v5711, %v5751
    %v5753 = vpop.f32.mrf.mxu0
    %v5754 = vadd.f32 %v5713, %v5753
    %v5755 = vpop.f32.mrf.mxu0
    %v5756 = vpop.f32.mrf.mxu0
    %5757 = vdwg.mxu0
    %5758 = vmatprep.subr.bf16.mxu0 %v4354
    %5759 = vmatpush1.bf16.msra.mxu0 %v4353
    %5760 = vmatprep.subr.bf16.mxu0 %v4346
    %5761 = vmatpush1.bf16.msra.mxu0 %v4345
    %5762 = vmatprep.subr.bf16.mxu0 %v4338
    %5763 = vmatpush1.bf16.msra.mxu0 %v4337
    %5764 = vmatprep.subr.bf16.mxu0 %v4330
    %5765 = vmatpush1.bf16.msra.mxu0 %v4329
    %5766 = vmatprep.subr.bf16.mxu0 %v4322
    %5767 = vmatpush1.bf16.msra.mxu0 %v4321
    %5768 = vmatprep.subr.bf16.mxu0 %v4314
    %5769 = vmatpush1.bf16.msra.mxu0 %v4313
    %5770 = vmatprep.subr.bf16.mxu0 %v4306
    %5771 = vmatpush1.bf16.msra.mxu0 %v4305
    %5772 = vmatprep.subr.bf16.mxu0 %v4298
    %5773 = vmatpush1.bf16.msra.mxu0 %v4297
    %5774 = vmatprep.subr.bf16.mxu0 0
    %5775 = vmatpush2.bf16.msra.mxu0 0
    %5776 = vmatprep.subr.bf16.mxu0 0
    %5777 = vmatpush2.bf16.msra.mxu0 0
    %5778 = vmatprep.subr.bf16.mxu0 0
    %5779 = vmatpush2.bf16.msra.mxu0 0
    %5780 = vmatprep.subr.bf16.mxu0 0
    %5781 = vmatpush2.bf16.msra.mxu0 0
    %5782 = vmatprep.subr.bf16.mxu0 0
    %5783 = vmatpush2.bf16.msra.mxu0 0
    %5784 = vmatprep.subr.bf16.mxu0 0
    %5785 = vmatpush2.bf16.msra.mxu0 0
    %5786 = vmatprep.subr.bf16.mxu0 0
    %5787 = vmatpush2.bf16.msra.mxu0 0
    %5788 = vmatprep.subr.bf16.mxu0 0
    %5789 = vmatpush2.bf16.msra.mxu0 0
    %5790 = vmatprep.mubr.bf16.mxu0 0
    %5791 = vmatmul.mubr.bf16.gmra.mxu0 %v794
    %v5792 = vpop.f32.mrf.mxu0
    %v5793 = vadd.f32 %v5752, %v5792
    %v5794 = vpop.f32.mrf.mxu0
    %v5795 = vadd.f32 %v5754, %v5794
    %v5796 = vpop.f32.mrf.mxu0
    %v5797 = vpop.f32.mrf.mxu0
    %5798 = vdwg.mxu0
    %5799 = vmatprep.subr.bf16.mxu0 %v3716
    %5800 = vmatpush1.bf16.msra.mxu0 %v3715
    %5801 = vmatprep.subr.bf16.mxu0 %v3708
    %5802 = vmatpush1.bf16.msra.mxu0 %v3707
    %5803 = vmatprep.subr.bf16.mxu0 %v3700
    %5804 = vmatpush1.bf16.msra.mxu0 %v3699
    %5805 = vmatprep.subr.bf16.mxu0 %v3692
    %5806 = vmatpush1.bf16.msra.mxu0 %v3691
    %5807 = vmatprep.subr.bf16.mxu0 %v3684
    %5808 = vmatpush1.bf16.msra.mxu0 %v3683
    %5809 = vmatprep.subr.bf16.mxu0 %v3676
    %5810 = vmatpush1.bf16.msra.mxu0 %v3675
    %5811 = vmatprep.subr.bf16.mxu0 %v3668
    %5812 = vmatpush1.bf16.msra.mxu0 %v3667
    %5813 = vmatprep.subr.bf16.mxu0 %v3660
    %5814 = vmatpush1.bf16.msra.mxu0 %v3659
    %5815 = vmatprep.subr.bf16.mxu0 %v3780
    %5816 = vmatpush2.bf16.msra.mxu0 %v3779
    %5817 = vmatprep.subr.bf16.mxu0 %v3772
    %5818 = vmatpush2.bf16.msra.mxu0 %v3771
    %5819 = vmatprep.subr.bf16.mxu0 %v3764
    %5820 = vmatpush2.bf16.msra.mxu0 %v3763
    %5821 = vmatprep.subr.bf16.mxu0 %v3756
    %5822 = vmatpush2.bf16.msra.mxu0 %v3755
    %5823 = vmatprep.subr.bf16.mxu0 %v3748
    %5824 = vmatpush2.bf16.msra.mxu0 %v3747
    %5825 = vmatprep.subr.bf16.mxu0 %v3740
    %5826 = vmatpush2.bf16.msra.mxu0 %v3739
    %5827 = vmatprep.subr.bf16.mxu0 %v3732
    %5828 = vmatpush2.bf16.msra.mxu0 %v3731
    %5829 = vmatprep.subr.bf16.mxu0 %v3724
    %5830 = vmatpush2.bf16.msra.mxu0 %v3723
    %5831 = vmatprep.mubr.bf16.mxu0 %v785
    %5832 = vmatmul.mubr.bf16.gmra.mxu0 %v784
    %v5833 = vpop.f32.mrf.mxu0
    %v5834 = vadd.f32 %v1528, %v5833
    %v5835 = vpop.f32.mrf.mxu0
    %v5836 = vadd.f32 %v1532, %v5835
    %v5837 = vpop.f32.mrf.mxu0
    %v5838 = vpop.f32.mrf.mxu0
    %5839 = vdwg.mxu0
    %5840 = vmatprep.subr.bf16.mxu0 %v3844
    %5841 = vmatpush1.bf16.msra.mxu0 %v3843
    %5842 = vmatprep.subr.bf16.mxu0 %v3836
    %5843 = vmatpush1.bf16.msra.mxu0 %v3835
    %5844 = vmatprep.subr.bf16.mxu0 %v3828
    %5845 = vmatpush1.bf16.msra.mxu0 %v3827
    %5846 = vmatprep.subr.bf16.mxu0 %v3820
    %5847 = vmatpush1.bf16.msra.mxu0 %v3819
    %5848 = vmatprep.subr.bf16.mxu0 %v3812
    %5849 = vmatpush1.bf16.msra.mxu0 %v3811
    %5850 = vmatprep.subr.bf16.mxu0 %v3804
    %5851 = vmatpush1.bf16.msra.mxu0 %v3803
    %5852 = vmatprep.subr.bf16.mxu0 %v3796
    %5853 = vmatpush1.bf16.msra.mxu0 %v3795
    %5854 = vmatprep.subr.bf16.mxu0 %v3788
    %5855 = vmatpush1.bf16.msra.mxu0 %v3787
    %5856 = vmatprep.subr.bf16.mxu0 %v3908
    %5857 = vmatpush2.bf16.msra.mxu0 %v3907
    %5858 = vmatprep.subr.bf16.mxu0 %v3900
    %5859 = vmatpush2.bf16.msra.mxu0 %v3899
    %5860 = vmatprep.subr.bf16.mxu0 %v3892
    %5861 = vmatpush2.bf16.msra.mxu0 %v3891
    %5862 = vmatprep.subr.bf16.mxu0 %v3884
    %5863 = vmatpush2.bf16.msra.mxu0 %v3883
    %5864 = vmatprep.subr.bf16.mxu0 %v3876
    %5865 = vmatpush2.bf16.msra.mxu0 %v3875
    %5866 = vmatprep.subr.bf16.mxu0 %v3868
    %5867 = vmatpush2.bf16.msra.mxu0 %v3867
    %5868 = vmatprep.subr.bf16.mxu0 %v3860
    %5869 = vmatpush2.bf16.msra.mxu0 %v3859
    %5870 = vmatprep.subr.bf16.mxu0 %v3852
    %5871 = vmatpush2.bf16.msra.mxu0 %v3851
    %5872 = vmatprep.mubr.bf16.mxu0 %v787
    %5873 = vmatmul.mubr.bf16.gmra.mxu0 %v786
    %v5874 = vpop.f32.mrf.mxu0
    %v5875 = vadd.f32 %v5834, %v5874
    %v5876 = vpop.f32.mrf.mxu0
    %v5877 = vadd.f32 %v5836, %v5876
    %v5878 = vpop.f32.mrf.mxu0
    %v5879 = vpop.f32.mrf.mxu0
    %5880 = vdwg.mxu0
    %5881 = vmatprep.subr.bf16.mxu0 %v3972
    %5882 = vmatpush1.bf16.msra.mxu0 %v3971
    %5883 = vmatprep.subr.bf16.mxu0 %v3964
    %5884 = vmatpush1.bf16.msra.mxu0 %v3963
    %5885 = vmatprep.subr.bf16.mxu0 %v3956
    %5886 = vmatpush1.bf16.msra.mxu0 %v3955
    %5887 = vmatprep.subr.bf16.mxu0 %v3948
    %5888 = vmatpush1.bf16.msra.mxu0 %v3947
    %5889 = vmatprep.subr.bf16.mxu0 %v3940
    %5890 = vmatpush1.bf16.msra.mxu0 %v3939
    %5891 = vmatprep.subr.bf16.mxu0 %v3932
    %5892 = vmatpush1.bf16.msra.mxu0 %v3931
    %5893 = vmatprep.subr.bf16.mxu0 %v3924
    %5894 = vmatpush1.bf16.msra.mxu0 %v3923
    %5895 = vmatprep.subr.bf16.mxu0 %v3916
    %5896 = vmatpush1.bf16.msra.mxu0 %v3915
    %5897 = vmatprep.subr.bf16.mxu0 %v4036
    %5898 = vmatpush2.bf16.msra.mxu0 %v4035
    %5899 = vmatprep.subr.bf16.mxu0 %v4028
    %5900 = vmatpush2.bf16.msra.mxu0 %v4027
    %5901 = vmatprep.subr.bf16.mxu0 %v4020
    %5902 = vmatpush2.bf16.msra.mxu0 %v4019
    %5903 = vmatprep.subr.bf16.mxu0 %v4012
    %5904 = vmatpush2.bf16.msra.mxu0 %v4011
    %5905 = vmatprep.subr.bf16.mxu0 %v4004
    %5906 = vmatpush2.bf16.msra.mxu0 %v4003
    %5907 = vmatprep.subr.bf16.mxu0 %v3996
    %5908 = vmatpush2.bf16.msra.mxu0 %v3995
    %5909 = vmatprep.subr.bf16.mxu0 %v3988
    %5910 = vmatpush2.bf16.msra.mxu0 %v3987
    %5911 = vmatprep.subr.bf16.mxu0 %v3980
    %5912 = vmatpush2.bf16.msra.mxu0 %v3979
    %5913 = vmatprep.mubr.bf16.mxu0 %v789
    %5914 = vmatmul.mubr.bf16.gmra.mxu0 %v788
    %v5915 = vpop.f32.mrf.mxu0
    %v5916 = vadd.f32 %v5875, %v5915
    %v5917 = vpop.f32.mrf.mxu0
    %v5918 = vadd.f32 %v5877, %v5917
    %v5919 = vpop.f32.mrf.mxu0
    %v5920 = vpop.f32.mrf.mxu0
    %5921 = vdwg.mxu0
    %5922 = vmatprep.subr.bf16.mxu0 %v4100
    %5923 = vmatpush1.bf16.msra.mxu0 %v4099
    %5924 = vmatprep.subr.bf16.mxu0 %v4092
    %5925 = vmatpush1.bf16.msra.mxu0 %v4091
    %5926 = vmatprep.subr.bf16.mxu0 %v4084
    %5927 = vmatpush1.bf16.msra.mxu0 %v4083
    %5928 = vmatprep.subr.bf16.mxu0 %v4076
    %5929 = vmatpush1.bf16.msra.mxu0 %v4075
    %5930 = vmatprep.subr.bf16.mxu0 %v4068
    %5931 = vmatpush1.bf16.msra.mxu0 %v4067
    %5932 = vmatprep.subr.bf16.mxu0 %v4060
    %5933 = vmatpush1.bf16.msra.mxu0 %v4059
    %5934 = vmatprep.subr.bf16.mxu0 %v4052
    %5935 = vmatpush1.bf16.msra.mxu0 %v4051
    %5936 = vmatprep.subr.bf16.mxu0 %v4044
    %5937 = vmatpush1.bf16.msra.mxu0 %v4043
    %5938 = vmatprep.subr.bf16.mxu0 %v4164
    %5939 = vmatpush2.bf16.msra.mxu0 %v4163
    %5940 = vmatprep.subr.bf16.mxu0 %v4156
    %5941 = vmatpush2.bf16.msra.mxu0 %v4155
    %5942 = vmatprep.subr.bf16.mxu0 %v4148
    %5943 = vmatpush2.bf16.msra.mxu0 %v4147
    %5944 = vmatprep.subr.bf16.mxu0 %v4140
    %5945 = vmatpush2.bf16.msra.mxu0 %v4139
    %5946 = vmatprep.subr.bf16.mxu0 %v4132
    %5947 = vmatpush2.bf16.msra.mxu0 %v4131
    %5948 = vmatprep.subr.bf16.mxu0 %v4124
    %5949 = vmatpush2.bf16.msra.mxu0 %v4123
    %5950 = vmatprep.subr.bf16.mxu0 %v4116
    %5951 = vmatpush2.bf16.msra.mxu0 %v4115
    %5952 = vmatprep.subr.bf16.mxu0 %v4108
    %5953 = vmatpush2.bf16.msra.mxu0 %v4107
    %5954 = vmatprep.mubr.bf16.mxu0 %v791
    %5955 = vmatmul.mubr.bf16.gmra.mxu0 %v790
    %v5956 = vpop.f32.mrf.mxu0
    %v5957 = vadd.f32 %v5916, %v5956
    %v5958 = vpop.f32.mrf.mxu0
    %v5959 = vadd.f32 %v5918, %v5958
    %v5960 = vpop.f32.mrf.mxu0
    %v5961 = vpop.f32.mrf.mxu0
    %5962 = vdwg.mxu0
    %5963 = vmatprep.subr.bf16.mxu0 %v4228
    %5964 = vmatpush1.bf16.msra.mxu0 %v4227
    %5965 = vmatprep.subr.bf16.mxu0 %v4220
    %5966 = vmatpush1.bf16.msra.mxu0 %v4219
    %5967 = vmatprep.subr.bf16.mxu0 %v4212
    %5968 = vmatpush1.bf16.msra.mxu0 %v4211
    %5969 = vmatprep.subr.bf16.mxu0 %v4204
    %5970 = vmatpush1.bf16.msra.mxu0 %v4203
    %5971 = vmatprep.subr.bf16.mxu0 %v4196
    %5972 = vmatpush1.bf16.msra.mxu0 %v4195
    %5973 = vmatprep.subr.bf16.mxu0 %v4188
    %5974 = vmatpush1.bf16.msra.mxu0 %v4187
    %5975 = vmatprep.subr.bf16.mxu0 %v4180
    %5976 = vmatpush1.bf16.msra.mxu0 %v4179
    %5977 = vmatprep.subr.bf16.mxu0 %v4172
    %5978 = vmatpush1.bf16.msra.mxu0 %v4171
    %5979 = vmatprep.subr.bf16.mxu0 %v4292
    %5980 = vmatpush2.bf16.msra.mxu0 %v4291
    %5981 = vmatprep.subr.bf16.mxu0 %v4284
    %5982 = vmatpush2.bf16.msra.mxu0 %v4283
    %5983 = vmatprep.subr.bf16.mxu0 %v4276
    %5984 = vmatpush2.bf16.msra.mxu0 %v4275
    %5985 = vmatprep.subr.bf16.mxu0 %v4268
    %5986 = vmatpush2.bf16.msra.mxu0 %v4267
    %5987 = vmatprep.subr.bf16.mxu0 %v4260
    %5988 = vmatpush2.bf16.msra.mxu0 %v4259
    %5989 = vmatprep.subr.bf16.mxu0 %v4252
    %5990 = vmatpush2.bf16.msra.mxu0 %v4251
    %5991 = vmatprep.subr.bf16.mxu0 %v4244
    %5992 = vmatpush2.bf16.msra.mxu0 %v4243
    %5993 = vmatprep.subr.bf16.mxu0 %v4236
    %5994 = vmatpush2.bf16.msra.mxu0 %v4235
    %5995 = vmatprep.mubr.bf16.mxu0 %v793
    %5996 = vmatmul.mubr.bf16.gmra.mxu0 %v792
    %v5997 = vpop.f32.mrf.mxu0
    %v5998 = vadd.f32 %v5957, %v5997
    %v5999 = vpop.f32.mrf.mxu0
    %v6000 = vadd.f32 %v5959, %v5999
    %v6001 = vpop.f32.mrf.mxu0
    %v6002 = vpop.f32.mrf.mxu0
    %6003 = vdwg.mxu0
    %6004 = vmatprep.subr.bf16.mxu0 %v4356
    %6005 = vmatpush1.bf16.msra.mxu0 %v4355
    %6006 = vmatprep.subr.bf16.mxu0 %v4348
    %6007 = vmatpush1.bf16.msra.mxu0 %v4347
    %6008 = vmatprep.subr.bf16.mxu0 %v4340
    %6009 = vmatpush1.bf16.msra.mxu0 %v4339
    %6010 = vmatprep.subr.bf16.mxu0 %v4332
    %6011 = vmatpush1.bf16.msra.mxu0 %v4331
    %6012 = vmatprep.subr.bf16.mxu0 %v4324
    %6013 = vmatpush1.bf16.msra.mxu0 %v4323
    %6014 = vmatprep.subr.bf16.mxu0 %v4316
    %6015 = vmatpush1.bf16.msra.mxu0 %v4315
    %6016 = vmatprep.subr.bf16.mxu0 %v4308
    %6017 = vmatpush1.bf16.msra.mxu0 %v4307
    %6018 = vmatprep.subr.bf16.mxu0 %v4300
    %6019 = vmatpush1.bf16.msra.mxu0 %v4299
    %6020 = vmatprep.subr.bf16.mxu0 0
    %6021 = vmatpush2.bf16.msra.mxu0 0
    %6022 = vmatprep.subr.bf16.mxu0 0
    %6023 = vmatpush2.bf16.msra.mxu0 0
    %6024 = vmatprep.subr.bf16.mxu0 0
    %6025 = vmatpush2.bf16.msra.mxu0 0
    %6026 = vmatprep.subr.bf16.mxu0 0
    %6027 = vmatpush2.bf16.msra.mxu0 0
    %6028 = vmatprep.subr.bf16.mxu0 0
    %6029 = vmatpush2.bf16.msra.mxu0 0
    %6030 = vmatprep.subr.bf16.mxu0 0
    %6031 = vmatpush2.bf16.msra.mxu0 0
    %6032 = vmatprep.subr.bf16.mxu0 0
    %6033 = vmatpush2.bf16.msra.mxu0 0
    %6034 = vmatprep.subr.bf16.mxu0 0
    %6035 = vmatpush2.bf16.msra.mxu0 0
    %6036 = vmatprep.mubr.bf16.mxu0 0
    %6037 = vmatmul.mubr.bf16.gmra.mxu0 %v794
    %v6038 = vpop.f32.mrf.mxu0
    %v6039 = vadd.f32 %v5998, %v6038
    %v6040 = vpop.f32.mrf.mxu0
    %v6041 = vadd.f32 %v6000, %v6040
    %v6042 = vpop.f32.mrf.mxu0
    %v6043 = vpop.f32.mrf.mxu0
    %6044 = vdwg.mxu0
    %v6045 = vmax.f32 %v5301, 0.0
    %v6046 = vmax.f32 %v5303, 0.0
    %v6047 = vmax.f32 %v5547, 0.0
    %v6048 = vmax.f32 %v5549, 0.0
    %v6049 = vmax.f32 %v5793, 0.0
    %v6050 = vmax.f32 %v5795, 0.0
    %v6051 = vmax.f32 %v6039, 0.0
    %v6052 = vmax.f32 %v6041, 0.0
    %v6053 = vpack.c.bf16 %v6045, %v6045
    %v6054 = vpack.c.bf16 %v6046, %v6046
    %v6055 = vpack.c.bf16 %v6047, %v6047
    %v6056 = vpack.c.bf16 %v6048, %v6048
    %v6057 = vpack.c.bf16 %v6049, %v6049
    %v6058 = vpack.c.bf16 %v6050, %v6050
    %v6059 = vpack.c.bf16 %v6051, %v6051
    %v6060 = vpack.c.bf16 %v6052, %v6052
    %v6061 = vld [vmem:[#allocation11] sm:$0xff]
    %v6062 = vld [vmem:[#allocation11 + $0x8] sm:$0xff]
    %v6063 = vld [vmem:[#allocation11 + $0x10] sm:$0xff]
    %v6064 = vld [vmem:[#allocation11 + $0x18] sm:$0xff]
    %v6065 = vld [vmem:[#allocation11 + $0x20] sm:$0xff]
    %v6066 = vld [vmem:[#allocation11 + $0x28] sm:$0xff]
    %v6067 = vld [vmem:[#allocation11 + $0x30] sm:$0xff]
    %v6068 = vld [vmem:[#allocation11 + $0x38] sm:$0xff]
    %v6069 = vld [vmem:[#allocation11 + $0x40] sm:$0xff]
    %v6070 = vld [vmem:[#allocation11 + $0x48] sm:$0xff]
    %v6071 = vld [vmem:[#allocation11 + $0x50] sm:$0xff]
    %v6072 = vld [vmem:[#allocation11 + $0x58] sm:$0xff]
    %v6073 = vld [vmem:[#allocation11 + $0x60] sm:$0xff]
    %v6074 = vld [vmem:[#allocation11 + $0x68] sm:$0xff]
    %v6075 = vld [vmem:[#allocation11 + $0x70] sm:$0xff]
    %v6076 = vld [vmem:[#allocation11 + $0x78] sm:$0xff]
    %v6077 = vld [vmem:[#allocation11 + $0x80] sm:$0xff]
    %v6078 = vld [vmem:[#allocation11 + $0x88] sm:$0xff]
    %v6079 = vld [vmem:[#allocation11 + $0x90] sm:$0xff]
    %v6080 = vld [vmem:[#allocation11 + $0x98] sm:$0xff]
    %v6081 = vld [vmem:[#allocation11 + $0xa0] sm:$0xff]
    %v6082 = vld [vmem:[#allocation11 + $0xa8] sm:$0xff]
    %v6083 = vld [vmem:[#allocation11 + $0xb0] sm:$0xff]
    %v6084 = vld [vmem:[#allocation11 + $0xb8] sm:$0xff]
    %v6085 = vld [vmem:[#allocation11 + $0xc0] sm:$0xff]
    %v6086 = vld [vmem:[#allocation11 + $0xc8] sm:$0xff]
    %v6087 = vld [vmem:[#allocation11 + $0xd0] sm:$0xff]
    %v6088 = vld [vmem:[#allocation11 + $0xd8] sm:$0xff]
    %v6089 = vld [vmem:[#allocation11 + $0xe0] sm:$0xff]
    %v6090 = vld [vmem:[#allocation11 + $0xe8] sm:$0xff]
    %v6091 = vld [vmem:[#allocation11 + $0xf0] sm:$0xff]
    %v6092 = vld [vmem:[#allocation11 + $0xf8] sm:$0xff]
    %v6093 = vld [vmem:[#allocation11 + $0x100] sm:$0xff]
    %v6094 = vld [vmem:[#allocation11 + $0x108] sm:$0xff]
    %v6095 = vld [vmem:[#allocation11 + $0x110] sm:$0xff]
    %v6096 = vld [vmem:[#allocation11 + $0x118] sm:$0xff]
    %v6097 = vld [vmem:[#allocation11 + $0x120] sm:$0xff]
    %v6098 = vld [vmem:[#allocation11 + $0x128] sm:$0xff]
    %v6099 = vld [vmem:[#allocation11 + $0x130] sm:$0xff]
    %v6100 = vld [vmem:[#allocation11 + $0x138] sm:$0xff]
    %v6101 = vld [vmem:[#allocation11 + $0x140] sm:$0xff]
    %v6102 = vld [vmem:[#allocation11 + $0x148] sm:$0xff]
    %v6103 = vld [vmem:[#allocation11 + $0x150] sm:$0xff]
    %v6104 = vld [vmem:[#allocation11 + $0x158] sm:$0xff]
    %v6105 = vld [vmem:[#allocation11 + $0x160] sm:$0xff]
    %v6106 = vld [vmem:[#allocation11 + $0x168] sm:$0xff]
    %v6107 = vld [vmem:[#allocation11 + $0x170] sm:$0xff]
    %v6108 = vld [vmem:[#allocation11 + $0x178] sm:$0xff]
    %v6109 = vld [vmem:[#allocation11 + $0x180] sm:$0xff]
    %v6110 = vld [vmem:[#allocation11 + $0x188] sm:$0xff]
    %v6111 = vld [vmem:[#allocation11 + $0x190] sm:$0xff]
    %v6112 = vld [vmem:[#allocation11 + $0x198] sm:$0xff]
    %v6113 = vld [vmem:[#allocation11 + $0x1a0] sm:$0xff]
    %v6114 = vld [vmem:[#allocation11 + $0x1a8] sm:$0xff]
    %v6115 = vld [vmem:[#allocation11 + $0x1b0] sm:$0xff]
    %v6116 = vld [vmem:[#allocation11 + $0x1b8] sm:$0xff]
    %v6117 = vld [vmem:[#allocation11 + $0x1c0] sm:$0xff]
    %v6118 = vld [vmem:[#allocation11 + $0x1c8] sm:$0xff]
    %v6119 = vld [vmem:[#allocation11 + $0x1d0] sm:$0xff]
    %v6120 = vld [vmem:[#allocation11 + $0x1d8] sm:$0xff]
    %v6121 = vld [vmem:[#allocation11 + $0x1e0] sm:$0xff]
    %v6122 = vld [vmem:[#allocation11 + $0x1e8] sm:$0xff]
    %v6123 = vld [vmem:[#allocation11 + $0x1f0] sm:$0xff]
    %v6124 = vld [vmem:[#allocation11 + $0x1f8] sm:$0xff]
    %v6125 = vld [vmem:[#allocation11 + $0x200] sm:$0xff]
    %v6126 = vld [vmem:[#allocation11 + $0x208] sm:$0xff]
    %v6127 = vld [vmem:[#allocation11 + $0x210] sm:$0xff]
    %v6128 = vld [vmem:[#allocation11 + $0x218] sm:$0xff]
    %v6129 = vld [vmem:[#allocation11 + $0x220] sm:$0xff]
    %v6130 = vld [vmem:[#allocation11 + $0x228] sm:$0xff]
    %v6131 = vld [vmem:[#allocation11 + $0x230] sm:$0xff]
    %v6132 = vld [vmem:[#allocation11 + $0x238] sm:$0xff]
    %v6133 = vld [vmem:[#allocation11 + $0x240] sm:$0xff]
    %v6134 = vld [vmem:[#allocation11 + $0x248] sm:$0xff]
    %v6135 = vld [vmem:[#allocation11 + $0x250] sm:$0xff]
    %v6136 = vld [vmem:[#allocation11 + $0x258] sm:$0xff]
    %v6137 = vld [vmem:[#allocation11 + $0x260] sm:$0xff]
    %v6138 = vld [vmem:[#allocation11 + $0x268] sm:$0xff]
    %v6139 = vld [vmem:[#allocation11 + $0x270] sm:$0xff]
    %v6140 = vld [vmem:[#allocation11 + $0x278] sm:$0xff]
    %v6141 = vld [vmem:[#allocation11 + $0x280] sm:$0xff]
    %v6142 = vld [vmem:[#allocation11 + $0x288] sm:$0xff]
    %v6143 = vld [vmem:[#allocation11 + $0x290] sm:$0xff]
    %v6144 = vld [vmem:[#allocation11 + $0x298] sm:$0xff]
    %v6145 = vld [vmem:[#allocation11 + $0x2a0] sm:$0xff]
    %v6146 = vld [vmem:[#allocation11 + $0x2a8] sm:$0xff]
    %v6147 = vld [vmem:[#allocation11 + $0x2b0] sm:$0xff]
    %v6148 = vld [vmem:[#allocation11 + $0x2b8] sm:$0xff]
    %v6149 = vld [vmem:[#allocation11 + $0x2c0] sm:$0xff]
    %v6150 = vld [vmem:[#allocation11 + $0x2c8] sm:$0xff]
    %v6151 = vld [vmem:[#allocation11 + $0x2d0] sm:$0xff]
    %v6152 = vld [vmem:[#allocation11 + $0x2d8] sm:$0xff]
    %v6153 = vld [vmem:[#allocation11 + $0x2e0] sm:$0xff]
    %v6154 = vld [vmem:[#allocation11 + $0x2e8] sm:$0xff]
    %v6155 = vld [vmem:[#allocation11 + $0x2f0] sm:$0xff]
    %v6156 = vld [vmem:[#allocation11 + $0x2f8] sm:$0xff]
    %v6157 = vld [vmem:[#allocation11 + $0x300] sm:$0xff]
    %v6158 = vld [vmem:[#allocation11 + $0x308] sm:$0xff]
    %v6159 = vld [vmem:[#allocation11 + $0x310] sm:$0xff]
    %v6160 = vld [vmem:[#allocation11 + $0x318] sm:$0xff]
    %v6161 = vld [vmem:[#allocation11 + $0x320] sm:$0xff]
    %v6162 = vld [vmem:[#allocation11 + $0x328] sm:$0xff]
    %v6163 = vld [vmem:[#allocation11 + $0x330] sm:$0xff]
    %v6164 = vld [vmem:[#allocation11 + $0x338] sm:$0xff]
    %v6165 = vld [vmem:[#allocation11 + $0x340] sm:$0xff]
    %v6166 = vld [vmem:[#allocation11 + $0x348] sm:$0xff]
    %v6167 = vld [vmem:[#allocation11 + $0x350] sm:$0xff]
    %v6168 = vld [vmem:[#allocation11 + $0x358] sm:$0xff]
    %v6169 = vld [vmem:[#allocation11 + $0x360] sm:$0xff]
    %v6170 = vld [vmem:[#allocation11 + $0x368] sm:$0xff]
    %v6171 = vld [vmem:[#allocation11 + $0x370] sm:$0xff]
    %v6172 = vld [vmem:[#allocation11 + $0x378] sm:$0xff]
    %v6173 = vld [vmem:[#allocation11 + $0x380] sm:$0xff]
    %v6174 = vld [vmem:[#allocation11 + $0x388] sm:$0xff]
    %v6175 = vld [vmem:[#allocation11 + $0x390] sm:$0xff]
    %v6176 = vld [vmem:[#allocation11 + $0x398] sm:$0xff]
    %v6177 = vld [vmem:[#allocation11 + $0x3a0] sm:$0xff]
    %v6178 = vld [vmem:[#allocation11 + $0x3a8] sm:$0xff]
    %v6179 = vld [vmem:[#allocation11 + $0x3b0] sm:$0xff]
    %v6180 = vld [vmem:[#allocation11 + $0x3b8] sm:$0xff]
    %v6181 = vld [vmem:[#allocation11 + $0x3c0] sm:$0xff]
    %v6182 = vld [vmem:[#allocation11 + $0x3c8] sm:$0xff]
    %v6183 = vld [vmem:[#allocation11 + $0x3d0] sm:$0xff]
    %v6184 = vld [vmem:[#allocation11 + $0x3d8] sm:$0xff]
    %v6185 = vld [vmem:[#allocation11 + $0x3e0] sm:$0xff]
    %v6186 = vld [vmem:[#allocation11 + $0x3e8] sm:$0xff]
    %v6187 = vld [vmem:[#allocation11 + $0x3f0] sm:$0xff]
    %v6188 = vld [vmem:[#allocation11 + $0x3f8] sm:$0xff]
    %v6189 = vld [vmem:[#allocation11 + $0x400] sm:$0xff]
    %v6190 = vld [vmem:[#allocation11 + $0x408] sm:$0xff]
    %v6191 = vld [vmem:[#allocation11 + $0x410] sm:$0xff]
    %v6192 = vld [vmem:[#allocation11 + $0x418] sm:$0xff]
    %v6193 = vld [vmem:[#allocation11 + $0x420] sm:$0xff]
    %v6194 = vld [vmem:[#allocation11 + $0x428] sm:$0xff]
    %v6195 = vld [vmem:[#allocation11 + $0x430] sm:$0xff]
    %v6196 = vld [vmem:[#allocation11 + $0x438] sm:$0xff]
    %v6197 = vld [vmem:[#allocation11 + $0x440] sm:$0xff]
    %v6198 = vld [vmem:[#allocation11 + $0x448] sm:$0xff]
    %v6199 = vld [vmem:[#allocation11 + $0x450] sm:$0xff]
    %v6200 = vld [vmem:[#allocation11 + $0x458] sm:$0xff]
    %v6201 = vld [vmem:[#allocation11 + $0x460] sm:$0xff]
    %v6202 = vld [vmem:[#allocation11 + $0x468] sm:$0xff]
    %v6203 = vld [vmem:[#allocation11 + $0x470] sm:$0xff]
    %v6204 = vld [vmem:[#allocation11 + $0x478] sm:$0xff]
    %v6205 = vld [vmem:[#allocation11 + $0x480] sm:$0xff]
    %v6206 = vld [vmem:[#allocation11 + $0x488] sm:$0xff]
    %v6207 = vld [vmem:[#allocation11 + $0x490] sm:$0xff]
    %v6208 = vld [vmem:[#allocation11 + $0x498] sm:$0xff]
    %v6209 = vld [vmem:[#allocation11 + $0x4a0] sm:$0xff]
    %v6210 = vld [vmem:[#allocation11 + $0x4a8] sm:$0xff]
    %v6211 = vld [vmem:[#allocation11 + $0x4b0] sm:$0xff]
    %v6212 = vld [vmem:[#allocation11 + $0x4b8] sm:$0xff]
    %v6213 = vld [vmem:[#allocation11 + $0x4c0] sm:$0xff]
    %v6214 = vld [vmem:[#allocation11 + $0x4c8] sm:$0xff]
    %v6215 = vld [vmem:[#allocation11 + $0x4d0] sm:$0xff]
    %v6216 = vld [vmem:[#allocation11 + $0x4d8] sm:$0xff]
    %v6217 = vld [vmem:[#allocation11 + $0x4e0] sm:$0xff]
    %v6218 = vld [vmem:[#allocation11 + $0x4e8] sm:$0xff]
    %v6219 = vld [vmem:[#allocation11 + $0x4f0] sm:$0xff]
    %v6220 = vld [vmem:[#allocation11 + $0x4f8] sm:$0xff]
    %v6221 = vld [vmem:[#allocation11 + $0x500] sm:$0xff]
    %v6222 = vld [vmem:[#allocation11 + $0x508] sm:$0xff]
    %v6223 = vld [vmem:[#allocation11 + $0x510] sm:$0xff]
    %v6224 = vld [vmem:[#allocation11 + $0x518] sm:$0xff]
    %v6225 = vld [vmem:[#allocation11 + $0x520] sm:$0xff]
    %v6226 = vld [vmem:[#allocation11 + $0x528] sm:$0xff]
    %v6227 = vld [vmem:[#allocation11 + $0x530] sm:$0xff]
    %v6228 = vld [vmem:[#allocation11 + $0x538] sm:$0xff]
    %v6229 = vld [vmem:[#allocation11 + $0x540] sm:$0xff]
    %v6230 = vld [vmem:[#allocation11 + $0x548] sm:$0xff]
    %v6231 = vld [vmem:[#allocation11 + $0x550] sm:$0xff]
    %v6232 = vld [vmem:[#allocation11 + $0x558] sm:$0xff]
    %v6233 = vld [vmem:[#allocation11 + $0x560] sm:$0xff]
    %v6234 = vld [vmem:[#allocation11 + $0x568] sm:$0xff]
    %v6235 = vld [vmem:[#allocation11 + $0x570] sm:$0xff]
    %v6236 = vld [vmem:[#allocation11 + $0x578] sm:$0xff]
    %v6237 = vld [vmem:[#allocation11 + $0x580] sm:$0xff]
    %v6238 = vld [vmem:[#allocation11 + $0x588] sm:$0xff]
    %v6239 = vld [vmem:[#allocation11 + $0x590] sm:$0xff]
    %v6240 = vld [vmem:[#allocation11 + $0x598] sm:$0xff]
    %v6241 = vld [vmem:[#allocation11 + $0x5a0] sm:$0xff]
    %v6242 = vld [vmem:[#allocation11 + $0x5a8] sm:$0xff]
    %v6243 = vld [vmem:[#allocation11 + $0x5b0] sm:$0xff]
    %v6244 = vld [vmem:[#allocation11 + $0x5b8] sm:$0xff]
    %v6245 = vld [vmem:[#allocation11 + $0x5c0] sm:$0xff]
    %v6246 = vld [vmem:[#allocation11 + $0x5c8] sm:$0xff]
    %v6247 = vld [vmem:[#allocation11 + $0x5d0] sm:$0xff]
    %v6248 = vld [vmem:[#allocation11 + $0x5d8] sm:$0xff]
    %v6249 = vld [vmem:[#allocation11 + $0x5e0] sm:$0xff]
    %v6250 = vld [vmem:[#allocation11 + $0x5e8] sm:$0xff]
    %v6251 = vld [vmem:[#allocation11 + $0x5f0] sm:$0xff]
    %v6252 = vld [vmem:[#allocation11 + $0x5f8] sm:$0xff]
    %v6253 = vld [vmem:[#allocation11 + $0x600] sm:$0xff]
    %v6254 = vld [vmem:[#allocation11 + $0x608] sm:$0xff]
    %v6255 = vld [vmem:[#allocation11 + $0x610] sm:$0xff]
    %v6256 = vld [vmem:[#allocation11 + $0x618] sm:$0xff]
    %v6257 = vld [vmem:[#allocation11 + $0x620] sm:$0xff]
    %v6258 = vld [vmem:[#allocation11 + $0x628] sm:$0xff]
    %v6259 = vld [vmem:[#allocation11 + $0x630] sm:$0xff]
    %v6260 = vld [vmem:[#allocation11 + $0x638] sm:$0xff]
    %v6261 = vld [vmem:[#allocation11 + $0x640] sm:$0xff]
    %v6262 = vld [vmem:[#allocation11 + $0x648] sm:$0xff]
    %v6263 = vld [vmem:[#allocation11 + $0x650] sm:$0xff]
    %v6264 = vld [vmem:[#allocation11 + $0x658] sm:$0xff]
    %v6265 = vld [vmem:[#allocation11 + $0x660] sm:$0xff]
    %v6266 = vld [vmem:[#allocation11 + $0x668] sm:$0xff]
    %v6267 = vld [vmem:[#allocation11 + $0x670] sm:$0xff]
    %v6268 = vld [vmem:[#allocation11 + $0x678] sm:$0xff]
    %v6269 = vld [vmem:[#allocation11 + $0x680] sm:$0xff]
    %v6270 = vld [vmem:[#allocation11 + $0x688] sm:$0xff]
    %v6271 = vld [vmem:[#allocation11 + $0x690] sm:$0xff]
    %v6272 = vld [vmem:[#allocation11 + $0x698] sm:$0xff]
    %v6273 = vld [vmem:[#allocation11 + $0x6a0] sm:$0xff]
    %v6274 = vld [vmem:[#allocation11 + $0x6a8] sm:$0xff]
    %v6275 = vld [vmem:[#allocation11 + $0x6b0] sm:$0xff]
    %v6276 = vld [vmem:[#allocation11 + $0x6b8] sm:$0xff]
    %v6277 = vld [vmem:[#allocation11 + $0x6c0] sm:$0xff]
    %v6278 = vld [vmem:[#allocation11 + $0x6c8] sm:$0xff]
    %v6279 = vld [vmem:[#allocation11 + $0x6d0] sm:$0xff]
    %v6280 = vld [vmem:[#allocation11 + $0x6d8] sm:$0xff]
    %v6281 = vld [vmem:[#allocation11 + $0x6e0] sm:$0xff]
    %v6282 = vld [vmem:[#allocation11 + $0x6e8] sm:$0xff]
    %v6283 = vld [vmem:[#allocation11 + $0x6f0] sm:$0xff]
    %v6284 = vld [vmem:[#allocation11 + $0x6f8] sm:$0xff]
    %v6285 = vld [vmem:[#allocation11 + $0x700] sm:$0xff]
    %v6286 = vld [vmem:[#allocation11 + $0x708] sm:$0xff]
    %v6287 = vld [vmem:[#allocation11 + $0x710] sm:$0xff]
    %v6288 = vld [vmem:[#allocation11 + $0x718] sm:$0xff]
    %v6289 = vld [vmem:[#allocation11 + $0x720] sm:$0xff]
    %v6290 = vld [vmem:[#allocation11 + $0x728] sm:$0xff]
    %v6291 = vld [vmem:[#allocation11 + $0x730] sm:$0xff]
    %v6292 = vld [vmem:[#allocation11 + $0x738] sm:$0xff]
    %v6293 = vld [vmem:[#allocation11 + $0x740] sm:$0xff]
    %v6294 = vld [vmem:[#allocation11 + $0x748] sm:$0xff]
    %v6295 = vld [vmem:[#allocation11 + $0x750] sm:$0xff]
    %v6296 = vld [vmem:[#allocation11 + $0x758] sm:$0xff]
    %v6297 = vld [vmem:[#allocation11 + $0x760] sm:$0xff]
    %v6298 = vld [vmem:[#allocation11 + $0x768] sm:$0xff]
    %v6299 = vld [vmem:[#allocation11 + $0x770] sm:$0xff]
    %v6300 = vld [vmem:[#allocation11 + $0x778] sm:$0xff]
    %v6301 = vld [vmem:[#allocation11 + $0x780] sm:$0xff]
    %v6302 = vld [vmem:[#allocation11 + $0x788] sm:$0xff]
    %v6303 = vld [vmem:[#allocation11 + $0x790] sm:$0xff]
    %v6304 = vld [vmem:[#allocation11 + $0x798] sm:$0xff]
    %v6305 = vld [vmem:[#allocation11 + $0x7a0] sm:$0xff]
    %v6306 = vld [vmem:[#allocation11 + $0x7a8] sm:$0xff]
    %v6307 = vld [vmem:[#allocation11 + $0x7b0] sm:$0xff]
    %v6308 = vld [vmem:[#allocation11 + $0x7b8] sm:$0xff]
    %v6309 = vld [vmem:[#allocation11 + $0x7c0] sm:$0xff]
    %v6310 = vld [vmem:[#allocation11 + $0x7c8] sm:$0xff]
    %v6311 = vld [vmem:[#allocation11 + $0x7d0] sm:$0xff]
    %v6312 = vld [vmem:[#allocation11 + $0x7d8] sm:$0xff]
    %v6313 = vld [vmem:[#allocation11 + $0x7e0] sm:$0xff]
    %v6314 = vld [vmem:[#allocation11 + $0x7e8] sm:$0xff]
    %v6315 = vld [vmem:[#allocation11 + $0x7f0] sm:$0xff]
    %v6316 = vld [vmem:[#allocation11 + $0x7f8] sm:$0xff]
    %v6317 = vld [vmem:[#allocation13] sm:$0xf]
    %v6319 = vlaneseq
    %v6320 = vshrl.u32 %v6319, 7
    %v6321 = vsub.s32 0, %v6320
    %v6322 = vrot.slane %v6317, %v6321
    %v6323 = vlaneseq
    %v6324 = vshrl.u32 %v6323, 7
    %v6325 = vsub.s32 1, %v6324
    %v6326 = vrot.slane %v6317, %v6325
    %v6327 = vlaneseq
    %v6328 = vshrl.u32 %v6327, 7
    %v6329 = vsub.s32 2, %v6328
    %v6330 = vrot.slane %v6317, %v6329
    %v6331 = vlaneseq
    %v6332 = vshrl.u32 %v6331, 7
    %v6333 = vsub.s32 3, %v6332
    %v6334 = vrot.slane %v6317, %v6333
    %v6595 = vunpack.c.l.b16 %v6061
    %v6596 = vunpack.c.h.b16 %v6061
    %v6597 = vunpack.c.l.b16 %v6062
    %v6598 = vunpack.c.h.b16 %v6062
    %v6599 = vunpack.c.l.b16 %v6063
    %v6600 = vunpack.c.h.b16 %v6063
    %v6601 = vunpack.c.l.b16 %v6064
    %v6602 = vunpack.c.h.b16 %v6064
    %v6603 = vunpack.c.l.b16 %v6065
    %v6604 = vunpack.c.h.b16 %v6065
    %v6605 = vunpack.c.l.b16 %v6066
    %v6606 = vunpack.c.h.b16 %v6066
    %v6607 = vunpack.c.l.b16 %v6067
    %v6608 = vunpack.c.h.b16 %v6067
    %v6609 = vunpack.c.l.b16 %v6068
    %v6610 = vunpack.c.h.b16 %v6068
    %v6611 = vunpack.c.l.b16 %v6069
    %v6612 = vunpack.c.h.b16 %v6069
    %v6613 = vunpack.c.l.b16 %v6070
    %v6614 = vunpack.c.h.b16 %v6070
    %v6615 = vunpack.c.l.b16 %v6071
    %v6616 = vunpack.c.h.b16 %v6071
    %v6617 = vunpack.c.l.b16 %v6072
    %v6618 = vunpack.c.h.b16 %v6072
    %v6619 = vunpack.c.l.b16 %v6073
    %v6620 = vunpack.c.h.b16 %v6073
    %v6621 = vunpack.c.l.b16 %v6074
    %v6622 = vunpack.c.h.b16 %v6074
    %v6623 = vunpack.c.l.b16 %v6075
    %v6624 = vunpack.c.h.b16 %v6075
    %v6625 = vunpack.c.l.b16 %v6076
    %v6626 = vunpack.c.h.b16 %v6076
    %v6627 = vunpack.c.l.b16 %v6077
    %v6628 = vunpack.c.h.b16 %v6077
    %v6629 = vunpack.c.l.b16 %v6078
    %v6630 = vunpack.c.h.b16 %v6078
    %v6631 = vunpack.c.l.b16 %v6079
    %v6632 = vunpack.c.h.b16 %v6079
    %v6633 = vunpack.c.l.b16 %v6080
    %v6634 = vunpack.c.h.b16 %v6080
    %v6635 = vunpack.c.l.b16 %v6081
    %v6636 = vunpack.c.h.b16 %v6081
    %v6637 = vunpack.c.l.b16 %v6082
    %v6638 = vunpack.c.h.b16 %v6082
    %v6639 = vunpack.c.l.b16 %v6083
    %v6640 = vunpack.c.h.b16 %v6083
    %v6641 = vunpack.c.l.b16 %v6084
    %v6642 = vunpack.c.h.b16 %v6084
    %v6643 = vunpack.c.l.b16 %v6085
    %v6644 = vunpack.c.h.b16 %v6085
    %v6645 = vunpack.c.l.b16 %v6086
    %v6646 = vunpack.c.h.b16 %v6086
    %v6647 = vunpack.c.l.b16 %v6087
    %v6648 = vunpack.c.h.b16 %v6087
    %v6649 = vunpack.c.l.b16 %v6088
    %v6650 = vunpack.c.h.b16 %v6088
    %v6651 = vunpack.c.l.b16 %v6089
    %v6652 = vunpack.c.h.b16 %v6089
    %v6653 = vunpack.c.l.b16 %v6090
    %v6654 = vunpack.c.h.b16 %v6090
    %v6655 = vunpack.c.l.b16 %v6091
    %v6656 = vunpack.c.h.b16 %v6091
    %v6657 = vunpack.c.l.b16 %v6092
    %v6658 = vunpack.c.h.b16 %v6092
    %v6659 = vunpack.c.l.b16 %v6093
    %v6660 = vunpack.c.h.b16 %v6093
    %v6661 = vunpack.c.l.b16 %v6094
    %v6662 = vunpack.c.h.b16 %v6094
    %v6663 = vunpack.c.l.b16 %v6095
    %v6664 = vunpack.c.h.b16 %v6095
    %v6665 = vunpack.c.l.b16 %v6096
    %v6666 = vunpack.c.h.b16 %v6096
    %v6667 = vunpack.c.l.b16 %v6097
    %v6668 = vunpack.c.h.b16 %v6097
    %v6669 = vunpack.c.l.b16 %v6098
    %v6670 = vunpack.c.h.b16 %v6098
    %v6671 = vunpack.c.l.b16 %v6099
    %v6672 = vunpack.c.h.b16 %v6099
    %v6673 = vunpack.c.l.b16 %v6100
    %v6674 = vunpack.c.h.b16 %v6100
    %v6675 = vunpack.c.l.b16 %v6101
    %v6676 = vunpack.c.h.b16 %v6101
    %v6677 = vunpack.c.l.b16 %v6102
    %v6678 = vunpack.c.h.b16 %v6102
    %v6679 = vunpack.c.l.b16 %v6103
    %v6680 = vunpack.c.h.b16 %v6103
    %v6681 = vunpack.c.l.b16 %v6104
    %v6682 = vunpack.c.h.b16 %v6104
    %v6683 = vunpack.c.l.b16 %v6105
    %v6684 = vunpack.c.h.b16 %v6105
    %v6685 = vunpack.c.l.b16 %v6106
    %v6686 = vunpack.c.h.b16 %v6106
    %v6687 = vunpack.c.l.b16 %v6107
    %v6688 = vunpack.c.h.b16 %v6107
    %v6689 = vunpack.c.l.b16 %v6108
    %v6690 = vunpack.c.h.b16 %v6108
    %v6691 = vunpack.c.l.b16 %v6109
    %v6692 = vunpack.c.h.b16 %v6109
    %v6693 = vunpack.c.l.b16 %v6110
    %v6694 = vunpack.c.h.b16 %v6110
    %v6695 = vunpack.c.l.b16 %v6111
    %v6696 = vunpack.c.h.b16 %v6111
    %v6697 = vunpack.c.l.b16 %v6112
    %v6698 = vunpack.c.h.b16 %v6112
    %v6699 = vunpack.c.l.b16 %v6113
    %v6700 = vunpack.c.h.b16 %v6113
    %v6701 = vunpack.c.l.b16 %v6114
    %v6702 = vunpack.c.h.b16 %v6114
    %v6703 = vunpack.c.l.b16 %v6115
    %v6704 = vunpack.c.h.b16 %v6115
    %v6705 = vunpack.c.l.b16 %v6116
    %v6706 = vunpack.c.h.b16 %v6116
    %v6707 = vunpack.c.l.b16 %v6117
    %v6708 = vunpack.c.h.b16 %v6117
    %v6709 = vunpack.c.l.b16 %v6118
    %v6710 = vunpack.c.h.b16 %v6118
    %v6711 = vunpack.c.l.b16 %v6119
    %v6712 = vunpack.c.h.b16 %v6119
    %v6713 = vunpack.c.l.b16 %v6120
    %v6714 = vunpack.c.h.b16 %v6120
    %v6715 = vunpack.c.l.b16 %v6121
    %v6716 = vunpack.c.h.b16 %v6121
    %v6717 = vunpack.c.l.b16 %v6122
    %v6718 = vunpack.c.h.b16 %v6122
    %v6719 = vunpack.c.l.b16 %v6123
    %v6720 = vunpack.c.h.b16 %v6123
    %v6721 = vunpack.c.l.b16 %v6124
    %v6722 = vunpack.c.h.b16 %v6124
    %v6723 = vunpack.c.l.b16 %v6125
    %v6724 = vunpack.c.h.b16 %v6125
    %v6725 = vunpack.c.l.b16 %v6126
    %v6726 = vunpack.c.h.b16 %v6126
    %v6727 = vunpack.c.l.b16 %v6127
    %v6728 = vunpack.c.h.b16 %v6127
    %v6729 = vunpack.c.l.b16 %v6128
    %v6730 = vunpack.c.h.b16 %v6128
    %v6731 = vunpack.c.l.b16 %v6129
    %v6732 = vunpack.c.h.b16 %v6129
    %v6733 = vunpack.c.l.b16 %v6130
    %v6734 = vunpack.c.h.b16 %v6130
    %v6735 = vunpack.c.l.b16 %v6131
    %v6736 = vunpack.c.h.b16 %v6131
    %v6737 = vunpack.c.l.b16 %v6132
    %v6738 = vunpack.c.h.b16 %v6132
    %v6739 = vunpack.c.l.b16 %v6133
    %v6740 = vunpack.c.h.b16 %v6133
    %v6741 = vunpack.c.l.b16 %v6134
    %v6742 = vunpack.c.h.b16 %v6134
    %v6743 = vunpack.c.l.b16 %v6135
    %v6744 = vunpack.c.h.b16 %v6135
    %v6745 = vunpack.c.l.b16 %v6136
    %v6746 = vunpack.c.h.b16 %v6136
    %v6747 = vunpack.c.l.b16 %v6137
    %v6748 = vunpack.c.h.b16 %v6137
    %v6749 = vunpack.c.l.b16 %v6138
    %v6750 = vunpack.c.h.b16 %v6138
    %v6751 = vunpack.c.l.b16 %v6139
    %v6752 = vunpack.c.h.b16 %v6139
    %v6753 = vunpack.c.l.b16 %v6140
    %v6754 = vunpack.c.h.b16 %v6140
    %v6755 = vunpack.c.l.b16 %v6141
    %v6756 = vunpack.c.h.b16 %v6141
    %v6757 = vunpack.c.l.b16 %v6142
    %v6758 = vunpack.c.h.b16 %v6142
    %v6759 = vunpack.c.l.b16 %v6143
    %v6760 = vunpack.c.h.b16 %v6143
    %v6761 = vunpack.c.l.b16 %v6144
    %v6762 = vunpack.c.h.b16 %v6144
    %v6763 = vunpack.c.l.b16 %v6145
    %v6764 = vunpack.c.h.b16 %v6145
    %v6765 = vunpack.c.l.b16 %v6146
    %v6766 = vunpack.c.h.b16 %v6146
    %v6767 = vunpack.c.l.b16 %v6147
    %v6768 = vunpack.c.h.b16 %v6147
    %v6769 = vunpack.c.l.b16 %v6148
    %v6770 = vunpack.c.h.b16 %v6148
    %v6771 = vunpack.c.l.b16 %v6149
    %v6772 = vunpack.c.h.b16 %v6149
    %v6773 = vunpack.c.l.b16 %v6150
    %v6774 = vunpack.c.h.b16 %v6150
    %v6775 = vunpack.c.l.b16 %v6151
    %v6776 = vunpack.c.h.b16 %v6151
    %v6777 = vunpack.c.l.b16 %v6152
    %v6778 = vunpack.c.h.b16 %v6152
    %v6779 = vunpack.c.l.b16 %v6153
    %v6780 = vunpack.c.h.b16 %v6153
    %v6781 = vunpack.c.l.b16 %v6154
    %v6782 = vunpack.c.h.b16 %v6154
    %v6783 = vunpack.c.l.b16 %v6155
    %v6784 = vunpack.c.h.b16 %v6155
    %v6785 = vunpack.c.l.b16 %v6156
    %v6786 = vunpack.c.h.b16 %v6156
    %v6787 = vunpack.c.l.b16 %v6157
    %v6788 = vunpack.c.h.b16 %v6157
    %v6789 = vunpack.c.l.b16 %v6158
    %v6790 = vunpack.c.h.b16 %v6158
    %v6791 = vunpack.c.l.b16 %v6159
    %v6792 = vunpack.c.h.b16 %v6159
    %v6793 = vunpack.c.l.b16 %v6160
    %v6794 = vunpack.c.h.b16 %v6160
    %v6795 = vunpack.c.l.b16 %v6161
    %v6796 = vunpack.c.h.b16 %v6161
    %v6797 = vunpack.c.l.b16 %v6162
    %v6798 = vunpack.c.h.b16 %v6162
    %v6799 = vunpack.c.l.b16 %v6163
    %v6800 = vunpack.c.h.b16 %v6163
    %v6801 = vunpack.c.l.b16 %v6164
    %v6802 = vunpack.c.h.b16 %v6164
    %v6803 = vunpack.c.l.b16 %v6165
    %v6804 = vunpack.c.h.b16 %v6165
    %v6805 = vunpack.c.l.b16 %v6166
    %v6806 = vunpack.c.h.b16 %v6166
    %v6807 = vunpack.c.l.b16 %v6167
    %v6808 = vunpack.c.h.b16 %v6167
    %v6809 = vunpack.c.l.b16 %v6168
    %v6810 = vunpack.c.h.b16 %v6168
    %v6811 = vunpack.c.l.b16 %v6169
    %v6812 = vunpack.c.h.b16 %v6169
    %v6813 = vunpack.c.l.b16 %v6170
    %v6814 = vunpack.c.h.b16 %v6170
    %v6815 = vunpack.c.l.b16 %v6171
    %v6816 = vunpack.c.h.b16 %v6171
    %v6817 = vunpack.c.l.b16 %v6172
    %v6818 = vunpack.c.h.b16 %v6172
    %v6819 = vunpack.c.l.b16 %v6173
    %v6820 = vunpack.c.h.b16 %v6173
    %v6821 = vunpack.c.l.b16 %v6174
    %v6822 = vunpack.c.h.b16 %v6174
    %v6823 = vunpack.c.l.b16 %v6175
    %v6824 = vunpack.c.h.b16 %v6175
    %v6825 = vunpack.c.l.b16 %v6176
    %v6826 = vunpack.c.h.b16 %v6176
    %v6827 = vunpack.c.l.b16 %v6177
    %v6828 = vunpack.c.h.b16 %v6177
    %v6829 = vunpack.c.l.b16 %v6178
    %v6830 = vunpack.c.h.b16 %v6178
    %v6831 = vunpack.c.l.b16 %v6179
    %v6832 = vunpack.c.h.b16 %v6179
    %v6833 = vunpack.c.l.b16 %v6180
    %v6834 = vunpack.c.h.b16 %v6180
    %v6835 = vunpack.c.l.b16 %v6181
    %v6836 = vunpack.c.h.b16 %v6181
    %v6837 = vunpack.c.l.b16 %v6182
    %v6838 = vunpack.c.h.b16 %v6182
    %v6839 = vunpack.c.l.b16 %v6183
    %v6840 = vunpack.c.h.b16 %v6183
    %v6841 = vunpack.c.l.b16 %v6184
    %v6842 = vunpack.c.h.b16 %v6184
    %v6843 = vunpack.c.l.b16 %v6185
    %v6844 = vunpack.c.h.b16 %v6185
    %v6845 = vunpack.c.l.b16 %v6186
    %v6846 = vunpack.c.h.b16 %v6186
    %v6847 = vunpack.c.l.b16 %v6187
    %v6848 = vunpack.c.h.b16 %v6187
    %v6849 = vunpack.c.l.b16 %v6188
    %v6850 = vunpack.c.h.b16 %v6188
    %v6851 = vunpack.c.l.b16 %v6189
    %v6852 = vunpack.c.h.b16 %v6189
    %v6853 = vunpack.c.l.b16 %v6190
    %v6854 = vunpack.c.h.b16 %v6190
    %v6855 = vunpack.c.l.b16 %v6191
    %v6856 = vunpack.c.h.b16 %v6191
    %v6857 = vunpack.c.l.b16 %v6192
    %v6858 = vunpack.c.h.b16 %v6192
    %v6859 = vunpack.c.l.b16 %v6193
    %v6860 = vunpack.c.h.b16 %v6193
    %v6861 = vunpack.c.l.b16 %v6194
    %v6862 = vunpack.c.h.b16 %v6194
    %v6863 = vunpack.c.l.b16 %v6195
    %v6864 = vunpack.c.h.b16 %v6195
    %v6865 = vunpack.c.l.b16 %v6196
    %v6866 = vunpack.c.h.b16 %v6196
    %v6867 = vunpack.c.l.b16 %v6197
    %v6868 = vunpack.c.h.b16 %v6197
    %v6869 = vunpack.c.l.b16 %v6198
    %v6870 = vunpack.c.h.b16 %v6198
    %v6871 = vunpack.c.l.b16 %v6199
    %v6872 = vunpack.c.h.b16 %v6199
    %v6873 = vunpack.c.l.b16 %v6200
    %v6874 = vunpack.c.h.b16 %v6200
    %v6875 = vunpack.c.l.b16 %v6201
    %v6876 = vunpack.c.h.b16 %v6201
    %v6877 = vunpack.c.l.b16 %v6202
    %v6878 = vunpack.c.h.b16 %v6202
    %v6879 = vunpack.c.l.b16 %v6203
    %v6880 = vunpack.c.h.b16 %v6203
    %v6881 = vunpack.c.l.b16 %v6204
    %v6882 = vunpack.c.h.b16 %v6204
    %v6883 = vunpack.c.l.b16 %v6205
    %v6884 = vunpack.c.h.b16 %v6205
    %v6885 = vunpack.c.l.b16 %v6206
    %v6886 = vunpack.c.h.b16 %v6206
    %v6887 = vunpack.c.l.b16 %v6207
    %v6888 = vunpack.c.h.b16 %v6207
    %v6889 = vunpack.c.l.b16 %v6208
    %v6890 = vunpack.c.h.b16 %v6208
    %v6891 = vunpack.c.l.b16 %v6209
    %v6892 = vunpack.c.h.b16 %v6209
    %v6893 = vunpack.c.l.b16 %v6210
    %v6894 = vunpack.c.h.b16 %v6210
    %v6895 = vunpack.c.l.b16 %v6211
    %v6896 = vunpack.c.h.b16 %v6211
    %v6897 = vunpack.c.l.b16 %v6212
    %v6898 = vunpack.c.h.b16 %v6212
    %v6899 = vunpack.c.l.b16 %v6213
    %v6900 = vunpack.c.h.b16 %v6213
    %v6901 = vunpack.c.l.b16 %v6214
    %v6902 = vunpack.c.h.b16 %v6214
    %v6903 = vunpack.c.l.b16 %v6215
    %v6904 = vunpack.c.h.b16 %v6215
    %v6905 = vunpack.c.l.b16 %v6216
    %v6906 = vunpack.c.h.b16 %v6216
    %v6907 = vunpack.c.l.b16 %v6217
    %v6908 = vunpack.c.h.b16 %v6217
    %v6909 = vunpack.c.l.b16 %v6218
    %v6910 = vunpack.c.h.b16 %v6218
    %v6911 = vunpack.c.l.b16 %v6219
    %v6912 = vunpack.c.h.b16 %v6219
    %v6913 = vunpack.c.l.b16 %v6220
    %v6914 = vunpack.c.h.b16 %v6220
    %v6915 = vunpack.c.l.b16 %v6221
    %v6916 = vunpack.c.h.b16 %v6221
    %v6917 = vunpack.c.l.b16 %v6222
    %v6918 = vunpack.c.h.b16 %v6222
    %v6919 = vunpack.c.l.b16 %v6223
    %v6920 = vunpack.c.h.b16 %v6223
    %v6921 = vunpack.c.l.b16 %v6224
    %v6922 = vunpack.c.h.b16 %v6224
    %v6923 = vunpack.c.l.b16 %v6225
    %v6924 = vunpack.c.h.b16 %v6225
    %v6925 = vunpack.c.l.b16 %v6226
    %v6926 = vunpack.c.h.b16 %v6226
    %v6927 = vunpack.c.l.b16 %v6227
    %v6928 = vunpack.c.h.b16 %v6227
    %v6929 = vunpack.c.l.b16 %v6228
    %v6930 = vunpack.c.h.b16 %v6228
    %v6931 = vunpack.c.l.b16 %v6229
    %v6932 = vunpack.c.h.b16 %v6229
    %v6933 = vunpack.c.l.b16 %v6230
    %v6934 = vunpack.c.h.b16 %v6230
    %v6935 = vunpack.c.l.b16 %v6231
    %v6936 = vunpack.c.h.b16 %v6231
    %v6937 = vunpack.c.l.b16 %v6232
    %v6938 = vunpack.c.h.b16 %v6232
    %v6939 = vunpack.c.l.b16 %v6233
    %v6940 = vunpack.c.h.b16 %v6233
    %v6941 = vunpack.c.l.b16 %v6234
    %v6942 = vunpack.c.h.b16 %v6234
    %v6943 = vunpack.c.l.b16 %v6235
    %v6944 = vunpack.c.h.b16 %v6235
    %v6945 = vunpack.c.l.b16 %v6236
    %v6946 = vunpack.c.h.b16 %v6236
    %v6947 = vunpack.c.l.b16 %v6237
    %v6948 = vunpack.c.h.b16 %v6237
    %v6949 = vunpack.c.l.b16 %v6238
    %v6950 = vunpack.c.h.b16 %v6238
    %v6951 = vunpack.c.l.b16 %v6239
    %v6952 = vunpack.c.h.b16 %v6239
    %v6953 = vunpack.c.l.b16 %v6240
    %v6954 = vunpack.c.h.b16 %v6240
    %v6955 = vunpack.c.l.b16 %v6241
    %v6956 = vunpack.c.h.b16 %v6241
    %v6957 = vunpack.c.l.b16 %v6242
    %v6958 = vunpack.c.h.b16 %v6242
    %v6959 = vunpack.c.l.b16 %v6243
    %v6960 = vunpack.c.h.b16 %v6243
    %v6961 = vunpack.c.l.b16 %v6244
    %v6962 = vunpack.c.h.b16 %v6244
    %v6963 = vunpack.c.l.b16 %v6245
    %v6964 = vunpack.c.h.b16 %v6245
    %v6965 = vunpack.c.l.b16 %v6246
    %v6966 = vunpack.c.h.b16 %v6246
    %v6967 = vunpack.c.l.b16 %v6247
    %v6968 = vunpack.c.h.b16 %v6247
    %v6969 = vunpack.c.l.b16 %v6248
    %v6970 = vunpack.c.h.b16 %v6248
    %v6971 = vunpack.c.l.b16 %v6249
    %v6972 = vunpack.c.h.b16 %v6249
    %v6973 = vunpack.c.l.b16 %v6250
    %v6974 = vunpack.c.h.b16 %v6250
    %v6975 = vunpack.c.l.b16 %v6251
    %v6976 = vunpack.c.h.b16 %v6251
    %v6977 = vunpack.c.l.b16 %v6252
    %v6978 = vunpack.c.h.b16 %v6252
    %v6979 = vunpack.c.l.b16 %v6253
    %v6980 = vunpack.c.h.b16 %v6253
    %v6981 = vunpack.c.l.b16 %v6254
    %v6982 = vunpack.c.h.b16 %v6254
    %v6983 = vunpack.c.l.b16 %v6255
    %v6984 = vunpack.c.h.b16 %v6255
    %v6985 = vunpack.c.l.b16 %v6256
    %v6986 = vunpack.c.h.b16 %v6256
    %v6987 = vunpack.c.l.b16 %v6257
    %v6988 = vunpack.c.h.b16 %v6257
    %v6989 = vunpack.c.l.b16 %v6258
    %v6990 = vunpack.c.h.b16 %v6258
    %v6991 = vunpack.c.l.b16 %v6259
    %v6992 = vunpack.c.h.b16 %v6259
    %v6993 = vunpack.c.l.b16 %v6260
    %v6994 = vunpack.c.h.b16 %v6260
    %v6995 = vunpack.c.l.b16 %v6261
    %v6996 = vunpack.c.h.b16 %v6261
    %v6997 = vunpack.c.l.b16 %v6262
    %v6998 = vunpack.c.h.b16 %v6262
    %v6999 = vunpack.c.l.b16 %v6263
    %v7000 = vunpack.c.h.b16 %v6263
    %v7001 = vunpack.c.l.b16 %v6264
    %v7002 = vunpack.c.h.b16 %v6264
    %v7003 = vunpack.c.l.b16 %v6265
    %v7004 = vunpack.c.h.b16 %v6265
    %v7005 = vunpack.c.l.b16 %v6266
    %v7006 = vunpack.c.h.b16 %v6266
    %v7007 = vunpack.c.l.b16 %v6267
    %v7008 = vunpack.c.h.b16 %v6267
    %v7009 = vunpack.c.l.b16 %v6268
    %v7010 = vunpack.c.h.b16 %v6268
    %v7011 = vunpack.c.l.b16 %v6269
    %v7012 = vunpack.c.h.b16 %v6269
    %v7013 = vunpack.c.l.b16 %v6270
    %v7014 = vunpack.c.h.b16 %v6270
    %v7015 = vunpack.c.l.b16 %v6271
    %v7016 = vunpack.c.h.b16 %v6271
    %v7017 = vunpack.c.l.b16 %v6272
    %v7018 = vunpack.c.h.b16 %v6272
    %v7019 = vunpack.c.l.b16 %v6273
    %v7020 = vunpack.c.h.b16 %v6273
    %v7021 = vunpack.c.l.b16 %v6274
    %v7022 = vunpack.c.h.b16 %v6274
    %v7023 = vunpack.c.l.b16 %v6275
    %v7024 = vunpack.c.h.b16 %v6275
    %v7025 = vunpack.c.l.b16 %v6276
    %v7026 = vunpack.c.h.b16 %v6276
    %v7027 = vunpack.c.l.b16 %v6277
    %v7028 = vunpack.c.h.b16 %v6277
    %v7029 = vunpack.c.l.b16 %v6278
    %v7030 = vunpack.c.h.b16 %v6278
    %v7031 = vunpack.c.l.b16 %v6279
    %v7032 = vunpack.c.h.b16 %v6279
    %v7033 = vunpack.c.l.b16 %v6280
    %v7034 = vunpack.c.h.b16 %v6280
    %v7035 = vunpack.c.l.b16 %v6281
    %v7036 = vunpack.c.h.b16 %v6281
    %v7037 = vunpack.c.l.b16 %v6282
    %v7038 = vunpack.c.h.b16 %v6282
    %v7039 = vunpack.c.l.b16 %v6283
    %v7040 = vunpack.c.h.b16 %v6283
    %v7041 = vunpack.c.l.b16 %v6284
    %v7042 = vunpack.c.h.b16 %v6284
    %v7043 = vunpack.c.l.b16 %v6285
    %v7044 = vunpack.c.h.b16 %v6285
    %v7045 = vunpack.c.l.b16 %v6286
    %v7046 = vunpack.c.h.b16 %v6286
    %v7047 = vunpack.c.l.b16 %v6287
    %v7048 = vunpack.c.h.b16 %v6287
    %v7049 = vunpack.c.l.b16 %v6288
    %v7050 = vunpack.c.h.b16 %v6288
    %v7051 = vunpack.c.l.b16 %v6289
    %v7052 = vunpack.c.h.b16 %v6289
    %v7053 = vunpack.c.l.b16 %v6290
    %v7054 = vunpack.c.h.b16 %v6290
    %v7055 = vunpack.c.l.b16 %v6291
    %v7056 = vunpack.c.h.b16 %v6291
    %v7057 = vunpack.c.l.b16 %v6292
    %v7058 = vunpack.c.h.b16 %v6292
    %v7059 = vunpack.c.l.b16 %v6293
    %v7060 = vunpack.c.h.b16 %v6293
    %v7061 = vunpack.c.l.b16 %v6294
    %v7062 = vunpack.c.h.b16 %v6294
    %v7063 = vunpack.c.l.b16 %v6295
    %v7064 = vunpack.c.h.b16 %v6295
    %v7065 = vunpack.c.l.b16 %v6296
    %v7066 = vunpack.c.h.b16 %v6296
    %v7067 = vunpack.c.l.b16 %v6297
    %v7068 = vunpack.c.h.b16 %v6297
    %v7069 = vunpack.c.l.b16 %v6298
    %v7070 = vunpack.c.h.b16 %v6298
    %v7071 = vunpack.c.l.b16 %v6299
    %v7072 = vunpack.c.h.b16 %v6299
    %v7073 = vunpack.c.l.b16 %v6300
    %v7074 = vunpack.c.h.b16 %v6300
    %v7075 = vunpack.c.l.b16 %v6301
    %v7076 = vunpack.c.h.b16 %v6301
    %v7077 = vunpack.c.l.b16 %v6302
    %v7078 = vunpack.c.h.b16 %v6302
    %v7079 = vunpack.c.l.b16 %v6303
    %v7080 = vunpack.c.h.b16 %v6303
    %v7081 = vunpack.c.l.b16 %v6304
    %v7082 = vunpack.c.h.b16 %v6304
    %v7083 = vunpack.c.l.b16 %v6305
    %v7084 = vunpack.c.h.b16 %v6305
    %v7085 = vunpack.c.l.b16 %v6306
    %v7086 = vunpack.c.h.b16 %v6306
    %v7087 = vunpack.c.l.b16 %v6307
    %v7088 = vunpack.c.h.b16 %v6307
    %v7089 = vunpack.c.l.b16 %v6308
    %v7090 = vunpack.c.h.b16 %v6308
    %v7091 = vunpack.c.l.b16 %v6309
    %v7092 = vunpack.c.h.b16 %v6309
    %v7093 = vunpack.c.l.b16 %v6310
    %v7094 = vunpack.c.h.b16 %v6310
    %v7095 = vunpack.c.l.b16 %v6311
    %v7096 = vunpack.c.h.b16 %v6311
    %v7097 = vunpack.c.l.b16 %v6312
    %v7098 = vunpack.c.h.b16 %v6312
    %v7099 = vunpack.c.l.b16 %v6313
    %v7100 = vunpack.c.h.b16 %v6313
    %v7101 = vunpack.c.l.b16 %v6314
    %v7102 = vunpack.c.h.b16 %v6314
    %v7103 = vunpack.c.l.b16 %v6315
    %v7104 = vunpack.c.h.b16 %v6315
    %v7105 = vunpack.c.l.b16 %v6316
    %v7106 = vunpack.c.h.b16 %v6316
    %v7107 = vpack.c.b16 %v6599, %v6595
    %v7108 = vpack.c.b16 %v6600, %v6596
    %v7109 = vpack.c.b16 %v6601, %v6597
    %v7110 = vpack.c.b16 %v6602, %v6598
    %v7111 = vpack.c.b16 %v6607, %v6603
    %v7112 = vpack.c.b16 %v6608, %v6604
    %v7113 = vpack.c.b16 %v6609, %v6605
    %v7114 = vpack.c.b16 %v6610, %v6606
    %v7115 = vpack.c.b16 %v6615, %v6611
    %v7116 = vpack.c.b16 %v6616, %v6612
    %v7117 = vpack.c.b16 %v6617, %v6613
    %v7118 = vpack.c.b16 %v6618, %v6614
    %v7119 = vpack.c.b16 %v6623, %v6619
    %v7120 = vpack.c.b16 %v6624, %v6620
    %v7121 = vpack.c.b16 %v6625, %v6621
    %v7122 = vpack.c.b16 %v6626, %v6622
    %v7123 = vpack.c.b16 %v6631, %v6627
    %v7124 = vpack.c.b16 %v6632, %v6628
    %v7125 = vpack.c.b16 %v6633, %v6629
    %v7126 = vpack.c.b16 %v6634, %v6630
    %v7127 = vpack.c.b16 %v6639, %v6635
    %v7128 = vpack.c.b16 %v6640, %v6636
    %v7129 = vpack.c.b16 %v6641, %v6637
    %v7130 = vpack.c.b16 %v6642, %v6638
    %v7131 = vpack.c.b16 %v6647, %v6643
    %v7132 = vpack.c.b16 %v6648, %v6644
    %v7133 = vpack.c.b16 %v6649, %v6645
    %v7134 = vpack.c.b16 %v6650, %v6646
    %v7135 = vpack.c.b16 %v6655, %v6651
    %v7136 = vpack.c.b16 %v6656, %v6652
    %v7137 = vpack.c.b16 %v6657, %v6653
    %v7138 = vpack.c.b16 %v6658, %v6654
    %v7139 = vpack.c.b16 %v6663, %v6659
    %v7140 = vpack.c.b16 %v6664, %v6660
    %v7141 = vpack.c.b16 %v6665, %v6661
    %v7142 = vpack.c.b16 %v6666, %v6662
    %v7143 = vpack.c.b16 %v6671, %v6667
    %v7144 = vpack.c.b16 %v6672, %v6668
    %v7145 = vpack.c.b16 %v6673, %v6669
    %v7146 = vpack.c.b16 %v6674, %v6670
    %v7147 = vpack.c.b16 %v6679, %v6675
    %v7148 = vpack.c.b16 %v6680, %v6676
    %v7149 = vpack.c.b16 %v6681, %v6677
    %v7150 = vpack.c.b16 %v6682, %v6678
    %v7151 = vpack.c.b16 %v6687, %v6683
    %v7152 = vpack.c.b16 %v6688, %v6684
    %v7153 = vpack.c.b16 %v6689, %v6685
    %v7154 = vpack.c.b16 %v6690, %v6686
    %v7155 = vpack.c.b16 %v6695, %v6691
    %v7156 = vpack.c.b16 %v6696, %v6692
    %v7157 = vpack.c.b16 %v6697, %v6693
    %v7158 = vpack.c.b16 %v6698, %v6694
    %v7159 = vpack.c.b16 %v6703, %v6699
    %v7160 = vpack.c.b16 %v6704, %v6700
    %v7161 = vpack.c.b16 %v6705, %v6701
    %v7162 = vpack.c.b16 %v6706, %v6702
    %v7163 = vpack.c.b16 %v6711, %v6707
    %v7164 = vpack.c.b16 %v6712, %v6708
    %v7165 = vpack.c.b16 %v6713, %v6709
    %v7166 = vpack.c.b16 %v6714, %v6710
    %v7167 = vpack.c.b16 %v6719, %v6715
    %v7168 = vpack.c.b16 %v6720, %v6716
    %v7169 = vpack.c.b16 %v6721, %v6717
    %v7170 = vpack.c.b16 %v6722, %v6718
    %v7171 = vpack.c.b16 %v6727, %v6723
    %v7172 = vpack.c.b16 %v6728, %v6724
    %v7173 = vpack.c.b16 %v6729, %v6725
    %v7174 = vpack.c.b16 %v6730, %v6726
    %v7175 = vpack.c.b16 %v6735, %v6731
    %v7176 = vpack.c.b16 %v6736, %v6732
    %v7177 = vpack.c.b16 %v6737, %v6733
    %v7178 = vpack.c.b16 %v6738, %v6734
    %v7179 = vpack.c.b16 %v6743, %v6739
    %v7180 = vpack.c.b16 %v6744, %v6740
    %v7181 = vpack.c.b16 %v6745, %v6741
    %v7182 = vpack.c.b16 %v6746, %v6742
    %v7183 = vpack.c.b16 %v6751, %v6747
    %v7184 = vpack.c.b16 %v6752, %v6748
    %v7185 = vpack.c.b16 %v6753, %v6749
    %v7186 = vpack.c.b16 %v6754, %v6750
    %v7187 = vpack.c.b16 %v6759, %v6755
    %v7188 = vpack.c.b16 %v6760, %v6756
    %v7189 = vpack.c.b16 %v6761, %v6757
    %v7190 = vpack.c.b16 %v6762, %v6758
    %v7191 = vpack.c.b16 %v6767, %v6763
    %v7192 = vpack.c.b16 %v6768, %v6764
    %v7193 = vpack.c.b16 %v6769, %v6765
    %v7194 = vpack.c.b16 %v6770, %v6766
    %v7195 = vpack.c.b16 %v6775, %v6771
    %v7196 = vpack.c.b16 %v6776, %v6772
    %v7197 = vpack.c.b16 %v6777, %v6773
    %v7198 = vpack.c.b16 %v6778, %v6774
    %v7199 = vpack.c.b16 %v6783, %v6779
    %v7200 = vpack.c.b16 %v6784, %v6780
    %v7201 = vpack.c.b16 %v6785, %v6781
    %v7202 = vpack.c.b16 %v6786, %v6782
    %v7203 = vpack.c.b16 %v6791, %v6787
    %v7204 = vpack.c.b16 %v6792, %v6788
    %v7205 = vpack.c.b16 %v6793, %v6789
    %v7206 = vpack.c.b16 %v6794, %v6790
    %v7207 = vpack.c.b16 %v6799, %v6795
    %v7208 = vpack.c.b16 %v6800, %v6796
    %v7209 = vpack.c.b16 %v6801, %v6797
    %v7210 = vpack.c.b16 %v6802, %v6798
    %v7211 = vpack.c.b16 %v6807, %v6803
    %v7212 = vpack.c.b16 %v6808, %v6804
    %v7213 = vpack.c.b16 %v6809, %v6805
    %v7214 = vpack.c.b16 %v6810, %v6806
    %v7215 = vpack.c.b16 %v6815, %v6811
    %v7216 = vpack.c.b16 %v6816, %v6812
    %v7217 = vpack.c.b16 %v6817, %v6813
    %v7218 = vpack.c.b16 %v6818, %v6814
    %v7219 = vpack.c.b16 %v6823, %v6819
    %v7220 = vpack.c.b16 %v6824, %v6820
    %v7221 = vpack.c.b16 %v6825, %v6821
    %v7222 = vpack.c.b16 %v6826, %v6822
    %v7223 = vpack.c.b16 %v6831, %v6827
    %v7224 = vpack.c.b16 %v6832, %v6828
    %v7225 = vpack.c.b16 %v6833, %v6829
    %v7226 = vpack.c.b16 %v6834, %v6830
    %v7227 = vpack.c.b16 %v6839, %v6835
    %v7228 = vpack.c.b16 %v6840, %v6836
    %v7229 = vpack.c.b16 %v6841, %v6837
    %v7230 = vpack.c.b16 %v6842, %v6838
    %v7231 = vpack.c.b16 %v6847, %v6843
    %v7232 = vpack.c.b16 %v6848, %v6844
    %v7233 = vpack.c.b16 %v6849, %v6845
    %v7234 = vpack.c.b16 %v6850, %v6846
    %v7235 = vpack.c.b16 %v6855, %v6851
    %v7236 = vpack.c.b16 %v6856, %v6852
    %v7237 = vpack.c.b16 %v6857, %v6853
    %v7238 = vpack.c.b16 %v6858, %v6854
    %v7239 = vpack.c.b16 %v6863, %v6859
    %v7240 = vpack.c.b16 %v6864, %v6860
    %v7241 = vpack.c.b16 %v6865, %v6861
    %v7242 = vpack.c.b16 %v6866, %v6862
    %v7243 = vpack.c.b16 %v6871, %v6867
    %v7244 = vpack.c.b16 %v6872, %v6868
    %v7245 = vpack.c.b16 %v6873, %v6869
    %v7246 = vpack.c.b16 %v6874, %v6870
    %v7247 = vpack.c.b16 %v6879, %v6875
    %v7248 = vpack.c.b16 %v6880, %v6876
    %v7249 = vpack.c.b16 %v6881, %v6877
    %v7250 = vpack.c.b16 %v6882, %v6878
    %v7251 = vpack.c.b16 %v6887, %v6883
    %v7252 = vpack.c.b16 %v6888, %v6884
    %v7253 = vpack.c.b16 %v6889, %v6885
    %v7254 = vpack.c.b16 %v6890, %v6886
    %v7255 = vpack.c.b16 %v6895, %v6891
    %v7256 = vpack.c.b16 %v6896, %v6892
    %v7257 = vpack.c.b16 %v6897, %v6893
    %v7258 = vpack.c.b16 %v6898, %v6894
    %v7259 = vpack.c.b16 %v6903, %v6899
    %v7260 = vpack.c.b16 %v6904, %v6900
    %v7261 = vpack.c.b16 %v6905, %v6901
    %v7262 = vpack.c.b16 %v6906, %v6902
    %v7263 = vpack.c.b16 %v6911, %v6907
    %v7264 = vpack.c.b16 %v6912, %v6908
    %v7265 = vpack.c.b16 %v6913, %v6909
    %v7266 = vpack.c.b16 %v6914, %v6910
    %v7267 = vpack.c.b16 %v6919, %v6915
    %v7268 = vpack.c.b16 %v6920, %v6916
    %v7269 = vpack.c.b16 %v6921, %v6917
    %v7270 = vpack.c.b16 %v6922, %v6918
    %v7271 = vpack.c.b16 %v6927, %v6923
    %v7272 = vpack.c.b16 %v6928, %v6924
    %v7273 = vpack.c.b16 %v6929, %v6925
    %v7274 = vpack.c.b16 %v6930, %v6926
    %v7275 = vpack.c.b16 %v6935, %v6931
    %v7276 = vpack.c.b16 %v6936, %v6932
    %v7277 = vpack.c.b16 %v6937, %v6933
    %v7278 = vpack.c.b16 %v6938, %v6934
    %v7279 = vpack.c.b16 %v6943, %v6939
    %v7280 = vpack.c.b16 %v6944, %v6940
    %v7281 = vpack.c.b16 %v6945, %v6941
    %v7282 = vpack.c.b16 %v6946, %v6942
    %v7283 = vpack.c.b16 %v6951, %v6947
    %v7284 = vpack.c.b16 %v6952, %v6948
    %v7285 = vpack.c.b16 %v6953, %v6949
    %v7286 = vpack.c.b16 %v6954, %v6950
    %v7287 = vpack.c.b16 %v6959, %v6955
    %v7288 = vpack.c.b16 %v6960, %v6956
    %v7289 = vpack.c.b16 %v6961, %v6957
    %v7290 = vpack.c.b16 %v6962, %v6958
    %v7291 = vpack.c.b16 %v6967, %v6963
    %v7292 = vpack.c.b16 %v6968, %v6964
    %v7293 = vpack.c.b16 %v6969, %v6965
    %v7294 = vpack.c.b16 %v6970, %v6966
    %v7295 = vpack.c.b16 %v6975, %v6971
    %v7296 = vpack.c.b16 %v6976, %v6972
    %v7297 = vpack.c.b16 %v6977, %v6973
    %v7298 = vpack.c.b16 %v6978, %v6974
    %v7299 = vpack.c.b16 %v6983, %v6979
    %v7300 = vpack.c.b16 %v6984, %v6980
    %v7301 = vpack.c.b16 %v6985, %v6981
    %v7302 = vpack.c.b16 %v6986, %v6982
    %v7303 = vpack.c.b16 %v6991, %v6987
    %v7304 = vpack.c.b16 %v6992, %v6988
    %v7305 = vpack.c.b16 %v6993, %v6989
    %v7306 = vpack.c.b16 %v6994, %v6990
    %v7307 = vpack.c.b16 %v6999, %v6995
    %v7308 = vpack.c.b16 %v7000, %v6996
    %v7309 = vpack.c.b16 %v7001, %v6997
    %v7310 = vpack.c.b16 %v7002, %v6998
    %v7311 = vpack.c.b16 %v7007, %v7003
    %v7312 = vpack.c.b16 %v7008, %v7004
    %v7313 = vpack.c.b16 %v7009, %v7005
    %v7314 = vpack.c.b16 %v7010, %v7006
    %v7315 = vpack.c.b16 %v7015, %v7011
    %v7316 = vpack.c.b16 %v7016, %v7012
    %v7317 = vpack.c.b16 %v7017, %v7013
    %v7318 = vpack.c.b16 %v7018, %v7014
    %v7319 = vpack.c.b16 %v7023, %v7019
    %v7320 = vpack.c.b16 %v7024, %v7020
    %v7321 = vpack.c.b16 %v7025, %v7021
    %v7322 = vpack.c.b16 %v7026, %v7022
    %v7323 = vpack.c.b16 %v7031, %v7027
    %v7324 = vpack.c.b16 %v7032, %v7028
    %v7325 = vpack.c.b16 %v7033, %v7029
    %v7326 = vpack.c.b16 %v7034, %v7030
    %v7327 = vpack.c.b16 %v7039, %v7035
    %v7328 = vpack.c.b16 %v7040, %v7036
    %v7329 = vpack.c.b16 %v7041, %v7037
    %v7330 = vpack.c.b16 %v7042, %v7038
    %v7331 = vpack.c.b16 %v7047, %v7043
    %v7332 = vpack.c.b16 %v7048, %v7044
    %v7333 = vpack.c.b16 %v7049, %v7045
    %v7334 = vpack.c.b16 %v7050, %v7046
    %v7335 = vpack.c.b16 %v7055, %v7051
    %v7336 = vpack.c.b16 %v7056, %v7052
    %v7337 = vpack.c.b16 %v7057, %v7053
    %v7338 = vpack.c.b16 %v7058, %v7054
    %v7339 = vpack.c.b16 %v7063, %v7059
    %v7340 = vpack.c.b16 %v7064, %v7060
    %v7341 = vpack.c.b16 %v7065, %v7061
    %v7342 = vpack.c.b16 %v7066, %v7062
    %v7343 = vpack.c.b16 %v7071, %v7067
    %v7344 = vpack.c.b16 %v7072, %v7068
    %v7345 = vpack.c.b16 %v7073, %v7069
    %v7346 = vpack.c.b16 %v7074, %v7070
    %v7347 = vpack.c.b16 %v7079, %v7075
    %v7348 = vpack.c.b16 %v7080, %v7076
    %v7349 = vpack.c.b16 %v7081, %v7077
    %v7350 = vpack.c.b16 %v7082, %v7078
    %v7351 = vpack.c.b16 %v7087, %v7083
    %v7352 = vpack.c.b16 %v7088, %v7084
    %v7353 = vpack.c.b16 %v7089, %v7085
    %v7354 = vpack.c.b16 %v7090, %v7086
    %v7355 = vpack.c.b16 %v7095, %v7091
    %v7356 = vpack.c.b16 %v7096, %v7092
    %v7357 = vpack.c.b16 %v7097, %v7093
    %v7358 = vpack.c.b16 %v7098, %v7094
    %v7359 = vpack.c.b16 %v7103, %v7099
    %v7360 = vpack.c.b16 %v7104, %v7100
    %v7361 = vpack.c.b16 %v7105, %v7101
    %v7362 = vpack.c.b16 %v7106, %v7102
    %7619 = vmatprep.subr.bf16.mxu0 %v7136
    %7620 = vmatpush1.bf16.msra.mxu0 %v7135
    %7621 = vmatprep.subr.bf16.mxu0 %v7132
    %7622 = vmatpush1.bf16.msra.mxu0 %v7131
    %7623 = vmatprep.subr.bf16.mxu0 %v7128
    %7624 = vmatpush1.bf16.msra.mxu0 %v7127
    %7625 = vmatprep.subr.bf16.mxu0 %v7124
    %7626 = vmatpush1.bf16.msra.mxu0 %v7123
    %7627 = vmatprep.subr.bf16.mxu0 %v7120
    %7628 = vmatpush1.bf16.msra.mxu0 %v7119
    %7629 = vmatprep.subr.bf16.mxu0 %v7116
    %7630 = vmatpush1.bf16.msra.mxu0 %v7115
    %7631 = vmatprep.subr.bf16.mxu0 %v7112
    %7632 = vmatpush1.bf16.msra.mxu0 %v7111
    %7633 = vmatprep.subr.bf16.mxu0 %v7108
    %7634 = vmatpush1.bf16.msra.mxu0 %v7107
    %7635 = vmatprep.subr.bf16.mxu0 %v7168
    %7636 = vmatpush2.bf16.msra.mxu0 %v7167
    %7637 = vmatprep.subr.bf16.mxu0 %v7164
    %7638 = vmatpush2.bf16.msra.mxu0 %v7163
    %7639 = vmatprep.subr.bf16.mxu0 %v7160
    %7640 = vmatpush2.bf16.msra.mxu0 %v7159
    %7641 = vmatprep.subr.bf16.mxu0 %v7156
    %7642 = vmatpush2.bf16.msra.mxu0 %v7155
    %7643 = vmatprep.subr.bf16.mxu0 %v7152
    %7644 = vmatpush2.bf16.msra.mxu0 %v7151
    %7645 = vmatprep.subr.bf16.mxu0 %v7148
    %7646 = vmatpush2.bf16.msra.mxu0 %v7147
    %7647 = vmatprep.subr.bf16.mxu0 %v7144
    %7648 = vmatpush2.bf16.msra.mxu0 %v7143
    %7649 = vmatprep.subr.bf16.mxu0 %v7140
    %7650 = vmatpush2.bf16.msra.mxu0 %v7139
    %7651 = vmatprep.mubr.bf16.mxu0 %v6054
    %7652 = vmatmul.mubr.bf16.gmra.mxu0 %v6053
    %v7653 = vpop.f32.mrf.mxu0
    %v7654 = vadd.f32 %v6322, %v7653
    %v7655 = vpop.f32.mrf.mxu0
    %v7656 = vadd.f32 %v6326, %v7655
    %v7657 = vpop.f32.mrf.mxu0
    %v7658 = vpop.f32.mrf.mxu0
    %7659 = vdwg.mxu0
    %7660 = vmatprep.subr.bf16.mxu0 %v7200
    %7661 = vmatpush1.bf16.msra.mxu0 %v7199
    %7662 = vmatprep.subr.bf16.mxu0 %v7196
    %7663 = vmatpush1.bf16.msra.mxu0 %v7195
    %7664 = vmatprep.subr.bf16.mxu0 %v7192
    %7665 = vmatpush1.bf16.msra.mxu0 %v7191
    %7666 = vmatprep.subr.bf16.mxu0 %v7188
    %7667 = vmatpush1.bf16.msra.mxu0 %v7187
    %7668 = vmatprep.subr.bf16.mxu0 %v7184
    %7669 = vmatpush1.bf16.msra.mxu0 %v7183
    %7670 = vmatprep.subr.bf16.mxu0 %v7180
    %7671 = vmatpush1.bf16.msra.mxu0 %v7179
    %7672 = vmatprep.subr.bf16.mxu0 %v7176
    %7673 = vmatpush1.bf16.msra.mxu0 %v7175
    %7674 = vmatprep.subr.bf16.mxu0 %v7172
    %7675 = vmatpush1.bf16.msra.mxu0 %v7171
    %7676 = vmatprep.subr.bf16.mxu0 %v7232
    %7677 = vmatpush2.bf16.msra.mxu0 %v7231
    %7678 = vmatprep.subr.bf16.mxu0 %v7228
    %7679 = vmatpush2.bf16.msra.mxu0 %v7227
    %7680 = vmatprep.subr.bf16.mxu0 %v7224
    %7681 = vmatpush2.bf16.msra.mxu0 %v7223
    %7682 = vmatprep.subr.bf16.mxu0 %v7220
    %7683 = vmatpush2.bf16.msra.mxu0 %v7219
    %7684 = vmatprep.subr.bf16.mxu0 %v7216
    %7685 = vmatpush2.bf16.msra.mxu0 %v7215
    %7686 = vmatprep.subr.bf16.mxu0 %v7212
    %7687 = vmatpush2.bf16.msra.mxu0 %v7211
    %7688 = vmatprep.subr.bf16.mxu0 %v7208
    %7689 = vmatpush2.bf16.msra.mxu0 %v7207
    %7690 = vmatprep.subr.bf16.mxu0 %v7204
    %7691 = vmatpush2.bf16.msra.mxu0 %v7203
    %7692 = vmatprep.mubr.bf16.mxu0 %v6056
    %7693 = vmatmul.mubr.bf16.gmra.mxu0 %v6055
    %v7694 = vpop.f32.mrf.mxu0
    %v7695 = vadd.f32 %v7654, %v7694
    %v7696 = vpop.f32.mrf.mxu0
    %v7697 = vadd.f32 %v7656, %v7696
    %v7698 = vpop.f32.mrf.mxu0
    %v7699 = vpop.f32.mrf.mxu0
    %7700 = vdwg.mxu0
    %7701 = vmatprep.subr.bf16.mxu0 %v7264
    %7702 = vmatpush1.bf16.msra.mxu0 %v7263
    %7703 = vmatprep.subr.bf16.mxu0 %v7260
    %7704 = vmatpush1.bf16.msra.mxu0 %v7259
    %7705 = vmatprep.subr.bf16.mxu0 %v7256
    %7706 = vmatpush1.bf16.msra.mxu0 %v7255
    %7707 = vmatprep.subr.bf16.mxu0 %v7252
    %7708 = vmatpush1.bf16.msra.mxu0 %v7251
    %7709 = vmatprep.subr.bf16.mxu0 %v7248
    %7710 = vmatpush1.bf16.msra.mxu0 %v7247
    %7711 = vmatprep.subr.bf16.mxu0 %v7244
    %7712 = vmatpush1.bf16.msra.mxu0 %v7243
    %7713 = vmatprep.subr.bf16.mxu0 %v7240
    %7714 = vmatpush1.bf16.msra.mxu0 %v7239
    %7715 = vmatprep.subr.bf16.mxu0 %v7236
    %7716 = vmatpush1.bf16.msra.mxu0 %v7235
    %7717 = vmatprep.subr.bf16.mxu0 %v7296
    %7718 = vmatpush2.bf16.msra.mxu0 %v7295
    %7719 = vmatprep.subr.bf16.mxu0 %v7292
    %7720 = vmatpush2.bf16.msra.mxu0 %v7291
    %7721 = vmatprep.subr.bf16.mxu0 %v7288
    %7722 = vmatpush2.bf16.msra.mxu0 %v7287
    %7723 = vmatprep.subr.bf16.mxu0 %v7284
    %7724 = vmatpush2.bf16.msra.mxu0 %v7283
    %7725 = vmatprep.subr.bf16.mxu0 %v7280
    %7726 = vmatpush2.bf16.msra.mxu0 %v7279
    %7727 = vmatprep.subr.bf16.mxu0 %v7276
    %7728 = vmatpush2.bf16.msra.mxu0 %v7275
    %7729 = vmatprep.subr.bf16.mxu0 %v7272
    %7730 = vmatpush2.bf16.msra.mxu0 %v7271
    %7731 = vmatprep.subr.bf16.mxu0 %v7268
    %7732 = vmatpush2.bf16.msra.mxu0 %v7267
    %7733 = vmatprep.mubr.bf16.mxu0 %v6058
    %7734 = vmatmul.mubr.bf16.gmra.mxu0 %v6057
    %v7735 = vpop.f32.mrf.mxu0
    %v7736 = vadd.f32 %v7695, %v7735
    %v7737 = vpop.f32.mrf.mxu0
    %v7738 = vadd.f32 %v7697, %v7737
    %v7739 = vpop.f32.mrf.mxu0
    %v7740 = vpop.f32.mrf.mxu0
    %7741 = vdwg.mxu0
    %7742 = vmatprep.subr.bf16.mxu0 %v7328
    %7743 = vmatpush1.bf16.msra.mxu0 %v7327
    %7744 = vmatprep.subr.bf16.mxu0 %v7324
    %7745 = vmatpush1.bf16.msra.mxu0 %v7323
    %7746 = vmatprep.subr.bf16.mxu0 %v7320
    %7747 = vmatpush1.bf16.msra.mxu0 %v7319
    %7748 = vmatprep.subr.bf16.mxu0 %v7316
    %7749 = vmatpush1.bf16.msra.mxu0 %v7315
    %7750 = vmatprep.subr.bf16.mxu0 %v7312
    %7751 = vmatpush1.bf16.msra.mxu0 %v7311
    %7752 = vmatprep.subr.bf16.mxu0 %v7308
    %7753 = vmatpush1.bf16.msra.mxu0 %v7307
    %7754 = vmatprep.subr.bf16.mxu0 %v7304
    %7755 = vmatpush1.bf16.msra.mxu0 %v7303
    %7756 = vmatprep.subr.bf16.mxu0 %v7300
    %7757 = vmatpush1.bf16.msra.mxu0 %v7299
    %7758 = vmatprep.subr.bf16.mxu0 %v7360
    %7759 = vmatpush2.bf16.msra.mxu0 %v7359
    %7760 = vmatprep.subr.bf16.mxu0 %v7356
    %7761 = vmatpush2.bf16.msra.mxu0 %v7355
    %7762 = vmatprep.subr.bf16.mxu0 %v7352
    %7763 = vmatpush2.bf16.msra.mxu0 %v7351
    %7764 = vmatprep.subr.bf16.mxu0 %v7348
    %7765 = vmatpush2.bf16.msra.mxu0 %v7347
    %7766 = vmatprep.subr.bf16.mxu0 %v7344
    %7767 = vmatpush2.bf16.msra.mxu0 %v7343
    %7768 = vmatprep.subr.bf16.mxu0 %v7340
    %7769 = vmatpush2.bf16.msra.mxu0 %v7339
    %7770 = vmatprep.subr.bf16.mxu0 %v7336
    %7771 = vmatpush2.bf16.msra.mxu0 %v7335
    %7772 = vmatprep.subr.bf16.mxu0 %v7332
    %7773 = vmatpush2.bf16.msra.mxu0 %v7331
    %7774 = vmatprep.mubr.bf16.mxu0 %v6060
    %7775 = vmatmul.mubr.bf16.gmra.mxu0 %v6059
    %v7776 = vpop.f32.mrf.mxu0
    %v7777 = vadd.f32 %v7736, %v7776
    %v7778 = vpop.f32.mrf.mxu0
    %v7779 = vadd.f32 %v7738, %v7778
    %v7780 = vpop.f32.mrf.mxu0
    %v7781 = vpop.f32.mrf.mxu0
    %7782 = vdwg.mxu0
    %7783 = vmatprep.subr.bf16.mxu0 %v7138
    %7784 = vmatpush1.bf16.msra.mxu0 %v7137
    %7785 = vmatprep.subr.bf16.mxu0 %v7134
    %7786 = vmatpush1.bf16.msra.mxu0 %v7133
    %7787 = vmatprep.subr.bf16.mxu0 %v7130
    %7788 = vmatpush1.bf16.msra.mxu0 %v7129
    %7789 = vmatprep.subr.bf16.mxu0 %v7126
    %7790 = vmatpush1.bf16.msra.mxu0 %v7125
    %7791 = vmatprep.subr.bf16.mxu0 %v7122
    %7792 = vmatpush1.bf16.msra.mxu0 %v7121
    %7793 = vmatprep.subr.bf16.mxu0 %v7118
    %7794 = vmatpush1.bf16.msra.mxu0 %v7117
    %7795 = vmatprep.subr.bf16.mxu0 %v7114
    %7796 = vmatpush1.bf16.msra.mxu0 %v7113
    %7797 = vmatprep.subr.bf16.mxu0 %v7110
    %7798 = vmatpush1.bf16.msra.mxu0 %v7109
    %7799 = vmatprep.subr.bf16.mxu0 %v7170
    %7800 = vmatpush2.bf16.msra.mxu0 %v7169
    %7801 = vmatprep.subr.bf16.mxu0 %v7166
    %7802 = vmatpush2.bf16.msra.mxu0 %v7165
    %7803 = vmatprep.subr.bf16.mxu0 %v7162
    %7804 = vmatpush2.bf16.msra.mxu0 %v7161
    %7805 = vmatprep.subr.bf16.mxu0 %v7158
    %7806 = vmatpush2.bf16.msra.mxu0 %v7157
    %7807 = vmatprep.subr.bf16.mxu0 %v7154
    %7808 = vmatpush2.bf16.msra.mxu0 %v7153
    %7809 = vmatprep.subr.bf16.mxu0 %v7150
    %7810 = vmatpush2.bf16.msra.mxu0 %v7149
    %7811 = vmatprep.subr.bf16.mxu0 %v7146
    %7812 = vmatpush2.bf16.msra.mxu0 %v7145
    %7813 = vmatprep.subr.bf16.mxu0 %v7142
    %7814 = vmatpush2.bf16.msra.mxu0 %v7141
    %7815 = vmatprep.mubr.bf16.mxu0 %v6054
    %7816 = vmatmul.mubr.bf16.gmra.mxu0 %v6053
    %v7817 = vpop.f32.mrf.mxu0
    %v7818 = vadd.f32 %v6330, %v7817
    %v7819 = vpop.f32.mrf.mxu0
    %v7820 = vadd.f32 %v6334, %v7819
    %v7821 = vpop.f32.mrf.mxu0
    %v7822 = vpop.f32.mrf.mxu0
    %7823 = vdwg.mxu0
    %7824 = vmatprep.subr.bf16.mxu0 %v7202
    %7825 = vmatpush1.bf16.msra.mxu0 %v7201
    %7826 = vmatprep.subr.bf16.mxu0 %v7198
    %7827 = vmatpush1.bf16.msra.mxu0 %v7197
    %7828 = vmatprep.subr.bf16.mxu0 %v7194
    %7829 = vmatpush1.bf16.msra.mxu0 %v7193
    %7830 = vmatprep.subr.bf16.mxu0 %v7190
    %7831 = vmatpush1.bf16.msra.mxu0 %v7189
    %7832 = vmatprep.subr.bf16.mxu0 %v7186
    %7833 = vmatpush1.bf16.msra.mxu0 %v7185
    %7834 = vmatprep.subr.bf16.mxu0 %v7182
    %7835 = vmatpush1.bf16.msra.mxu0 %v7181
    %7836 = vmatprep.subr.bf16.mxu0 %v7178
    %7837 = vmatpush1.bf16.msra.mxu0 %v7177
    %7838 = vmatprep.subr.bf16.mxu0 %v7174
    %7839 = vmatpush1.bf16.msra.mxu0 %v7173
    %7840 = vmatprep.subr.bf16.mxu0 %v7234
    %7841 = vmatpush2.bf16.msra.mxu0 %v7233
    %7842 = vmatprep.subr.bf16.mxu0 %v7230
    %7843 = vmatpush2.bf16.msra.mxu0 %v7229
    %7844 = vmatprep.subr.bf16.mxu0 %v7226
    %7845 = vmatpush2.bf16.msra.mxu0 %v7225
    %7846 = vmatprep.subr.bf16.mxu0 %v7222
    %7847 = vmatpush2.bf16.msra.mxu0 %v7221
    %7848 = vmatprep.subr.bf16.mxu0 %v7218
    %7849 = vmatpush2.bf16.msra.mxu0 %v7217
    %7850 = vmatprep.subr.bf16.mxu0 %v7214
    %7851 = vmatpush2.bf16.msra.mxu0 %v7213
    %7852 = vmatprep.subr.bf16.mxu0 %v7210
    %7853 = vmatpush2.bf16.msra.mxu0 %v7209
    %7854 = vmatprep.subr.bf16.mxu0 %v7206
    %7855 = vmatpush2.bf16.msra.mxu0 %v7205
    %7856 = vmatprep.mubr.bf16.mxu0 %v6056
    %7857 = vmatmul.mubr.bf16.gmra.mxu0 %v6055
    %v7858 = vpop.f32.mrf.mxu0
    %v7859 = vadd.f32 %v7818, %v7858
    %v7860 = vpop.f32.mrf.mxu0
    %v7861 = vadd.f32 %v7820, %v7860
    %v7862 = vpop.f32.mrf.mxu0
    %v7863 = vpop.f32.mrf.mxu0
    %7864 = vdwg.mxu0
    %7865 = vmatprep.subr.bf16.mxu0 %v7266
    %7866 = vmatpush1.bf16.msra.mxu0 %v7265
    %7867 = vmatprep.subr.bf16.mxu0 %v7262
    %7868 = vmatpush1.bf16.msra.mxu0 %v7261
    %7869 = vmatprep.subr.bf16.mxu0 %v7258
    %7870 = vmatpush1.bf16.msra.mxu0 %v7257
    %7871 = vmatprep.subr.bf16.mxu0 %v7254
    %7872 = vmatpush1.bf16.msra.mxu0 %v7253
    %7873 = vmatprep.subr.bf16.mxu0 %v7250
    %7874 = vmatpush1.bf16.msra.mxu0 %v7249
    %7875 = vmatprep.subr.bf16.mxu0 %v7246
    %7876 = vmatpush1.bf16.msra.mxu0 %v7245
    %7877 = vmatprep.subr.bf16.mxu0 %v7242
    %7878 = vmatpush1.bf16.msra.mxu0 %v7241
    %7879 = vmatprep.subr.bf16.mxu0 %v7238
    %7880 = vmatpush1.bf16.msra.mxu0 %v7237
    %7881 = vmatprep.subr.bf16.mxu0 %v7298
    %7882 = vmatpush2.bf16.msra.mxu0 %v7297
    %7883 = vmatprep.subr.bf16.mxu0 %v7294
    %7884 = vmatpush2.bf16.msra.mxu0 %v7293
    %7885 = vmatprep.subr.bf16.mxu0 %v7290
    %7886 = vmatpush2.bf16.msra.mxu0 %v7289
    %7887 = vmatprep.subr.bf16.mxu0 %v7286
    %7888 = vmatpush2.bf16.msra.mxu0 %v7285
    %7889 = vmatprep.subr.bf16.mxu0 %v7282
    %7890 = vmatpush2.bf16.msra.mxu0 %v7281
    %7891 = vmatprep.subr.bf16.mxu0 %v7278
    %7892 = vmatpush2.bf16.msra.mxu0 %v7277
    %7893 = vmatprep.subr.bf16.mxu0 %v7274
    %7894 = vmatpush2.bf16.msra.mxu0 %v7273
    %7895 = vmatprep.subr.bf16.mxu0 %v7270
    %7896 = vmatpush2.bf16.msra.mxu0 %v7269
    %7897 = vmatprep.mubr.bf16.mxu0 %v6058
    %7898 = vmatmul.mubr.bf16.gmra.mxu0 %v6057
    %v7899 = vpop.f32.mrf.mxu0
    %v7900 = vadd.f32 %v7859, %v7899
    %v7901 = vpop.f32.mrf.mxu0
    %v7902 = vadd.f32 %v7861, %v7901
    %v7903 = vpop.f32.mrf.mxu0
    %v7904 = vpop.f32.mrf.mxu0
    %7905 = vdwg.mxu0
    %7906 = vmatprep.subr.bf16.mxu0 %v7330
    %7907 = vmatpush1.bf16.msra.mxu0 %v7329
    %7908 = vmatprep.subr.bf16.mxu0 %v7326
    %7909 = vmatpush1.bf16.msra.mxu0 %v7325
    %7910 = vmatprep.subr.bf16.mxu0 %v7322
    %7911 = vmatpush1.bf16.msra.mxu0 %v7321
    %7912 = vmatprep.subr.bf16.mxu0 %v7318
    %7913 = vmatpush1.bf16.msra.mxu0 %v7317
    %7914 = vmatprep.subr.bf16.mxu0 %v7314
    %7915 = vmatpush1.bf16.msra.mxu0 %v7313
    %7916 = vmatprep.subr.bf16.mxu0 %v7310
    %7917 = vmatpush1.bf16.msra.mxu0 %v7309
    %7918 = vmatprep.subr.bf16.mxu0 %v7306
    %7919 = vmatpush1.bf16.msra.mxu0 %v7305
    %7920 = vmatprep.subr.bf16.mxu0 %v7302
    %7921 = vmatpush1.bf16.msra.mxu0 %v7301
    %7922 = vmatprep.subr.bf16.mxu0 %v7362
    %7923 = vmatpush2.bf16.msra.mxu0 %v7361
    %7924 = vmatprep.subr.bf16.mxu0 %v7358
    %7925 = vmatpush2.bf16.msra.mxu0 %v7357
    %7926 = vmatprep.subr.bf16.mxu0 %v7354
    %7927 = vmatpush2.bf16.msra.mxu0 %v7353
    %7928 = vmatprep.subr.bf16.mxu0 %v7350
    %7929 = vmatpush2.bf16.msra.mxu0 %v7349
    %7930 = vmatprep.subr.bf16.mxu0 %v7346
    %7931 = vmatpush2.bf16.msra.mxu0 %v7345
    %7932 = vmatprep.subr.bf16.mxu0 %v7342
    %7933 = vmatpush2.bf16.msra.mxu0 %v7341
    %7934 = vmatprep.subr.bf16.mxu0 %v7338
    %7935 = vmatpush2.bf16.msra.mxu0 %v7337
    %7936 = vmatprep.subr.bf16.mxu0 %v7334
    %7937 = vmatpush2.bf16.msra.mxu0 %v7333
    %7938 = vmatprep.mubr.bf16.mxu0 %v6060
    %7939 = vmatmul.mubr.bf16.gmra.mxu0 %v6059
    %v7940 = vpop.f32.mrf.mxu0
    %v7941 = vadd.f32 %v7900, %v7940
    %v7942 = vpop.f32.mrf.mxu0
    %v7943 = vadd.f32 %v7902, %v7942
    %v7944 = vpop.f32.mrf.mxu0
    %v7945 = vpop.f32.mrf.mxu0
    %7946 = vdwg.mxu0
    %v7947 = vmax.f32 %v7777, 0.0
    %v7948 = vmax.f32 %v7779, 0.0
    %v7949 = vmax.f32 %v7941, 0.0
    %v7950 = vmax.f32 %v7943, 0.0
    %v7951 = vpack.c.bf16 %v7947, %v7947
    %v7952 = vpack.c.bf16 %v7948, %v7948
    %v7953 = vpack.c.bf16 %v7949, %v7949
    %v7954 = vpack.c.bf16 %v7950, %v7950
    %v7955 = vld [vmem:[#allocation14] sm:$0xff]
    %v7956 = vld [vmem:[#allocation14 + $0x8] sm:$0xff]
    %v7957 = vld [vmem:[#allocation14 + $0x10] sm:$0xff]
    %v7958 = vld [vmem:[#allocation14 + $0x18] sm:$0xff]
    %v7959 = vld [vmem:[#allocation14 + $0x20] sm:$0xff]
    %v7960 = vld [vmem:[#allocation14 + $0x28] sm:$0xff]
    %v7961 = vld [vmem:[#allocation14 + $0x30] sm:$0xff]
    %v7962 = vld [vmem:[#allocation14 + $0x38] sm:$0xff]
    %v7963 = vld [vmem:[#allocation14 + $0x40] sm:$0xff]
    %v7964 = vld [vmem:[#allocation14 + $0x48] sm:$0xff]
    %v7965 = vld [vmem:[#allocation14 + $0x50] sm:$0xff]
    %v7966 = vld [vmem:[#allocation14 + $0x58] sm:$0xff]
    %v7967 = vld [vmem:[#allocation14 + $0x60] sm:$0xff]
    %v7968 = vld [vmem:[#allocation14 + $0x68] sm:$0xff]
    %v7969 = vld [vmem:[#allocation14 + $0x70] sm:$0xff]
    %v7970 = vld [vmem:[#allocation14 + $0x78] sm:$0xff]
    %v7971 = vld [vmem:[#allocation14 + $0x80] sm:$0xff]
    %v7972 = vld [vmem:[#allocation14 + $0x88] sm:$0xff]
    %v7973 = vld [vmem:[#allocation14 + $0x90] sm:$0xff]
    %v7974 = vld [vmem:[#allocation14 + $0x98] sm:$0xff]
    %v7975 = vld [vmem:[#allocation14 + $0xa0] sm:$0xff]
    %v7976 = vld [vmem:[#allocation14 + $0xa8] sm:$0xff]
    %v7977 = vld [vmem:[#allocation14 + $0xb0] sm:$0xff]
    %v7978 = vld [vmem:[#allocation14 + $0xb8] sm:$0xff]
    %v7979 = vld [vmem:[#allocation14 + $0xc0] sm:$0xff]
    %v7980 = vld [vmem:[#allocation14 + $0xc8] sm:$0xff]
    %v7981 = vld [vmem:[#allocation14 + $0xd0] sm:$0xff]
    %v7982 = vld [vmem:[#allocation14 + $0xd8] sm:$0xff]
    %v7983 = vld [vmem:[#allocation14 + $0xe0] sm:$0xff]
    %v7984 = vld [vmem:[#allocation14 + $0xe8] sm:$0xff]
    %v7985 = vld [vmem:[#allocation14 + $0xf0] sm:$0xff]
    %v7986 = vld [vmem:[#allocation14 + $0xf8] sm:$0xff]
    %v7987 = vld [vmem:[#allocation14 + $0x100] sm:$0xff]
    %v7988 = vld [vmem:[#allocation14 + $0x108] sm:$0xff]
    %v7989 = vld [vmem:[#allocation14 + $0x110] sm:$0xff]
    %v7990 = vld [vmem:[#allocation14 + $0x118] sm:$0xff]
    %v7991 = vld [vmem:[#allocation14 + $0x120] sm:$0xff]
    %v7992 = vld [vmem:[#allocation14 + $0x128] sm:$0xff]
    %v7993 = vld [vmem:[#allocation14 + $0x130] sm:$0xff]
    %v7994 = vld [vmem:[#allocation14 + $0x138] sm:$0xff]
    %v7995 = vld [vmem:[#allocation14 + $0x140] sm:$0xff]
    %v7996 = vld [vmem:[#allocation14 + $0x148] sm:$0xff]
    %v7997 = vld [vmem:[#allocation14 + $0x150] sm:$0xff]
    %v7998 = vld [vmem:[#allocation14 + $0x158] sm:$0xff]
    %v7999 = vld [vmem:[#allocation14 + $0x160] sm:$0xff]
    %v8000 = vld [vmem:[#allocation14 + $0x168] sm:$0xff]
    %v8001 = vld [vmem:[#allocation14 + $0x170] sm:$0xff]
    %v8002 = vld [vmem:[#allocation14 + $0x178] sm:$0xff]
    %v8003 = vld [vmem:[#allocation14 + $0x180] sm:$0xff]
    %v8004 = vld [vmem:[#allocation14 + $0x188] sm:$0xff]
    %v8005 = vld [vmem:[#allocation14 + $0x190] sm:$0xff]
    %v8006 = vld [vmem:[#allocation14 + $0x198] sm:$0xff]
    %v8007 = vld [vmem:[#allocation14 + $0x1a0] sm:$0xff]
    %v8008 = vld [vmem:[#allocation14 + $0x1a8] sm:$0xff]
    %v8009 = vld [vmem:[#allocation14 + $0x1b0] sm:$0xff]
    %v8010 = vld [vmem:[#allocation14 + $0x1b8] sm:$0xff]
    %v8011 = vld [vmem:[#allocation14 + $0x1c0] sm:$0xff]
    %v8012 = vld [vmem:[#allocation14 + $0x1c8] sm:$0xff]
    %v8013 = vld [vmem:[#allocation14 + $0x1d0] sm:$0xff]
    %v8014 = vld [vmem:[#allocation14 + $0x1d8] sm:$0xff]
    %v8015 = vld [vmem:[#allocation14 + $0x1e0] sm:$0xff]
    %v8016 = vld [vmem:[#allocation14 + $0x1e8] sm:$0xff]
    %v8017 = vld [vmem:[#allocation14 + $0x1f0] sm:$0xff]
    %v8018 = vld [vmem:[#allocation14 + $0x1f8] sm:$0xff]
    %v8019 = vld [vmem:[#allocation14 + $0x200] sm:$0xff]
    %v8020 = vld [vmem:[#allocation14 + $0x208] sm:$0xff]
    %v8021 = vld [vmem:[#allocation14 + $0x210] sm:$0xff]
    %v8022 = vld [vmem:[#allocation14 + $0x218] sm:$0xff]
    %v8023 = vld [vmem:[#allocation14 + $0x220] sm:$0xff]
    %v8024 = vld [vmem:[#allocation14 + $0x228] sm:$0xff]
    %v8025 = vld [vmem:[#allocation14 + $0x230] sm:$0xff]
    %v8026 = vld [vmem:[#allocation14 + $0x238] sm:$0xff]
    %v8027 = vld [vmem:[#allocation14 + $0x240] sm:$0xff]
    %v8028 = vld [vmem:[#allocation14 + $0x248] sm:$0xff]
    %v8029 = vld [vmem:[#allocation14 + $0x250] sm:$0xff]
    %v8030 = vld [vmem:[#allocation14 + $0x258] sm:$0xff]
    %v8031 = vld [vmem:[#allocation14 + $0x260] sm:$0xff]
    %v8032 = vld [vmem:[#allocation14 + $0x268] sm:$0xff]
    %v8033 = vld [vmem:[#allocation14 + $0x270] sm:$0xff]
    %v8034 = vld [vmem:[#allocation14 + $0x278] sm:$0xff]
    %v8035 = vld [vmem:[#allocation14 + $0x280] sm:$0xff]
    %v8036 = vld [vmem:[#allocation14 + $0x288] sm:$0xff]
    %v8037 = vld [vmem:[#allocation14 + $0x290] sm:$0xff]
    %v8038 = vld [vmem:[#allocation14 + $0x298] sm:$0xff]
    %v8039 = vld [vmem:[#allocation14 + $0x2a0] sm:$0xff]
    %v8040 = vld [vmem:[#allocation14 + $0x2a8] sm:$0xff]
    %v8041 = vld [vmem:[#allocation14 + $0x2b0] sm:$0xff]
    %v8042 = vld [vmem:[#allocation14 + $0x2b8] sm:$0xff]
    %v8043 = vld [vmem:[#allocation14 + $0x2c0] sm:$0xff]
    %v8044 = vld [vmem:[#allocation14 + $0x2c8] sm:$0xff]
    %v8045 = vld [vmem:[#allocation14 + $0x2d0] sm:$0xff]
    %v8046 = vld [vmem:[#allocation14 + $0x2d8] sm:$0xff]
    %v8047 = vld [vmem:[#allocation14 + $0x2e0] sm:$0xff]
    %v8048 = vld [vmem:[#allocation14 + $0x2e8] sm:$0xff]
    %v8049 = vld [vmem:[#allocation14 + $0x2f0] sm:$0xff]
    %v8050 = vld [vmem:[#allocation14 + $0x2f8] sm:$0xff]
    %v8051 = vld [vmem:[#allocation14 + $0x300] sm:$0xff]
    %v8052 = vld [vmem:[#allocation14 + $0x308] sm:$0xff]
    %v8053 = vld [vmem:[#allocation14 + $0x310] sm:$0xff]
    %v8054 = vld [vmem:[#allocation14 + $0x318] sm:$0xff]
    %v8055 = vld [vmem:[#allocation14 + $0x320] sm:$0xff]
    %v8056 = vld [vmem:[#allocation14 + $0x328] sm:$0xff]
    %v8057 = vld [vmem:[#allocation14 + $0x330] sm:$0xff]
    %v8058 = vld [vmem:[#allocation14 + $0x338] sm:$0xff]
    %v8059 = vld [vmem:[#allocation14 + $0x340] sm:$0xff]
    %v8060 = vld [vmem:[#allocation14 + $0x348] sm:$0xff]
    %v8061 = vld [vmem:[#allocation14 + $0x350] sm:$0xff]
    %v8062 = vld [vmem:[#allocation14 + $0x358] sm:$0xff]
    %v8063 = vld [vmem:[#allocation14 + $0x360] sm:$0xff]
    %v8064 = vld [vmem:[#allocation14 + $0x368] sm:$0xff]
    %v8065 = vld [vmem:[#allocation14 + $0x370] sm:$0xff]
    %v8066 = vld [vmem:[#allocation14 + $0x378] sm:$0xff]
    %v8067 = vld [vmem:[#allocation14 + $0x380] sm:$0xff]
    %v8068 = vld [vmem:[#allocation14 + $0x388] sm:$0xff]
    %v8069 = vld [vmem:[#allocation14 + $0x390] sm:$0xff]
    %v8070 = vld [vmem:[#allocation14 + $0x398] sm:$0xff]
    %v8071 = vld [vmem:[#allocation14 + $0x3a0] sm:$0xff]
    %v8072 = vld [vmem:[#allocation14 + $0x3a8] sm:$0xff]
    %v8073 = vld [vmem:[#allocation14 + $0x3b0] sm:$0xff]
    %v8074 = vld [vmem:[#allocation14 + $0x3b8] sm:$0xff]
    %v8075 = vld [vmem:[#allocation14 + $0x3c0] sm:$0xff]
    %v8076 = vld [vmem:[#allocation14 + $0x3c8] sm:$0xff]
    %v8077 = vld [vmem:[#allocation14 + $0x3d0] sm:$0xff]
    %v8078 = vld [vmem:[#allocation14 + $0x3d8] sm:$0xff]
    %v8079 = vld [vmem:[#allocation14 + $0x3e0] sm:$0xff]
    %v8080 = vld [vmem:[#allocation14 + $0x3e8] sm:$0xff]
    %v8081 = vld [vmem:[#allocation14 + $0x3f0] sm:$0xff]
    %v8082 = vld [vmem:[#allocation14 + $0x3f8] sm:$0xff]
    %v8083 = vld [vmem:[#allocation16] sm:$0xf]
    %v8085 = vlaneseq
    %v8086 = vshrl.u32 %v8085, 7
    %v8087 = vsub.s32 0, %v8086
    %v8088 = vrot.slane %v8083, %v8087
    %v8089 = vlaneseq
    %v8090 = vshrl.u32 %v8089, 7
    %v8091 = vsub.s32 1, %v8090
    %v8092 = vrot.slane %v8083, %v8091
    %v8093 = vlaneseq
    %v8094 = vshrl.u32 %v8093, 7
    %v8095 = vsub.s32 2, %v8094
    %v8096 = vrot.slane %v8083, %v8095
    %v8097 = vlaneseq
    %v8098 = vshrl.u32 %v8097, 7
    %v8099 = vsub.s32 3, %v8098
    %v8100 = vrot.slane %v8083, %v8099
    %v8233 = vunpack.c.l.b16 %v7955
    %v8234 = vunpack.c.h.b16 %v7955
    %v8235 = vunpack.c.l.b16 %v7956
    %v8236 = vunpack.c.h.b16 %v7956
    %v8237 = vunpack.c.l.b16 %v7957
    %v8238 = vunpack.c.h.b16 %v7957
    %v8239 = vunpack.c.l.b16 %v7958
    %v8240 = vunpack.c.h.b16 %v7958
    %v8241 = vunpack.c.l.b16 %v7959
    %v8242 = vunpack.c.h.b16 %v7959
    %v8243 = vunpack.c.l.b16 %v7960
    %v8244 = vunpack.c.h.b16 %v7960
    %v8245 = vunpack.c.l.b16 %v7961
    %v8246 = vunpack.c.h.b16 %v7961
    %v8247 = vunpack.c.l.b16 %v7962
    %v8248 = vunpack.c.h.b16 %v7962
    %v8249 = vunpack.c.l.b16 %v7963
    %v8250 = vunpack.c.h.b16 %v7963
    %v8251 = vunpack.c.l.b16 %v7964
    %v8252 = vunpack.c.h.b16 %v7964
    %v8253 = vunpack.c.l.b16 %v7965
    %v8254 = vunpack.c.h.b16 %v7965
    %v8255 = vunpack.c.l.b16 %v7966
    %v8256 = vunpack.c.h.b16 %v7966
    %v8257 = vunpack.c.l.b16 %v7967
    %v8258 = vunpack.c.h.b16 %v7967
    %v8259 = vunpack.c.l.b16 %v7968
    %v8260 = vunpack.c.h.b16 %v7968
    %v8261 = vunpack.c.l.b16 %v7969
    %v8262 = vunpack.c.h.b16 %v7969
    %v8263 = vunpack.c.l.b16 %v7970
    %v8264 = vunpack.c.h.b16 %v7970
    %v8265 = vunpack.c.l.b16 %v7971
    %v8266 = vunpack.c.h.b16 %v7971
    %v8267 = vunpack.c.l.b16 %v7972
    %v8268 = vunpack.c.h.b16 %v7972
    %v8269 = vunpack.c.l.b16 %v7973
    %v8270 = vunpack.c.h.b16 %v7973
    %v8271 = vunpack.c.l.b16 %v7974
    %v8272 = vunpack.c.h.b16 %v7974
    %v8273 = vunpack.c.l.b16 %v7975
    %v8274 = vunpack.c.h.b16 %v7975
    %v8275 = vunpack.c.l.b16 %v7976
    %v8276 = vunpack.c.h.b16 %v7976
    %v8277 = vunpack.c.l.b16 %v7977
    %v8278 = vunpack.c.h.b16 %v7977
    %v8279 = vunpack.c.l.b16 %v7978
    %v8280 = vunpack.c.h.b16 %v7978
    %v8281 = vunpack.c.l.b16 %v7979
    %v8282 = vunpack.c.h.b16 %v7979
    %v8283 = vunpack.c.l.b16 %v7980
    %v8284 = vunpack.c.h.b16 %v7980
    %v8285 = vunpack.c.l.b16 %v7981
    %v8286 = vunpack.c.h.b16 %v7981
    %v8287 = vunpack.c.l.b16 %v7982
    %v8288 = vunpack.c.h.b16 %v7982
    %v8289 = vunpack.c.l.b16 %v7983
    %v8290 = vunpack.c.h.b16 %v7983
    %v8291 = vunpack.c.l.b16 %v7984
    %v8292 = vunpack.c.h.b16 %v7984
    %v8293 = vunpack.c.l.b16 %v7985
    %v8294 = vunpack.c.h.b16 %v7985
    %v8295 = vunpack.c.l.b16 %v7986
    %v8296 = vunpack.c.h.b16 %v7986
    %v8297 = vunpack.c.l.b16 %v7987
    %v8298 = vunpack.c.h.b16 %v7987
    %v8299 = vunpack.c.l.b16 %v7988
    %v8300 = vunpack.c.h.b16 %v7988
    %v8301 = vunpack.c.l.b16 %v7989
    %v8302 = vunpack.c.h.b16 %v7989
    %v8303 = vunpack.c.l.b16 %v7990
    %v8304 = vunpack.c.h.b16 %v7990
    %v8305 = vunpack.c.l.b16 %v7991
    %v8306 = vunpack.c.h.b16 %v7991
    %v8307 = vunpack.c.l.b16 %v7992
    %v8308 = vunpack.c.h.b16 %v7992
    %v8309 = vunpack.c.l.b16 %v7993
    %v8310 = vunpack.c.h.b16 %v7993
    %v8311 = vunpack.c.l.b16 %v7994
    %v8312 = vunpack.c.h.b16 %v7994
    %v8313 = vunpack.c.l.b16 %v7995
    %v8314 = vunpack.c.h.b16 %v7995
    %v8315 = vunpack.c.l.b16 %v7996
    %v8316 = vunpack.c.h.b16 %v7996
    %v8317 = vunpack.c.l.b16 %v7997
    %v8318 = vunpack.c.h.b16 %v7997
    %v8319 = vunpack.c.l.b16 %v7998
    %v8320 = vunpack.c.h.b16 %v7998
    %v8321 = vunpack.c.l.b16 %v7999
    %v8322 = vunpack.c.h.b16 %v7999
    %v8323 = vunpack.c.l.b16 %v8000
    %v8324 = vunpack.c.h.b16 %v8000
    %v8325 = vunpack.c.l.b16 %v8001
    %v8326 = vunpack.c.h.b16 %v8001
    %v8327 = vunpack.c.l.b16 %v8002
    %v8328 = vunpack.c.h.b16 %v8002
    %v8329 = vunpack.c.l.b16 %v8003
    %v8330 = vunpack.c.h.b16 %v8003
    %v8331 = vunpack.c.l.b16 %v8004
    %v8332 = vunpack.c.h.b16 %v8004
    %v8333 = vunpack.c.l.b16 %v8005
    %v8334 = vunpack.c.h.b16 %v8005
    %v8335 = vunpack.c.l.b16 %v8006
    %v8336 = vunpack.c.h.b16 %v8006
    %v8337 = vunpack.c.l.b16 %v8007
    %v8338 = vunpack.c.h.b16 %v8007
    %v8339 = vunpack.c.l.b16 %v8008
    %v8340 = vunpack.c.h.b16 %v8008
    %v8341 = vunpack.c.l.b16 %v8009
    %v8342 = vunpack.c.h.b16 %v8009
    %v8343 = vunpack.c.l.b16 %v8010
    %v8344 = vunpack.c.h.b16 %v8010
    %v8345 = vunpack.c.l.b16 %v8011
    %v8346 = vunpack.c.h.b16 %v8011
    %v8347 = vunpack.c.l.b16 %v8012
    %v8348 = vunpack.c.h.b16 %v8012
    %v8349 = vunpack.c.l.b16 %v8013
    %v8350 = vunpack.c.h.b16 %v8013
    %v8351 = vunpack.c.l.b16 %v8014
    %v8352 = vunpack.c.h.b16 %v8014
    %v8353 = vunpack.c.l.b16 %v8015
    %v8354 = vunpack.c.h.b16 %v8015
    %v8355 = vunpack.c.l.b16 %v8016
    %v8356 = vunpack.c.h.b16 %v8016
    %v8357 = vunpack.c.l.b16 %v8017
    %v8358 = vunpack.c.h.b16 %v8017
    %v8359 = vunpack.c.l.b16 %v8018
    %v8360 = vunpack.c.h.b16 %v8018
    %v8361 = vunpack.c.l.b16 %v8019
    %v8362 = vunpack.c.h.b16 %v8019
    %v8363 = vunpack.c.l.b16 %v8020
    %v8364 = vunpack.c.h.b16 %v8020
    %v8365 = vunpack.c.l.b16 %v8021
    %v8366 = vunpack.c.h.b16 %v8021
    %v8367 = vunpack.c.l.b16 %v8022
    %v8368 = vunpack.c.h.b16 %v8022
    %v8369 = vunpack.c.l.b16 %v8023
    %v8370 = vunpack.c.h.b16 %v8023
    %v8371 = vunpack.c.l.b16 %v8024
    %v8372 = vunpack.c.h.b16 %v8024
    %v8373 = vunpack.c.l.b16 %v8025
    %v8374 = vunpack.c.h.b16 %v8025
    %v8375 = vunpack.c.l.b16 %v8026
    %v8376 = vunpack.c.h.b16 %v8026
    %v8377 = vunpack.c.l.b16 %v8027
    %v8378 = vunpack.c.h.b16 %v8027
    %v8379 = vunpack.c.l.b16 %v8028
    %v8380 = vunpack.c.h.b16 %v8028
    %v8381 = vunpack.c.l.b16 %v8029
    %v8382 = vunpack.c.h.b16 %v8029
    %v8383 = vunpack.c.l.b16 %v8030
    %v8384 = vunpack.c.h.b16 %v8030
    %v8385 = vunpack.c.l.b16 %v8031
    %v8386 = vunpack.c.h.b16 %v8031
    %v8387 = vunpack.c.l.b16 %v8032
    %v8388 = vunpack.c.h.b16 %v8032
    %v8389 = vunpack.c.l.b16 %v8033
    %v8390 = vunpack.c.h.b16 %v8033
    %v8391 = vunpack.c.l.b16 %v8034
    %v8392 = vunpack.c.h.b16 %v8034
    %v8393 = vunpack.c.l.b16 %v8035
    %v8394 = vunpack.c.h.b16 %v8035
    %v8395 = vunpack.c.l.b16 %v8036
    %v8396 = vunpack.c.h.b16 %v8036
    %v8397 = vunpack.c.l.b16 %v8037
    %v8398 = vunpack.c.h.b16 %v8037
    %v8399 = vunpack.c.l.b16 %v8038
    %v8400 = vunpack.c.h.b16 %v8038
    %v8401 = vunpack.c.l.b16 %v8039
    %v8402 = vunpack.c.h.b16 %v8039
    %v8403 = vunpack.c.l.b16 %v8040
    %v8404 = vunpack.c.h.b16 %v8040
    %v8405 = vunpack.c.l.b16 %v8041
    %v8406 = vunpack.c.h.b16 %v8041
    %v8407 = vunpack.c.l.b16 %v8042
    %v8408 = vunpack.c.h.b16 %v8042
    %v8409 = vunpack.c.l.b16 %v8043
    %v8410 = vunpack.c.h.b16 %v8043
    %v8411 = vunpack.c.l.b16 %v8044
    %v8412 = vunpack.c.h.b16 %v8044
    %v8413 = vunpack.c.l.b16 %v8045
    %v8414 = vunpack.c.h.b16 %v8045
    %v8415 = vunpack.c.l.b16 %v8046
    %v8416 = vunpack.c.h.b16 %v8046
    %v8417 = vunpack.c.l.b16 %v8047
    %v8418 = vunpack.c.h.b16 %v8047
    %v8419 = vunpack.c.l.b16 %v8048
    %v8420 = vunpack.c.h.b16 %v8048
    %v8421 = vunpack.c.l.b16 %v8049
    %v8422 = vunpack.c.h.b16 %v8049
    %v8423 = vunpack.c.l.b16 %v8050
    %v8424 = vunpack.c.h.b16 %v8050
    %v8425 = vunpack.c.l.b16 %v8051
    %v8426 = vunpack.c.h.b16 %v8051
    %v8427 = vunpack.c.l.b16 %v8052
    %v8428 = vunpack.c.h.b16 %v8052
    %v8429 = vunpack.c.l.b16 %v8053
    %v8430 = vunpack.c.h.b16 %v8053
    %v8431 = vunpack.c.l.b16 %v8054
    %v8432 = vunpack.c.h.b16 %v8054
    %v8433 = vunpack.c.l.b16 %v8055
    %v8434 = vunpack.c.h.b16 %v8055
    %v8435 = vunpack.c.l.b16 %v8056
    %v8436 = vunpack.c.h.b16 %v8056
    %v8437 = vunpack.c.l.b16 %v8057
    %v8438 = vunpack.c.h.b16 %v8057
    %v8439 = vunpack.c.l.b16 %v8058
    %v8440 = vunpack.c.h.b16 %v8058
    %v8441 = vunpack.c.l.b16 %v8059
    %v8442 = vunpack.c.h.b16 %v8059
    %v8443 = vunpack.c.l.b16 %v8060
    %v8444 = vunpack.c.h.b16 %v8060
    %v8445 = vunpack.c.l.b16 %v8061
    %v8446 = vunpack.c.h.b16 %v8061
    %v8447 = vunpack.c.l.b16 %v8062
    %v8448 = vunpack.c.h.b16 %v8062
    %v8449 = vunpack.c.l.b16 %v8063
    %v8450 = vunpack.c.h.b16 %v8063
    %v8451 = vunpack.c.l.b16 %v8064
    %v8452 = vunpack.c.h.b16 %v8064
    %v8453 = vunpack.c.l.b16 %v8065
    %v8454 = vunpack.c.h.b16 %v8065
    %v8455 = vunpack.c.l.b16 %v8066
    %v8456 = vunpack.c.h.b16 %v8066
    %v8457 = vunpack.c.l.b16 %v8067
    %v8458 = vunpack.c.h.b16 %v8067
    %v8459 = vunpack.c.l.b16 %v8068
    %v8460 = vunpack.c.h.b16 %v8068
    %v8461 = vunpack.c.l.b16 %v8069
    %v8462 = vunpack.c.h.b16 %v8069
    %v8463 = vunpack.c.l.b16 %v8070
    %v8464 = vunpack.c.h.b16 %v8070
    %v8465 = vunpack.c.l.b16 %v8071
    %v8466 = vunpack.c.h.b16 %v8071
    %v8467 = vunpack.c.l.b16 %v8072
    %v8468 = vunpack.c.h.b16 %v8072
    %v8469 = vunpack.c.l.b16 %v8073
    %v8470 = vunpack.c.h.b16 %v8073
    %v8471 = vunpack.c.l.b16 %v8074
    %v8472 = vunpack.c.h.b16 %v8074
    %v8473 = vunpack.c.l.b16 %v8075
    %v8474 = vunpack.c.h.b16 %v8075
    %v8475 = vunpack.c.l.b16 %v8076
    %v8476 = vunpack.c.h.b16 %v8076
    %v8477 = vunpack.c.l.b16 %v8077
    %v8478 = vunpack.c.h.b16 %v8077
    %v8479 = vunpack.c.l.b16 %v8078
    %v8480 = vunpack.c.h.b16 %v8078
    %v8481 = vunpack.c.l.b16 %v8079
    %v8482 = vunpack.c.h.b16 %v8079
    %v8483 = vunpack.c.l.b16 %v8080
    %v8484 = vunpack.c.h.b16 %v8080
    %v8485 = vunpack.c.l.b16 %v8081
    %v8486 = vunpack.c.h.b16 %v8081
    %v8487 = vunpack.c.l.b16 %v8082
    %v8488 = vunpack.c.h.b16 %v8082
    %v8489 = vpack.c.b16 %v8237, %v8233
    %v8490 = vpack.c.b16 %v8238, %v8234
    %v8491 = vpack.c.b16 %v8239, %v8235
    %v8492 = vpack.c.b16 %v8240, %v8236
    %v8493 = vpack.c.b16 %v8245, %v8241
    %v8494 = vpack.c.b16 %v8246, %v8242
    %v8495 = vpack.c.b16 %v8247, %v8243
    %v8496 = vpack.c.b16 %v8248, %v8244
    %v8497 = vpack.c.b16 %v8253, %v8249
    %v8498 = vpack.c.b16 %v8254, %v8250
    %v8499 = vpack.c.b16 %v8255, %v8251
    %v8500 = vpack.c.b16 %v8256, %v8252
    %v8501 = vpack.c.b16 %v8261, %v8257
    %v8502 = vpack.c.b16 %v8262, %v8258
    %v8503 = vpack.c.b16 %v8263, %v8259
    %v8504 = vpack.c.b16 %v8264, %v8260
    %v8505 = vpack.c.b16 %v8269, %v8265
    %v8506 = vpack.c.b16 %v8270, %v8266
    %v8507 = vpack.c.b16 %v8271, %v8267
    %v8508 = vpack.c.b16 %v8272, %v8268
    %v8509 = vpack.c.b16 %v8277, %v8273
    %v8510 = vpack.c.b16 %v8278, %v8274
    %v8511 = vpack.c.b16 %v8279, %v8275
    %v8512 = vpack.c.b16 %v8280, %v8276
    %v8513 = vpack.c.b16 %v8285, %v8281
    %v8514 = vpack.c.b16 %v8286, %v8282
    %v8515 = vpack.c.b16 %v8287, %v8283
    %v8516 = vpack.c.b16 %v8288, %v8284
    %v8517 = vpack.c.b16 %v8293, %v8289
    %v8518 = vpack.c.b16 %v8294, %v8290
    %v8519 = vpack.c.b16 %v8295, %v8291
    %v8520 = vpack.c.b16 %v8296, %v8292
    %v8521 = vpack.c.b16 %v8301, %v8297
    %v8522 = vpack.c.b16 %v8302, %v8298
    %v8523 = vpack.c.b16 %v8303, %v8299
    %v8524 = vpack.c.b16 %v8304, %v8300
    %v8525 = vpack.c.b16 %v8309, %v8305
    %v8526 = vpack.c.b16 %v8310, %v8306
    %v8527 = vpack.c.b16 %v8311, %v8307
    %v8528 = vpack.c.b16 %v8312, %v8308
    %v8529 = vpack.c.b16 %v8317, %v8313
    %v8530 = vpack.c.b16 %v8318, %v8314
    %v8531 = vpack.c.b16 %v8319, %v8315
    %v8532 = vpack.c.b16 %v8320, %v8316
    %v8533 = vpack.c.b16 %v8325, %v8321
    %v8534 = vpack.c.b16 %v8326, %v8322
    %v8535 = vpack.c.b16 %v8327, %v8323
    %v8536 = vpack.c.b16 %v8328, %v8324
    %v8537 = vpack.c.b16 %v8333, %v8329
    %v8538 = vpack.c.b16 %v8334, %v8330
    %v8539 = vpack.c.b16 %v8335, %v8331
    %v8540 = vpack.c.b16 %v8336, %v8332
    %v8541 = vpack.c.b16 %v8341, %v8337
    %v8542 = vpack.c.b16 %v8342, %v8338
    %v8543 = vpack.c.b16 %v8343, %v8339
    %v8544 = vpack.c.b16 %v8344, %v8340
    %v8545 = vpack.c.b16 %v8349, %v8345
    %v8546 = vpack.c.b16 %v8350, %v8346
    %v8547 = vpack.c.b16 %v8351, %v8347
    %v8548 = vpack.c.b16 %v8352, %v8348
    %v8549 = vpack.c.b16 %v8357, %v8353
    %v8550 = vpack.c.b16 %v8358, %v8354
    %v8551 = vpack.c.b16 %v8359, %v8355
    %v8552 = vpack.c.b16 %v8360, %v8356
    %v8553 = vpack.c.b16 %v8365, %v8361
    %v8554 = vpack.c.b16 %v8366, %v8362
    %v8555 = vpack.c.b16 %v8367, %v8363
    %v8556 = vpack.c.b16 %v8368, %v8364
    %v8557 = vpack.c.b16 %v8373, %v8369
    %v8558 = vpack.c.b16 %v8374, %v8370
    %v8559 = vpack.c.b16 %v8375, %v8371
    %v8560 = vpack.c.b16 %v8376, %v8372
    %v8561 = vpack.c.b16 %v8381, %v8377
    %v8562 = vpack.c.b16 %v8382, %v8378
    %v8563 = vpack.c.b16 %v8383, %v8379
    %v8564 = vpack.c.b16 %v8384, %v8380
    %v8565 = vpack.c.b16 %v8389, %v8385
    %v8566 = vpack.c.b16 %v8390, %v8386
    %v8567 = vpack.c.b16 %v8391, %v8387
    %v8568 = vpack.c.b16 %v8392, %v8388
    %v8569 = vpack.c.b16 %v8397, %v8393
    %v8570 = vpack.c.b16 %v8398, %v8394
    %v8571 = vpack.c.b16 %v8399, %v8395
    %v8572 = vpack.c.b16 %v8400, %v8396
    %v8573 = vpack.c.b16 %v8405, %v8401
    %v8574 = vpack.c.b16 %v8406, %v8402
    %v8575 = vpack.c.b16 %v8407, %v8403
    %v8576 = vpack.c.b16 %v8408, %v8404
    %v8577 = vpack.c.b16 %v8413, %v8409
    %v8578 = vpack.c.b16 %v8414, %v8410
    %v8579 = vpack.c.b16 %v8415, %v8411
    %v8580 = vpack.c.b16 %v8416, %v8412
    %v8581 = vpack.c.b16 %v8421, %v8417
    %v8582 = vpack.c.b16 %v8422, %v8418
    %v8583 = vpack.c.b16 %v8423, %v8419
    %v8584 = vpack.c.b16 %v8424, %v8420
    %v8585 = vpack.c.b16 %v8429, %v8425
    %v8586 = vpack.c.b16 %v8430, %v8426
    %v8587 = vpack.c.b16 %v8431, %v8427
    %v8588 = vpack.c.b16 %v8432, %v8428
    %v8589 = vpack.c.b16 %v8437, %v8433
    %v8590 = vpack.c.b16 %v8438, %v8434
    %v8591 = vpack.c.b16 %v8439, %v8435
    %v8592 = vpack.c.b16 %v8440, %v8436
    %v8593 = vpack.c.b16 %v8445, %v8441
    %v8594 = vpack.c.b16 %v8446, %v8442
    %v8595 = vpack.c.b16 %v8447, %v8443
    %v8596 = vpack.c.b16 %v8448, %v8444
    %v8597 = vpack.c.b16 %v8453, %v8449
    %v8598 = vpack.c.b16 %v8454, %v8450
    %v8599 = vpack.c.b16 %v8455, %v8451
    %v8600 = vpack.c.b16 %v8456, %v8452
    %v8601 = vpack.c.b16 %v8461, %v8457
    %v8602 = vpack.c.b16 %v8462, %v8458
    %v8603 = vpack.c.b16 %v8463, %v8459
    %v8604 = vpack.c.b16 %v8464, %v8460
    %v8605 = vpack.c.b16 %v8469, %v8465
    %v8606 = vpack.c.b16 %v8470, %v8466
    %v8607 = vpack.c.b16 %v8471, %v8467
    %v8608 = vpack.c.b16 %v8472, %v8468
    %v8609 = vpack.c.b16 %v8477, %v8473
    %v8610 = vpack.c.b16 %v8478, %v8474
    %v8611 = vpack.c.b16 %v8479, %v8475
    %v8612 = vpack.c.b16 %v8480, %v8476
    %v8613 = vpack.c.b16 %v8485, %v8481
    %v8614 = vpack.c.b16 %v8486, %v8482
    %v8615 = vpack.c.b16 %v8487, %v8483
    %v8616 = vpack.c.b16 %v8488, %v8484
    %8745 = vmatprep.subr.bf16.mxu0 %v8518
    %8746 = vmatpush1.bf16.msra.mxu0 %v8517
    %8747 = vmatprep.subr.bf16.mxu0 %v8514
    %8748 = vmatpush1.bf16.msra.mxu0 %v8513
    %8749 = vmatprep.subr.bf16.mxu0 %v8510
    %8750 = vmatpush1.bf16.msra.mxu0 %v8509
    %8751 = vmatprep.subr.bf16.mxu0 %v8506
    %8752 = vmatpush1.bf16.msra.mxu0 %v8505
    %8753 = vmatprep.subr.bf16.mxu0 %v8502
    %8754 = vmatpush1.bf16.msra.mxu0 %v8501
    %8755 = vmatprep.subr.bf16.mxu0 %v8498
    %8756 = vmatpush1.bf16.msra.mxu0 %v8497
    %8757 = vmatprep.subr.bf16.mxu0 %v8494
    %8758 = vmatpush1.bf16.msra.mxu0 %v8493
    %8759 = vmatprep.subr.bf16.mxu0 %v8490
    %8760 = vmatpush1.bf16.msra.mxu0 %v8489
    %8761 = vmatprep.subr.bf16.mxu0 %v8550
    %8762 = vmatpush2.bf16.msra.mxu0 %v8549
    %8763 = vmatprep.subr.bf16.mxu0 %v8546
    %8764 = vmatpush2.bf16.msra.mxu0 %v8545
    %8765 = vmatprep.subr.bf16.mxu0 %v8542
    %8766 = vmatpush2.bf16.msra.mxu0 %v8541
    %8767 = vmatprep.subr.bf16.mxu0 %v8538
    %8768 = vmatpush2.bf16.msra.mxu0 %v8537
    %8769 = vmatprep.subr.bf16.mxu0 %v8534
    %8770 = vmatpush2.bf16.msra.mxu0 %v8533
    %8771 = vmatprep.subr.bf16.mxu0 %v8530
    %8772 = vmatpush2.bf16.msra.mxu0 %v8529
    %8773 = vmatprep.subr.bf16.mxu0 %v8526
    %8774 = vmatpush2.bf16.msra.mxu0 %v8525
    %8775 = vmatprep.subr.bf16.mxu0 %v8522
    %8776 = vmatpush2.bf16.msra.mxu0 %v8521
    %8777 = vmatprep.mubr.bf16.mxu0 %v7952
    %8778 = vmatmul.mubr.bf16.gmra.mxu0 %v7951
    %v8779 = vpop.f32.mrf.mxu0
    %v8780 = vadd.f32 %v8088, %v8779
    %v8781 = vpop.f32.mrf.mxu0
    %v8782 = vadd.f32 %v8092, %v8781
    %v8783 = vpop.f32.mrf.mxu0
    %v8784 = vpop.f32.mrf.mxu0
    %8785 = vdwg.mxu0
    %8786 = vmatprep.subr.bf16.mxu0 %v8582
    %8787 = vmatpush1.bf16.msra.mxu0 %v8581
    %8788 = vmatprep.subr.bf16.mxu0 %v8578
    %8789 = vmatpush1.bf16.msra.mxu0 %v8577
    %8790 = vmatprep.subr.bf16.mxu0 %v8574
    %8791 = vmatpush1.bf16.msra.mxu0 %v8573
    %8792 = vmatprep.subr.bf16.mxu0 %v8570
    %8793 = vmatpush1.bf16.msra.mxu0 %v8569
    %8794 = vmatprep.subr.bf16.mxu0 %v8566
    %8795 = vmatpush1.bf16.msra.mxu0 %v8565
    %8796 = vmatprep.subr.bf16.mxu0 %v8562
    %8797 = vmatpush1.bf16.msra.mxu0 %v8561
    %8798 = vmatprep.subr.bf16.mxu0 %v8558
    %8799 = vmatpush1.bf16.msra.mxu0 %v8557
    %8800 = vmatprep.subr.bf16.mxu0 %v8554
    %8801 = vmatpush1.bf16.msra.mxu0 %v8553
    %8802 = vmatprep.subr.bf16.mxu0 %v8614
    %8803 = vmatpush2.bf16.msra.mxu0 %v8613
    %8804 = vmatprep.subr.bf16.mxu0 %v8610
    %8805 = vmatpush2.bf16.msra.mxu0 %v8609
    %8806 = vmatprep.subr.bf16.mxu0 %v8606
    %8807 = vmatpush2.bf16.msra.mxu0 %v8605
    %8808 = vmatprep.subr.bf16.mxu0 %v8602
    %8809 = vmatpush2.bf16.msra.mxu0 %v8601
    %8810 = vmatprep.subr.bf16.mxu0 %v8598
    %8811 = vmatpush2.bf16.msra.mxu0 %v8597
    %8812 = vmatprep.subr.bf16.mxu0 %v8594
    %8813 = vmatpush2.bf16.msra.mxu0 %v8593
    %8814 = vmatprep.subr.bf16.mxu0 %v8590
    %8815 = vmatpush2.bf16.msra.mxu0 %v8589
    %8816 = vmatprep.subr.bf16.mxu0 %v8586
    %8817 = vmatpush2.bf16.msra.mxu0 %v8585
    %8818 = vmatprep.mubr.bf16.mxu0 %v7954
    %8819 = vmatmul.mubr.bf16.gmra.mxu0 %v7953
    %v8820 = vpop.f32.mrf.mxu0
    %v8821 = vadd.f32 %v8780, %v8820
    %v8822 = vpop.f32.mrf.mxu0
    %v8823 = vadd.f32 %v8782, %v8822
    %v8824 = vpop.f32.mrf.mxu0
    %v8825 = vpop.f32.mrf.mxu0
    %8826 = vdwg.mxu0
    %8827 = vmatprep.subr.bf16.mxu0 %v8520
    %8828 = vmatpush1.bf16.msra.mxu0 %v8519
    %8829 = vmatprep.subr.bf16.mxu0 %v8516
    %8830 = vmatpush1.bf16.msra.mxu0 %v8515
    %8831 = vmatprep.subr.bf16.mxu0 %v8512
    %8832 = vmatpush1.bf16.msra.mxu0 %v8511
    %8833 = vmatprep.subr.bf16.mxu0 %v8508
    %8834 = vmatpush1.bf16.msra.mxu0 %v8507
    %8835 = vmatprep.subr.bf16.mxu0 %v8504
    %8836 = vmatpush1.bf16.msra.mxu0 %v8503
    %8837 = vmatprep.subr.bf16.mxu0 %v8500
    %8838 = vmatpush1.bf16.msra.mxu0 %v8499
    %8839 = vmatprep.subr.bf16.mxu0 %v8496
    %8840 = vmatpush1.bf16.msra.mxu0 %v8495
    %8841 = vmatprep.subr.bf16.mxu0 %v8492
    %8842 = vmatpush1.bf16.msra.mxu0 %v8491
    %8843 = vmatprep.subr.bf16.mxu0 %v8552
    %8844 = vmatpush2.bf16.msra.mxu0 %v8551
    %8845 = vmatprep.subr.bf16.mxu0 %v8548
    %8846 = vmatpush2.bf16.msra.mxu0 %v8547
    %8847 = vmatprep.subr.bf16.mxu0 %v8544
    %8848 = vmatpush2.bf16.msra.mxu0 %v8543
    %8849 = vmatprep.subr.bf16.mxu0 %v8540
    %8850 = vmatpush2.bf16.msra.mxu0 %v8539
    %8851 = vmatprep.subr.bf16.mxu0 %v8536
    %8852 = vmatpush2.bf16.msra.mxu0 %v8535
    %8853 = vmatprep.subr.bf16.mxu0 %v8532
    %8854 = vmatpush2.bf16.msra.mxu0 %v8531
    %8855 = vmatprep.subr.bf16.mxu0 %v8528
    %8856 = vmatpush2.bf16.msra.mxu0 %v8527
    %8857 = vmatprep.subr.bf16.mxu0 %v8524
    %8858 = vmatpush2.bf16.msra.mxu0 %v8523
    %8859 = vmatprep.mubr.bf16.mxu0 %v7952
    %8860 = vmatmul.mubr.bf16.gmra.mxu0 %v7951
    %v8861 = vpop.f32.mrf.mxu0
    %v8862 = vadd.f32 %v8096, %v8861
    %v8863 = vpop.f32.mrf.mxu0
    %v8864 = vadd.f32 %v8100, %v8863
    %v8865 = vpop.f32.mrf.mxu0
    %v8866 = vpop.f32.mrf.mxu0
    %8867 = vdwg.mxu0
    %8868 = vmatprep.subr.bf16.mxu0 %v8584
    %8869 = vmatpush1.bf16.msra.mxu0 %v8583
    %8870 = vmatprep.subr.bf16.mxu0 %v8580
    %8871 = vmatpush1.bf16.msra.mxu0 %v8579
    %8872 = vmatprep.subr.bf16.mxu0 %v8576
    %8873 = vmatpush1.bf16.msra.mxu0 %v8575
    %8874 = vmatprep.subr.bf16.mxu0 %v8572
    %8875 = vmatpush1.bf16.msra.mxu0 %v8571
    %8876 = vmatprep.subr.bf16.mxu0 %v8568
    %8877 = vmatpush1.bf16.msra.mxu0 %v8567
    %8878 = vmatprep.subr.bf16.mxu0 %v8564
    %8879 = vmatpush1.bf16.msra.mxu0 %v8563
    %8880 = vmatprep.subr.bf16.mxu0 %v8560
    %8881 = vmatpush1.bf16.msra.mxu0 %v8559
    %8882 = vmatprep.subr.bf16.mxu0 %v8556
    %8883 = vmatpush1.bf16.msra.mxu0 %v8555
    %8884 = vmatprep.subr.bf16.mxu0 %v8616
    %8885 = vmatpush2.bf16.msra.mxu0 %v8615
    %8886 = vmatprep.subr.bf16.mxu0 %v8612
    %8887 = vmatpush2.bf16.msra.mxu0 %v8611
    %8888 = vmatprep.subr.bf16.mxu0 %v8608
    %8889 = vmatpush2.bf16.msra.mxu0 %v8607
    %8890 = vmatprep.subr.bf16.mxu0 %v8604
    %8891 = vmatpush2.bf16.msra.mxu0 %v8603
    %8892 = vmatprep.subr.bf16.mxu0 %v8600
    %8893 = vmatpush2.bf16.msra.mxu0 %v8599
    %8894 = vmatprep.subr.bf16.mxu0 %v8596
    %8895 = vmatpush2.bf16.msra.mxu0 %v8595
    %8896 = vmatprep.subr.bf16.mxu0 %v8592
    %8897 = vmatpush2.bf16.msra.mxu0 %v8591
    %8898 = vmatprep.subr.bf16.mxu0 %v8588
    %8899 = vmatpush2.bf16.msra.mxu0 %v8587
    %8900 = vmatprep.mubr.bf16.mxu0 %v7954
    %8901 = vmatmul.mubr.bf16.gmra.mxu0 %v7953
    %v8902 = vpop.f32.mrf.mxu0
    %v8903 = vadd.f32 %v8862, %v8902
    %v8904 = vpop.f32.mrf.mxu0
    %v8905 = vadd.f32 %v8864, %v8904
    %v8906 = vpop.f32.mrf.mxu0
    %v8907 = vpop.f32.mrf.mxu0
    %8908 = vdwg.mxu0
    %v8909 = vmax.f32 %v8821, 0.0
    %v8910 = vmax.f32 %v8823, 0.0
    %v8911 = vmax.f32 %v8903, 0.0
    %v8912 = vmax.f32 %v8905, 0.0
    %v8913 = vpack.c.bf16 %v8909, %v8909
    %v8914 = vpack.c.bf16 %v8910, %v8910
    %v8915 = vpack.c.bf16 %v8911, %v8911
    %v8916 = vpack.c.bf16 %v8912, %v8912
    %v8917 = vld [vmem:[#allocation17] sm:$0xff]
    %v8918 = vld [vmem:[#allocation17 + $0x8] sm:$0xf]
    %v8919 = vld [vmem:[#allocation17 + $0xc] sm:$0xff]
    %v8920 = vld [vmem:[#allocation17 + $0x14] sm:$0xf]
    %v8921 = vld [vmem:[#allocation17 + $0x18] sm:$0xff]
    %v8922 = vld [vmem:[#allocation17 + $0x20] sm:$0xf]
    %v8923 = vld [vmem:[#allocation17 + $0x24] sm:$0xff]
    %v8924 = vld [vmem:[#allocation17 + $0x2c] sm:$0xf]
    %v8925 = vld [vmem:[#allocation17 + $0x30] sm:$0xff]
    %v8926 = vld [vmem:[#allocation17 + $0x38] sm:$0xf]
    %v8927 = vld [vmem:[#allocation17 + $0x3c] sm:$0xff]
    %v8928 = vld [vmem:[#allocation17 + $0x44] sm:$0xf]
    %v8929 = vld [vmem:[#allocation17 + $0x48] sm:$0xff]
    %v8930 = vld [vmem:[#allocation17 + $0x50] sm:$0xf]
    %v8931 = vld [vmem:[#allocation17 + $0x54] sm:$0xff]
    %v8932 = vld [vmem:[#allocation17 + $0x5c] sm:$0xf]
    %v8933 = vld [vmem:[#allocation17 + $0x60] sm:$0xff]
    %v8934 = vld [vmem:[#allocation17 + $0x68] sm:$0xf]
    %v8935 = vld [vmem:[#allocation17 + $0x6c] sm:$0xff]
    %v8936 = vld [vmem:[#allocation17 + $0x74] sm:$0xf]
    %v8937 = vld [vmem:[#allocation17 + $0x78] sm:$0xff]
    %v8938 = vld [vmem:[#allocation17 + $0x80] sm:$0xf]
    %v8939 = vld [vmem:[#allocation17 + $0x84] sm:$0xff]
    %v8940 = vld [vmem:[#allocation17 + $0x8c] sm:$0xf]
    %v8941 = vld [vmem:[#allocation17 + $0x90] sm:$0xff]
    %v8942 = vld [vmem:[#allocation17 + $0x98] sm:$0xf]
    %v8943 = vld [vmem:[#allocation17 + $0x9c] sm:$0xff]
    %v8944 = vld [vmem:[#allocation17 + $0xa4] sm:$0xf]
    %v8945 = vld [vmem:[#allocation17 + $0xa8] sm:$0xff]
    %v8946 = vld [vmem:[#allocation17 + $0xb0] sm:$0xf]
    %v8947 = vld [vmem:[#allocation17 + $0xb4] sm:$0xff]
    %v8948 = vld [vmem:[#allocation17 + $0xbc] sm:$0xf]
    %v8949 = vld [vmem:[#allocation17 + $0xc0] sm:$0xff]
    %v8950 = vld [vmem:[#allocation17 + $0xc8] sm:$0xf]
    %v8951 = vld [vmem:[#allocation17 + $0xcc] sm:$0xff]
    %v8952 = vld [vmem:[#allocation17 + $0xd4] sm:$0xf]
    %v8953 = vld [vmem:[#allocation17 + $0xd8] sm:$0xff]
    %v8954 = vld [vmem:[#allocation17 + $0xe0] sm:$0xf]
    %v8955 = vld [vmem:[#allocation17 + $0xe4] sm:$0xff]
    %v8956 = vld [vmem:[#allocation17 + $0xec] sm:$0xf]
    %v8957 = vld [vmem:[#allocation17 + $0xf0] sm:$0xff]
    %v8958 = vld [vmem:[#allocation17 + $0xf8] sm:$0xf]
    %v8959 = vld [vmem:[#allocation17 + $0xfc] sm:$0xff]
    %v8960 = vld [vmem:[#allocation17 + $0x104] sm:$0xf]
    %v8961 = vld [vmem:[#allocation17 + $0x108] sm:$0xff]
    %v8962 = vld [vmem:[#allocation17 + $0x110] sm:$0xf]
    %v8963 = vld [vmem:[#allocation17 + $0x114] sm:$0xff]
    %v8964 = vld [vmem:[#allocation17 + $0x11c] sm:$0xf]
    %v8965 = vld [vmem:[#allocation17 + $0x120] sm:$0xff]
    %v8966 = vld [vmem:[#allocation17 + $0x128] sm:$0xf]
    %v8967 = vld [vmem:[#allocation17 + $0x12c] sm:$0xff]
    %v8968 = vld [vmem:[#allocation17 + $0x134] sm:$0xf]
    %v8969 = vld [vmem:[#allocation17 + $0x138] sm:$0xff]
    %v8970 = vld [vmem:[#allocation17 + $0x140] sm:$0xf]
    %v8971 = vld [vmem:[#allocation17 + $0x144] sm:$0xff]
    %v8972 = vld [vmem:[#allocation17 + $0x14c] sm:$0xf]
    %v8973 = vld [vmem:[#allocation17 + $0x150] sm:$0xff]
    %v8974 = vld [vmem:[#allocation17 + $0x158] sm:$0xf]
    %v8975 = vld [vmem:[#allocation17 + $0x15c] sm:$0xff]
    %v8976 = vld [vmem:[#allocation17 + $0x164] sm:$0xf]
    %v8977 = vld [vmem:[#allocation17 + $0x168] sm:$0xff]
    %v8978 = vld [vmem:[#allocation17 + $0x170] sm:$0xf]
    %v8979 = vld [vmem:[#allocation17 + $0x174] sm:$0xff]
    %v8980 = vld [vmem:[#allocation17 + $0x17c] sm:$0xf]
    %v8981 = vld [vmem:[#allocation17 + $0x180] sm:$0xff]
    %v8982 = vld [vmem:[#allocation17 + $0x188] sm:$0xf]
    %v8983 = vld [vmem:[#allocation17 + $0x18c] sm:$0xff]
    %v8984 = vld [vmem:[#allocation17 + $0x194] sm:$0xf]
    %v8985 = vld [vmem:[#allocation17 + $0x198] sm:$0xff]
    %v8986 = vld [vmem:[#allocation17 + $0x1a0] sm:$0xf]
    %v8987 = vld [vmem:[#allocation17 + $0x1a4] sm:$0xff]
    %v8988 = vld [vmem:[#allocation17 + $0x1ac] sm:$0xf]
    %v8989 = vld [vmem:[#allocation17 + $0x1b0] sm:$0xff]
    %v8990 = vld [vmem:[#allocation17 + $0x1b8] sm:$0xf]
    %v8991 = vld [vmem:[#allocation17 + $0x1bc] sm:$0xff]
    %v8992 = vld [vmem:[#allocation17 + $0x1c4] sm:$0xf]
    %v8993 = vld [vmem:[#allocation17 + $0x1c8] sm:$0xff]
    %v8994 = vld [vmem:[#allocation17 + $0x1d0] sm:$0xf]
    %v8995 = vld [vmem:[#allocation17 + $0x1d4] sm:$0xff]
    %v8996 = vld [vmem:[#allocation17 + $0x1dc] sm:$0xf]
    %v8997 = vld [vmem:[#allocation17 + $0x1e0] sm:$0xff]
    %v8998 = vld [vmem:[#allocation17 + $0x1e8] sm:$0xf]
    %v8999 = vld [vmem:[#allocation17 + $0x1ec] sm:$0xff]
    %v9000 = vld [vmem:[#allocation17 + $0x1f4] sm:$0xf]
    %v9001 = vld [vmem:[#allocation17 + $0x1f8] sm:$0xff]
    %v9002 = vld [vmem:[#allocation17 + $0x200] sm:$0xf]
    %v9003 = vld [vmem:[#allocation17 + $0x204] sm:$0xff]
    %v9004 = vld [vmem:[#allocation17 + $0x20c] sm:$0xf]
    %v9005 = vld [vmem:[#allocation17 + $0x210] sm:$0xff]
    %v9006 = vld [vmem:[#allocation17 + $0x218] sm:$0xf]
    %v9007 = vld [vmem:[#allocation17 + $0x21c] sm:$0xff]
    %v9008 = vld [vmem:[#allocation17 + $0x224] sm:$0xf]
    %v9009 = vld [vmem:[#allocation17 + $0x228] sm:$0xff]
    %v9010 = vld [vmem:[#allocation17 + $0x230] sm:$0xf]
    %v9011 = vld [vmem:[#allocation17 + $0x234] sm:$0xff]
    %v9012 = vld [vmem:[#allocation17 + $0x23c] sm:$0xf]
    %v9013 = vld [vmem:[#allocation17 + $0x240] sm:$0xff]
    %v9014 = vld [vmem:[#allocation17 + $0x248] sm:$0xf]
    %v9015 = vld [vmem:[#allocation17 + $0x24c] sm:$0xff]
    %v9016 = vld [vmem:[#allocation17 + $0x254] sm:$0xf]
    %v9017 = vld [vmem:[#allocation17 + $0x258] sm:$0xff]
    %v9018 = vld [vmem:[#allocation17 + $0x260] sm:$0xf]
    %v9019 = vld [vmem:[#allocation17 + $0x264] sm:$0xff]
    %v9020 = vld [vmem:[#allocation17 + $0x26c] sm:$0xf]
    %v9021 = vld [vmem:[#allocation17 + $0x270] sm:$0xff]
    %v9022 = vld [vmem:[#allocation17 + $0x278] sm:$0xf]
    %v9023 = vld [vmem:[#allocation17 + $0x27c] sm:$0xff]
    %v9024 = vld [vmem:[#allocation17 + $0x284] sm:$0xf]
    %v9025 = vld [vmem:[#allocation17 + $0x288] sm:$0xff]
    %v9026 = vld [vmem:[#allocation17 + $0x290] sm:$0xf]
    %v9027 = vld [vmem:[#allocation17 + $0x294] sm:$0xff]
    %v9028 = vld [vmem:[#allocation17 + $0x29c] sm:$0xf]
    %v9029 = vld [vmem:[#allocation17 + $0x2a0] sm:$0xff]
    %v9030 = vld [vmem:[#allocation17 + $0x2a8] sm:$0xf]
    %v9031 = vld [vmem:[#allocation17 + $0x2ac] sm:$0xff]
    %v9032 = vld [vmem:[#allocation17 + $0x2b4] sm:$0xf]
    %v9033 = vld [vmem:[#allocation17 + $0x2b8] sm:$0xff]
    %v9034 = vld [vmem:[#allocation17 + $0x2c0] sm:$0xf]
    %v9035 = vld [vmem:[#allocation17 + $0x2c4] sm:$0xff]
    %v9036 = vld [vmem:[#allocation17 + $0x2cc] sm:$0xf]
    %v9037 = vld [vmem:[#allocation17 + $0x2d0] sm:$0xff]
    %v9038 = vld [vmem:[#allocation17 + $0x2d8] sm:$0xf]
    %v9039 = vld [vmem:[#allocation17 + $0x2dc] sm:$0xff]
    %v9040 = vld [vmem:[#allocation17 + $0x2e4] sm:$0xf]
    %v9041 = vld [vmem:[#allocation17 + $0x2e8] sm:$0xff]
    %v9042 = vld [vmem:[#allocation17 + $0x2f0] sm:$0xf]
    %v9043 = vld [vmem:[#allocation17 + $0x2f4] sm:$0xff]
    %v9044 = vld [vmem:[#allocation17 + $0x2fc] sm:$0xf]
    %v9045 = vld [vmem:[#allocation19] sm:$0x7]
    %v9047 = vlaneseq
    %v9048 = vshrl.u32 %v9047, 7
    %v9049 = vsub.s32 0, %v9048
    %v9050 = vrot.slane %v9045, %v9049
    %v9051 = vlaneseq
    %v9052 = vshrl.u32 %v9051, 7
    %v9053 = vsub.s32 1, %v9052
    %v9054 = vrot.slane %v9045, %v9053
    %v9055 = vlaneseq
    %v9056 = vshrl.u32 %v9055, 7
    %v9057 = vsub.s32 2, %v9056
    %v9058 = vrot.slane %v9045, %v9057
    %v9190 = vunpack.c.l.b16 %v8917
    %v9191 = vunpack.c.h.b16 %v8917
    %v9192 = vunpack.c.l.b16 %v8918
    %v9193 = vunpack.c.l.b16 %v8919
    %v9194 = vunpack.c.h.b16 %v8919
    %v9195 = vunpack.c.l.b16 %v8920
    %v9196 = vunpack.c.l.b16 %v8921
    %v9197 = vunpack.c.h.b16 %v8921
    %v9198 = vunpack.c.l.b16 %v8922
    %v9199 = vunpack.c.l.b16 %v8923
    %v9200 = vunpack.c.h.b16 %v8923
    %v9201 = vunpack.c.l.b16 %v8924
    %v9202 = vunpack.c.l.b16 %v8925
    %v9203 = vunpack.c.h.b16 %v8925
    %v9204 = vunpack.c.l.b16 %v8926
    %v9205 = vunpack.c.l.b16 %v8927
    %v9206 = vunpack.c.h.b16 %v8927
    %v9207 = vunpack.c.l.b16 %v8928
    %v9208 = vunpack.c.l.b16 %v8929
    %v9209 = vunpack.c.h.b16 %v8929
    %v9210 = vunpack.c.l.b16 %v8930
    %v9211 = vunpack.c.l.b16 %v8931
    %v9212 = vunpack.c.h.b16 %v8931
    %v9213 = vunpack.c.l.b16 %v8932
    %v9214 = vunpack.c.l.b16 %v8933
    %v9215 = vunpack.c.h.b16 %v8933
    %v9216 = vunpack.c.l.b16 %v8934
    %v9217 = vunpack.c.l.b16 %v8935
    %v9218 = vunpack.c.h.b16 %v8935
    %v9219 = vunpack.c.l.b16 %v8936
    %v9220 = vunpack.c.l.b16 %v8937
    %v9221 = vunpack.c.h.b16 %v8937
    %v9222 = vunpack.c.l.b16 %v8938
    %v9223 = vunpack.c.l.b16 %v8939
    %v9224 = vunpack.c.h.b16 %v8939
    %v9225 = vunpack.c.l.b16 %v8940
    %v9226 = vunpack.c.l.b16 %v8941
    %v9227 = vunpack.c.h.b16 %v8941
    %v9228 = vunpack.c.l.b16 %v8942
    %v9229 = vunpack.c.l.b16 %v8943
    %v9230 = vunpack.c.h.b16 %v8943
    %v9231 = vunpack.c.l.b16 %v8944
    %v9232 = vunpack.c.l.b16 %v8945
    %v9233 = vunpack.c.h.b16 %v8945
    %v9234 = vunpack.c.l.b16 %v8946
    %v9235 = vunpack.c.l.b16 %v8947
    %v9236 = vunpack.c.h.b16 %v8947
    %v9237 = vunpack.c.l.b16 %v8948
    %v9238 = vunpack.c.l.b16 %v8949
    %v9239 = vunpack.c.h.b16 %v8949
    %v9240 = vunpack.c.l.b16 %v8950
    %v9241 = vunpack.c.l.b16 %v8951
    %v9242 = vunpack.c.h.b16 %v8951
    %v9243 = vunpack.c.l.b16 %v8952
    %v9244 = vunpack.c.l.b16 %v8953
    %v9245 = vunpack.c.h.b16 %v8953
    %v9246 = vunpack.c.l.b16 %v8954
    %v9247 = vunpack.c.l.b16 %v8955
    %v9248 = vunpack.c.h.b16 %v8955
    %v9249 = vunpack.c.l.b16 %v8956
    %v9250 = vunpack.c.l.b16 %v8957
    %v9251 = vunpack.c.h.b16 %v8957
    %v9252 = vunpack.c.l.b16 %v8958
    %v9253 = vunpack.c.l.b16 %v8959
    %v9254 = vunpack.c.h.b16 %v8959
    %v9255 = vunpack.c.l.b16 %v8960
    %v9256 = vunpack.c.l.b16 %v8961
    %v9257 = vunpack.c.h.b16 %v8961
    %v9258 = vunpack.c.l.b16 %v8962
    %v9259 = vunpack.c.l.b16 %v8963
    %v9260 = vunpack.c.h.b16 %v8963
    %v9261 = vunpack.c.l.b16 %v8964
    %v9262 = vunpack.c.l.b16 %v8965
    %v9263 = vunpack.c.h.b16 %v8965
    %v9264 = vunpack.c.l.b16 %v8966
    %v9265 = vunpack.c.l.b16 %v8967
    %v9266 = vunpack.c.h.b16 %v8967
    %v9267 = vunpack.c.l.b16 %v8968
    %v9268 = vunpack.c.l.b16 %v8969
    %v9269 = vunpack.c.h.b16 %v8969
    %v9270 = vunpack.c.l.b16 %v8970
    %v9271 = vunpack.c.l.b16 %v8971
    %v9272 = vunpack.c.h.b16 %v8971
    %v9273 = vunpack.c.l.b16 %v8972
    %v9274 = vunpack.c.l.b16 %v8973
    %v9275 = vunpack.c.h.b16 %v8973
    %v9276 = vunpack.c.l.b16 %v8974
    %v9277 = vunpack.c.l.b16 %v8975
    %v9278 = vunpack.c.h.b16 %v8975
    %v9279 = vunpack.c.l.b16 %v8976
    %v9280 = vunpack.c.l.b16 %v8977
    %v9281 = vunpack.c.h.b16 %v8977
    %v9282 = vunpack.c.l.b16 %v8978
    %v9283 = vunpack.c.l.b16 %v8979
    %v9284 = vunpack.c.h.b16 %v8979
    %v9285 = vunpack.c.l.b16 %v8980
    %v9286 = vunpack.c.l.b16 %v8981
    %v9287 = vunpack.c.h.b16 %v8981
    %v9288 = vunpack.c.l.b16 %v8982
    %v9289 = vunpack.c.l.b16 %v8983
    %v9290 = vunpack.c.h.b16 %v8983
    %v9291 = vunpack.c.l.b16 %v8984
    %v9292 = vunpack.c.l.b16 %v8985
    %v9293 = vunpack.c.h.b16 %v8985
    %v9294 = vunpack.c.l.b16 %v8986
    %v9295 = vunpack.c.l.b16 %v8987
    %v9296 = vunpack.c.h.b16 %v8987
    %v9297 = vunpack.c.l.b16 %v8988
    %v9298 = vunpack.c.l.b16 %v8989
    %v9299 = vunpack.c.h.b16 %v8989
    %v9300 = vunpack.c.l.b16 %v8990
    %v9301 = vunpack.c.l.b16 %v8991
    %v9302 = vunpack.c.h.b16 %v8991
    %v9303 = vunpack.c.l.b16 %v8992
    %v9304 = vunpack.c.l.b16 %v8993
    %v9305 = vunpack.c.h.b16 %v8993
    %v9306 = vunpack.c.l.b16 %v8994
    %v9307 = vunpack.c.l.b16 %v8995
    %v9308 = vunpack.c.h.b16 %v8995
    %v9309 = vunpack.c.l.b16 %v8996
    %v9310 = vunpack.c.l.b16 %v8997
    %v9311 = vunpack.c.h.b16 %v8997
    %v9312 = vunpack.c.l.b16 %v8998
    %v9313 = vunpack.c.l.b16 %v8999
    %v9314 = vunpack.c.h.b16 %v8999
    %v9315 = vunpack.c.l.b16 %v9000
    %v9316 = vunpack.c.l.b16 %v9001
    %v9317 = vunpack.c.h.b16 %v9001
    %v9318 = vunpack.c.l.b16 %v9002
    %v9319 = vunpack.c.l.b16 %v9003
    %v9320 = vunpack.c.h.b16 %v9003
    %v9321 = vunpack.c.l.b16 %v9004
    %v9322 = vunpack.c.l.b16 %v9005
    %v9323 = vunpack.c.h.b16 %v9005
    %v9324 = vunpack.c.l.b16 %v9006
    %v9325 = vunpack.c.l.b16 %v9007
    %v9326 = vunpack.c.h.b16 %v9007
    %v9327 = vunpack.c.l.b16 %v9008
    %v9328 = vunpack.c.l.b16 %v9009
    %v9329 = vunpack.c.h.b16 %v9009
    %v9330 = vunpack.c.l.b16 %v9010
    %v9331 = vunpack.c.l.b16 %v9011
    %v9332 = vunpack.c.h.b16 %v9011
    %v9333 = vunpack.c.l.b16 %v9012
    %v9334 = vunpack.c.l.b16 %v9013
    %v9335 = vunpack.c.h.b16 %v9013
    %v9336 = vunpack.c.l.b16 %v9014
    %v9337 = vunpack.c.l.b16 %v9015
    %v9338 = vunpack.c.h.b16 %v9015
    %v9339 = vunpack.c.l.b16 %v9016
    %v9340 = vunpack.c.l.b16 %v9017
    %v9341 = vunpack.c.h.b16 %v9017
    %v9342 = vunpack.c.l.b16 %v9018
    %v9343 = vunpack.c.l.b16 %v9019
    %v9344 = vunpack.c.h.b16 %v9019
    %v9345 = vunpack.c.l.b16 %v9020
    %v9346 = vunpack.c.l.b16 %v9021
    %v9347 = vunpack.c.h.b16 %v9021
    %v9348 = vunpack.c.l.b16 %v9022
    %v9349 = vunpack.c.l.b16 %v9023
    %v9350 = vunpack.c.h.b16 %v9023
    %v9351 = vunpack.c.l.b16 %v9024
    %v9352 = vunpack.c.l.b16 %v9025
    %v9353 = vunpack.c.h.b16 %v9025
    %v9354 = vunpack.c.l.b16 %v9026
    %v9355 = vunpack.c.l.b16 %v9027
    %v9356 = vunpack.c.h.b16 %v9027
    %v9357 = vunpack.c.l.b16 %v9028
    %v9358 = vunpack.c.l.b16 %v9029
    %v9359 = vunpack.c.h.b16 %v9029
    %v9360 = vunpack.c.l.b16 %v9030
    %v9361 = vunpack.c.l.b16 %v9031
    %v9362 = vunpack.c.h.b16 %v9031
    %v9363 = vunpack.c.l.b16 %v9032
    %v9364 = vunpack.c.l.b16 %v9033
    %v9365 = vunpack.c.h.b16 %v9033
    %v9366 = vunpack.c.l.b16 %v9034
    %v9367 = vunpack.c.l.b16 %v9035
    %v9368 = vunpack.c.h.b16 %v9035
    %v9369 = vunpack.c.l.b16 %v9036
    %v9370 = vunpack.c.l.b16 %v9037
    %v9371 = vunpack.c.h.b16 %v9037
    %v9372 = vunpack.c.l.b16 %v9038
    %v9373 = vunpack.c.l.b16 %v9039
    %v9374 = vunpack.c.h.b16 %v9039
    %v9375 = vunpack.c.l.b16 %v9040
    %v9376 = vunpack.c.l.b16 %v9041
    %v9377 = vunpack.c.h.b16 %v9041
    %v9378 = vunpack.c.l.b16 %v9042
    %v9379 = vunpack.c.l.b16 %v9043
    %v9380 = vunpack.c.h.b16 %v9043
    %v9381 = vunpack.c.l.b16 %v9044
    %v9382 = vpack.c.b16 %v9193, %v9190
    %v9383 = vpack.c.b16 %v9194, %v9191
    %v9384 = vpack.c.b16 %v9195, %v9192
    %v9385 = vpack.c.b16 %v9199, %v9196
    %v9386 = vpack.c.b16 %v9200, %v9197
    %v9387 = vpack.c.b16 %v9201, %v9198
    %v9388 = vpack.c.b16 %v9205, %v9202
    %v9389 = vpack.c.b16 %v9206, %v9203
    %v9390 = vpack.c.b16 %v9207, %v9204
    %v9391 = vpack.c.b16 %v9211, %v9208
    %v9392 = vpack.c.b16 %v9212, %v9209
    %v9393 = vpack.c.b16 %v9213, %v9210
    %v9394 = vpack.c.b16 %v9217, %v9214
    %v9395 = vpack.c.b16 %v9218, %v9215
    %v9396 = vpack.c.b16 %v9219, %v9216
    %v9397 = vpack.c.b16 %v9223, %v9220
    %v9398 = vpack.c.b16 %v9224, %v9221
    %v9399 = vpack.c.b16 %v9225, %v9222
    %v9400 = vpack.c.b16 %v9229, %v9226
    %v9401 = vpack.c.b16 %v9230, %v9227
    %v9402 = vpack.c.b16 %v9231, %v9228
    %v9403 = vpack.c.b16 %v9235, %v9232
    %v9404 = vpack.c.b16 %v9236, %v9233
    %v9405 = vpack.c.b16 %v9237, %v9234
    %v9406 = vpack.c.b16 %v9241, %v9238
    %v9407 = vpack.c.b16 %v9242, %v9239
    %v9408 = vpack.c.b16 %v9243, %v9240
    %v9409 = vpack.c.b16 %v9247, %v9244
    %v9410 = vpack.c.b16 %v9248, %v9245
    %v9411 = vpack.c.b16 %v9249, %v9246
    %v9412 = vpack.c.b16 %v9253, %v9250
    %v9413 = vpack.c.b16 %v9254, %v9251
    %v9414 = vpack.c.b16 %v9255, %v9252
    %v9415 = vpack.c.b16 %v9259, %v9256
    %v9416 = vpack.c.b16 %v9260, %v9257
    %v9417 = vpack.c.b16 %v9261, %v9258
    %v9418 = vpack.c.b16 %v9265, %v9262
    %v9419 = vpack.c.b16 %v9266, %v9263
    %v9420 = vpack.c.b16 %v9267, %v9264
    %v9421 = vpack.c.b16 %v9271, %v9268
    %v9422 = vpack.c.b16 %v9272, %v9269
    %v9423 = vpack.c.b16 %v9273, %v9270
    %v9424 = vpack.c.b16 %v9277, %v9274
    %v9425 = vpack.c.b16 %v9278, %v9275
    %v9426 = vpack.c.b16 %v9279, %v9276
    %v9427 = vpack.c.b16 %v9283, %v9280
    %v9428 = vpack.c.b16 %v9284, %v9281
    %v9429 = vpack.c.b16 %v9285, %v9282
    %v9430 = vpack.c.b16 %v9289, %v9286
    %v9431 = vpack.c.b16 %v9290, %v9287
    %v9432 = vpack.c.b16 %v9291, %v9288
    %v9433 = vpack.c.b16 %v9295, %v9292
    %v9434 = vpack.c.b16 %v9296, %v9293
    %v9435 = vpack.c.b16 %v9297, %v9294
    %v9436 = vpack.c.b16 %v9301, %v9298
    %v9437 = vpack.c.b16 %v9302, %v9299
    %v9438 = vpack.c.b16 %v9303, %v9300
    %v9439 = vpack.c.b16 %v9307, %v9304
    %v9440 = vpack.c.b16 %v9308, %v9305
    %v9441 = vpack.c.b16 %v9309, %v9306
    %v9442 = vpack.c.b16 %v9313, %v9310
    %v9443 = vpack.c.b16 %v9314, %v9311
    %v9444 = vpack.c.b16 %v9315, %v9312
    %v9445 = vpack.c.b16 %v9319, %v9316
    %v9446 = vpack.c.b16 %v9320, %v9317
    %v9447 = vpack.c.b16 %v9321, %v9318
    %v9448 = vpack.c.b16 %v9325, %v9322
    %v9449 = vpack.c.b16 %v9326, %v9323
    %v9450 = vpack.c.b16 %v9327, %v9324
    %v9451 = vpack.c.b16 %v9331, %v9328
    %v9452 = vpack.c.b16 %v9332, %v9329
    %v9453 = vpack.c.b16 %v9333, %v9330
    %v9454 = vpack.c.b16 %v9337, %v9334
    %v9455 = vpack.c.b16 %v9338, %v9335
    %v9456 = vpack.c.b16 %v9339, %v9336
    %v9457 = vpack.c.b16 %v9343, %v9340
    %v9458 = vpack.c.b16 %v9344, %v9341
    %v9459 = vpack.c.b16 %v9345, %v9342
    %v9460 = vpack.c.b16 %v9349, %v9346
    %v9461 = vpack.c.b16 %v9350, %v9347
    %v9462 = vpack.c.b16 %v9351, %v9348
    %v9463 = vpack.c.b16 %v9355, %v9352
    %v9464 = vpack.c.b16 %v9356, %v9353
    %v9465 = vpack.c.b16 %v9357, %v9354
    %v9466 = vpack.c.b16 %v9361, %v9358
    %v9467 = vpack.c.b16 %v9362, %v9359
    %v9468 = vpack.c.b16 %v9363, %v9360
    %v9469 = vpack.c.b16 %v9367, %v9364
    %v9470 = vpack.c.b16 %v9368, %v9365
    %v9471 = vpack.c.b16 %v9369, %v9366
    %v9472 = vpack.c.b16 %v9373, %v9370
    %v9473 = vpack.c.b16 %v9374, %v9371
    %v9474 = vpack.c.b16 %v9375, %v9372
    %v9475 = vpack.c.b16 %v9379, %v9376
    %v9476 = vpack.c.b16 %v9380, %v9377
    %v9477 = vpack.c.b16 %v9381, %v9378
    %9574 = vmatprep.subr.bf16.mxu0 %v9404
    %9575 = vmatpush1.bf16.msra.mxu0 %v9403
    %9576 = vmatprep.subr.bf16.mxu0 %v9401
    %9577 = vmatpush1.bf16.msra.mxu0 %v9400
    %9578 = vmatprep.subr.bf16.mxu0 %v9398
    %9579 = vmatpush1.bf16.msra.mxu0 %v9397
    %9580 = vmatprep.subr.bf16.mxu0 %v9395
    %9581 = vmatpush1.bf16.msra.mxu0 %v9394
    %9582 = vmatprep.subr.bf16.mxu0 %v9392
    %9583 = vmatpush1.bf16.msra.mxu0 %v9391
    %9584 = vmatprep.subr.bf16.mxu0 %v9389
    %9585 = vmatpush1.bf16.msra.mxu0 %v9388
    %9586 = vmatprep.subr.bf16.mxu0 %v9386
    %9587 = vmatpush1.bf16.msra.mxu0 %v9385
    %9588 = vmatprep.subr.bf16.mxu0 %v9383
    %9589 = vmatpush1.bf16.msra.mxu0 %v9382
    %9590 = vmatprep.subr.bf16.mxu0 %v9428
    %9591 = vmatpush2.bf16.msra.mxu0 %v9427
    %9592 = vmatprep.subr.bf16.mxu0 %v9425
    %9593 = vmatpush2.bf16.msra.mxu0 %v9424
    %9594 = vmatprep.subr.bf16.mxu0 %v9422
    %9595 = vmatpush2.bf16.msra.mxu0 %v9421
    %9596 = vmatprep.subr.bf16.mxu0 %v9419
    %9597 = vmatpush2.bf16.msra.mxu0 %v9418
    %9598 = vmatprep.subr.bf16.mxu0 %v9416
    %9599 = vmatpush2.bf16.msra.mxu0 %v9415
    %9600 = vmatprep.subr.bf16.mxu0 %v9413
    %9601 = vmatpush2.bf16.msra.mxu0 %v9412
    %9602 = vmatprep.subr.bf16.mxu0 %v9410
    %9603 = vmatpush2.bf16.msra.mxu0 %v9409
    %9604 = vmatprep.subr.bf16.mxu0 %v9407
    %9605 = vmatpush2.bf16.msra.mxu0 %v9406
    %9606 = vmatprep.mubr.bf16.mxu0 %v8914
    %9607 = vmatmul.mubr.bf16.gmra.mxu0 %v8913
    %v9608 = vpop.f32.mrf.mxu0
    %v9609 = vadd.f32 %v9050, %v9608
    %v9610 = vpop.f32.mrf.mxu0
    %v9611 = vadd.f32 %v9054, %v9610
    %v9612 = vpop.f32.mrf.mxu0
    %v9613 = vpop.f32.mrf.mxu0
    %9614 = vdwg.mxu0
    %9615 = vmatprep.subr.bf16.mxu0 %v9452
    %9616 = vmatpush1.bf16.msra.mxu0 %v9451
    %9617 = vmatprep.subr.bf16.mxu0 %v9449
    %9618 = vmatpush1.bf16.msra.mxu0 %v9448
    %9619 = vmatprep.subr.bf16.mxu0 %v9446
    %9620 = vmatpush1.bf16.msra.mxu0 %v9445
    %9621 = vmatprep.subr.bf16.mxu0 %v9443
    %9622 = vmatpush1.bf16.msra.mxu0 %v9442
    %9623 = vmatprep.subr.bf16.mxu0 %v9440
    %9624 = vmatpush1.bf16.msra.mxu0 %v9439
    %9625 = vmatprep.subr.bf16.mxu0 %v9437
    %9626 = vmatpush1.bf16.msra.mxu0 %v9436
    %9627 = vmatprep.subr.bf16.mxu0 %v9434
    %9628 = vmatpush1.bf16.msra.mxu0 %v9433
    %9629 = vmatprep.subr.bf16.mxu0 %v9431
    %9630 = vmatpush1.bf16.msra.mxu0 %v9430
    %9631 = vmatprep.subr.bf16.mxu0 %v9476
    %9632 = vmatpush2.bf16.msra.mxu0 %v9475
    %9633 = vmatprep.subr.bf16.mxu0 %v9473
    %9634 = vmatpush2.bf16.msra.mxu0 %v9472
    %9635 = vmatprep.subr.bf16.mxu0 %v9470
    %9636 = vmatpush2.bf16.msra.mxu0 %v9469
    %9637 = vmatprep.subr.bf16.mxu0 %v9467
    %9638 = vmatpush2.bf16.msra.mxu0 %v9466
    %9639 = vmatprep.subr.bf16.mxu0 %v9464
    %9640 = vmatpush2.bf16.msra.mxu0 %v9463
    %9641 = vmatprep.subr.bf16.mxu0 %v9461
    %9642 = vmatpush2.bf16.msra.mxu0 %v9460
    %9643 = vmatprep.subr.bf16.mxu0 %v9458
    %9644 = vmatpush2.bf16.msra.mxu0 %v9457
    %9645 = vmatprep.subr.bf16.mxu0 %v9455
    %9646 = vmatpush2.bf16.msra.mxu0 %v9454
    %9647 = vmatprep.mubr.bf16.mxu0 %v8916
    %9648 = vmatmul.mubr.bf16.gmra.mxu0 %v8915
    %v9649 = vpop.f32.mrf.mxu0
    %v9650 = vadd.f32 %v9609, %v9649
    %v9651 = vpop.f32.mrf.mxu0
    %v9652 = vadd.f32 %v9611, %v9651
    %v9653 = vpop.f32.mrf.mxu0
    %v9654 = vpop.f32.mrf.mxu0
    %9655 = vdwg.mxu0
    %9656 = vmatprep.subr.bf16.mxu0 0
    %9657 = vmatpush1.bf16.msra.mxu0 %v9405
    %9658 = vmatprep.subr.bf16.mxu0 0
    %9659 = vmatpush1.bf16.msra.mxu0 %v9402
    %9660 = vmatprep.subr.bf16.mxu0 0
    %9661 = vmatpush1.bf16.msra.mxu0 %v9399
    %9662 = vmatprep.subr.bf16.mxu0 0
    %9663 = vmatpush1.bf16.msra.mxu0 %v9396
    %9664 = vmatprep.subr.bf16.mxu0 0
    %9665 = vmatpush1.bf16.msra.mxu0 %v9393
    %9666 = vmatprep.subr.bf16.mxu0 0
    %9667 = vmatpush1.bf16.msra.mxu0 %v9390
    %9668 = vmatprep.subr.bf16.mxu0 0
    %9669 = vmatpush1.bf16.msra.mxu0 %v9387
    %9670 = vmatprep.subr.bf16.mxu0 0
    %9671 = vmatpush1.bf16.msra.mxu0 %v9384
    %9672 = vmatprep.subr.bf16.mxu0 0
    %9673 = vmatpush2.bf16.msra.mxu0 %v9429
    %9674 = vmatprep.subr.bf16.mxu0 0
    %9675 = vmatpush2.bf16.msra.mxu0 %v9426
    %9676 = vmatprep.subr.bf16.mxu0 0
    %9677 = vmatpush2.bf16.msra.mxu0 %v9423
    %9678 = vmatprep.subr.bf16.mxu0 0
    %9679 = vmatpush2.bf16.msra.mxu0 %v9420
    %9680 = vmatprep.subr.bf16.mxu0 0
    %9681 = vmatpush2.bf16.msra.mxu0 %v9417
    %9682 = vmatprep.subr.bf16.mxu0 0
    %9683 = vmatpush2.bf16.msra.mxu0 %v9414
    %9684 = vmatprep.subr.bf16.mxu0 0
    %9685 = vmatpush2.bf16.msra.mxu0 %v9411
    %9686 = vmatprep.subr.bf16.mxu0 0
    %9687 = vmatpush2.bf16.msra.mxu0 %v9408
    %9688 = vmatprep.mubr.bf16.mxu0 %v8914
    %9689 = vmatmul.mubr.bf16.gmra.mxu0 %v8913
    %v9690 = vpop.f32.mrf.mxu0
    %v9691 = vadd.f32 %v9058, %v9690
    %v9692 = vpop.f32.mrf.mxu0
    %v9693 = vpop.f32.mrf.mxu0
    %v9694 = vpop.f32.mrf.mxu0
    %9695 = vdwg.mxu0
    %9696 = vmatprep.subr.bf16.mxu0 0
    %9697 = vmatpush1.bf16.msra.mxu0 %v9453
    %9698 = vmatprep.subr.bf16.mxu0 0
    %9699 = vmatpush1.bf16.msra.mxu0 %v9450
    %9700 = vmatprep.subr.bf16.mxu0 0
    %9701 = vmatpush1.bf16.msra.mxu0 %v9447
    %9702 = vmatprep.subr.bf16.mxu0 0
    %9703 = vmatpush1.bf16.msra.mxu0 %v9444
    %9704 = vmatprep.subr.bf16.mxu0 0
    %9705 = vmatpush1.bf16.msra.mxu0 %v9441
    %9706 = vmatprep.subr.bf16.mxu0 0
    %9707 = vmatpush1.bf16.msra.mxu0 %v9438
    %9708 = vmatprep.subr.bf16.mxu0 0
    %9709 = vmatpush1.bf16.msra.mxu0 %v9435
    %9710 = vmatprep.subr.bf16.mxu0 0
    %9711 = vmatpush1.bf16.msra.mxu0 %v9432
    %9712 = vmatprep.subr.bf16.mxu0 0
    %9713 = vmatpush2.bf16.msra.mxu0 %v9477
    %9714 = vmatprep.subr.bf16.mxu0 0
    %9715 = vmatpush2.bf16.msra.mxu0 %v9474
    %9716 = vmatprep.subr.bf16.mxu0 0
    %9717 = vmatpush2.bf16.msra.mxu0 %v9471
    %9718 = vmatprep.subr.bf16.mxu0 0
    %9719 = vmatpush2.bf16.msra.mxu0 %v9468
    %9720 = vmatprep.subr.bf16.mxu0 0
    %9721 = vmatpush2.bf16.msra.mxu0 %v9465
    %9722 = vmatprep.subr.bf16.mxu0 0
    %9723 = vmatpush2.bf16.msra.mxu0 %v9462
    %9724 = vmatprep.subr.bf16.mxu0 0
    %9725 = vmatpush2.bf16.msra.mxu0 %v9459
    %9726 = vmatprep.subr.bf16.mxu0 0
    %9727 = vmatpush2.bf16.msra.mxu0 %v9456
    %9728 = vmatprep.mubr.bf16.mxu0 %v8916
    %9729 = vmatmul.mubr.bf16.gmra.mxu0 %v8915
    %v9730 = vpop.f32.mrf.mxu0
    %v9731 = vadd.f32 %v9691, %v9730
    %v9732 = vpop.f32.mrf.mxu0
    %v9733 = vpop.f32.mrf.mxu0
    %v9734 = vpop.f32.mrf.mxu0
    %9735 = vdwg.mxu0
    %v9739 = vcombine.low %v9650, %v9652
    %v9741 = vunpack.c.l.s4 1983009808
    %v9742 = vunpack.c.0.s8 %v9741
    %v9743 = vlaneseq
    %v9744 = vshrl.u32 %v9743, 7
    %v9745 = vsub.s32 %v9742, %v9744
    %v9746 = vrot.slane %v9739, %v9745
    %v9748 = vunpack.c.l.s4 1983009808
    %v9749 = vunpack.c.0.s8 %v9748
    %v9750 = vlaneseq
    %v9751 = vshrl.u32 %v9750, 7
    %v9752 = vsub.s32 %v9749, %v9751
    %v9753 = vrot.slane %v9731, %v9752
    %v9754 = vcombine.low %v9746, %v9753
    %9756 = vst [vmem:[#allocation20] sm:$0x3f] %v9754
    // Predicated region
    $region94: #{enetv2_forward.3} parent=1 // pred_check
      _
    $region95: #{enetv2_forward.3} parent=1 // pred_check_branch
      %9758 = sbr.rel (0) target = $region97
    $region96: #{enetv2_forward.3} parent=1 // pred_region
      %s9760 = ssub.s32 96, 96
      %9761 = vsyncadd [#allocation4], %s9760
      %s9763 = sshll.u32 [#allocation20], 4
      %s9764 = int_to_ptr.vmem [resolvable:$true] %s9763
      %9766 = dma.vmem_to_hbm [thread:$0]  %s9764, 96, %s12, [#allocation4]
    $region97: #{enetv2_forward.3} parent=1 // pred_fallthru
      _
    // Predicated region
    $region98: #{enetv2_forward.3} parent=1 // pred_check
      _
    $region99: #{enetv2_forward.3} parent=1 // pred_check_branch
      %9768 = sbr.rel (0) target = $region101
    $region100: #{enetv2_forward.3} parent=1 // pred_region
      %9769 = dma.done [#allocation4], 96
    $region101: #{enetv2_forward.3} parent=1 // pred_fallthru
      _
    %9770 = vsyncpa [#allocation3], 1
    %9771 = vsyncpa [#allocation6], 1
    %9772 = vsyncpa [#allocation9], 1
    %9773 = vsyncpa [#allocation12], 1
    %9774 = vsyncpa [#allocation15], 1
    %9775 = vsyncpa [#allocation18], 1
    %9776 = vsyncpa [#allocation4], 1

</llo_original>
